<compile_context>
chip_gen: v5e
topology: v5e:2x2
jax: 0.10.0
libtpu: 0.0.40
codegen_flags: <defaults>
</compile_context>

<pallas_src>
import functools

import jax
import jax.numpy as jnp
from jax.experimental import pallas as pl
from jax.experimental.pallas import tpu as pltpu

KSIZE = 3
BN_EPS = 1e-5
LEAKY_SLOPE = 0.01            # nn.LeakyReLU() default
LANE = 128
VMEM_LIMIT = 32 * 1024 * 1024  # explicit scoped-VMEM cap, valid on v5e/v6e/v7x


def _round_up(x, m):
    return (x + m - 1) // m * m


# ---------------------------------------------------------------------------
# Conv3d (+ fused BN-apply / LeakyReLU of the *previous* layer) + BN partials.
# ---------------------------------------------------------------------------
def _conv_stats_kernel(x0_ref, x1_ref, x2_ref, w_ref, scale_ref, shift_ref,
                       y_ref, sum_ref, sq_ref, *, d_total, apply_act):
    """Grid = (N, D); each step produces the full conv output of one (n, d).

    x{k}_ref: (1, 1, H+2, W+2, Cin_p)  bf16  padded input slice at depth d + k
    w_ref:    (3, 3, 3, Cin_p, Cout_p) bf16  full conv weight (VMEM resident)
    scale/shift_ref: (1, Cin_p) f32    previous layer's BN scale/shift
                                       (only read when apply_act=True)
    y_ref:    (1, 1, H*W, Cout_p) bf16 pre-BN conv output for (n, d)
    sum_ref:  (1, 1, 1, Cout_p)   f32  per-(n, d) channel sums
    sq_ref:   (1, 1, 1, Cout_p)   f32  per-(n, d) channel sums of squares
    """
    di = pl.program_id(1)
    hp, wp, cin_p = x0_ref.shape[2], x0_ref.shape[3], x0_ref.shape[4]
    h, w = hp - 2, wp - 2
    hw = h * w
    cout_p = w_ref.shape[-1]

    if apply_act:
        # Conv zero-padding must hold on the *post*-activation tensor, but the
        # stored tensor is pre-BN, so halo voxels are re-zeroed after the fused
        # affine + LeakyReLU.
        r = jax.lax.broadcasted_iota(jnp.int32, (hp, wp, cin_p), 0)
        c = jax.lax.broadcasted_iota(jnp.int32, (hp, wp, cin_p), 1)
        interior = (r >= 1) & (r <= h) & (c >= 1) & (c <= w)
        scale = scale_ref[...]
        shift = shift_ref[...]

    acc = jnp.zeros((hw, cout_p), jnp.float32)
    for kd, x_ref in enumerate((x0_ref, x1_ref, x2_ref)):
        xs = x_ref[0, 0]                                # (H+2, W+2, Cin_p)
        if apply_act:
            z = xs.astype(jnp.float32) * scale + shift
            z = jnp.where(z >= 0, z, LEAKY_SLOPE * z)   # LeakyReLU
            dz = di + kd                                # padded depth index
            valid = interior & (dz >= 1) & (dz <= d_total)
            xs = jnp.where(valid, z, 0.0)
        xs = xs.astype(jnp.bfloat16)
        for kh in range(KSIZE):
            for kw in range(KSIZE):
                patch = xs[kh:kh + h, kw:kw + w, :].reshape(hw, cin_p)
                acc = acc + jnp.dot(patch, w_ref[kd, kh, kw],
                                    preferred_element_type=jnp.float32)

    y_ref[0, 0] = acc.astype(y_ref.dtype)
    sum_ref[0, 0] = jnp.sum(acc, axis=0, keepdims=True)
    sq_ref[0, 0] = jnp.sum(acc * acc, axis=0, keepdims=True)


# ---------------------------------------------------------------------------
# Standalone BN-apply + LeakyReLU (last layer only).
# ---------------------------------------------------------------------------
def _bn_lrelu_kernel(y_ref, scale_ref, shift_ref, o_ref):
    z = y_ref[0, 0].astype(jnp.float32) * scale_ref[...] + shift_ref[...]
    o_ref[0, 0] = jnp.where(z >= 0, z, LEAKY_SLOPE * z)


# ---------------------------------------------------------------------------
# pallas_call wrappers.
# ---------------------------------------------------------------------------
def _conv_layer(x_pad, w5d, scale, shift, apply_act):
    """x_pad: (N, D+2, H+2, W+2, Cin_p) bf16, channels-last, zero halo.
    Returns (y, sum, sumsq): pre-BN conv output (bf16) + per-(n, d) stats."""
    n, dp, hp, wp, cin_p = x_pad.shape
    d, h, w = dp - 2, hp - 2, wp - 2
    hw = h * w
    cout_p = w5d.shape[-1]

    kernel = functools.partial(_conv_stats_kernel, d_total=d, apply_act=apply_act)

    def x_spec(off):
        return pl.BlockSpec((1, 1, hp, wp, cin_p),
                            lambda ni, di, off=off: (ni, di + off, 0, 0, 0))

    return pl.pallas_call(
        kernel,
        grid=(n, d),
        in_specs=[
            x_spec(0), x_spec(1), x_spec(2),
            pl.BlockSpec((KSIZE, KSIZE, KSIZE, cin_p, cout_p),
                         lambda ni, di: (0, 0, 0, 0, 0)),
            pl.BlockSpec((1, cin_p), lambda ni, di: (0, 0)),
            pl.BlockSpec((1, cin_p), lambda ni, di: (0, 0)),
        ],
        out_specs=[
            pl.BlockSpec((1, 1, hw, cout_p), lambda ni, di: (ni, di, 0, 0)),
            pl.BlockSpec((1, 1, 1, cout_p), lambda ni, di: (ni, di, 0, 0)),
            pl.BlockSpec((1, 1, 1, cout_p), lambda ni, di: (ni, di, 0, 0)),
        ],
        out_shape=[
            jax.ShapeDtypeStruct((n, d, hw, cout_p), jnp.bfloat16),
            jax.ShapeDtypeStruct((n, d, 1, cout_p), jnp.float32),
            jax.ShapeDtypeStruct((n, d, 1, cout_p), jnp.float32),
        ],
        compiler_params=pltpu.CompilerParams(
            dimension_semantics=("parallel", "parallel"),
            vmem_limit_bytes=VMEM_LIMIT),
    )(x_pad, x_pad, x_pad, w5d, scale, shift)


def _bn_lrelu(y, scale, shift):
    n, d, hw, cout_p = y.shape
    return pl.pallas_call(
        _bn_lrelu_kernel,
        grid=(n, d),
        in_specs=[
            pl.BlockSpec((1, 1, hw, cout_p), lambda ni, di: (ni, di, 0, 0)),
            pl.BlockSpec((1, cout_p), lambda ni, di: (0, 0)),
            pl.BlockSpec((1, cout_p), lambda ni, di: (0, 0)),
        ],
        out_specs=pl.BlockSpec((1, 1, hw, cout_p), lambda ni, di: (ni, di, 0, 0)),
        out_shape=jax.ShapeDtypeStruct((n, d, hw, cout_p), jnp.float32),
        compiler_params=pltpu.CompilerParams(
            dimension_semantics=("parallel", "parallel"),
            vmem_limit_bytes=VMEM_LIMIT),
    )(y, scale, shift)


# ---------------------------------------------------------------------------
# Parameters (PyTorch layouts) and kernel-side preparation.
# ---------------------------------------------------------------------------
def init_conv_block_params(key, in_channels, out_channels, n_conv):
    """Deterministic parameters mirroring ConvBlock.__init__ shapes."""
    params = []
    cin = in_channels
    for _ in range(max(n_conv, 1)):
        key, wkey = jax.random.split(key)
        fan_in = cin * KSIZE ** 3
        wt = jax.random.normal(wkey, (out_channels, cin, KSIZE, KSIZE, KSIZE),
                               dtype=jnp.float32) * (1.0 / jnp.sqrt(fan_in))
        gamma = jnp.ones((out_channels,), jnp.float32)   # BatchNorm3d default init
        beta = jnp.zeros((out_channels,), jnp.float32)
        params.append((wt, gamma, beta))
        cin = out_channels
    return tuple(params)


def _prepare_layer(wt, gamma, beta, cin_p, cout_p):
    cout, cin = wt.shape[0], wt.shape[1]
    w5d = jnp.transpose(wt, (2, 3, 4, 1, 0))             # (kd, kh, kw, Cin, Cout)
    w5d = jnp.pad(w5d, ((0, 0),) * 3 + ((0, cin_p - cin), (0, cout_p - cout)))
    w5d = w5d.astype(jnp.bfloat16)                        # bf16 MXU operands
    gamma_p = jnp.pad(gamma, (0, cout_p - cout))          # padded channels stay 0
    beta_p = jnp.pad(beta, (0, cout_p - cout))
    return w5d, gamma_p, beta_p


@jax.jit
def conv_block_forward(x, params):
    """x: (N, Cin, D, H, W) f32; params: tuple of PyTorch-layout (weight, gamma, beta)."""
    n, cin, d, h, w = x.shape
    cout = params[-1][0].shape[0]
    hw = h * w

    # Single layout change at block entry: NCDHW -> NDHWC, lane-dense channels.
    act = jnp.transpose(x, (0, 2, 3, 4, 1))
    act = jnp.pad(act, ((0, 0),) * 4 + ((0, _round_up(cin, LANE) - cin),))
    x_pad = jnp.pad(act, ((0, 0), (1, 1), (1, 1), (1, 1), (0, 0))).astype(jnp.bfloat16)

    scale = jnp.zeros((1, x_pad.shape[-1]), jnp.float32)   # unused for layer 0
    shift = jnp.zeros((1, x_pad.shape[-1]), jnp.float32)
    y = None
    cout_p = None
    for li, (wt, gamma, beta) in enumerate(params):
        cin_p = x_pad.shape[-1]
        cout_p = _round_up(wt.shape[0], LANE)
        w5d, gamma_p, beta_p = _prepare_layer(wt, gamma, beta, cin_p, cout_p)

        # Conv of layer li, fused with BN + LeakyReLU of layer li-1 (if any).
        y, s, ss = _conv_layer(x_pad, w5d, scale, shift, apply_act=(li > 0))

        # BatchNorm training-mode stats (biased variance) from the partial sums.
        m_total = n * d * hw
        mean = jnp.sum(s, axis=(0, 1, 2)) / m_total
        var = jnp.maximum(jnp.sum(ss, axis=(0, 1, 2)) / m_total - mean * mean, 0.0)
        inv = gamma_p * jax.lax.rsqrt(var + BN_EPS)
        scale = inv.reshape(1, cout_p)
        shift = (beta_p - mean * inv).reshape(1, cout_p)

        if li + 1 < len(params):
            y5 = y.reshape(n, d, h, w, cout_p)             # metadata-only reshape
            x_pad = jnp.pad(y5, ((0, 0), (1, 1), (1, 1), (1, 1), (0, 0)))

    # Last layer's BN + LeakyReLU.
    out = _bn_lrelu(y, scale, shift).reshape(n, d, h, w, cout_p)

    # Single layout change at block exit; drop channel padding.
    return jnp.transpose(out[..., :cout], (0, 4, 1, 2, 3))


# ---------------------------------------------------------------------------
# Pure-JAX reference (PyTorch-equivalent forward) for a correctness check.
# ---------------------------------------------------------------------------
def _reference_forward(x, params):
    act = x
    for (wt, gamma, beta) in params:
        y = jax.lax.conv_general_dilated(
            act, wt, window_strides=(1, 1, 1),
            padding=((1, 1), (1, 1), (1, 1)),
            dimension_numbers=("NCDHW", "OIDHW", "NCDHW"))
        mean = jnp.mean(y, axis=(0, 2, 3, 4), keepdims=True)
        var = jnp.mean(jnp.square(y - mean), axis=(0, 2, 3, 4), keepdims=True)
        yh = (y - mean) * jax.lax.rsqrt(var + BN_EPS)
        yh = yh * gamma.reshape(1, -1, 1, 1, 1) + beta.reshape(1, -1, 1, 1, 1)
        act = jnp.where(yh >= 0, yh, LEAKY_SLOPE * yh)
    return act


if __name__ == "__main__":
    key = jax.random.PRNGKey(0)
    key, xkey = jax.random.split(key)

    # ConvBlock(in_channels=4, out_channels=8, n_conv=2) on a small 3-D volume.
    N, Cin, Cout, D, H, W = 2, 4, 8, 8, 8, 8
    n_conv = 2

    x = jax.random.normal(xkey, (N, Cin, D, H, W), dtype=jnp.float32)
    params = init_conv_block_params(key, Cin, Cout, n_conv)

    y = conv_block_forward(x, params)
    y = jax.block_until_ready(y)
    assert y.shape == (N, Cout, D, H, W), y.shape

    y_ref = _reference_forward(x, params)
    max_err = float(jnp.max(jnp.abs(y - y_ref)))
    assert max_err < 1e-1, f"max abs err {max_err}"

    print("KERNEL_OK")
</pallas_src>

<mosaic_0001>
module attributes {stable_mosaic.version = 11 : i64} {
  func.func @_conv_stats_kernel(%arg0: i32, %arg1: i32, %arg2: memref<1x1x10x10x128xbf16, #tpu.memory_space<vmem>>, %arg3: memref<1x1x10x10x128xbf16, #tpu.memory_space<vmem>>, %arg4: memref<1x1x10x10x128xbf16, #tpu.memory_space<vmem>>, %arg5: memref<3x3x3x128x128xbf16, #tpu.memory_space<vmem>>, %arg6: memref<1x128xf32, #tpu.memory_space<vmem>>, %arg7: memref<1x128xf32, #tpu.memory_space<vmem>>, %arg8: memref<1x1x64x128xbf16, #tpu.memory_space<vmem>>, %arg9: memref<1x1x1x128xf32, #tpu.memory_space<vmem>>, %arg10: memref<1x1x1x128xf32, #tpu.memory_space<vmem>>) attributes {dimension_semantics = [#tpu.dimension_semantics<parallel>, #tpu.dimension_semantics<parallel>], iteration_bounds = array<i64: 2, 8>, scalar_prefetch = 0 : i64, scratch_operands = 0 : i64, tpu.core_type = #tpu.core_type<tc>, window_params = [{transform_indices = @transform_0, window_bounds = array<i64: 1, 1, 10, 10, 128>}, {transform_indices = @transform_1, window_bounds = array<i64: 1, 1, 10, 10, 128>}, {transform_indices = @transform_2, window_bounds = array<i64: 1, 1, 10, 10, 128>}, {pipeline_mode = #tpu.pipeline_mode<synchronous>, transform_indices = @transform_3, window_bounds = array<i64: 3, 3, 3, 128, 128>}, {pipeline_mode = #tpu.pipeline_mode<synchronous>, transform_indices = @transform_4, window_bounds = array<i64: 1, 128>}, {pipeline_mode = #tpu.pipeline_mode<synchronous>, transform_indices = @transform_5, window_bounds = array<i64: 1, 128>}, {transform_indices = @transform_6, window_bounds = array<i64: 1, 1, 64, 128>}, {transform_indices = @transform_7, window_bounds = array<i64: 1, 1, 1, 128>}, {transform_indices = @transform_8, window_bounds = array<i64: 1, 1, 1, 128>}]} {
    %cst = arith.constant 0.000000e+00 : f32
    %0 = vector.broadcast %cst : f32 to vector<64x128xf32>
    %c0 = arith.constant 0 : index
    %c0_0 = arith.constant 0 : index
    %c0_1 = arith.constant 0 : index
    %c0_2 = arith.constant 0 : index
    %c0_3 = arith.constant 0 : index
    %1 = vector.load %arg2[%c0, %c0_0, %c0_1, %c0_2, %c0_3] : memref<1x1x10x10x128xbf16, #tpu.memory_space<vmem>>, vector<1x1x10x10x128xbf16>
    %2 = vector.shape_cast %1 : vector<1x1x10x10x128xbf16> to vector<10x10x128xbf16>
    %3 = vector.extract_strided_slice %2 {offsets = [0, 0, 0], sizes = [8, 8, 128], strides = [1, 1, 1]} : vector<10x10x128xbf16> to vector<8x8x128xbf16>
    %4 = vector.shape_cast %3 : vector<8x8x128xbf16> to vector<64x128xbf16>
    %c0_4 = arith.constant 0 : index
    %c0_5 = arith.constant 0 : index
    %c0_6 = arith.constant 0 : index
    %c0_7 = arith.constant 0 : index
    %c0_8 = arith.constant 0 : index
    %5 = vector.load %arg5[%c0_4, %c0_5, %c0_6, %c0_7, %c0_8] : memref<3x3x3x128x128xbf16, #tpu.memory_space<vmem>>, vector<1x1x1x128x128xbf16>
    %6 = vector.shape_cast %5 : vector<1x1x1x128x128xbf16> to vector<128x128xbf16>
    %cst_9 = arith.constant dense<0.000000e+00> : vector<64x128xf32>
    %7 = tpu.matmul %4, %6, %cst_9 {dimension_numbers = #tpu.dot_dimension_numbers<[1], [0], [0], [1], [0, 0, 1, 1], [], []>} : vector<64x128xbf16>, vector<128x128xbf16>, vector<64x128xf32> -> vector<64x128xf32>
    %8 = arith.addf %0, %7 : vector<64x128xf32>
    %9 = vector.extract_strided_slice %2 {offsets = [0, 1, 0], sizes = [8, 8, 128], strides = [1, 1, 1]} : vector<10x10x128xbf16> to vector<8x8x128xbf16>
    %10 = vector.shape_cast %9 : vector<8x8x128xbf16> to vector<64x128xbf16>
    %c0_10 = arith.constant 0 : index
    %c0_11 = arith.constant 0 : index
    %c1 = arith.constant 1 : index
    %c0_12 = arith.constant 0 : index
    %c0_13 = arith.constant 0 : index
    %11 = vector.load %arg5[%c0_10, %c0_11, %c1, %c0_12, %c0_13] : memref<3x3x3x128x128xbf16, #tpu.memory_space<vmem>>, vector<1x1x1x128x128xbf16>
    %12 = vector.shape_cast %11 : vector<1x1x1x128x128xbf16> to vector<128x128xbf16>
    %cst_14 = arith.constant dense<0.000000e+00> : vector<64x128xf32>
    %13 = tpu.matmul %10, %12, %cst_14 {dimension_numbers = #tpu.dot_dimension_numbers<[1], [0], [0], [1], [0, 0, 1, 1], [], []>} : vector<64x128xbf16>, vector<128x128xbf16>, vector<64x128xf32> -> vector<64x128xf32>
    %14 = arith.addf %8, %13 : vector<64x128xf32>
    %15 = vector.extract_strided_slice %2 {offsets = [0, 2, 0], sizes = [8, 8, 128], strides = [1, 1, 1]} : vector<10x10x128xbf16> to vector<8x8x128xbf16>
    %16 = vector.shape_cast %15 : vector<8x8x128xbf16> to vector<64x128xbf16>
    %c0_15 = arith.constant 0 : index
    %c0_16 = arith.constant 0 : index
    %c2 = arith.constant 2 : index
    %c0_17 = arith.constant 0 : index
    %c0_18 = arith.constant 0 : index
    %17 = vector.load %arg5[%c0_15, %c0_16, %c2, %c0_17, %c0_18] : memref<3x3x3x128x128xbf16, #tpu.memory_space<vmem>>, vector<1x1x1x128x128xbf16>
    %18 = vector.shape_cast %17 : vector<1x1x1x128x128xbf16> to vector<128x128xbf16>
    %cst_19 = arith.constant dense<0.000000e+00> : vector<64x128xf32>
    %19 = tpu.matmul %16, %18, %cst_19 {dimension_numbers = #tpu.dot_dimension_numbers<[1], [0], [0], [1], [0, 0, 1, 1], [], []>} : vector<64x128xbf16>, vector<128x128xbf16>, vector<64x128xf32> -> vector<64x128xf32>
    %20 = arith.addf %14, %19 : vector<64x128xf32>
    %21 = vector.extract_strided_slice %2 {offsets = [1, 0, 0], sizes = [8, 8, 128], strides = [1, 1, 1]} : vector<10x10x128xbf16> to vector<8x8x128xbf16>
    %22 = vector.shape_cast %21 : vector<8x8x128xbf16> to vector<64x128xbf16>
    %c0_20 = arith.constant 0 : index
    %c1_21 = arith.constant 1 : index
    %c0_22 = arith.constant 0 : index
    %c0_23 = arith.constant 0 : index
    %c0_24 = arith.constant 0 : index
    %23 = vector.load %arg5[%c0_20, %c1_21, %c0_22, %c0_23, %c0_24] : memref<3x3x3x128x128xbf16, #tpu.memory_space<vmem>>, vector<1x1x1x128x128xbf16>
    %24 = vector.shape_cast %23 : vector<1x1x1x128x128xbf16> to vector<128x128xbf16>
    %cst_25 = arith.constant dense<0.000000e+00> : vector<64x128xf32>
    %25 = tpu.matmul %22, %24, %cst_25 {dimension_numbers = #tpu.dot_dimension_numbers<[1], [0], [0], [1], [0, 0, 1, 1], [], []>} : vector<64x128xbf16>, vector<128x128xbf16>, vector<64x128xf32> -> vector<64x128xf32>
    %26 = arith.addf %20, %25 : vector<64x128xf32>
    %27 = vector.extract_strided_slice %2 {offsets = [1, 1, 0], sizes = [8, 8, 128], strides = [1, 1, 1]} : vector<10x10x128xbf16> to vector<8x8x128xbf16>
    %28 = vector.shape_cast %27 : vector<8x8x128xbf16> to vector<64x128xbf16>
    %c0_26 = arith.constant 0 : index
    %c1_27 = arith.constant 1 : index
    %c1_28 = arith.constant 1 : index
    %c0_29 = arith.constant 0 : index
    %c0_30 = arith.constant 0 : index
    %29 = vector.load %arg5[%c0_26, %c1_27, %c1_28, %c0_29, %c0_30] : memref<3x3x3x128x128xbf16, #tpu.memory_space<vmem>>, vector<1x1x1x128x128xbf16>
    %30 = vector.shape_cast %29 : vector<1x1x1x128x128xbf16> to vector<128x128xbf16>
    %cst_31 = arith.constant dense<0.000000e+00> : vector<64x128xf32>
    %31 = tpu.matmul %28, %30, %cst_31 {dimension_numbers = #tpu.dot_dimension_numbers<[1], [0], [0], [1], [0, 0, 1, 1], [], []>} : vector<64x128xbf16>, vector<128x128xbf16>, vector<64x128xf32> -> vector<64x128xf32>
    %32 = arith.addf %26, %31 : vector<64x128xf32>
    %33 = vector.extract_strided_slice %2 {offsets = [1, 2, 0], sizes = [8, 8, 128], strides = [1, 1, 1]} : vector<10x10x128xbf16> to vector<8x8x128xbf16>
    %34 = vector.shape_cast %33 : vector<8x8x128xbf16> to vector<64x128xbf16>
    %c0_32 = arith.constant 0 : index
    %c1_33 = arith.constant 1 : index
    %c2_34 = arith.constant 2 : index
    %c0_35 = arith.constant 0 : index
    %c0_36 = arith.constant 0 : index
    %35 = vector.load %arg5[%c0_32, %c1_33, %c2_34, %c0_35, %c0_36] : memref<3x3x3x128x128xbf16, #tpu.memory_space<vmem>>, vector<1x1x1x128x128xbf16>
    %36 = vector.shape_cast %35 : vector<1x1x1x128x128xbf16> to vector<128x128xbf16>
    %cst_37 = arith.constant dense<0.000000e+00> : vector<64x128xf32>
    %37 = tpu.matmul %34, %36, %cst_37 {dimension_numbers = #tpu.dot_dimension_numbers<[1], [0], [0], [1], [0, 0, 1, 1], [], []>} : vector<64x128xbf16>, vector<128x128xbf16>, vector<64x128xf32> -> vector<64x128xf32>
    %38 = arith.addf %32, %37 : vector<64x128xf32>
    %39 = vector.extract_strided_slice %2 {offsets = [2, 0, 0], sizes = [8, 8, 128], strides = [1, 1, 1]} : vector<10x10x128xbf16> to vector<8x8x128xbf16>
    %40 = vector.shape_cast %39 : vector<8x8x128xbf16> to vector<64x128xbf16>
    %c0_38 = arith.constant 0 : index
    %c2_39 = arith.constant 2 : index
    %c0_40 = arith.constant 0 : index
    %c0_41 = arith.constant 0 : index
    %c0_42 = arith.constant 0 : index
    %41 = vector.load %arg5[%c0_38, %c2_39, %c0_40, %c0_41, %c0_42] : memref<3x3x3x128x128xbf16, #tpu.memory_space<vmem>>, vector<1x1x1x128x128xbf16>
    %42 = vector.shape_cast %41 : vector<1x1x1x128x128xbf16> to vector<128x128xbf16>
    %cst_43 = arith.constant dense<0.000000e+00> : vector<64x128xf32>
    %43 = tpu.matmul %40, %42, %cst_43 {dimension_numbers = #tpu.dot_dimension_numbers<[1], [0], [0], [1], [0, 0, 1, 1], [], []>} : vector<64x128xbf16>, vector<128x128xbf16>, vector<64x128xf32> -> vector<64x128xf32>
    %44 = arith.addf %38, %43 : vector<64x128xf32>
    %45 = vector.extract_strided_slice %2 {offsets = [2, 1, 0], sizes = [8, 8, 128], strides = [1, 1, 1]} : vector<10x10x128xbf16> to vector<8x8x128xbf16>
    %46 = vector.shape_cast %45 : vector<8x8x128xbf16> to vector<64x128xbf16>
    %c0_44 = arith.constant 0 : index
    %c2_45 = arith.constant 2 : index
    %c1_46 = arith.constant 1 : index
    %c0_47 = arith.constant 0 : index
    %c0_48 = arith.constant 0 : index
    %47 = vector.load %arg5[%c0_44, %c2_45, %c1_46, %c0_47, %c0_48] : memref<3x3x3x128x128xbf16, #tpu.memory_space<vmem>>, vector<1x1x1x128x128xbf16>
    %48 = vector.shape_cast %47 : vector<1x1x1x128x128xbf16> to vector<128x128xbf16>
    %cst_49 = arith.constant dense<0.000000e+00> : vector<64x128xf32>
    %49 = tpu.matmul %46, %48, %cst_49 {dimension_numbers = #tpu.dot_dimension_numbers<[1], [0], [0], [1], [0, 0, 1, 1], [], []>} : vector<64x128xbf16>, vector<128x128xbf16>, vector<64x128xf32> -> vector<64x128xf32>
    %50 = arith.addf %44, %49 : vector<64x128xf32>
    %51 = vector.extract_strided_slice %2 {offsets = [2, 2, 0], sizes = [8, 8, 128], strides = [1, 1, 1]} : vector<10x10x128xbf16> to vector<8x8x128xbf16>
    %52 = vector.shape_cast %51 : vector<8x8x128xbf16> to vector<64x128xbf16>
    %c0_50 = arith.constant 0 : index
    %c2_51 = arith.constant 2 : index
    %c2_52 = arith.constant 2 : index
    %c0_53 = arith.constant 0 : index
    %c0_54 = arith.constant 0 : index
    %53 = vector.load %arg5[%c0_50, %c2_51, %c2_52, %c0_53, %c0_54] : memref<3x3x3x128x128xbf16, #tpu.memory_space<vmem>>, vector<1x1x1x128x128xbf16>
    %54 = vector.shape_cast %53 : vector<1x1x1x128x128xbf16> to vector<128x128xbf16>
    %cst_55 = arith.constant dense<0.000000e+00> : vector<64x128xf32>
    %55 = tpu.matmul %52, %54, %cst_55 {dimension_numbers = #tpu.dot_dimension_numbers<[1], [0], [0], [1], [0, 0, 1, 1], [], []>} : vector<64x128xbf16>, vector<128x128xbf16>, vector<64x128xf32> -> vector<64x128xf32>
    %56 = arith.addf %50, %55 : vector<64x128xf32>
    %c0_56 = arith.constant 0 : index
    %c0_57 = arith.constant 0 : index
    %c0_58 = arith.constant 0 : index
    %c0_59 = arith.constant 0 : index
    %c0_60 = arith.constant 0 : index
    %57 = vector.load %arg3[%c0_56, %c0_57, %c0_58, %c0_59, %c0_60] : memref<1x1x10x10x128xbf16, #tpu.memory_space<vmem>>, vector<1x1x10x10x128xbf16>
    %58 = vector.shape_cast %57 : vector<1x1x10x10x128xbf16> to vector<10x10x128xbf16>
    %59 = vector.extract_strided_slice %58 {offsets = [0, 0, 0], sizes = [8, 8, 128], strides = [1, 1, 1]} : vector<10x10x128xbf16> to vector<8x8x128xbf16>
    %60 = vector.shape_cast %59 : vector<8x8x128xbf16> to vector<64x128xbf16>
    %c1_61 = arith.constant 1 : index
    %c0_62 = arith.constant 0 : index
    %c0_63 = arith.constant 0 : index
    %c0_64 = arith.constant 0 : index
    %c0_65 = arith.constant 0 : index
    %61 = vector.load %arg5[%c1_61, %c0_62, %c0_63, %c0_64, %c0_65] : memref<3x3x3x128x128xbf16, #tpu.memory_space<vmem>>, vector<1x1x1x128x128xbf16>
    %62 = vector.shape_cast %61 : vector<1x1x1x128x128xbf16> to vector<128x128xbf16>
    %cst_66 = arith.constant dense<0.000000e+00> : vector<64x128xf32>
    %63 = tpu.matmul %60, %62, %cst_66 {dimension_numbers = #tpu.dot_dimension_numbers<[1], [0], [0], [1], [0, 0, 1, 1], [], []>} : vector<64x128xbf16>, vector<128x128xbf16>, vector<64x128xf32> -> vector<64x128xf32>
    %64 = arith.addf %56, %63 : vector<64x128xf32>
    %65 = vector.extract_strided_slice %58 {offsets = [0, 1, 0], sizes = [8, 8, 128], strides = [1, 1, 1]} : vector<10x10x128xbf16> to vector<8x8x128xbf16>
    %66 = vector.shape_cast %65 : vector<8x8x128xbf16> to vector<64x128xbf16>
    %c1_67 = arith.constant 1 : index
    %c0_68 = arith.constant 0 : index
    %c1_69 = arith.constant 1 : index
    %c0_70 = arith.constant 0 : index
    %c0_71 = arith.constant 0 : index
    %67 = vector.load %arg5[%c1_67, %c0_68, %c1_69, %c0_70, %c0_71] : memref<3x3x3x128x128xbf16, #tpu.memory_space<vmem>>, vector<1x1x1x128x128xbf16>
    %68 = vector.shape_cast %67 : vector<1x1x1x128x128xbf16> to vector<128x128xbf16>
    %cst_72 = arith.constant dense<0.000000e+00> : vector<64x128xf32>
    %69 = tpu.matmul %66, %68, %cst_72 {dimension_numbers = #tpu.dot_dimension_numbers<[1], [0], [0], [1], [0, 0, 1, 1], [], []>} : vector<64x128xbf16>, vector<128x128xbf16>, vector<64x128xf32> -> vector<64x128xf32>
    %70 = arith.addf %64, %69 : vector<64x128xf32>
    %71 = vector.extract_strided_slice %58 {offsets = [0, 2, 0], sizes = [8, 8, 128], strides = [1, 1, 1]} : vector<10x10x128xbf16> to vector<8x8x128xbf16>
    %72 = vector.shape_cast %71 : vector<8x8x128xbf16> to vector<64x128xbf16>
    %c1_73 = arith.constant 1 : index
    %c0_74 = arith.constant 0 : index
    %c2_75 = arith.constant 2 : index
    %c0_76 = arith.constant 0 : index
    %c0_77 = arith.constant 0 : index
    %73 = vector.load %arg5[%c1_73, %c0_74, %c2_75, %c0_76, %c0_77] : memref<3x3x3x128x128xbf16, #tpu.memory_space<vmem>>, vector<1x1x1x128x128xbf16>
    %74 = vector.shape_cast %73 : vector<1x1x1x128x128xbf16> to vector<128x128xbf16>
    %cst_78 = arith.constant dense<0.000000e+00> : vector<64x128xf32>
    %75 = tpu.matmul %72, %74, %cst_78 {dimension_numbers = #tpu.dot_dimension_numbers<[1], [0], [0], [1], [0, 0, 1, 1], [], []>} : vector<64x128xbf16>, vector<128x128xbf16>, vector<64x128xf32> -> vector<64x128xf32>
    %76 = arith.addf %70, %75 : vector<64x128xf32>
    %77 = vector.extract_strided_slice %58 {offsets = [1, 0, 0], sizes = [8, 8, 128], strides = [1, 1, 1]} : vector<10x10x128xbf16> to vector<8x8x128xbf16>
    %78 = vector.shape_cast %77 : vector<8x8x128xbf16> to vector<64x128xbf16>
    %c1_79 = arith.constant 1 : index
    %c1_80 = arith.constant 1 : index
    %c0_81 = arith.constant 0 : index
    %c0_82 = arith.constant 0 : index
    %c0_83 = arith.constant 0 : index
    %79 = vector.load %arg5[%c1_79, %c1_80, %c0_81, %c0_82, %c0_83] : memref<3x3x3x128x128xbf16, #tpu.memory_space<vmem>>, vector<1x1x1x128x128xbf16>
    %80 = vector.shape_cast %79 : vector<1x1x1x128x128xbf16> to vector<128x128xbf16>
    %cst_84 = arith.constant dense<0.000000e+00> : vector<64x128xf32>
    %81 = tpu.matmul %78, %80, %cst_84 {dimension_numbers = #tpu.dot_dimension_numbers<[1], [0], [0], [1], [0, 0, 1, 1], [], []>} : vector<64x128xbf16>, vector<128x128xbf16>, vector<64x128xf32> -> vector<64x128xf32>
    %82 = arith.addf %76, %81 : vector<64x128xf32>
    %83 = vector.extract_strided_slice %58 {offsets = [1, 1, 0], sizes = [8, 8, 128], strides = [1, 1, 1]} : vector<10x10x128xbf16> to vector<8x8x128xbf16>
    %84 = vector.shape_cast %83 : vector<8x8x128xbf16> to vector<64x128xbf16>
    %c1_85 = arith.constant 1 : index
    %c1_86 = arith.constant 1 : index
    %c1_87 = arith.constant 1 : index
    %c0_88 = arith.constant 0 : index
    %c0_89 = arith.constant 0 : index
    %85 = vector.load %arg5[%c1_85, %c1_86, %c1_87, %c0_88, %c0_89] : memref<3x3x3x128x128xbf16, #tpu.memory_space<vmem>>, vector<1x1x1x128x128xbf16>
    %86 = vector.shape_cast %85 : vector<1x1x1x128x128xbf16> to vector<128x128xbf16>
    %cst_90 = arith.constant dense<0.000000e+00> : vector<64x128xf32>
    %87 = tpu.matmul %84, %86, %cst_90 {dimension_numbers = #tpu.dot_dimension_numbers<[1], [0], [0], [1], [0, 0, 1, 1], [], []>} : vector<64x128xbf16>, vector<128x128xbf16>, vector<64x128xf32> -> vector<64x128xf32>
    %88 = arith.addf %82, %87 : vector<64x128xf32>
    %89 = vector.extract_strided_slice %58 {offsets = [1, 2, 0], sizes = [8, 8, 128], strides = [1, 1, 1]} : vector<10x10x128xbf16> to vector<8x8x128xbf16>
    %90 = vector.shape_cast %89 : vector<8x8x128xbf16> to vector<64x128xbf16>
    %c1_91 = arith.constant 1 : index
    %c1_92 = arith.constant 1 : index
    %c2_93 = arith.constant 2 : index
    %c0_94 = arith.constant 0 : index
    %c0_95 = arith.constant 0 : index
    %91 = vector.load %arg5[%c1_91, %c1_92, %c2_93, %c0_94, %c0_95] : memref<3x3x3x128x128xbf16, #tpu.memory_space<vmem>>, vector<1x1x1x128x128xbf16>
    %92 = vector.shape_cast %91 : vector<1x1x1x128x128xbf16> to vector<128x128xbf16>
    %cst_96 = arith.constant dense<0.000000e+00> : vector<64x128xf32>
    %93 = tpu.matmul %90, %92, %cst_96 {dimension_numbers = #tpu.dot_dimension_numbers<[1], [0], [0], [1], [0, 0, 1, 1], [], []>} : vector<64x128xbf16>, vector<128x128xbf16>, vector<64x128xf32> -> vector<64x128xf32>
    %94 = arith.addf %88, %93 : vector<64x128xf32>
    %95 = vector.extract_strided_slice %58 {offsets = [2, 0, 0], sizes = [8, 8, 128], strides = [1, 1, 1]} : vector<10x10x128xbf16> to vector<8x8x128xbf16>
    %96 = vector.shape_cast %95 : vector<8x8x128xbf16> to vector<64x128xbf16>
    %c1_97 = arith.constant 1 : index
    %c2_98 = arith.constant 2 : index
    %c0_99 = arith.constant 0 : index
    %c0_100 = arith.constant 0 : index
    %c0_101 = arith.constant 0 : index
    %97 = vector.load %arg5[%c1_97, %c2_98, %c0_99, %c0_100, %c0_101] : memref<3x3x3x128x128xbf16, #tpu.memory_space<vmem>>, vector<1x1x1x128x128xbf16>
    %98 = vector.shape_cast %97 : vector<1x1x1x128x128xbf16> to vector<128x128xbf16>
    %cst_102 = arith.constant dense<0.000000e+00> : vector<64x128xf32>
    %99 = tpu.matmul %96, %98, %cst_102 {dimension_numbers = #tpu.dot_dimension_numbers<[1], [0], [0], [1], [0, 0, 1, 1], [], []>} : vector<64x128xbf16>, vector<128x128xbf16>, vector<64x128xf32> -> vector<64x128xf32>
    %100 = arith.addf %94, %99 : vector<64x128xf32>
    %101 = vector.extract_strided_slice %58 {offsets = [2, 1, 0], sizes = [8, 8, 128], strides = [1, 1, 1]} : vector<10x10x128xbf16> to vector<8x8x128xbf16>
    %102 = vector.shape_cast %101 : vector<8x8x128xbf16> to vector<64x128xbf16>
    %c1_103 = arith.constant 1 : index
    %c2_104 = arith.constant 2 : index
    %c1_105 = arith.constant 1 : index
    %c0_106 = arith.constant 0 : index
    %c0_107 = arith.constant 0 : index
    %103 = vector.load %arg5[%c1_103, %c2_104, %c1_105, %c0_106, %c0_107] : memref<3x3x3x128x128xbf16, #tpu.memory_space<vmem>>, vector<1x1x1x128x128xbf16>
    %104 = vector.shape_cast %103 : vector<1x1x1x128x128xbf16> to vector<128x128xbf16>
    %cst_108 = arith.constant dense<0.000000e+00> : vector<64x128xf32>
    %105 = tpu.matmul %102, %104, %cst_108 {dimension_numbers = #tpu.dot_dimension_numbers<[1], [0], [0], [1], [0, 0, 1, 1], [], []>} : vector<64x128xbf16>, vector<128x128xbf16>, vector<64x128xf32> -> vector<64x128xf32>
    %106 = arith.addf %100, %105 : vector<64x128xf32>
    %107 = vector.extract_strided_slice %58 {offsets = [2, 2, 0], sizes = [8, 8, 128], strides = [1, 1, 1]} : vector<10x10x128xbf16> to vector<8x8x128xbf16>
    %108 = vector.shape_cast %107 : vector<8x8x128xbf16> to vector<64x128xbf16>
    %c1_109 = arith.constant 1 : index
    %c2_110 = arith.constant 2 : index
    %c2_111 = arith.constant 2 : index
    %c0_112 = arith.constant 0 : index
    %c0_113 = arith.constant 0 : index
    %109 = vector.load %arg5[%c1_109, %c2_110, %c2_111, %c0_112, %c0_113] : memref<3x3x3x128x128xbf16, #tpu.memory_space<vmem>>, vector<1x1x1x128x128xbf16>
    %110 = vector.shape_cast %109 : vector<1x1x1x128x128xbf16> to vector<128x128xbf16>
    %cst_114 = arith.constant dense<0.000000e+00> : vector<64x128xf32>
    %111 = tpu.matmul %108, %110, %cst_114 {dimension_numbers = #tpu.dot_dimension_numbers<[1], [0], [0], [1], [0, 0, 1, 1], [], []>} : vector<64x128xbf16>, vector<128x128xbf16>, vector<64x128xf32> -> vector<64x128xf32>
    %112 = arith.addf %106, %111 : vector<64x128xf32>
    %c0_115 = arith.constant 0 : index
    %c0_116 = arith.constant 0 : index
    %c0_117 = arith.constant 0 : index
    %c0_118 = arith.constant 0 : index
    %c0_119 = arith.constant 0 : index
    %113 = vector.load %arg4[%c0_115, %c0_116, %c0_117, %c0_118, %c0_119] : memref<1x1x10x10x128xbf16, #tpu.memory_space<vmem>>, vector<1x1x10x10x128xbf16>
    %114 = vector.shape_cast %113 : vector<1x1x10x10x128xbf16> to vector<10x10x128xbf16>
    %115 = vector.extract_strided_slice %114 {offsets = [0, 0, 0], sizes = [8, 8, 128], strides = [1, 1, 1]} : vector<10x10x128xbf16> to vector<8x8x128xbf16>
    %116 = vector.shape_cast %115 : vector<8x8x128xbf16> to vector<64x128xbf16>
    %c2_120 = arith.constant 2 : index
    %c0_121 = arith.constant 0 : index
    %c0_122 = arith.constant 0 : index
    %c0_123 = arith.constant 0 : index
    %c0_124 = arith.constant 0 : index
    %117 = vector.load %arg5[%c2_120, %c0_121, %c0_122, %c0_123, %c0_124] : memref<3x3x3x128x128xbf16, #tpu.memory_space<vmem>>, vector<1x1x1x128x128xbf16>
    %118 = vector.shape_cast %117 : vector<1x1x1x128x128xbf16> to vector<128x128xbf16>
    %cst_125 = arith.constant dense<0.000000e+00> : vector<64x128xf32>
    %119 = tpu.matmul %116, %118, %cst_125 {dimension_numbers = #tpu.dot_dimension_numbers<[1], [0], [0], [1], [0, 0, 1, 1], [], []>} : vector<64x128xbf16>, vector<128x128xbf16>, vector<64x128xf32> -> vector<64x128xf32>
    %120 = arith.addf %112, %119 : vector<64x128xf32>
    %121 = vector.extract_strided_slice %114 {offsets = [0, 1, 0], sizes = [8, 8, 128], strides = [1, 1, 1]} : vector<10x10x128xbf16> to vector<8x8x128xbf16>
    %122 = vector.shape_cast %121 : vector<8x8x128xbf16> to vector<64x128xbf16>
    %c2_126 = arith.constant 2 : index
    %c0_127 = arith.constant 0 : index
    %c1_128 = arith.constant 1 : index
    %c0_129 = arith.constant 0 : index
    %c0_130 = arith.constant 0 : index
    %123 = vector.load %arg5[%c2_126, %c0_127, %c1_128, %c0_129, %c0_130] : memref<3x3x3x128x128xbf16, #tpu.memory_space<vmem>>, vector<1x1x1x128x128xbf16>
    %124 = vector.shape_cast %123 : vector<1x1x1x128x128xbf16> to vector<128x128xbf16>
    %cst_131 = arith.constant dense<0.000000e+00> : vector<64x128xf32>
    %125 = tpu.matmul %122, %124, %cst_131 {dimension_numbers = #tpu.dot_dimension_numbers<[1], [0], [0], [1], [0, 0, 1, 1], [], []>} : vector<64x128xbf16>, vector<128x128xbf16>, vector<64x128xf32> -> vector<64x128xf32>
    %126 = arith.addf %120, %125 : vector<64x128xf32>
    %127 = vector.extract_strided_slice %114 {offsets = [0, 2, 0], sizes = [8, 8, 128], strides = [1, 1, 1]} : vector<10x10x128xbf16> to vector<8x8x128xbf16>
    %128 = vector.shape_cast %127 : vector<8x8x128xbf16> to vector<64x128xbf16>
    %c2_132 = arith.constant 2 : index
    %c0_133 = arith.constant 0 : index
    %c2_134 = arith.constant 2 : index
    %c0_135 = arith.constant 0 : index
    %c0_136 = arith.constant 0 : index
    %129 = vector.load %arg5[%c2_132, %c0_133, %c2_134, %c0_135, %c0_136] : memref<3x3x3x128x128xbf16, #tpu.memory_space<vmem>>, vector<1x1x1x128x128xbf16>
    %130 = vector.shape_cast %129 : vector<1x1x1x128x128xbf16> to vector<128x128xbf16>
    %cst_137 = arith.constant dense<0.000000e+00> : vector<64x128xf32>
    %131 = tpu.matmul %128, %130, %cst_137 {dimension_numbers = #tpu.dot_dimension_numbers<[1], [0], [0], [1], [0, 0, 1, 1], [], []>} : vector<64x128xbf16>, vector<128x128xbf16>, vector<64x128xf32> -> vector<64x128xf32>
    %132 = arith.addf %126, %131 : vector<64x128xf32>
    %133 = vector.extract_strided_slice %114 {offsets = [1, 0, 0], sizes = [8, 8, 128], strides = [1, 1, 1]} : vector<10x10x128xbf16> to vector<8x8x128xbf16>
    %134 = vector.shape_cast %133 : vector<8x8x128xbf16> to vector<64x128xbf16>
    %c2_138 = arith.constant 2 : index
    %c1_139 = arith.constant 1 : index
    %c0_140 = arith.constant 0 : index
    %c0_141 = arith.constant 0 : index
    %c0_142 = arith.constant 0 : index
    %135 = vector.load %arg5[%c2_138, %c1_139, %c0_140, %c0_141, %c0_142] : memref<3x3x3x128x128xbf16, #tpu.memory_space<vmem>>, vector<1x1x1x128x128xbf16>
    %136 = vector.shape_cast %135 : vector<1x1x1x128x128xbf16> to vector<128x128xbf16>
    %cst_143 = arith.constant dense<0.000000e+00> : vector<64x128xf32>
    %137 = tpu.matmul %134, %136, %cst_143 {dimension_numbers = #tpu.dot_dimension_numbers<[1], [0], [0], [1], [0, 0, 1, 1], [], []>} : vector<64x128xbf16>, vector<128x128xbf16>, vector<64x128xf32> -> vector<64x128xf32>
    %138 = arith.addf %132, %137 : vector<64x128xf32>
    %139 = vector.extract_strided_slice %114 {offsets = [1, 1, 0], sizes = [8, 8, 128], strides = [1, 1, 1]} : vector<10x10x128xbf16> to vector<8x8x128xbf16>
    %140 = vector.shape_cast %139 : vector<8x8x128xbf16> to vector<64x128xbf16>
    %c2_144 = arith.constant 2 : index
    %c1_145 = arith.constant 1 : index
    %c1_146 = arith.constant 1 : index
    %c0_147 = arith.constant 0 : index
    %c0_148 = arith.constant 0 : index
    %141 = vector.load %arg5[%c2_144, %c1_145, %c1_146, %c0_147, %c0_148] : memref<3x3x3x128x128xbf16, #tpu.memory_space<vmem>>, vector<1x1x1x128x128xbf16>
    %142 = vector.shape_cast %141 : vector<1x1x1x128x128xbf16> to vector<128x128xbf16>
    %cst_149 = arith.constant dense<0.000000e+00> : vector<64x128xf32>
    %143 = tpu.matmul %140, %142, %cst_149 {dimension_numbers = #tpu.dot_dimension_numbers<[1], [0], [0], [1], [0, 0, 1, 1], [], []>} : vector<64x128xbf16>, vector<128x128xbf16>, vector<64x128xf32> -> vector<64x128xf32>
    %144 = arith.addf %138, %143 : vector<64x128xf32>
    %145 = vector.extract_strided_slice %114 {offsets = [1, 2, 0], sizes = [8, 8, 128], strides = [1, 1, 1]} : vector<10x10x128xbf16> to vector<8x8x128xbf16>
    %146 = vector.shape_cast %145 : vector<8x8x128xbf16> to vector<64x128xbf16>
    %c2_150 = arith.constant 2 : index
    %c1_151 = arith.constant 1 : index
    %c2_152 = arith.constant 2 : index
    %c0_153 = arith.constant 0 : index
    %c0_154 = arith.constant 0 : index
    %147 = vector.load %arg5[%c2_150, %c1_151, %c2_152, %c0_153, %c0_154] : memref<3x3x3x128x128xbf16, #tpu.memory_space<vmem>>, vector<1x1x1x128x128xbf16>
    %148 = vector.shape_cast %147 : vector<1x1x1x128x128xbf16> to vector<128x128xbf16>
    %cst_155 = arith.constant dense<0.000000e+00> : vector<64x128xf32>
    %149 = tpu.matmul %146, %148, %cst_155 {dimension_numbers = #tpu.dot_dimension_numbers<[1], [0], [0], [1], [0, 0, 1, 1], [], []>} : vector<64x128xbf16>, vector<128x128xbf16>, vector<64x128xf32> -> vector<64x128xf32>
    %150 = arith.addf %144, %149 : vector<64x128xf32>
    %151 = vector.extract_strided_slice %114 {offsets = [2, 0, 0], sizes = [8, 8, 128], strides = [1, 1, 1]} : vector<10x10x128xbf16> to vector<8x8x128xbf16>
    %152 = vector.shape_cast %151 : vector<8x8x128xbf16> to vector<64x128xbf16>
    %c2_156 = arith.constant 2 : index
    %c2_157 = arith.constant 2 : index
    %c0_158 = arith.constant 0 : index
    %c0_159 = arith.constant 0 : index
    %c0_160 = arith.constant 0 : index
    %153 = vector.load %arg5[%c2_156, %c2_157, %c0_158, %c0_159, %c0_160] : memref<3x3x3x128x128xbf16, #tpu.memory_space<vmem>>, vector<1x1x1x128x128xbf16>
    %154 = vector.shape_cast %153 : vector<1x1x1x128x128xbf16> to vector<128x128xbf16>
    %cst_161 = arith.constant dense<0.000000e+00> : vector<64x128xf32>
    %155 = tpu.matmul %152, %154, %cst_161 {dimension_numbers = #tpu.dot_dimension_numbers<[1], [0], [0], [1], [0, 0, 1, 1], [], []>} : vector<64x128xbf16>, vector<128x128xbf16>, vector<64x128xf32> -> vector<64x128xf32>
    %156 = arith.addf %150, %155 : vector<64x128xf32>
    %157 = vector.extract_strided_slice %114 {offsets = [2, 1, 0], sizes = [8, 8, 128], strides = [1, 1, 1]} : vector<10x10x128xbf16> to vector<8x8x128xbf16>
    %158 = vector.shape_cast %157 : vector<8x8x128xbf16> to vector<64x128xbf16>
    %c2_162 = arith.constant 2 : index
    %c2_163 = arith.constant 2 : index
    %c1_164 = arith.constant 1 : index
    %c0_165 = arith.constant 0 : index
    %c0_166 = arith.constant 0 : index
    %159 = vector.load %arg5[%c2_162, %c2_163, %c1_164, %c0_165, %c0_166] : memref<3x3x3x128x128xbf16, #tpu.memory_space<vmem>>, vector<1x1x1x128x128xbf16>
    %160 = vector.shape_cast %159 : vector<1x1x1x128x128xbf16> to vector<128x128xbf16>
    %cst_167 = arith.constant dense<0.000000e+00> : vector<64x128xf32>
    %161 = tpu.matmul %158, %160, %cst_167 {dimension_numbers = #tpu.dot_dimension_numbers<[1], [0], [0], [1], [0, 0, 1, 1], [], []>} : vector<64x128xbf16>, vector<128x128xbf16>, vector<64x128xf32> -> vector<64x128xf32>
    %162 = arith.addf %156, %161 : vector<64x128xf32>
    %163 = vector.extract_strided_slice %114 {offsets = [2, 2, 0], sizes = [8, 8, 128], strides = [1, 1, 1]} : vector<10x10x128xbf16> to vector<8x8x128xbf16>
    %164 = vector.shape_cast %163 : vector<8x8x128xbf16> to vector<64x128xbf16>
    %c2_168 = arith.constant 2 : index
    %c2_169 = arith.constant 2 : index
    %c2_170 = arith.constant 2 : index
    %c0_171 = arith.constant 0 : index
    %c0_172 = arith.constant 0 : index
    %165 = vector.load %arg5[%c2_168, %c2_169, %c2_170, %c0_171, %c0_172] : memref<3x3x3x128x128xbf16, #tpu.memory_space<vmem>>, vector<1x1x1x128x128xbf16>
    %166 = vector.shape_cast %165 : vector<1x1x1x128x128xbf16> to vector<128x128xbf16>
    %cst_173 = arith.constant dense<0.000000e+00> : vector<64x128xf32>
    %167 = tpu.matmul %164, %166, %cst_173 {dimension_numbers = #tpu.dot_dimension_numbers<[1], [0], [0], [1], [0, 0, 1, 1], [], []>} : vector<64x128xbf16>, vector<128x128xbf16>, vector<64x128xf32> -> vector<64x128xf32>
    %168 = arith.addf %162, %167 : vector<64x128xf32>
    %169 = arith.truncf %168 : vector<64x128xf32> to vector<64x128xbf16>
    %c0_174 = arith.constant 0 : index
    %c0_175 = arith.constant 0 : index
    %c0_176 = arith.constant 0 : index
    %c0_177 = arith.constant 0 : index
    %170 = vector.load %arg8[%c0_174, %c0_175, %c0_176, %c0_177] : memref<1x1x64x128xbf16, #tpu.memory_space<vmem>>, vector<1x1x64x128xbf16>
    %171 = vector.shape_cast %170 : vector<1x1x64x128xbf16> to vector<64x128xbf16>
    %172 = vector.shape_cast %169 : vector<64x128xbf16> to vector<1x1x64x128xbf16>
    tpu.vector_store %arg8[%c0_174, %c0_175, %c0_176, %c0_177], %172 {strides = array<i32>} : memref<1x1x64x128xbf16, #tpu.memory_space<vmem>>, vector<1x1x64x128xbf16>,
    %cst_178 = arith.constant dense<0.000000e+00> : vector<128xf32>
    %173 = vector.multi_reduction <add>, %168, %cst_178 [0] : vector<64x128xf32> to vector<128xf32>
    %174 = vector.shape_cast %173 : vector<128xf32> to vector<1x128xf32>
    %c0_179 = arith.constant 0 : index
    %c0_180 = arith.constant 0 : index
    %c0_181 = arith.constant 0 : index
    %c0_182 = arith.constant 0 : index
    %175 = vector.load %arg9[%c0_179, %c0_180, %c0_181, %c0_182] : memref<1x1x1x128xf32, #tpu.memory_space<vmem>>, vector<1x1x1x128xf32>
    %176 = vector.shape_cast %175 : vector<1x1x1x128xf32> to vector<1x128xf32>
    %177 = vector.shape_cast %174 : vector<1x128xf32> to vector<1x1x1x128xf32>
    tpu.vector_store %arg9[%c0_179, %c0_180, %c0_181, %c0_182], %177 {strides = array<i32>} : memref<1x1x1x128xf32, #tpu.memory_space<vmem>>, vector<1x1x1x128xf32>,
    %178 = arith.mulf %168, %168 : vector<64x128xf32>
    %cst_183 = arith.constant dense<0.000000e+00> : vector<128xf32>
    %179 = vector.multi_reduction <add>, %178, %cst_183 [0] : vector<64x128xf32> to vector<128xf32>
    %180 = vector.shape_cast %179 : vector<128xf32> to vector<1x128xf32>
    %c0_184 = arith.constant 0 : index
    %c0_185 = arith.constant 0 : index
    %c0_186 = arith.constant 0 : index
    %c0_187 = arith.constant 0 : index
    %181 = vector.load %arg10[%c0_184, %c0_185, %c0_186, %c0_187] : memref<1x1x1x128xf32, #tpu.memory_space<vmem>>, vector<1x1x1x128xf32>
    %182 = vector.shape_cast %181 : vector<1x1x1x128xf32> to vector<1x128xf32>
    %183 = vector.shape_cast %180 : vector<1x128xf32> to vector<1x1x1x128xf32>
    tpu.vector_store %arg10[%c0_184, %c0_185, %c0_186, %c0_187], %183 {strides = array<i32>} : memref<1x1x1x128xf32, #tpu.memory_space<vmem>>, vector<1x1x1x128xf32>,
    return
  }
  func.func @transform_0(%arg0: i32, %arg1: i32) -> (i32, i32, i32, i32, i32) {
    %c0_i32 = arith.constant 0 : i32
    %0 = arith.addi %arg1, %c0_i32 : i32
    %c0_i32_0 = arith.constant 0 : i32
    %c0_i32_1 = arith.constant 0 : i32
    %c0_i32_2 = arith.constant 0 : i32
    %c0_i32_3 = arith.constant 0 : i32
    return %arg0, %0, %c0_i32_0, %c0_i32_1, %c0_i32_2 : i32, i32, i32, i32, i32
  }
  func.func @transform_1(%arg0: i32, %arg1: i32) -> (i32, i32, i32, i32, i32) {
    %c1_i32 = arith.constant 1 : i32
    %0 = arith.addi %arg1, %c1_i32 : i32
    %c0_i32 = arith.constant 0 : i32
    %c0_i32_0 = arith.constant 0 : i32
    %c0_i32_1 = arith.constant 0 : i32
    %c0_i32_2 = arith.constant 0 : i32
    return %arg0, %0, %c0_i32, %c0_i32_0, %c0_i32_1 : i32, i32, i32, i32, i32
  }
  func.func @transform_2(%arg0: i32, %arg1: i32) -> (i32, i32, i32, i32, i32) {
    %c2_i32 = arith.constant 2 : i32
    %0 = arith.addi %arg1, %c2_i32 : i32
    %c0_i32 = arith.constant 0 : i32
    %c0_i32_0 = arith.constant 0 : i32
    %c0_i32_1 = arith.constant 0 : i32
    %c0_i32_2 = arith.constant 0 : i32
    return %arg0, %0, %c0_i32, %c0_i32_0, %c0_i32_1 : i32, i32, i32, i32, i32
  }
  func.func @transform_3(%arg0: i32, %arg1: i32) -> (i32, i32, i32, i32, i32) {
    %c0_i32 = arith.constant 0 : i32
    %c0_i32_0 = arith.constant 0 : i32
    %c0_i32_1 = arith.constant 0 : i32
    %c0_i32_2 = arith.constant 0 : i32
    %c0_i32_3 = arith.constant 0 : i32
    %c0_i32_4 = arith.constant 0 : i32
    return %c0_i32, %c0_i32_0, %c0_i32_1, %c0_i32_2, %c0_i32_3 : i32, i32, i32, i32, i32
  }
  func.func @transform_4(%arg0: i32, %arg1: i32) -> (i32, i32) {
    %c0_i32 = arith.constant 0 : i32
    %c0_i32_0 = arith.constant 0 : i32
    %c0_i32_1 = arith.constant 0 : i32
    return %c0_i32, %c0_i32_0 : i32, i32
  }
  func.func @transform_5(%arg0: i32, %arg1: i32) -> (i32, i32) {
    %c0_i32 = arith.constant 0 : i32
    %c0_i32_0 = arith.constant 0 : i32
    %c0_i32_1 = arith.constant 0 : i32
    return %c0_i32, %c0_i32_0 : i32, i32
  }
  func.func @transform_6(%arg0: i32, %arg1: i32) -> (i32, i32, i32, i32) {
    %c0_i32 = arith.constant 0 : i32
    %c0_i32_0 = arith.constant 0 : i32
    %c0_i32_1 = arith.constant 0 : i32
    return %arg0, %arg1, %c0_i32, %c0_i32_0 : i32, i32, i32, i32
  }
  func.func @transform_7(%arg0: i32, %arg1: i32) -> (i32, i32, i32, i32) {
    %c0_i32 = arith.constant 0 : i32
    %c0_i32_0 = arith.constant 0 : i32
    %c0_i32_1 = arith.constant 0 : i32
    return %arg0, %arg1, %c0_i32, %c0_i32_0 : i32, i32, i32, i32
  }
  func.func @transform_8(%arg0: i32, %arg1: i32) -> (i32, i32, i32, i32) {
    %c0_i32 = arith.constant 0 : i32
    %c0_i32_0 = arith.constant 0 : i32
    %c0_i32_1 = arith.constant 0 : i32
    return %arg0, %arg1, %c0_i32, %c0_i32_0 : i32, i32, i32, i32
  }
}

module attributes {stable_mosaic.version = 11 : i64} {
  func.func @_bn_lrelu_kernel(%arg0: i32, %arg1: i32, %arg2: memref<1x1x64x128xbf16, #tpu.memory_space<vmem>>, %arg3: memref<1x128xf32, #tpu.memory_space<vmem>>, %arg4: memref<1x128xf32, #tpu.memory_space<vmem>>, %arg5: memref<1x1x64x128xf32, #tpu.memory_space<vmem>>) attributes {dimension_semantics = [#tpu.dimension_semantics<parallel>, #tpu.dimension_semantics<parallel>], iteration_bounds = array<i64: 2, 8>, scalar_prefetch = 0 : i64, scratch_operands = 0 : i64, tpu.core_type = #tpu.core_type<tc>, window_params = [{transform_indices = @transform_0, window_bounds = array<i64: 1, 1, 64, 128>}, {pipeline_mode = #tpu.pipeline_mode<synchronous>, transform_indices = @transform_1, window_bounds = array<i64: 1, 128>}, {pipeline_mode = #tpu.pipeline_mode<synchronous>, transform_indices = @transform_2, window_bounds = array<i64: 1, 128>}, {transform_indices = @transform_3, window_bounds = array<i64: 1, 1, 64, 128>}]} {
    %c0 = arith.constant 0 : index
    %c0_0 = arith.constant 0 : index
    %c0_1 = arith.constant 0 : index
    %c0_2 = arith.constant 0 : index
    %0 = vector.load %arg2[%c0, %c0_0, %c0_1, %c0_2] : memref<1x1x64x128xbf16, #tpu.memory_space<vmem>>, vector<1x1x64x128xbf16>
    %1 = vector.shape_cast %0 : vector<1x1x64x128xbf16> to vector<64x128xbf16>
    %2 = arith.extf %1 : vector<64x128xbf16> to vector<64x128xf32>
    %c0_3 = arith.constant 0 : index
    %c0_4 = arith.constant 0 : index
    %3 = vector.load %arg3[%c0_3, %c0_4] : memref<1x128xf32, #tpu.memory_space<vmem>>, vector<1x128xf32>
    %4 = vector.broadcast %3 : vector<1x128xf32> to vector<64x128xf32>
    %5 = arith.mulf %2, %4 : vector<64x128xf32>
    %c0_5 = arith.constant 0 : index
    %c0_6 = arith.constant 0 : index
    %6 = vector.load %arg4[%c0_5, %c0_6] : memref<1x128xf32, #tpu.memory_space<vmem>>, vector<1x128xf32>
    %7 = vector.broadcast %6 : vector<1x128xf32> to vector<64x128xf32>
    %8 = arith.addf %5, %7 : vector<64x128xf32>
    %cst = arith.constant 0.000000e+00 : f32
    %9 = vector.broadcast %cst : f32 to vector<64x128xf32>
    %10 = arith.cmpf oge, %8, %9 : vector<64x128xf32>
    %cst_7 = arith.constant 0.00999999977 : f32
    %11 = vector.broadcast %cst_7 : f32 to vector<64x128xf32>
    %12 = arith.mulf %11, %8 : vector<64x128xf32>
    %13 = arith.select %10, %8, %12 : vector<64x128xi1>, vector<64x128xf32>
    %c0_8 = arith.constant 0 : index
    %c0_9 = arith.constant 0 : index
    %c0_10 = arith.constant 0 : index
    %c0_11 = arith.constant 0 : index
    %14 = vector.load %arg5[%c0_8, %c0_9, %c0_10, %c0_11] : memref<1x1x64x128xf32, #tpu.memory_space<vmem>>, vector<1x1x64x128xf32>
    %15 = vector.shape_cast %14 : vector<1x1x64x128xf32> to vector<64x128xf32>
    %16 = vector.shape_cast %13 : vector<64x128xf32> to vector<1x1x64x128xf32>
    tpu.vector_store %arg5[%c0_8, %c0_9, %c0_10, %c0_11], %16 {strides = array<i32>} : memref<1x1x64x128xf32, #tpu.memory_space<vmem>>, vector<1x1x64x128xf32>,
    return
  }
  func.func @transform_0(%arg0: i32, %arg1: i32) -> (i32, i32, i32, i32) {
    %c0_i32 = arith.constant 0 : i32
    %c0_i32_0 = arith.constant 0 : i32
    %c0_i32_1 = arith.constant 0 : i32
    return %arg0, %arg1, %c0_i32, %c0_i32_0 : i32, i32, i32, i32
  }
  func.func @transform_1(%arg0: i32, %arg1: i32) -> (i32, i32) {
    %c0_i32 = arith.constant 0 : i32
    %c0_i32_0 = arith.constant 0 : i32
    %c0_i32_1 = arith.constant 0 : i32
    return %c0_i32, %c0_i32_0 : i32, i32
  }
  func.func @transform_2(%arg0: i32, %arg1: i32) -> (i32, i32) {
    %c0_i32 = arith.constant 0 : i32
    %c0_i32_0 = arith.constant 0 : i32
    %c0_i32_1 = arith.constant 0 : i32
    return %c0_i32, %c0_i32_0 : i32, i32
  }
  func.func @transform_3(%arg0: i32, %arg1: i32) -> (i32, i32, i32, i32) {
    %c0_i32 = arith.constant 0 : i32
    %c0_i32_0 = arith.constant 0 : i32
    %c0_i32_1 = arith.constant 0 : i32
    return %arg0, %arg1, %c0_i32, %c0_i32_0 : i32, i32, i32, i32
  }
}

module attributes {stable_mosaic.version = 11 : i64} {
  func.func @_conv_stats_kernel(%arg0: i32, %arg1: i32, %arg2: memref<1x1x10x10x128xbf16, #tpu.memory_space<vmem>>, %arg3: memref<1x1x10x10x128xbf16, #tpu.memory_space<vmem>>, %arg4: memref<1x1x10x10x128xbf16, #tpu.memory_space<vmem>>, %arg5: memref<3x3x3x128x128xbf16, #tpu.memory_space<vmem>>, %arg6: memref<1x128xf32, #tpu.memory_space<vmem>>, %arg7: memref<1x128xf32, #tpu.memory_space<vmem>>, %arg8: memref<1x1x64x128xbf16, #tpu.memory_space<vmem>>, %arg9: memref<1x1x1x128xf32, #tpu.memory_space<vmem>>, %arg10: memref<1x1x1x128xf32, #tpu.memory_space<vmem>>) attributes {dimension_semantics = [#tpu.dimension_semantics<parallel>, #tpu.dimension_semantics<parallel>], iteration_bounds = array<i64: 2, 8>, scalar_prefetch = 0 : i64, scratch_operands = 0 : i64, tpu.core_type = #tpu.core_type<tc>, window_params = [{transform_indices = @transform_0, window_bounds = array<i64: 1, 1, 10, 10, 128>}, {transform_indices = @transform_1, window_bounds = array<i64: 1, 1, 10, 10, 128>}, {transform_indices = @transform_2, window_bounds = array<i64: 1, 1, 10, 10, 128>}, {pipeline_mode = #tpu.pipeline_mode<synchronous>, transform_indices = @transform_3, window_bounds = array<i64: 3, 3, 3, 128, 128>}, {pipeline_mode = #tpu.pipeline_mode<synchronous>, transform_indices = @transform_4, window_bounds = array<i64: 1, 128>}, {pipeline_mode = #tpu.pipeline_mode<synchronous>, transform_indices = @transform_5, window_bounds = array<i64: 1, 128>}, {transform_indices = @transform_6, window_bounds = array<i64: 1, 1, 64, 128>}, {transform_indices = @transform_7, window_bounds = array<i64: 1, 1, 1, 128>}, {transform_indices = @transform_8, window_bounds = array<i64: 1, 1, 1, 128>}]} {
    %0 = tpu.iota {dimensions = array<i32: 0>} : vector<10x10x128xi32>
    %1 = tpu.iota {dimensions = array<i32: 1>} : vector<10x10x128xi32>
    %c1_i32 = arith.constant 1 : i32
    %2 = vector.broadcast %c1_i32 : i32 to vector<10x10x128xi32>
    %3 = arith.cmpi sge, %0, %2 : vector<10x10x128xi32>
    %c8_i32 = arith.constant 8 : i32
    %4 = vector.broadcast %c8_i32 : i32 to vector<10x10x128xi32>
    %5 = arith.cmpi sle, %0, %4 : vector<10x10x128xi32>
    %6 = arith.andi %3, %5 : vector<10x10x128xi1>
    %c1_i32_0 = arith.constant 1 : i32
    %7 = vector.broadcast %c1_i32_0 : i32 to vector<10x10x128xi32>
    %8 = arith.cmpi sge, %1, %7 : vector<10x10x128xi32>
    %9 = arith.andi %6, %8 : vector<10x10x128xi1>
    %c8_i32_1 = arith.constant 8 : i32
    %10 = vector.broadcast %c8_i32_1 : i32 to vector<10x10x128xi32>
    %11 = arith.cmpi sle, %1, %10 : vector<10x10x128xi32>
    %12 = arith.andi %9, %11 : vector<10x10x128xi1>
    %c0 = arith.constant 0 : index
    %c0_2 = arith.constant 0 : index
    %13 = vector.load %arg6[%c0, %c0_2] : memref<1x128xf32, #tpu.memory_space<vmem>>, vector<1x128xf32>
    %c0_3 = arith.constant 0 : index
    %c0_4 = arith.constant 0 : index
    %14 = vector.load %arg7[%c0_3, %c0_4] : memref<1x128xf32, #tpu.memory_space<vmem>>, vector<1x128xf32>
    %cst = arith.constant 0.000000e+00 : f32
    %15 = vector.broadcast %cst : f32 to vector<64x128xf32>
    %c0_5 = arith.constant 0 : index
    %c0_6 = arith.constant 0 : index
    %c0_7 = arith.constant 0 : index
    %c0_8 = arith.constant 0 : index
    %c0_9 = arith.constant 0 : index
    %16 = vector.load %arg2[%c0_5, %c0_6, %c0_7, %c0_8, %c0_9] : memref<1x1x10x10x128xbf16, #tpu.memory_space<vmem>>, vector<1x1x10x10x128xbf16>
    %17 = vector.shape_cast %16 : vector<1x1x10x10x128xbf16> to vector<10x10x128xbf16>
    %18 = arith.extf %17 : vector<10x10x128xbf16> to vector<10x10x128xf32>
    %19 = vector.shape_cast %13 : vector<1x128xf32> to vector<1x1x128xf32>
    %20 = vector.broadcast %19 : vector<1x1x128xf32> to vector<10x10x128xf32>
    %21 = arith.mulf %18, %20 : vector<10x10x128xf32>
    %22 = vector.shape_cast %14 : vector<1x128xf32> to vector<1x1x128xf32>
    %23 = vector.broadcast %22 : vector<1x1x128xf32> to vector<10x10x128xf32>
    %24 = arith.addf %21, %23 : vector<10x10x128xf32>
    %cst_10 = arith.constant 0.000000e+00 : f32
    %25 = vector.broadcast %cst_10 : f32 to vector<10x10x128xf32>
    %26 = arith.cmpf oge, %24, %25 : vector<10x10x128xf32>
    %cst_11 = arith.constant 0.00999999977 : f32
    %27 = vector.broadcast %cst_11 : f32 to vector<10x10x128xf32>
    %28 = arith.mulf %27, %24 : vector<10x10x128xf32>
    %29 = arith.select %26, %24, %28 : vector<10x10x128xi1>, vector<10x10x128xf32>
    %c0_i32 = arith.constant 0 : i32
    %30 = arith.addi %arg1, %c0_i32 : i32
    %c1_i32_12 = arith.constant 1 : i32
    %31 = arith.cmpi sge, %30, %c1_i32_12 : i32
    %32 = vector.broadcast %31 : i1 to vector<10x10x128xi1>
    %33 = arith.andi %12, %32 : vector<10x10x128xi1>
    %c8_i32_13 = arith.constant 8 : i32
    %34 = arith.cmpi sle, %30, %c8_i32_13 : i32
    %35 = vector.broadcast %34 : i1 to vector<10x10x128xi1>
    %36 = arith.andi %33, %35 : vector<10x10x128xi1>
    %cst_14 = arith.constant 0.000000e+00 : f32
    %37 = vector.broadcast %cst_14 : f32 to vector<10x10x128xf32>
    %38 = arith.select %36, %29, %37 : vector<10x10x128xi1>, vector<10x10x128xf32>
    %39 = arith.truncf %38 : vector<10x10x128xf32> to vector<10x10x128xbf16>
    %40 = vector.extract_strided_slice %39 {offsets = [0, 0, 0], sizes = [8, 8, 128], strides = [1, 1, 1]} : vector<10x10x128xbf16> to vector<8x8x128xbf16>
    %41 = vector.shape_cast %40 : vector<8x8x128xbf16> to vector<64x128xbf16>
    %c0_15 = arith.constant 0 : index
    %c0_16 = arith.constant 0 : index
    %c0_17 = arith.constant 0 : index
    %c0_18 = arith.constant 0 : index
    %c0_19 = arith.constant 0 : index
    %42 = vector.load %arg5[%c0_15, %c0_16, %c0_17, %c0_18, %c0_19] : memref<3x3x3x128x128xbf16, #tpu.memory_space<vmem>>, vector<1x1x1x128x128xbf16>
    %43 = vector.shape_cast %42 : vector<1x1x1x128x128xbf16> to vector<128x128xbf16>
    %cst_20 = arith.constant dense<0.000000e+00> : vector<64x128xf32>
    %44 = tpu.matmul %41, %43, %cst_20 {dimension_numbers = #tpu.dot_dimension_numbers<[1], [0], [0], [1], [0, 0, 1, 1], [], []>} : vector<64x128xbf16>, vector<128x128xbf16>, vector<64x128xf32> -> vector<64x128xf32>
    %45 = arith.addf %15, %44 : vector<64x128xf32>
    %46 = vector.extract_strided_slice %39 {offsets = [0, 1, 0], sizes = [8, 8, 128], strides = [1, 1, 1]} : vector<10x10x128xbf16> to vector<8x8x128xbf16>
    %47 = vector.shape_cast %46 : vector<8x8x128xbf16> to vector<64x128xbf16>
    %c0_21 = arith.constant 0 : index
    %c0_22 = arith.constant 0 : index
    %c1 = arith.constant 1 : index
    %c0_23 = arith.constant 0 : index
    %c0_24 = arith.constant 0 : index
    %48 = vector.load %arg5[%c0_21, %c0_22, %c1, %c0_23, %c0_24] : memref<3x3x3x128x128xbf16, #tpu.memory_space<vmem>>, vector<1x1x1x128x128xbf16>
    %49 = vector.shape_cast %48 : vector<1x1x1x128x128xbf16> to vector<128x128xbf16>
    %cst_25 = arith.constant dense<0.000000e+00> : vector<64x128xf32>
    %50 = tpu.matmul %47, %49, %cst_25 {dimension_numbers = #tpu.dot_dimension_numbers<[1], [0], [0], [1], [0, 0, 1, 1], [], []>} : vector<64x128xbf16>, vector<128x128xbf16>, vector<64x128xf32> -> vector<64x128xf32>
    %51 = arith.addf %45, %50 : vector<64x128xf32>
    %52 = vector.extract_strided_slice %39 {offsets = [0, 2, 0], sizes = [8, 8, 128], strides = [1, 1, 1]} : vector<10x10x128xbf16> to vector<8x8x128xbf16>
    %53 = vector.shape_cast %52 : vector<8x8x128xbf16> to vector<64x128xbf16>
    %c0_26 = arith.constant 0 : index
    %c0_27 = arith.constant 0 : index
    %c2 = arith.constant 2 : index
    %c0_28 = arith.constant 0 : index
    %c0_29 = arith.constant 0 : index
    %54 = vector.load %arg5[%c0_26, %c0_27, %c2, %c0_28, %c0_29] : memref<3x3x3x128x128xbf16, #tpu.memory_space<vmem>>, vector<1x1x1x128x128xbf16>
    %55 = vector.shape_cast %54 : vector<1x1x1x128x128xbf16> to vector<128x128xbf16>
    %cst_30 = arith.constant dense<0.000000e+00> : vector<64x128xf32>
    %56 = tpu.matmul %53, %55, %cst_30 {dimension_numbers = #tpu.dot_dimension_numbers<[1], [0], [0], [1], [0, 0, 1, 1], [], []>} : vector<64x128xbf16>, vector<128x128xbf16>, vector<64x128xf32> -> vector<64x128xf32>
    %57 = arith.addf %51, %56 : vector<64x128xf32>
    %58 = vector.extract_strided_slice %39 {offsets = [1, 0, 0], sizes = [8, 8, 128], strides = [1, 1, 1]} : vector<10x10x128xbf16> to vector<8x8x128xbf16>
    %59 = vector.shape_cast %58 : vector<8x8x128xbf16> to vector<64x128xbf16>
    %c0_31 = arith.constant 0 : index
    %c1_32 = arith.constant 1 : index
    %c0_33 = arith.constant 0 : index
    %c0_34 = arith.constant 0 : index
    %c0_35 = arith.constant 0 : index
    %60 = vector.load %arg5[%c0_31, %c1_32, %c0_33, %c0_34, %c0_35] : memref<3x3x3x128x128xbf16, #tpu.memory_space<vmem>>, vector<1x1x1x128x128xbf16>
    %61 = vector.shape_cast %60 : vector<1x1x1x128x128xbf16> to vector<128x128xbf16>
    %cst_36 = arith.constant dense<0.000000e+00> : vector<64x128xf32>
    %62 = tpu.matmul %59, %61, %cst_36 {dimension_numbers = #tpu.dot_dimension_numbers<[1], [0], [0], [1], [0, 0, 1, 1], [], []>} : vector<64x128xbf16>, vector<128x128xbf16>, vector<64x128xf32> -> vector<64x128xf32>
    %63 = arith.addf %57, %62 : vector<64x128xf32>
    %64 = vector.extract_strided_slice %39 {offsets = [1, 1, 0], sizes = [8, 8, 128], strides = [1, 1, 1]} : vector<10x10x128xbf16> to vector<8x8x128xbf16>
    %65 = vector.shape_cast %64 : vector<8x8x128xbf16> to vector<64x128xbf16>
    %c0_37 = arith.constant 0 : index
    %c1_38 = arith.constant 1 : index
    %c1_39 = arith.constant 1 : index
    %c0_40 = arith.constant 0 : index
    %c0_41 = arith.constant 0 : index
    %66 = vector.load %arg5[%c0_37, %c1_38, %c1_39, %c0_40, %c0_41] : memref<3x3x3x128x128xbf16, #tpu.memory_space<vmem>>, vector<1x1x1x128x128xbf16>
    %67 = vector.shape_cast %66 : vector<1x1x1x128x128xbf16> to vector<128x128xbf16>
    %cst_42 = arith.constant dense<0.000000e+00> : vector<64x128xf32>
    %68 = tpu.matmul %65, %67, %cst_42 {dimension_numbers = #tpu.dot_dimension_numbers<[1], [0], [0], [1], [0, 0, 1, 1], [], []>} : vector<64x128xbf16>, vector<128x128xbf16>, vector<64x128xf32> -> vector<64x128xf32>
    %69 = arith.addf %63, %68 : vector<64x128xf32>
    %70 = vector.extract_strided_slice %39 {offsets = [1, 2, 0], sizes = [8, 8, 128], strides = [1, 1, 1]} : vector<10x10x128xbf16> to vector<8x8x128xbf16>
    %71 = vector.shape_cast %70 : vector<8x8x128xbf16> to vector<64x128xbf16>
    %c0_43 = arith.constant 0 : index
    %c1_44 = arith.constant 1 : index
    %c2_45 = arith.constant 2 : index
    %c0_46 = arith.constant 0 : index
    %c0_47 = arith.constant 0 : index
    %72 = vector.load %arg5[%c0_43, %c1_44, %c2_45, %c0_46, %c0_47] : memref<3x3x3x128x128xbf16, #tpu.memory_space<vmem>>, vector<1x1x1x128x128xbf16>
    %73 = vector.shape_cast %72 : vector<1x1x1x128x128xbf16> to vector<128x128xbf16>
    %cst_48 = arith.constant dense<0.000000e+00> : vector<64x128xf32>
    %74 = tpu.matmul %71, %73, %cst_48 {dimension_numbers = #tpu.dot_dimension_numbers<[1], [0], [0], [1], [0, 0, 1, 1], [], []>} : vector<64x128xbf16>, vector<128x128xbf16>, vector<64x128xf32> -> vector<64x128xf32>
    %75 = arith.addf %69, %74 : vector<64x128xf32>
    %76 = vector.extract_strided_slice %39 {offsets = [2, 0, 0], sizes = [8, 8, 128], strides = [1, 1, 1]} : vector<10x10x128xbf16> to vector<8x8x128xbf16>
    %77 = vector.shape_cast %76 : vector<8x8x128xbf16> to vector<64x128xbf16>
    %c0_49 = arith.constant 0 : index
    %c2_50 = arith.constant 2 : index
    %c0_51 = arith.constant 0 : index
    %c0_52 = arith.constant 0 : index
    %c0_53 = arith.constant 0 : index
    %78 = vector.load %arg5[%c0_49, %c2_50, %c0_51, %c0_52, %c0_53] : memref<3x3x3x128x128xbf16, #tpu.memory_space<vmem>>, vector<1x1x1x128x128xbf16>
    %79 = vector.shape_cast %78 : vector<1x1x1x128x128xbf16> to vector<128x128xbf16>
    %cst_54 = arith.constant dense<0.000000e+00> : vector<64x128xf32>
    %80 = tpu.matmul %77, %79, %cst_54 {dimension_numbers = #tpu.dot_dimension_numbers<[1], [0], [0], [1], [0, 0, 1, 1], [], []>} : vector<64x128xbf16>, vector<128x128xbf16>, vector<64x128xf32> -> vector<64x128xf32>
    %81 = arith.addf %75, %80 : vector<64x128xf32>
    %82 = vector.extract_strided_slice %39 {offsets = [2, 1, 0], sizes = [8, 8, 128], strides = [1, 1, 1]} : vector<10x10x128xbf16> to vector<8x8x128xbf16>
    %83 = vector.shape_cast %82 : vector<8x8x128xbf16> to vector<64x128xbf16>
    %c0_55 = arith.constant 0 : index
    %c2_56 = arith.constant 2 : index
    %c1_57 = arith.constant 1 : index
    %c0_58 = arith.constant 0 : index
    %c0_59 = arith.constant 0 : index
    %84 = vector.load %arg5[%c0_55, %c2_56, %c1_57, %c0_58, %c0_59] : memref<3x3x3x128x128xbf16, #tpu.memory_space<vmem>>, vector<1x1x1x128x128xbf16>
    %85 = vector.shape_cast %84 : vector<1x1x1x128x128xbf16> to vector<128x128xbf16>
    %cst_60 = arith.constant dense<0.000000e+00> : vector<64x128xf32>
    %86 = tpu.matmul %83, %85, %cst_60 {dimension_numbers = #tpu.dot_dimension_numbers<[1], [0], [0], [1], [0, 0, 1, 1], [], []>} : vector<64x128xbf16>, vector<128x128xbf16>, vector<64x128xf32> -> vector<64x128xf32>
    %87 = arith.addf %81, %86 : vector<64x128xf32>
    %88 = vector.extract_strided_slice %39 {offsets = [2, 2, 0], sizes = [8, 8, 128], strides = [1, 1, 1]} : vector<10x10x128xbf16> to vector<8x8x128xbf16>
    %89 = vector.shape_cast %88 : vector<8x8x128xbf16> to vector<64x128xbf16>
    %c0_61 = arith.constant 0 : index
    %c2_62 = arith.constant 2 : index
    %c2_63 = arith.constant 2 : index
    %c0_64 = arith.constant 0 : index
    %c0_65 = arith.constant 0 : index
    %90 = vector.load %arg5[%c0_61, %c2_62, %c2_63, %c0_64, %c0_65] : memref<3x3x3x128x128xbf16, #tpu.memory_space<vmem>>, vector<1x1x1x128x128xbf16>
    %91 = vector.shape_cast %90 : vector<1x1x1x128x128xbf16> to vector<128x128xbf16>
    %cst_66 = arith.constant dense<0.000000e+00> : vector<64x128xf32>
    %92 = tpu.matmul %89, %91, %cst_66 {dimension_numbers = #tpu.dot_dimension_numbers<[1], [0], [0], [1], [0, 0, 1, 1], [], []>} : vector<64x128xbf16>, vector<128x128xbf16>, vector<64x128xf32> -> vector<64x128xf32>
    %93 = arith.addf %87, %92 : vector<64x128xf32>
    %c0_67 = arith.constant 0 : index
    %c0_68 = arith.constant 0 : index
    %c0_69 = arith.constant 0 : index
    %c0_70 = arith.constant 0 : index
    %c0_71 = arith.constant 0 : index
    %94 = vector.load %arg3[%c0_67, %c0_68, %c0_69, %c0_70, %c0_71] : memref<1x1x10x10x128xbf16, #tpu.memory_space<vmem>>, vector<1x1x10x10x128xbf16>
    %95 = vector.shape_cast %94 : vector<1x1x10x10x128xbf16> to vector<10x10x128xbf16>
    %96 = arith.extf %95 : vector<10x10x128xbf16> to vector<10x10x128xf32>
    %97 = vector.shape_cast %13 : vector<1x128xf32> to vector<1x1x128xf32>
    %98 = vector.broadcast %97 : vector<1x1x128xf32> to vector<10x10x128xf32>
    %99 = arith.mulf %96, %98 : vector<10x10x128xf32>
    %100 = vector.shape_cast %14 : vector<1x128xf32> to vector<1x1x128xf32>
    %101 = vector.broadcast %100 : vector<1x1x128xf32> to vector<10x10x128xf32>
    %102 = arith.addf %99, %101 : vector<10x10x128xf32>
    %cst_72 = arith.constant 0.000000e+00 : f32
    %103 = vector.broadcast %cst_72 : f32 to vector<10x10x128xf32>
    %104 = arith.cmpf oge, %102, %103 : vector<10x10x128xf32>
    %cst_73 = arith.constant 0.00999999977 : f32
    %105 = vector.broadcast %cst_73 : f32 to vector<10x10x128xf32>
    %106 = arith.mulf %105, %102 : vector<10x10x128xf32>
    %107 = arith.select %104, %102, %106 : vector<10x10x128xi1>, vector<10x10x128xf32>
    %c1_i32_74 = arith.constant 1 : i32
    %108 = arith.addi %arg1, %c1_i32_74 : i32
    %c1_i32_75 = arith.constant 1 : i32
    %109 = arith.cmpi sge, %108, %c1_i32_75 : i32
    %110 = vector.broadcast %109 : i1 to vector<10x10x128xi1>
    %111 = arith.andi %12, %110 : vector<10x10x128xi1>
    %c8_i32_76 = arith.constant 8 : i32
    %112 = arith.cmpi sle, %108, %c8_i32_76 : i32
    %113 = vector.broadcast %112 : i1 to vector<10x10x128xi1>
    %114 = arith.andi %111, %113 : vector<10x10x128xi1>
    %cst_77 = arith.constant 0.000000e+00 : f32
    %115 = vector.broadcast %cst_77 : f32 to vector<10x10x128xf32>
    %116 = arith.select %114, %107, %115 : vector<10x10x128xi1>, vector<10x10x128xf32>
    %117 = arith.truncf %116 : vector<10x10x128xf32> to vector<10x10x128xbf16>
    %118 = vector.extract_strided_slice %117 {offsets = [0, 0, 0], sizes = [8, 8, 128], strides = [1, 1, 1]} : vector<10x10x128xbf16> to vector<8x8x128xbf16>
    %119 = vector.shape_cast %118 : vector<8x8x128xbf16> to vector<64x128xbf16>
    %c1_78 = arith.constant 1 : index
    %c0_79 = arith.constant 0 : index
    %c0_80 = arith.constant 0 : index
    %c0_81 = arith.constant 0 : index
    %c0_82 = arith.constant 0 : index
    %120 = vector.load %arg5[%c1_78, %c0_79, %c0_80, %c0_81, %c0_82] : memref<3x3x3x128x128xbf16, #tpu.memory_space<vmem>>, vector<1x1x1x128x128xbf16>
    %121 = vector.shape_cast %120 : vector<1x1x1x128x128xbf16> to vector<128x128xbf16>
    %cst_83 = arith.constant dense<0.000000e+00> : vector<64x128xf32>
    %122 = tpu.matmul %119, %121, %cst_83 {dimension_numbers = #tpu.dot_dimension_numbers<[1], [0], [0], [1], [0, 0, 1, 1], [], []>} : vector<64x128xbf16>, vector<128x128xbf16>, vector<64x128xf32> -> vector<64x128xf32>
    %123 = arith.addf %93, %122 : vector<64x128xf32>
    %124 = vector.extract_strided_slice %117 {offsets = [0, 1, 0], sizes = [8, 8, 128], strides = [1, 1, 1]} : vector<10x10x128xbf16> to vector<8x8x128xbf16>
    %125 = vector.shape_cast %124 : vector<8x8x128xbf16> to vector<64x128xbf16>
    %c1_84 = arith.constant 1 : index
    %c0_85 = arith.constant 0 : index
    %c1_86 = arith.constant 1 : index
    %c0_87 = arith.constant 0 : index
    %c0_88 = arith.constant 0 : index
    %126 = vector.load %arg5[%c1_84, %c0_85, %c1_86, %c0_87, %c0_88] : memref<3x3x3x128x128xbf16, #tpu.memory_space<vmem>>, vector<1x1x1x128x128xbf16>
    %127 = vector.shape_cast %126 : vector<1x1x1x128x128xbf16> to vector<128x128xbf16>
    %cst_89 = arith.constant dense<0.000000e+00> : vector<64x128xf32>
    %128 = tpu.matmul %125, %127, %cst_89 {dimension_numbers = #tpu.dot_dimension_numbers<[1], [0], [0], [1], [0, 0, 1, 1], [], []>} : vector<64x128xbf16>, vector<128x128xbf16>, vector<64x128xf32> -> vector<64x128xf32>
    %129 = arith.addf %123, %128 : vector<64x128xf32>
    %130 = vector.extract_strided_slice %117 {offsets = [0, 2, 0], sizes = [8, 8, 128], strides = [1, 1, 1]} : vector<10x10x128xbf16> to vector<8x8x128xbf16>
    %131 = vector.shape_cast %130 : vector<8x8x128xbf16> to vector<64x128xbf16>
    %c1_90 = arith.constant 1 : index
    %c0_91 = arith.constant 0 : index
    %c2_92 = arith.constant 2 : index
    %c0_93 = arith.constant 0 : index
    %c0_94 = arith.constant 0 : index
    %132 = vector.load %arg5[%c1_90, %c0_91, %c2_92, %c0_93, %c0_94] : memref<3x3x3x128x128xbf16, #tpu.memory_space<vmem>>, vector<1x1x1x128x128xbf16>
    %133 = vector.shape_cast %132 : vector<1x1x1x128x128xbf16> to vector<128x128xbf16>
    %cst_95 = arith.constant dense<0.000000e+00> : vector<64x128xf32>
    %134 = tpu.matmul %131, %133, %cst_95 {dimension_numbers = #tpu.dot_dimension_numbers<[1], [0], [0], [1], [0, 0, 1, 1], [], []>} : vector<64x128xbf16>, vector<128x128xbf16>, vector<64x128xf32> -> vector<64x128xf32>
    %135 = arith.addf %129, %134 : vector<64x128xf32>
    %136 = vector.extract_strided_slice %117 {offsets = [1, 0, 0], sizes = [8, 8, 128], strides = [1, 1, 1]} : vector<10x10x128xbf16> to vector<8x8x128xbf16>
    %137 = vector.shape_cast %136 : vector<8x8x128xbf16> to vector<64x128xbf16>
    %c1_96 = arith.constant 1 : index
    %c1_97 = arith.constant 1 : index
    %c0_98 = arith.constant 0 : index
    %c0_99 = arith.constant 0 : index
    %c0_100 = arith.constant 0 : index
    %138 = vector.load %arg5[%c1_96, %c1_97, %c0_98, %c0_99, %c0_100] : memref<3x3x3x128x128xbf16, #tpu.memory_space<vmem>>, vector<1x1x1x128x128xbf16>
    %139 = vector.shape_cast %138 : vector<1x1x1x128x128xbf16> to vector<128x128xbf16>
    %cst_101 = arith.constant dense<0.000000e+00> : vector<64x128xf32>
    %140 = tpu.matmul %137, %139, %cst_101 {dimension_numbers = #tpu.dot_dimension_numbers<[1], [0], [0], [1], [0, 0, 1, 1], [], []>} : vector<64x128xbf16>, vector<128x128xbf16>, vector<64x128xf32> -> vector<64x128xf32>
    %141 = arith.addf %135, %140 : vector<64x128xf32>
    %142 = vector.extract_strided_slice %117 {offsets = [1, 1, 0], sizes = [8, 8, 128], strides = [1, 1, 1]} : vector<10x10x128xbf16> to vector<8x8x128xbf16>
    %143 = vector.shape_cast %142 : vector<8x8x128xbf16> to vector<64x128xbf16>
    %c1_102 = arith.constant 1 : index
    %c1_103 = arith.constant 1 : index
    %c1_104 = arith.constant 1 : index
    %c0_105 = arith.constant 0 : index
    %c0_106 = arith.constant 0 : index
    %144 = vector.load %arg5[%c1_102, %c1_103, %c1_104, %c0_105, %c0_106] : memref<3x3x3x128x128xbf16, #tpu.memory_space<vmem>>, vector<1x1x1x128x128xbf16>
    %145 = vector.shape_cast %144 : vector<1x1x1x128x128xbf16> to vector<128x128xbf16>
    %cst_107 = arith.constant dense<0.000000e+00> : vector<64x128xf32>
    %146 = tpu.matmul %143, %145, %cst_107 {dimension_numbers = #tpu.dot_dimension_numbers<[1], [0], [0], [1], [0, 0, 1, 1], [], []>} : vector<64x128xbf16>, vector<128x128xbf16>, vector<64x128xf32> -> vector<64x128xf32>
    %147 = arith.addf %141, %146 : vector<64x128xf32>
    %148 = vector.extract_strided_slice %117 {offsets = [1, 2, 0], sizes = [8, 8, 128], strides = [1, 1, 1]} : vector<10x10x128xbf16> to vector<8x8x128xbf16>
    %149 = vector.shape_cast %148 : vector<8x8x128xbf16> to vector<64x128xbf16>
    %c1_108 = arith.constant 1 : index
    %c1_109 = arith.constant 1 : index
    %c2_110 = arith.constant 2 : index
    %c0_111 = arith.constant 0 : index
    %c0_112 = arith.constant 0 : index
    %150 = vector.load %arg5[%c1_108, %c1_109, %c2_110, %c0_111, %c0_112] : memref<3x3x3x128x128xbf16, #tpu.memory_space<vmem>>, vector<1x1x1x128x128xbf16>
    %151 = vector.shape_cast %150 : vector<1x1x1x128x128xbf16> to vector<128x128xbf16>
    %cst_113 = arith.constant dense<0.000000e+00> : vector<64x128xf32>
    %152 = tpu.matmul %149, %151, %cst_113 {dimension_numbers = #tpu.dot_dimension_numbers<[1], [0], [0], [1], [0, 0, 1, 1], [], []>} : vector<64x128xbf16>, vector<128x128xbf16>, vector<64x128xf32> -> vector<64x128xf32>
    %153 = arith.addf %147, %152 : vector<64x128xf32>
    %154 = vector.extract_strided_slice %117 {offsets = [2, 0, 0], sizes = [8, 8, 128], strides = [1, 1, 1]} : vector<10x10x128xbf16> to vector<8x8x128xbf16>
    %155 = vector.shape_cast %154 : vector<8x8x128xbf16> to vector<64x128xbf16>
    %c1_114 = arith.constant 1 : index
    %c2_115 = arith.constant 2 : index
    %c0_116 = arith.constant 0 : index
    %c0_117 = arith.constant 0 : index
    %c0_118 = arith.constant 0 : index
    %156 = vector.load %arg5[%c1_114, %c2_115, %c0_116, %c0_117, %c0_118] : memref<3x3x3x128x128xbf16, #tpu.memory_space<vmem>>, vector<1x1x1x128x128xbf16>
    %157 = vector.shape_cast %156 : vector<1x1x1x128x128xbf16> to vector<128x128xbf16>
    %cst_119 = arith.constant dense<0.000000e+00> : vector<64x128xf32>
    %158 = tpu.matmul %155, %157, %cst_119 {dimension_numbers = #tpu.dot_dimension_numbers<[1], [0], [0], [1], [0, 0, 1, 1], [], []>} : vector<64x128xbf16>, vector<128x128xbf16>, vector<64x128xf32> -> vector<64x128xf32>
    %159 = arith.addf %153, %158 : vector<64x128xf32>
    %160 = vector.extract_strided_slice %117 {offsets = [2, 1, 0], sizes = [8, 8, 128], strides = [1, 1, 1]} : vector<10x10x128xbf16> to vector<8x8x128xbf16>
    %161 = vector.shape_cast %160 : vector<8x8x128xbf16> to vector<64x128xbf16>
    %c1_120 = arith.constant 1 : index
    %c2_121 = arith.constant 2 : index
    %c1_122 = arith.constant 1 : index
    %c0_123 = arith.constant 0 : index
    %c0_124 = arith.constant 0 : index
    %162 = vector.load %arg5[%c1_120, %c2_121, %c1_122, %c0_123, %c0_124] : memref<3x3x3x128x128xbf16, #tpu.memory_space<vmem>>, vector<1x1x1x128x128xbf16>
    %163 = vector.shape_cast %162 : vector<1x1x1x128x128xbf16> to vector<128x128xbf16>
    %cst_125 = arith.constant dense<0.000000e+00> : vector<64x128xf32>
    %164 = tpu.matmul %161, %163, %cst_125 {dimension_numbers = #tpu.dot_dimension_numbers<[1], [0], [0], [1], [0, 0, 1, 1], [], []>} : vector<64x128xbf16>, vector<128x128xbf16>, vector<64x128xf32> -> vector<64x128xf32>
    %165 = arith.addf %159, %164 : vector<64x128xf32>
    %166 = vector.extract_strided_slice %117 {offsets = [2, 2, 0], sizes = [8, 8, 128], strides = [1, 1, 1]} : vector<10x10x128xbf16> to vector<8x8x128xbf16>
    %167 = vector.shape_cast %166 : vector<8x8x128xbf16> to vector<64x128xbf16>
    %c1_126 = arith.constant 1 : index
    %c2_127 = arith.constant 2 : index
    %c2_128 = arith.constant 2 : index
    %c0_129 = arith.constant 0 : index
    %c0_130 = arith.constant 0 : index
    %168 = vector.load %arg5[%c1_126, %c2_127, %c2_128, %c0_129, %c0_130] : memref<3x3x3x128x128xbf16, #tpu.memory_space<vmem>>, vector<1x1x1x128x128xbf16>
    %169 = vector.shape_cast %168 : vector<1x1x1x128x128xbf16> to vector<128x128xbf16>
    %cst_131 = arith.constant dense<0.000000e+00> : vector<64x128xf32>
    %170 = tpu.matmul %167, %169, %cst_131 {dimension_numbers = #tpu.dot_dimension_numbers<[1], [0], [0], [1], [0, 0, 1, 1], [], []>} : vector<64x128xbf16>, vector<128x128xbf16>, vector<64x128xf32> -> vector<64x128xf32>
    %171 = arith.addf %165, %170 : vector<64x128xf32>
    %c0_132 = arith.constant 0 : index
    %c0_133 = arith.constant 0 : index
    %c0_134 = arith.constant 0 : index
    %c0_135 = arith.constant 0 : index
    %c0_136 = arith.constant 0 : index
    %172 = vector.load %arg4[%c0_132, %c0_133, %c0_134, %c0_135, %c0_136] : memref<1x1x10x10x128xbf16, #tpu.memory_space<vmem>>, vector<1x1x10x10x128xbf16>
    %173 = vector.shape_cast %172 : vector<1x1x10x10x128xbf16> to vector<10x10x128xbf16>
    %174 = arith.extf %173 : vector<10x10x128xbf16> to vector<10x10x128xf32>
    %175 = vector.shape_cast %13 : vector<1x128xf32> to vector<1x1x128xf32>
    %176 = vector.broadcast %175 : vector<1x1x128xf32> to vector<10x10x128xf32>
    %177 = arith.mulf %174, %176 : vector<10x10x128xf32>
    %178 = vector.shape_cast %14 : vector<1x128xf32> to vector<1x1x128xf32>
    %179 = vector.broadcast %178 : vector<1x1x128xf32> to vector<10x10x128xf32>
    %180 = arith.addf %177, %179 : vector<10x10x128xf32>
    %cst_137 = arith.constant 0.000000e+00 : f32
    %181 = vector.broadcast %cst_137 : f32 to vector<10x10x128xf32>
    %182 = arith.cmpf oge, %180, %181 : vector<10x10x128xf32>
    %cst_138 = arith.constant 0.00999999977 : f32
    %183 = vector.broadcast %cst_138 : f32 to vector<10x10x128xf32>
    %184 = arith.mulf %183, %180 : vector<10x10x128xf32>
    %185 = arith.select %182, %180, %184 : vector<10x10x128xi1>, vector<10x10x128xf32>
    %c2_i32 = arith.constant 2 : i32
    %186 = arith.addi %arg1, %c2_i32 : i32
    %c1_i32_139 = arith.constant 1 : i32
    %187 = arith.cmpi sge, %186, %c1_i32_139 : i32
    %188 = vector.broadcast %187 : i1 to vector<10x10x128xi1>
    %189 = arith.andi %12, %188 : vector<10x10x128xi1>
    %c8_i32_140 = arith.constant 8 : i32
    %190 = arith.cmpi sle, %186, %c8_i32_140 : i32
    %191 = vector.broadcast %190 : i1 to vector<10x10x128xi1>
    %192 = arith.andi %189, %191 : vector<10x10x128xi1>
    %cst_141 = arith.constant 0.000000e+00 : f32
    %193 = vector.broadcast %cst_141 : f32 to vector<10x10x128xf32>
    %194 = arith.select %192, %185, %193 : vector<10x10x128xi1>, vector<10x10x128xf32>
    %195 = arith.truncf %194 : vector<10x10x128xf32> to vector<10x10x128xbf16>
    %196 = vector.extract_strided_slice %195 {offsets = [0, 0, 0], sizes = [8, 8, 128], strides = [1, 1, 1]} : vector<10x10x128xbf16> to vector<8x8x128xbf16>
    %197 = vector.shape_cast %196 : vector<8x8x128xbf16> to vector<64x128xbf16>
    %c2_142 = arith.constant 2 : index
    %c0_143 = arith.constant 0 : index
    %c0_144 = arith.constant 0 : index
    %c0_145 = arith.constant 0 : index
    %c0_146 = arith.constant 0 : index
    %198 = vector.load %arg5[%c2_142, %c0_143, %c0_144, %c0_145, %c0_146] : memref<3x3x3x128x128xbf16, #tpu.memory_space<vmem>>, vector<1x1x1x128x128xbf16>
    %199 = vector.shape_cast %198 : vector<1x1x1x128x128xbf16> to vector<128x128xbf16>
    %cst_147 = arith.constant dense<0.000000e+00> : vector<64x128xf32>
    %200 = tpu.matmul %197, %199, %cst_147 {dimension_numbers = #tpu.dot_dimension_numbers<[1], [0], [0], [1], [0, 0, 1, 1], [], []>} : vector<64x128xbf16>, vector<128x128xbf16>, vector<64x128xf32> -> vector<64x128xf32>
    %201 = arith.addf %171, %200 : vector<64x128xf32>
    %202 = vector.extract_strided_slice %195 {offsets = [0, 1, 0], sizes = [8, 8, 128], strides = [1, 1, 1]} : vector<10x10x128xbf16> to vector<8x8x128xbf16>
    %203 = vector.shape_cast %202 : vector<8x8x128xbf16> to vector<64x128xbf16>
    %c2_148 = arith.constant 2 : index
    %c0_149 = arith.constant 0 : index
    %c1_150 = arith.constant 1 : index
    %c0_151 = arith.constant 0 : index
    %c0_152 = arith.constant 0 : index
    %204 = vector.load %arg5[%c2_148, %c0_149, %c1_150, %c0_151, %c0_152] : memref<3x3x3x128x128xbf16, #tpu.memory_space<vmem>>, vector<1x1x1x128x128xbf16>
    %205 = vector.shape_cast %204 : vector<1x1x1x128x128xbf16> to vector<128x128xbf16>
    %cst_153 = arith.constant dense<0.000000e+00> : vector<64x128xf32>
    %206 = tpu.matmul %203, %205, %cst_153 {dimension_numbers = #tpu.dot_dimension_numbers<[1], [0], [0], [1], [0, 0, 1, 1], [], []>} : vector<64x128xbf16>, vector<128x128xbf16>, vector<64x128xf32> -> vector<64x128xf32>
    %207 = arith.addf %201, %206 : vector<64x128xf32>
    %208 = vector.extract_strided_slice %195 {offsets = [0, 2, 0], sizes = [8, 8, 128], strides = [1, 1, 1]} : vector<10x10x128xbf16> to vector<8x8x128xbf16>
    %209 = vector.shape_cast %208 : vector<8x8x128xbf16> to vector<64x128xbf16>
    %c2_154 = arith.constant 2 : index
    %c0_155 = arith.constant 0 : index
    %c2_156 = arith.constant 2 : index
    %c0_157 = arith.constant 0 : index
    %c0_158 = arith.constant 0 : index
    %210 = vector.load %arg5[%c2_154, %c0_155, %c2_156, %c0_157, %c0_158] : memref<3x3x3x128x128xbf16, #tpu.memory_space<vmem>>, vector<1x1x1x128x128xbf16>
    %211 = vector.shape_cast %210 : vector<1x1x1x128x128xbf16> to vector<128x128xbf16>
    %cst_159 = arith.constant dense<0.000000e+00> : vector<64x128xf32>
    %212 = tpu.matmul %209, %211, %cst_159 {dimension_numbers = #tpu.dot_dimension_numbers<[1], [0], [0], [1], [0, 0, 1, 1], [], []>} : vector<64x128xbf16>, vector<128x128xbf16>, vector<64x128xf32> -> vector<64x128xf32>
    %213 = arith.addf %207, %212 : vector<64x128xf32>
    %214 = vector.extract_strided_slice %195 {offsets = [1, 0, 0], sizes = [8, 8, 128], strides = [1, 1, 1]} : vector<10x10x128xbf16> to vector<8x8x128xbf16>
    %215 = vector.shape_cast %214 : vector<8x8x128xbf16> to vector<64x128xbf16>
    %c2_160 = arith.constant 2 : index
    %c1_161 = arith.constant 1 : index
    %c0_162 = arith.constant 0 : index
    %c0_163 = arith.constant 0 : index
    %c0_164 = arith.constant 0 : index
    %216 = vector.load %arg5[%c2_160, %c1_161, %c0_162, %c0_163, %c0_164] : memref<3x3x3x128x128xbf16, #tpu.memory_space<vmem>>, vector<1x1x1x128x128xbf16>
    %217 = vector.shape_cast %216 : vector<1x1x1x128x128xbf16> to vector<128x128xbf16>
    %cst_165 = arith.constant dense<0.000000e+00> : vector<64x128xf32>
    %218 = tpu.matmul %215, %217, %cst_165 {dimension_numbers = #tpu.dot_dimension_numbers<[1], [0], [0], [1], [0, 0, 1, 1], [], []>} : vector<64x128xbf16>, vector<128x128xbf16>, vector<64x128xf32> -> vector<64x128xf32>
    %219 = arith.addf %213, %218 : vector<64x128xf32>
    %220 = vector.extract_strided_slice %195 {offsets = [1, 1, 0], sizes = [8, 8, 128], strides = [1, 1, 1]} : vector<10x10x128xbf16> to vector<8x8x128xbf16>
    %221 = vector.shape_cast %220 : vector<8x8x128xbf16> to vector<64x128xbf16>
    %c2_166 = arith.constant 2 : index
    %c1_167 = arith.constant 1 : index
    %c1_168 = arith.constant 1 : index
    %c0_169 = arith.constant 0 : index
    %c0_170 = arith.constant 0 : index
    %222 = vector.load %arg5[%c2_166, %c1_167, %c1_168, %c0_169, %c0_170] : memref<3x3x3x128x128xbf16, #tpu.memory_space<vmem>>, vector<1x1x1x128x128xbf16>
    %223 = vector.shape_cast %222 : vector<1x1x1x128x128xbf16> to vector<128x128xbf16>
    %cst_171 = arith.constant dense<0.000000e+00> : vector<64x128xf32>
    %224 = tpu.matmul %221, %223, %cst_171 {dimension_numbers = #tpu.dot_dimension_numbers<[1], [0], [0], [1], [0, 0, 1, 1], [], []>} : vector<64x128xbf16>, vector<128x128xbf16>, vector<64x128xf32> -> vector<64x128xf32>
    %225 = arith.addf %219, %224 : vector<64x128xf32>
    %226 = vector.extract_strided_slice %195 {offsets = [1, 2, 0], sizes = [8, 8, 128], strides = [1, 1, 1]} : vector<10x10x128xbf16> to vector<8x8x128xbf16>
    %227 = vector.shape_cast %226 : vector<8x8x128xbf16> to vector<64x128xbf16>
    %c2_172 = arith.constant 2 : index
    %c1_173 = arith.constant 1 : index
    %c2_174 = arith.constant 2 : index
    %c0_175 = arith.constant 0 : index
    %c0_176 = arith.constant 0 : index
    %228 = vector.load %arg5[%c2_172, %c1_173, %c2_174, %c0_175, %c0_176] : memref<3x3x3x128x128xbf16, #tpu.memory_space<vmem>>, vector<1x1x1x128x128xbf16>
    %229 = vector.shape_cast %228 : vector<1x1x1x128x128xbf16> to vector<128x128xbf16>
    %cst_177 = arith.constant dense<0.000000e+00> : vector<64x128xf32>
    %230 = tpu.matmul %227, %229, %cst_177 {dimension_numbers = #tpu.dot_dimension_numbers<[1], [0], [0], [1], [0, 0, 1, 1], [], []>} : vector<64x128xbf16>, vector<128x128xbf16>, vector<64x128xf32> -> vector<64x128xf32>
    %231 = arith.addf %225, %230 : vector<64x128xf32>
    %232 = vector.extract_strided_slice %195 {offsets = [2, 0, 0], sizes = [8, 8, 128], strides = [1, 1, 1]} : vector<10x10x128xbf16> to vector<8x8x128xbf16>
    %233 = vector.shape_cast %232 : vector<8x8x128xbf16> to vector<64x128xbf16>
    %c2_178 = arith.constant 2 : index
    %c2_179 = arith.constant 2 : index
    %c0_180 = arith.constant 0 : index
    %c0_181 = arith.constant 0 : index
    %c0_182 = arith.constant 0 : index
    %234 = vector.load %arg5[%c2_178, %c2_179, %c0_180, %c0_181, %c0_182] : memref<3x3x3x128x128xbf16, #tpu.memory_space<vmem>>, vector<1x1x1x128x128xbf16>
    %235 = vector.shape_cast %234 : vector<1x1x1x128x128xbf16> to vector<128x128xbf16>
    %cst_183 = arith.constant dense<0.000000e+00> : vector<64x128xf32>
    %236 = tpu.matmul %233, %235, %cst_183 {dimension_numbers = #tpu.dot_dimension_numbers<[1], [0], [0], [1], [0, 0, 1, 1], [], []>} : vector<64x128xbf16>, vector<128x128xbf16>, vector<64x128xf32> -> vector<64x128xf32>
    %237 = arith.addf %231, %236 : vector<64x128xf32>
    %238 = vector.extract_strided_slice %195 {offsets = [2, 1, 0], sizes = [8, 8, 128], strides = [1, 1, 1]} : vector<10x10x128xbf16> to vector<8x8x128xbf16>
    %239 = vector.shape_cast %238 : vector<8x8x128xbf16> to vector<64x128xbf16>
    %c2_184 = arith.constant 2 : index
    %c2_185 = arith.constant 2 : index
    %c1_186 = arith.constant 1 : index
    %c0_187 = arith.constant 0 : index
    %c0_188 = arith.constant 0 : index
    %240 = vector.load %arg5[%c2_184, %c2_185, %c1_186, %c0_187, %c0_188] : memref<3x3x3x128x128xbf16, #tpu.memory_space<vmem>>, vector<1x1x1x128x128xbf16>
    %241 = vector.shape_cast %240 : vector<1x1x1x128x128xbf16> to vector<128x128xbf16>
    %cst_189 = arith.constant dense<0.000000e+00> : vector<64x128xf32>
    %242 = tpu.matmul %239, %241, %cst_189 {dimension_numbers = #tpu.dot_dimension_numbers<[1], [0], [0], [1], [0, 0, 1, 1], [], []>} : vector<64x128xbf16>, vector<128x128xbf16>, vector<64x128xf32> -> vector<64x128xf32>
    %243 = arith.addf %237, %242 : vector<64x128xf32>
    %244 = vector.extract_strided_slice %195 {offsets = [2, 2, 0], sizes = [8, 8, 128], strides = [1, 1, 1]} : vector<10x10x128xbf16> to vector<8x8x128xbf16>
    %245 = vector.shape_cast %244 : vector<8x8x128xbf16> to vector<64x128xbf16>
    %c2_190 = arith.constant 2 : index
    %c2_191 = arith.constant 2 : index
    %c2_192 = arith.constant 2 : index
    %c0_193 = arith.constant 0 : index
    %c0_194 = arith.constant 0 : index
    %246 = vector.load %arg5[%c2_190, %c2_191, %c2_192, %c0_193, %c0_194] : memref<3x3x3x128x128xbf16, #tpu.memory_space<vmem>>, vector<1x1x1x128x128xbf16>
    %247 = vector.shape_cast %246 : vector<1x1x1x128x128xbf16> to vector<128x128xbf16>
    %cst_195 = arith.constant dense<0.000000e+00> : vector<64x128xf32>
    %248 = tpu.matmul %245, %247, %cst_195 {dimension_numbers = #tpu.dot_dimension_numbers<[1], [0], [0], [1], [0, 0, 1, 1], [], []>} : vector<64x128xbf16>, vector<128x128xbf16>, vector<64x128xf32> -> vector<64x128xf32>
    %249 = arith.addf %243, %248 : vector<64x128xf32>
    %250 = arith.truncf %249 : vector<64x128xf32> to vector<64x128xbf16>
    %c0_196 = arith.constant 0 : index
    %c0_197 = arith.constant 0 : index
    %c0_198 = arith.constant 0 : index
    %c0_199 = arith.constant 0 : index
    %251 = vector.load %arg8[%c0_196, %c0_197, %c0_198, %c0_199] : memref<1x1x64x128xbf16, #tpu.memory_space<vmem>>, vector<1x1x64x128xbf16>
    %252 = vector.shape_cast %251 : vector<1x1x64x128xbf16> to vector<64x128xbf16>
    %253 = vector.shape_cast %250 : vector<64x128xbf16> to vector<1x1x64x128xbf16>
    tpu.vector_store %arg8[%c0_196, %c0_197, %c0_198, %c0_199], %253 {strides = array<i32>} : memref<1x1x64x128xbf16, #tpu.memory_space<vmem>>, vector<1x1x64x128xbf16>,
    %cst_200 = arith.constant dense<0.000000e+00> : vector<128xf32>
    %254 = vector.multi_reduction <add>, %249, %cst_200 [0] : vector<64x128xf32> to vector<128xf32>
    %255 = vector.shape_cast %254 : vector<128xf32> to vector<1x128xf32>
    %c0_201 = arith.constant 0 : index
    %c0_202 = arith.constant 0 : index
    %c0_203 = arith.constant 0 : index
    %c0_204 = arith.constant 0 : index
    %256 = vector.load %arg9[%c0_201, %c0_202, %c0_203, %c0_204] : memref<1x1x1x128xf32, #tpu.memory_space<vmem>>, vector<1x1x1x128xf32>
    %257 = vector.shape_cast %256 : vector<1x1x1x128xf32> to vector<1x128xf32>
    %258 = vector.shape_cast %255 : vector<1x128xf32> to vector<1x1x1x128xf32>
    tpu.vector_store %arg9[%c0_201, %c0_202, %c0_203, %c0_204], %258 {strides = array<i32>} : memref<1x1x1x128xf32, #tpu.memory_space<vmem>>, vector<1x1x1x128xf32>,
    %259 = arith.mulf %249, %249 : vector<64x128xf32>
    %cst_205 = arith.constant dense<0.000000e+00> : vector<128xf32>
    %260 = vector.multi_reduction <add>, %259, %cst_205 [0] : vector<64x128xf32> to vector<128xf32>
    %261 = vector.shape_cast %260 : vector<128xf32> to vector<1x128xf32>
    %c0_206 = arith.constant 0 : index
    %c0_207 = arith.constant 0 : index
    %c0_208 = arith.constant 0 : index
    %c0_209 = arith.constant 0 : index
    %262 = vector.load %arg10[%c0_206, %c0_207, %c0_208, %c0_209] : memref<1x1x1x128xf32, #tpu.memory_space<vmem>>, vector<1x1x1x128xf32>
    %263 = vector.shape_cast %262 : vector<1x1x1x128xf32> to vector<1x128xf32>
    %264 = vector.shape_cast %261 : vector<1x128xf32> to vector<1x1x1x128xf32>
    tpu.vector_store %arg10[%c0_206, %c0_207, %c0_208, %c0_209], %264 {strides = array<i32>} : memref<1x1x1x128xf32, #tpu.memory_space<vmem>>, vector<1x1x1x128xf32>,
    return
  }
  func.func @transform_0(%arg0: i32, %arg1: i32) -> (i32, i32, i32, i32, i32) {
    %c0_i32 = arith.constant 0 : i32
    %0 = arith.addi %arg1, %c0_i32 : i32
    %c0_i32_0 = arith.constant 0 : i32
    %c0_i32_1 = arith.constant 0 : i32
    %c0_i32_2 = arith.constant 0 : i32
    %c0_i32_3 = arith.constant 0 : i32
    return %arg0, %0, %c0_i32_0, %c0_i32_1, %c0_i32_2 : i32, i32, i32, i32, i32
  }
  func.func @transform_1(%arg0: i32, %arg1: i32) -> (i32, i32, i32, i32, i32) {
    %c1_i32 = arith.constant 1 : i32
    %0 = arith.addi %arg1, %c1_i32 : i32
    %c0_i32 = arith.constant 0 : i32
    %c0_i32_0 = arith.constant 0 : i32
    %c0_i32_1 = arith.constant 0 : i32
    %c0_i32_2 = arith.constant 0 : i32
    return %arg0, %0, %c0_i32, %c0_i32_0, %c0_i32_1 : i32, i32, i32, i32, i32
  }
  func.func @transform_2(%arg0: i32, %arg1: i32) -> (i32, i32, i32, i32, i32) {
    %c2_i32 = arith.constant 2 : i32
    %0 = arith.addi %arg1, %c2_i32 : i32
    %c0_i32 = arith.constant 0 : i32
    %c0_i32_0 = arith.constant 0 : i32
    %c0_i32_1 = arith.constant 0 : i32
    %c0_i32_2 = arith.constant 0 : i32
    return %arg0, %0, %c0_i32, %c0_i32_0, %c0_i32_1 : i32, i32, i32, i32, i32
  }
  func.func @transform_3(%arg0: i32, %arg1: i32) -> (i32, i32, i32, i32, i32) {
    %c0_i32 = arith.constant 0 : i32
    %c0_i32_0 = arith.constant 0 : i32
    %c0_i32_1 = arith.constant 0 : i32
    %c0_i32_2 = arith.constant 0 : i32
    %c0_i32_3 = arith.constant 0 : i32
    %c0_i32_4 = arith.constant 0 : i32
    return %c0_i32, %c0_i32_0, %c0_i32_1, %c0_i32_2, %c0_i32_3 : i32, i32, i32, i32, i32
  }
  func.func @transform_4(%arg0: i32, %arg1: i32) -> (i32, i32) {
    %c0_i32 = arith.constant 0 : i32
    %c0_i32_0 = arith.constant 0 : i32
    %c0_i32_1 = arith.constant 0 : i32
    return %c0_i32, %c0_i32_0 : i32, i32
  }
  func.func @transform_5(%arg0: i32, %arg1: i32) -> (i32, i32) {
    %c0_i32 = arith.constant 0 : i32
    %c0_i32_0 = arith.constant 0 : i32
    %c0_i32_1 = arith.constant 0 : i32
    return %c0_i32, %c0_i32_0 : i32, i32
  }
  func.func @transform_6(%arg0: i32, %arg1: i32) -> (i32, i32, i32, i32) {
    %c0_i32 = arith.constant 0 : i32
    %c0_i32_0 = arith.constant 0 : i32
    %c0_i32_1 = arith.constant 0 : i32
    return %arg0, %arg1, %c0_i32, %c0_i32_0 : i32, i32, i32, i32
  }
  func.func @transform_7(%arg0: i32, %arg1: i32) -> (i32, i32, i32, i32) {
    %c0_i32 = arith.constant 0 : i32
    %c0_i32_0 = arith.constant 0 : i32
    %c0_i32_1 = arith.constant 0 : i32
    return %arg0, %arg1, %c0_i32, %c0_i32_0 : i32, i32, i32, i32
  }
  func.func @transform_8(%arg0: i32, %arg1: i32) -> (i32, i32, i32, i32) {
    %c0_i32 = arith.constant 0 : i32
    %c0_i32_0 = arith.constant 0 : i32
    %c0_i32_1 = arith.constant 0 : i32
    return %arg0, %arg1, %c0_i32, %c0_i32_0 : i32, i32, i32, i32
  }
}

</mosaic_0001>

<llo_original>
// kernel: conv_block_forward.5
$region0: #{conv_block_forward.5}
  #allocation0 [shape = 'u32[]', space=smem, size = 0x4, offset = 0x4, fixed_abs, tag = 'smem constant byte address 0x4 - core index']
  #allocation1 [shape = 'u32[72,128]{1,0:T(1,128)}', space=vmem, size = 0x9000, scoped, tag = 'internal scratch']
  %s0 = inlined_call_operand.vmem [shape: bf16[2,8,64,128], index: 0, kind: input, shape index: {}]
  %s1 = inlined_call_operand.vmem [shape: f32[1,128], index: 1, kind: input, shape index: {}]
  %s2 = inlined_call_operand.vmem [shape: f32[1,128], index: 2, kind: input, shape index: {}]
  %s3 = inlined_call_operand.vmem [shape: f32[2,8,64,128], index: 3, kind: output, shape index: {}]
  %s4 = sld [smem:[#allocation0]]
  $region45: #{conv_block_forward.5} parent=0
    _
  %s6 = ssub.s32 1, %s4
  %s7 = scalar_select 0, %s6, %s4
  loop: start=0, step=1, limit=18
  $region2: #{conv_block_forward.5} parent=0 // loop_pre_header
    _
  $region3: #{conv_block_forward.5} parent=0 // loop_header
    %s9 = sphi 0, %s13
    %p10 = scmp.ge.s32.totalorder %s9, 18
    %s16 = sphi 0, %s28
    %s17 = sphi 0, %s24
    %s18 = sphi 0, %s16
    %s19 = sphi 0, %s17
    %s20 = sphi 0, %s18
    %s21 = sphi 0, %s19
    %s33 = sphi 0, %s35
    %s36 = sphi 0, %s33
    %s37 = sphi 0, %s36
    %s53 = sphi 0, %s37
    %s57 = sphi 0, %s57
    %s59 = sphi 0, %s57
    %s60 = sphi 0, %s59
    %s74 = sphi 0, %s60
    %s78 = sphi 0, %s78
    %s80 = sphi 0, %s78
    %s81 = sphi 0, %s80
    %s95 = sphi 0, %s81
    %s103 = sphi 0, %s105
    %s106 = sphi 0, %s103
    %s107 = sphi 0, %s106
    %s123 = sphi 0, %s107
  $region4: #{conv_block_forward.5} parent=0 // loop_header_branch
    %12 = sbr.rel (%p10) target = $region8
  $region5: #{conv_block_forward.5} parent=0 // loop_body
    %s14 = ssub.s32 %s9, 1
    %s15 = ssub.s32 %s9, 2
    %s22 = sadd.s32 1, %s17
    %p23 = scmp.ge.s32.totalorder %s22, 8
    %s24 = scalar_select %p23, 0, %s22
    %s25 = sadd.s32 1, %s16
    %s26 = scalar_select %p23, %s25, %s16
    %p27 = scmp.ge.s32.totalorder %s26, 2
    %s28 = scalar_select %p27, 0, %s26
    %s29 = ssub.s32 %s16, %s28
    %s30 = ssub.s32 %s17, %s24
    %s31 = sor.u32 %s29, %s30
    %p32 = scmp.eq.s32.totalorder %s31, 0
    %s34 = sadd.s32 %s33, 1
    %s35 = scalar_select %p32, %s33, %s34
    %p38 = pneg %p32
    %p39 = scmp.eq.s32.totalorder %s9, 15
    %p40 = por %p38, %p39
    %p41 = scmp.ne.s32.totalorder %s33, %s36
    %p42 = scmp.eq.s32.totalorder %s9, 0
    %p43 = por %p41, %p42
    %p44 = scmp.ne.s32.totalorder %s33, %s36
    %p45 = scmp.eq.s32.totalorder %s14, 15
    %p46 = por %p44, %p45
    %p47 = scmp.ne.s32.totalorder %s36, %s37
    %p48 = scmp.eq.s32.totalorder %s14, 0
    %p49 = por %p47, %p48
    %p50 = scmp.ne.s32.totalorder %s36, %s37
    %p51 = scmp.eq.s32.totalorder %s15, 15
    %p52 = por %p50, %p51
    %p54 = scmp.ne.s32.totalorder %s37, %s53
    %p55 = scmp.eq.s32.totalorder %s15, 0
    %p56 = por %p54, %p55
    %s58 = sadd.s32 %s57, 1
    %p61 = scmp.eq.s32.totalorder %s9, 15
    %p62 = scmp.ne.s32.totalorder %s57, %s59
    %p63 = scmp.eq.s32.totalorder %s9, 0
    %p64 = por %p62, %p63
    %p65 = scmp.ne.s32.totalorder %s57, %s59
    %p66 = scmp.eq.s32.totalorder %s14, 15
    %p67 = por %p65, %p66
    %p68 = scmp.ne.s32.totalorder %s59, %s60
    %p69 = scmp.eq.s32.totalorder %s14, 0
    %p70 = por %p68, %p69
    %p71 = scmp.ne.s32.totalorder %s59, %s60
    %p72 = scmp.eq.s32.totalorder %s15, 15
    %p73 = por %p71, %p72
    %p75 = scmp.ne.s32.totalorder %s60, %s74
    %p76 = scmp.eq.s32.totalorder %s15, 0
    %p77 = por %p75, %p76
    %s79 = sadd.s32 %s78, 1
    %p82 = scmp.eq.s32.totalorder %s9, 15
    %p83 = scmp.ne.s32.totalorder %s78, %s80
    %p84 = scmp.eq.s32.totalorder %s9, 0
    %p85 = por %p83, %p84
    %p86 = scmp.ne.s32.totalorder %s78, %s80
    %p87 = scmp.eq.s32.totalorder %s14, 15
    %p88 = por %p86, %p87
    %p89 = scmp.ne.s32.totalorder %s80, %s81
    %p90 = scmp.eq.s32.totalorder %s14, 0
    %p91 = por %p89, %p90
    %p92 = scmp.ne.s32.totalorder %s80, %s81
    %p93 = scmp.eq.s32.totalorder %s15, 15
    %p94 = por %p92, %p93
    %p96 = scmp.ne.s32.totalorder %s81, %s95
    %p97 = scmp.eq.s32.totalorder %s15, 0
    %p98 = por %p96, %p97
    %s99 = ssub.s32 %s16, %s28
    %s100 = ssub.s32 %s17, %s24
    %s101 = sor.u32 %s99, %s100
    %p102 = scmp.eq.s32.totalorder %s101, 0
    %s104 = sadd.s32 %s103, 1
    %s105 = scalar_select %p102, %s103, %s104
    %p108 = pneg %p102
    %p109 = scmp.eq.s32.totalorder %s9, 15
    %p110 = por %p108, %p109
    %p111 = scmp.ne.s32.totalorder %s103, %s106
    %p112 = scmp.eq.s32.totalorder %s9, 0
    %p113 = por %p111, %p112
    %p114 = scmp.ne.s32.totalorder %s103, %s106
    %p115 = scmp.eq.s32.totalorder %s14, 15
    %p116 = por %p114, %p115
    %p117 = scmp.ne.s32.totalorder %s106, %s107
    %p118 = scmp.eq.s32.totalorder %s14, 0
    %p119 = por %p117, %p118
    %p120 = scmp.ne.s32.totalorder %s106, %s107
    %p121 = scmp.eq.s32.totalorder %s15, 15
    %p122 = por %p120, %p121
    %p124 = scmp.ne.s32.totalorder %s107, %s123
    %p125 = scmp.eq.s32.totalorder %s15, 0
    %p126 = por %p124, %p125
    %p127 = scmp.le.s32.totalorder 1, %s9
    %p128 = scmp.lt.s32.totalorder %s9, 17
    %p129 = pnand %p127, %p128
    %p130 = pneg %p129
    // Predicated region
    $region9: #{conv_block_forward.5} parent=5 // pred_check
      _
    $region10: #{conv_block_forward.5} parent=5 // pred_check_branch
      %132 = sbr.rel (%p129) target = $region12
    $region11: #{conv_block_forward.5} parent=5 // pred_region
      %s133 = ssub.s32 %s9, 1
      // Predicated region
      $region13: #{conv_block_forward.5} parent=11 // pred_check
        %p134 = pneg %p70
      $region14: #{conv_block_forward.5} parent=11 // pred_check_branch
        %136 = sbr.rel (%p134) target = $region16
      $region15: #{conv_block_forward.5} parent=11 // pred_region
        _
      $region16: #{conv_block_forward.5} parent=11 // pred_fallthru
        _
      // Predicated region
      $region17: #{conv_block_forward.5} parent=11 // pred_check
        %p137 = pneg %p91
      $region18: #{conv_block_forward.5} parent=11 // pred_check_branch
        %139 = sbr.rel (%p137) target = $region20
      $region19: #{conv_block_forward.5} parent=11 // pred_region
        _
      $region20: #{conv_block_forward.5} parent=11 // pred_fallthru
        _
    $region12: #{conv_block_forward.5} parent=5 // pred_fallthru
      _
    %p140 = scmp.lt.s32.totalorder %s9, 16
    // Predicated region
    $region21: #{conv_block_forward.5} parent=5 // pred_check
      %p141 = pneg %p140
    $region22: #{conv_block_forward.5} parent=5 // pred_check_branch
      %143 = sbr.rel (%p141) target = $region24
    $region23: #{conv_block_forward.5} parent=5 // pred_region
      // Predicated region
      $region25: #{conv_block_forward.5} parent=23 // pred_check
        %p144 = pneg %p43
      $region26: #{conv_block_forward.5} parent=23 // pred_check_branch
        %146 = sbr.rel (%p144) target = $region28
      $region27: #{conv_block_forward.5} parent=23 // pred_region
        %p147 = scmp.lt.s32.totalorder %s16, 1
        %s148 = scalar_select %p147, %s16, 1
        %p149 = scmp.lt.s32.totalorder %s17, 7
        %s150 = scalar_select %p149, %s17, 7
        %s151 = smul.addr %s150, 8
        %s152 = smul.addr %s148, 64
        %s153 = sadd.s32 %s151, %s152
        %s154 = smul.addr %s153, 4
        %s155 = scalar_lea.vmem %s0, %s154
      $region28: #{conv_block_forward.5} parent=23 // pred_fallthru
        _
    $region24: #{conv_block_forward.5} parent=5 // pred_fallthru
      _
    %p156 = scmp.le.s32.totalorder 1, %s9
    %p157 = scmp.lt.s32.totalorder %s9, 17
    %p158 = pnand %p156, %p157
    %p159 = pneg %p158
    // Predicated region
    $region29: #{conv_block_forward.5} parent=5 // pred_check
      _
    $region30: #{conv_block_forward.5} parent=5 // pred_check_branch
      %161 = sbr.rel (%p158) target = $region32
    $region31: #{conv_block_forward.5} parent=5 // pred_region
      %s162 = ssub.s32 %s9, 1
      %p163 = scmp.lt.s32.totalorder %s18, 1
      %s164 = scalar_select %p163, %s18, 1
      %p165 = scmp.lt.s32.totalorder %s19, 7
      %s166 = scalar_select %p165, %s19, 7
      %s167 = smul.addr %s166, 8
      %s168 = smul.addr %s164, 64
      %s169 = sadd.s32 %s167, %s168
      %s170 = smul.addr %s169, 4
      %s171 = scalar_lea.vmem %s0, %s170
      %p172 = pneg %p49
      %p173 = pneg %p46
      %p174 = pneg %p70
      %p175 = pneg %p67
      %p176 = pneg %p91
      %p177 = pneg %p88
      %p178 = pneg %p119
      %p179 = pneg %p116
      %p180 = scmp.lt.s32.totalorder %s18, 1
      %s181 = scalar_select %p180, %s18, 1
      %p182 = scmp.lt.s32.totalorder %s19, 7
      %s183 = scalar_select %p182, %s19, 7
      %s184 = smul.addr %s183, 8
      %s185 = smul.addr %s181, 64
      %s186 = sadd.s32 %s184, %s185
      %s187 = smul.addr %s186, 8
      %s188 = scalar_lea.vmem %s3, %s187
      %p189 = scmp.lt.s32.totalorder %s18, 1
      %s190 = scalar_select %p189, %s18, 1
      %p191 = scmp.lt.s32.totalorder %s19, 7
      %s192 = scalar_select %p191, %s19, 7
      %s193 = smul.addr %s192, 8
      %s194 = smul.addr %s190, 64
      %s195 = sadd.s32 %s193, %s194
      %s196 = smul.addr %s195, 4
      %s197 = scalar_lea.vmem %s0, %s196
      %p198 = scmp.lt.s32.totalorder %s18, 1
      %s199 = scalar_select %p198, %s18, 1
      %p200 = scmp.lt.s32.totalorder %s19, 7
      %s201 = scalar_select %p200, %s19, 7
      %s202 = smul.addr %s201, 8
      %s203 = smul.addr %s199, 64
      %s204 = sadd.s32 %s202, %s203
      %s205 = smul.addr %s204, 8
      %s206 = scalar_lea.vmem %s3, %s205
      %v207 = vld [vmem:[%s197] sm:$0xf]
      %v208 = vld [vmem:[%s197 + $0x4] sm:$0xf]
      %v209 = vld [vmem:[%s197 + $0x8] sm:$0xf]
      %v210 = vld [vmem:[%s197 + $0xc] sm:$0xf]
      %v211 = vld [vmem:[%s197 + $0x10] sm:$0xf]
      %v212 = vld [vmem:[%s197 + $0x14] sm:$0xf]
      %v213 = vld [vmem:[%s197 + $0x18] sm:$0xf]
      %v214 = vld [vmem:[%s197 + $0x1c] sm:$0xf]
      %v215 = vunpack.c.l.bf16 %v207
      %v216 = vunpack.c.l.bf16 %v208
      %v217 = vunpack.c.l.bf16 %v209
      %v218 = vunpack.c.l.bf16 %v210
      %v219 = vunpack.c.l.bf16 %v211
      %v220 = vunpack.c.l.bf16 %v212
      %v221 = vunpack.c.l.bf16 %v213
      %v222 = vunpack.c.l.bf16 %v214
      %v223 = vld [vmem:[%s1] sm:$0x1]
      %v225 = vperm.slane %v223, 0
      %v227 = vmul.f32 %v215, %v225
      %v228 = vmul.f32 %v216, %v225
      %v229 = vmul.f32 %v217, %v225
      %v230 = vmul.f32 %v218, %v225
      %v231 = vmul.f32 %v219, %v225
      %v232 = vmul.f32 %v220, %v225
      %v233 = vmul.f32 %v221, %v225
      %v234 = vmul.f32 %v222, %v225
      %v235 = vld [vmem:[%s2] sm:$0x1]
      %v237 = vperm.slane %v235, 0
      %v239 = vadd.f32 %v227, %v237
      %v240 = vadd.f32 %v228, %v237
      %v241 = vadd.f32 %v229, %v237
      %v242 = vadd.f32 %v230, %v237
      %v243 = vadd.f32 %v231, %v237
      %v244 = vadd.f32 %v232, %v237
      %v245 = vadd.f32 %v233, %v237
      %v246 = vadd.f32 %v234, %v237
      %vm247 = vcmp.ge.f32.partialorder %v239, 0.0
      %vm248 = vcmp.ge.f32.partialorder %v240, 0.0
      %vm249 = vcmp.ge.f32.partialorder %v241, 0.0
      %vm250 = vcmp.ge.f32.partialorder %v242, 0.0
      %vm251 = vcmp.ge.f32.partialorder %v243, 0.0
      %vm252 = vcmp.ge.f32.partialorder %v244, 0.0
      %vm253 = vcmp.ge.f32.partialorder %v245, 0.0
      %vm254 = vcmp.ge.f32.partialorder %v246, 0.0
      %v255 = vmul.f32 %v239, 0.01
      %v256 = vmul.f32 %v240, 0.01
      %v257 = vmul.f32 %v241, 0.01
      %v258 = vmul.f32 %v242, 0.01
      %v259 = vmul.f32 %v243, 0.01
      %v260 = vmul.f32 %v244, 0.01
      %v261 = vmul.f32 %v245, 0.01
      %v262 = vmul.f32 %v246, 0.01
      %v263 = vsel %vm247, %v239, %v255
      %v264 = vsel %vm248, %v240, %v256
      %v265 = vsel %vm249, %v241, %v257
      %v266 = vsel %vm250, %v242, %v258
      %v267 = vsel %vm251, %v243, %v259
      %v268 = vsel %vm252, %v244, %v260
      %v269 = vsel %vm253, %v245, %v261
      %v270 = vsel %vm254, %v246, %v262
      %271 = vst [vmem:[%s206] sm:$0xff] %v263
      %272 = vst [vmem:[%s206 + $0x8] sm:$0xff] %v264
      %273 = vst [vmem:[%s206 + $0x10] sm:$0xff] %v265
      %274 = vst [vmem:[%s206 + $0x18] sm:$0xff] %v266
      %275 = vst [vmem:[%s206 + $0x20] sm:$0xff] %v267
      %276 = vst [vmem:[%s206 + $0x28] sm:$0xff] %v268
      %277 = vst [vmem:[%s206 + $0x30] sm:$0xff] %v269
      %278 = vst [vmem:[%s206 + $0x38] sm:$0xff] %v270
      %p279 = scmp.lt.s32.totalorder %s18, 1
      %s280 = scalar_select %p279, %s18, 1
      %p281 = scmp.lt.s32.totalorder %s19, 7
      %s282 = scalar_select %p281, %s19, 7
      %s283 = smul.addr %s282, 8
      %s284 = smul.addr %s280, 64
      %s285 = sadd.s32 %s283, %s284
      %s286 = smul.addr %s285, 8
      %s287 = scalar_lea.vmem %s3, %s286
      // Predicated region
      $region33: #{conv_block_forward.5} parent=31 // pred_check
        %p288 = pneg %p116
      $region34: #{conv_block_forward.5} parent=31 // pred_check_branch
        %290 = sbr.rel (%p288) target = $region36
      $region35: #{conv_block_forward.5} parent=31 // pred_region
        _
      $region36: #{conv_block_forward.5} parent=31 // pred_fallthru
        _
    $region32: #{conv_block_forward.5} parent=5 // pred_fallthru
      _
    %p291 = scmp.le.s32.totalorder 2, %s9
    // Predicated region
    $region37: #{conv_block_forward.5} parent=5 // pred_check
      %p292 = pneg %p291
    $region38: #{conv_block_forward.5} parent=5 // pred_check_branch
      %294 = sbr.rel (%p292) target = $region40
    $region39: #{conv_block_forward.5} parent=5 // pred_region
      %s295 = ssub.s32 %s9, 2
      // Predicated region
      $region41: #{conv_block_forward.5} parent=39 // pred_check
        %p296 = pneg %p122
      $region42: #{conv_block_forward.5} parent=39 // pred_check_branch
        %298 = sbr.rel (%p296) target = $region44
      $region43: #{conv_block_forward.5} parent=39 // pred_region
        %p299 = scmp.lt.s32.totalorder %s20, 1
        %s300 = scalar_select %p299, %s20, 1
        %p301 = scmp.lt.s32.totalorder %s21, 7
        %s302 = scalar_select %p301, %s21, 7
        %s303 = smul.addr %s302, 8
        %s304 = smul.addr %s300, 64
        %s305 = sadd.s32 %s303, %s304
        %s306 = smul.addr %s305, 8
        %s307 = scalar_lea.vmem %s3, %s306
      $region44: #{conv_block_forward.5} parent=39 // pred_fallthru
        _
    $region40: #{conv_block_forward.5} parent=5 // pred_fallthru
      _
  $region6: #{conv_block_forward.5} parent=0 // loop_footer
    %s13 = sadd.s32 1, %s9
  $region7: #{conv_block_forward.5} parent=0 // loop_footer_branch
    %8 = sbr.rel target = $region3
  $region8: #{conv_block_forward.5} parent=0 // loop_exit
    _

// kernel: conv_block_forward.3
$region0: #{conv_block_forward.3}
  #allocation0 [shape = 'u32[]', space=smem, size = 0x4, offset = 0x4, fixed_abs, tag = 'smem constant byte address 0x4 - core index']
  #allocation1 [shape = 'u32[72,128]{1,0:T(1,128)}', space=vmem, size = 0x9000, scoped, tag = 'internal scratch']
  %s0 = inlined_call_operand.vmem [shape: bf16[2,10,10,10,128], index: 0, kind: input, shape index: {}, may-alias: {0,1,2}]
  %s1 = inlined_call_operand.vmem [shape: bf16[2,10,10,10,128], index: 1, kind: input, shape index: {}, may-alias: {0,1,2}]
  %s2 = inlined_call_operand.vmem [shape: bf16[2,10,10,10,128], index: 2, kind: input, shape index: {}, may-alias: {0,1,2}]
  %s3 = inlined_call_operand.vmem [shape: bf16[3,3,3,128,128], index: 3, kind: input, shape index: {}]
  %s4 = inlined_call_operand.vmem [shape: f32[1,128], index: 4, kind: input, shape index: {}, may-alias: {4,5}]
  %s5 = inlined_call_operand.vmem [shape: f32[1,128], index: 5, kind: input, shape index: {}, may-alias: {4,5}]
  %s6 = inlined_call_operand.vmem [shape: bf16[2,8,64,128], index: 6, kind: output, shape index: {0}]
  %s7 = inlined_call_operand.vmem [shape: f32[2,8,1,128], index: 7, kind: output, shape index: {1}]
  %s8 = inlined_call_operand.vmem [shape: f32[2,8,1,128], index: 8, kind: output, shape index: {2}]
  %9 = xla_tuple %s6, %s7, %s8
  %s10 = sld [smem:[#allocation0]]
  $region73: #{conv_block_forward.3} parent=0
    _
  %s12 = ssub.s32 1, %s10
  %s13 = scalar_select 0, %s12, %s10
  loop: start=0, step=1, limit=18
  $region2: #{conv_block_forward.3} parent=0 // loop_pre_header
    _
  $region3: #{conv_block_forward.3} parent=0 // loop_header
    %s15 = sphi 0, %s19
    %p16 = scmp.ge.s32.totalorder %s15, 18
    %s22 = sphi 0, %s34
    %s23 = sphi 0, %s30
    %s24 = sphi 0, %s22
    %s25 = sphi 0, %s23
    %s26 = sphi 0, %s24
    %s27 = sphi 0, %s25
    %s39 = sphi 0, %s41
    %s42 = sphi 0, %s39
    %s43 = sphi 0, %s42
    %s59 = sphi 0, %s43
    %s69 = sphi 0, %s71
    %s72 = sphi 0, %s69
    %s73 = sphi 0, %s72
    %s89 = sphi 0, %s73
    %s99 = sphi 0, %s101
    %s102 = sphi 0, %s99
    %s103 = sphi 0, %s102
    %s119 = sphi 0, %s103
    %s123 = sphi 0, %s123
    %s125 = sphi 0, %s123
    %s126 = sphi 0, %s125
    %s140 = sphi 0, %s126
    %s144 = sphi 0, %s144
    %s146 = sphi 0, %s144
    %s147 = sphi 0, %s146
    %s161 = sphi 0, %s147
    %s165 = sphi 0, %s165
    %s167 = sphi 0, %s165
    %s168 = sphi 0, %s167
    %s182 = sphi 0, %s168
    %s190 = sphi 0, %s192
    %s193 = sphi 0, %s190
    %s194 = sphi 0, %s193
    %s210 = sphi 0, %s194
    %s218 = sphi 0, %s220
    %s221 = sphi 0, %s218
    %s222 = sphi 0, %s221
    %s238 = sphi 0, %s222
    %s246 = sphi 0, %s248
    %s249 = sphi 0, %s246
    %s250 = sphi 0, %s249
    %s266 = sphi 0, %s250
  $region4: #{conv_block_forward.3} parent=0 // loop_header_branch
    %18 = sbr.rel (%p16) target = $region8
  $region5: #{conv_block_forward.3} parent=0 // loop_body
    %s20 = ssub.s32 %s15, 1
    %s21 = ssub.s32 %s15, 2
    %s28 = sadd.s32 1, %s23
    %p29 = scmp.ge.s32.totalorder %s28, 8
    %s30 = scalar_select %p29, 0, %s28
    %s31 = sadd.s32 1, %s22
    %s32 = scalar_select %p29, %s31, %s22
    %p33 = scmp.ge.s32.totalorder %s32, 2
    %s34 = scalar_select %p33, 0, %s32
    %s35 = ssub.s32 %s22, %s34
    %s36 = ssub.s32 %s23, %s30
    %s37 = sor.u32 %s35, %s36
    %p38 = scmp.eq.s32.totalorder %s37, 0
    %s40 = sadd.s32 %s39, 1
    %s41 = scalar_select %p38, %s39, %s40
    %p44 = pneg %p38
    %p45 = scmp.eq.s32.totalorder %s15, 15
    %p46 = por %p44, %p45
    %p47 = scmp.ne.s32.totalorder %s39, %s42
    %p48 = scmp.eq.s32.totalorder %s15, 0
    %p49 = por %p47, %p48
    %p50 = scmp.ne.s32.totalorder %s39, %s42
    %p51 = scmp.eq.s32.totalorder %s20, 15
    %p52 = por %p50, %p51
    %p53 = scmp.ne.s32.totalorder %s42, %s43
    %p54 = scmp.eq.s32.totalorder %s20, 0
    %p55 = por %p53, %p54
    %p56 = scmp.ne.s32.totalorder %s42, %s43
    %p57 = scmp.eq.s32.totalorder %s21, 15
    %p58 = por %p56, %p57
    %p60 = scmp.ne.s32.totalorder %s43, %s59
    %p61 = scmp.eq.s32.totalorder %s21, 0
    %p62 = por %p60, %p61
    %s63 = sadd.s32 %s23, 1
    %s64 = sadd.s32 %s30, 1
    %s65 = ssub.s32 %s22, %s34
    %s66 = ssub.s32 %s63, %s64
    %s67 = sor.u32 %s65, %s66
    %p68 = scmp.eq.s32.totalorder %s67, 0
    %s70 = sadd.s32 %s69, 1
    %s71 = scalar_select %p68, %s69, %s70
    %p74 = pneg %p68
    %p75 = scmp.eq.s32.totalorder %s15, 15
    %p76 = por %p74, %p75
    %p77 = scmp.ne.s32.totalorder %s69, %s72
    %p78 = scmp.eq.s32.totalorder %s15, 0
    %p79 = por %p77, %p78
    %p80 = scmp.ne.s32.totalorder %s69, %s72
    %p81 = scmp.eq.s32.totalorder %s20, 15
    %p82 = por %p80, %p81
    %p83 = scmp.ne.s32.totalorder %s72, %s73
    %p84 = scmp.eq.s32.totalorder %s20, 0
    %p85 = por %p83, %p84
    %p86 = scmp.ne.s32.totalorder %s72, %s73
    %p87 = scmp.eq.s32.totalorder %s21, 15
    %p88 = por %p86, %p87
    %p90 = scmp.ne.s32.totalorder %s73, %s89
    %p91 = scmp.eq.s32.totalorder %s21, 0
    %p92 = por %p90, %p91
    %s93 = sadd.s32 %s23, 2
    %s94 = sadd.s32 %s30, 2
    %s95 = ssub.s32 %s22, %s34
    %s96 = ssub.s32 %s93, %s94
    %s97 = sor.u32 %s95, %s96
    %p98 = scmp.eq.s32.totalorder %s97, 0
    %s100 = sadd.s32 %s99, 1
    %s101 = scalar_select %p98, %s99, %s100
    %p104 = pneg %p98
    %p105 = scmp.eq.s32.totalorder %s15, 15
    %p106 = por %p104, %p105
    %p107 = scmp.ne.s32.totalorder %s99, %s102
    %p108 = scmp.eq.s32.totalorder %s15, 0
    %p109 = por %p107, %p108
    %p110 = scmp.ne.s32.totalorder %s99, %s102
    %p111 = scmp.eq.s32.totalorder %s20, 15
    %p112 = por %p110, %p111
    %p113 = scmp.ne.s32.totalorder %s102, %s103
    %p114 = scmp.eq.s32.totalorder %s20, 0
    %p115 = por %p113, %p114
    %p116 = scmp.ne.s32.totalorder %s102, %s103
    %p117 = scmp.eq.s32.totalorder %s21, 15
    %p118 = por %p116, %p117
    %p120 = scmp.ne.s32.totalorder %s103, %s119
    %p121 = scmp.eq.s32.totalorder %s21, 0
    %p122 = por %p120, %p121
    %s124 = sadd.s32 %s123, 1
    %p127 = scmp.eq.s32.totalorder %s15, 15
    %p128 = scmp.ne.s32.totalorder %s123, %s125
    %p129 = scmp.eq.s32.totalorder %s15, 0
    %p130 = por %p128, %p129
    %p131 = scmp.ne.s32.totalorder %s123, %s125
    %p132 = scmp.eq.s32.totalorder %s20, 15
    %p133 = por %p131, %p132
    %p134 = scmp.ne.s32.totalorder %s125, %s126
    %p135 = scmp.eq.s32.totalorder %s20, 0
    %p136 = por %p134, %p135
    %p137 = scmp.ne.s32.totalorder %s125, %s126
    %p138 = scmp.eq.s32.totalorder %s21, 15
    %p139 = por %p137, %p138
    %p141 = scmp.ne.s32.totalorder %s126, %s140
    %p142 = scmp.eq.s32.totalorder %s21, 0
    %p143 = por %p141, %p142
    %s145 = sadd.s32 %s144, 1
    %p148 = scmp.eq.s32.totalorder %s15, 15
    %p149 = scmp.ne.s32.totalorder %s144, %s146
    %p150 = scmp.eq.s32.totalorder %s15, 0
    %p151 = por %p149, %p150
    %p152 = scmp.ne.s32.totalorder %s144, %s146
    %p153 = scmp.eq.s32.totalorder %s20, 15
    %p154 = por %p152, %p153
    %p155 = scmp.ne.s32.totalorder %s146, %s147
    %p156 = scmp.eq.s32.totalorder %s20, 0
    %p157 = por %p155, %p156
    %p158 = scmp.ne.s32.totalorder %s146, %s147
    %p159 = scmp.eq.s32.totalorder %s21, 15
    %p160 = por %p158, %p159
    %p162 = scmp.ne.s32.totalorder %s147, %s161
    %p163 = scmp.eq.s32.totalorder %s21, 0
    %p164 = por %p162, %p163
    %s166 = sadd.s32 %s165, 1
    %p169 = scmp.eq.s32.totalorder %s15, 15
    %p170 = scmp.ne.s32.totalorder %s165, %s167
    %p171 = scmp.eq.s32.totalorder %s15, 0
    %p172 = por %p170, %p171
    %p173 = scmp.ne.s32.totalorder %s165, %s167
    %p174 = scmp.eq.s32.totalorder %s20, 15
    %p175 = por %p173, %p174
    %p176 = scmp.ne.s32.totalorder %s167, %s168
    %p177 = scmp.eq.s32.totalorder %s20, 0
    %p178 = por %p176, %p177
    %p179 = scmp.ne.s32.totalorder %s167, %s168
    %p180 = scmp.eq.s32.totalorder %s21, 15
    %p181 = por %p179, %p180
    %p183 = scmp.ne.s32.totalorder %s168, %s182
    %p184 = scmp.eq.s32.totalorder %s21, 0
    %p185 = por %p183, %p184
    %s186 = ssub.s32 %s22, %s34
    %s187 = ssub.s32 %s23, %s30
    %s188 = sor.u32 %s186, %s187
    %p189 = scmp.eq.s32.totalorder %s188, 0
    %s191 = sadd.s32 %s190, 1
    %s192 = scalar_select %p189, %s190, %s191
    %p195 = pneg %p189
    %p196 = scmp.eq.s32.totalorder %s15, 15
    %p197 = por %p195, %p196
    %p198 = scmp.ne.s32.totalorder %s190, %s193
    %p199 = scmp.eq.s32.totalorder %s15, 0
    %p200 = por %p198, %p199
    %p201 = scmp.ne.s32.totalorder %s190, %s193
    %p202 = scmp.eq.s32.totalorder %s20, 15
    %p203 = por %p201, %p202
    %p204 = scmp.ne.s32.totalorder %s193, %s194
    %p205 = scmp.eq.s32.totalorder %s20, 0
    %p206 = por %p204, %p205
    %p207 = scmp.ne.s32.totalorder %s193, %s194
    %p208 = scmp.eq.s32.totalorder %s21, 15
    %p209 = por %p207, %p208
    %p211 = scmp.ne.s32.totalorder %s194, %s210
    %p212 = scmp.eq.s32.totalorder %s21, 0
    %p213 = por %p211, %p212
    %s214 = ssub.s32 %s22, %s34
    %s215 = ssub.s32 %s23, %s30
    %s216 = sor.u32 %s214, %s215
    %p217 = scmp.eq.s32.totalorder %s216, 0
    %s219 = sadd.s32 %s218, 1
    %s220 = scalar_select %p217, %s218, %s219
    %p223 = pneg %p217
    %p224 = scmp.eq.s32.totalorder %s15, 15
    %p225 = por %p223, %p224
    %p226 = scmp.ne.s32.totalorder %s218, %s221
    %p227 = scmp.eq.s32.totalorder %s15, 0
    %p228 = por %p226, %p227
    %p229 = scmp.ne.s32.totalorder %s218, %s221
    %p230 = scmp.eq.s32.totalorder %s20, 15
    %p231 = por %p229, %p230
    %p232 = scmp.ne.s32.totalorder %s221, %s222
    %p233 = scmp.eq.s32.totalorder %s20, 0
    %p234 = por %p232, %p233
    %p235 = scmp.ne.s32.totalorder %s221, %s222
    %p236 = scmp.eq.s32.totalorder %s21, 15
    %p237 = por %p235, %p236
    %p239 = scmp.ne.s32.totalorder %s222, %s238
    %p240 = scmp.eq.s32.totalorder %s21, 0
    %p241 = por %p239, %p240
    %s242 = ssub.s32 %s22, %s34
    %s243 = ssub.s32 %s23, %s30
    %s244 = sor.u32 %s242, %s243
    %p245 = scmp.eq.s32.totalorder %s244, 0
    %s247 = sadd.s32 %s246, 1
    %s248 = scalar_select %p245, %s246, %s247
    %p251 = pneg %p245
    %p252 = scmp.eq.s32.totalorder %s15, 15
    %p253 = por %p251, %p252
    %p254 = scmp.ne.s32.totalorder %s246, %s249
    %p255 = scmp.eq.s32.totalorder %s15, 0
    %p256 = por %p254, %p255
    %p257 = scmp.ne.s32.totalorder %s246, %s249
    %p258 = scmp.eq.s32.totalorder %s20, 15
    %p259 = por %p257, %p258
    %p260 = scmp.ne.s32.totalorder %s249, %s250
    %p261 = scmp.eq.s32.totalorder %s20, 0
    %p262 = por %p260, %p261
    %p263 = scmp.ne.s32.totalorder %s249, %s250
    %p264 = scmp.eq.s32.totalorder %s21, 15
    %p265 = por %p263, %p264
    %p267 = scmp.ne.s32.totalorder %s250, %s266
    %p268 = scmp.eq.s32.totalorder %s21, 0
    %p269 = por %p267, %p268
    %p270 = scmp.le.s32.totalorder 1, %s15
    %p271 = scmp.lt.s32.totalorder %s15, 17
    %p272 = pnand %p270, %p271
    %p273 = pneg %p272
    // Predicated region
    $region9: #{conv_block_forward.3} parent=5 // pred_check
      _
    $region10: #{conv_block_forward.3} parent=5 // pred_check_branch
      %275 = sbr.rel (%p272) target = $region12
    $region11: #{conv_block_forward.3} parent=5 // pred_region
      %s276 = ssub.s32 %s15, 1
      // Predicated region
      $region13: #{conv_block_forward.3} parent=11 // pred_check
        %p277 = pneg %p136
      $region14: #{conv_block_forward.3} parent=11 // pred_check_branch
        %279 = sbr.rel (%p277) target = $region16
      $region15: #{conv_block_forward.3} parent=11 // pred_region
        _
      $region16: #{conv_block_forward.3} parent=11 // pred_fallthru
        _
      // Predicated region
      $region17: #{conv_block_forward.3} parent=11 // pred_check
        %p280 = pneg %p157
      $region18: #{conv_block_forward.3} parent=11 // pred_check_branch
        %282 = sbr.rel (%p280) target = $region20
      $region19: #{conv_block_forward.3} parent=11 // pred_region
        _
      $region20: #{conv_block_forward.3} parent=11 // pred_fallthru
        _
      // Predicated region
      $region21: #{conv_block_forward.3} parent=11 // pred_check
        %p283 = pneg %p178
      $region22: #{conv_block_forward.3} parent=11 // pred_check_branch
        %285 = sbr.rel (%p283) target = $region24
      $region23: #{conv_block_forward.3} parent=11 // pred_region
        _
      $region24: #{conv_block_forward.3} parent=11 // pred_fallthru
        _
    $region12: #{conv_block_forward.3} parent=5 // pred_fallthru
      _
    %p286 = scmp.lt.s32.totalorder %s15, 16
    // Predicated region
    $region25: #{conv_block_forward.3} parent=5 // pred_check
      %p287 = pneg %p286
    $region26: #{conv_block_forward.3} parent=5 // pred_check_branch
      %289 = sbr.rel (%p287) target = $region28
    $region27: #{conv_block_forward.3} parent=5 // pred_region
      // Predicated region
      $region29: #{conv_block_forward.3} parent=27 // pred_check
        %p290 = pneg %p49
      $region30: #{conv_block_forward.3} parent=27 // pred_check_branch
        %292 = sbr.rel (%p290) target = $region32
      $region31: #{conv_block_forward.3} parent=27 // pred_region
        %p293 = scmp.lt.s32.totalorder %s22, 1
        %s294 = scalar_select %p293, %s22, 1
        %p295 = scmp.lt.s32.totalorder %s23, 9
        %s296 = scalar_select %p295, %s23, 9
        %s297 = smul.addr %s296, 20
        %s298 = smul.addr %s294, 200
        %s299 = sadd.s32 %s297, %s298
        %s300 = smul.addr %s299, 4
        %s301 = scalar_lea.vmem %s0, %s300
      $region32: #{conv_block_forward.3} parent=27 // pred_fallthru
        _
      // Predicated region
      $region33: #{conv_block_forward.3} parent=27 // pred_check
        %p302 = pneg %p79
      $region34: #{conv_block_forward.3} parent=27 // pred_check_branch
        %304 = sbr.rel (%p302) target = $region36
      $region35: #{conv_block_forward.3} parent=27 // pred_region
        %s305 = sadd.s32 %s23, 1
        %p306 = scmp.lt.s32.totalorder %s22, 1
        %s307 = scalar_select %p306, %s22, 1
        %p308 = scmp.lt.s32.totalorder %s305, 9
        %s309 = scalar_select %p308, %s305, 9
        %s310 = smul.addr %s309, 20
        %s311 = smul.addr %s307, 200
        %s312 = sadd.s32 %s310, %s311
        %s313 = smul.addr %s312, 4
        %s314 = scalar_lea.vmem %s1, %s313
        %s315 = sadd.s32 %s23, 1
      $region36: #{conv_block_forward.3} parent=27 // pred_fallthru
        _
      // Predicated region
      $region37: #{conv_block_forward.3} parent=27 // pred_check
        %p316 = pneg %p109
      $region38: #{conv_block_forward.3} parent=27 // pred_check_branch
        %318 = sbr.rel (%p316) target = $region40
      $region39: #{conv_block_forward.3} parent=27 // pred_region
        %s319 = sadd.s32 %s23, 2
        %p320 = scmp.lt.s32.totalorder %s22, 1
        %s321 = scalar_select %p320, %s22, 1
        %p322 = scmp.lt.s32.totalorder %s319, 9
        %s323 = scalar_select %p322, %s319, 9
        %s324 = smul.addr %s323, 20
        %s325 = smul.addr %s321, 200
        %s326 = sadd.s32 %s324, %s325
        %s327 = smul.addr %s326, 4
        %s328 = scalar_lea.vmem %s2, %s327
        %s329 = sadd.s32 %s23, 2
      $region40: #{conv_block_forward.3} parent=27 // pred_fallthru
        _
    $region28: #{conv_block_forward.3} parent=5 // pred_fallthru
      _
    %p330 = scmp.le.s32.totalorder 1, %s15
    %p331 = scmp.lt.s32.totalorder %s15, 17
    %p332 = pnand %p330, %p331
    %p333 = pneg %p332
    // Predicated region
    $region41: #{conv_block_forward.3} parent=5 // pred_check
      _
    $region42: #{conv_block_forward.3} parent=5 // pred_check_branch
      %335 = sbr.rel (%p332) target = $region44
    $region43: #{conv_block_forward.3} parent=5 // pred_region
      %s336 = ssub.s32 %s15, 1
      %p337 = scmp.lt.s32.totalorder %s24, 1
      %s338 = scalar_select %p337, %s24, 1
      %p339 = scmp.lt.s32.totalorder %s25, 9
      %s340 = scalar_select %p339, %s25, 9
      %s341 = smul.addr %s340, 20
      %s342 = smul.addr %s338, 200
      %s343 = sadd.s32 %s341, %s342
      %s344 = smul.addr %s343, 4
      %s345 = scalar_lea.vmem %s0, %s344
      %p346 = pneg %p55
      %p347 = pneg %p52
      %s348 = sadd.s32 %s25, 1
      %p349 = scmp.lt.s32.totalorder %s24, 1
      %s350 = scalar_select %p349, %s24, 1
      %p351 = scmp.lt.s32.totalorder %s348, 9
      %s352 = scalar_select %p351, %s348, 9
      %s353 = smul.addr %s352, 20
      %s354 = smul.addr %s350, 200
      %s355 = sadd.s32 %s353, %s354
      %s356 = smul.addr %s355, 4
      %s357 = scalar_lea.vmem %s1, %s356
      %p358 = pneg %p85
      %p359 = pneg %p82
      %s360 = sadd.s32 %s25, 2
      %p361 = scmp.lt.s32.totalorder %s24, 1
      %s362 = scalar_select %p361, %s24, 1
      %p363 = scmp.lt.s32.totalorder %s360, 9
      %s364 = scalar_select %p363, %s360, 9
      %s365 = smul.addr %s364, 20
      %s366 = smul.addr %s362, 200
      %s367 = sadd.s32 %s365, %s366
      %s368 = smul.addr %s367, 4
      %s369 = scalar_lea.vmem %s2, %s368
      %p370 = pneg %p115
      %p371 = pneg %p112
      %p372 = pneg %p136
      %p373 = pneg %p133
      %p374 = pneg %p157
      %p375 = pneg %p154
      %p376 = pneg %p178
      %p377 = pneg %p175
      %p378 = pneg %p206
      %p379 = pneg %p203
      %p380 = scmp.lt.s32.totalorder %s24, 1
      %s381 = scalar_select %p380, %s24, 1
      %p382 = scmp.lt.s32.totalorder %s25, 7
      %s383 = scalar_select %p382, %s25, 7
      %s384 = smul.addr %s383, 8
      %s385 = smul.addr %s381, 64
      %s386 = sadd.s32 %s384, %s385
      %s387 = smul.addr %s386, 4
      %s388 = scalar_lea.vmem %s6, %s387
      %p389 = pneg %p234
      %p390 = pneg %p231
      %p391 = scmp.lt.s32.totalorder %s24, 1
      %s392 = scalar_select %p391, %s24, 1
      %p393 = scmp.lt.s32.totalorder %s25, 7
      %s394 = scalar_select %p393, %s25, 7
      %s395 = smul.addr %s392, 8
      %s396 = sadd.s32 %s394, %s395
      %s397 = scalar_lea.vmem %s7, %s396
      %p398 = pneg %p262
      %p399 = pneg %p259
      %p400 = scmp.lt.s32.totalorder %s24, 1
      %s401 = scalar_select %p400, %s24, 1
      %p402 = scmp.lt.s32.totalorder %s25, 7
      %s403 = scalar_select %p402, %s25, 7
      %s404 = smul.addr %s401, 8
      %s405 = sadd.s32 %s403, %s404
      %s406 = scalar_lea.vmem %s8, %s405
      %p407 = scmp.lt.s32.totalorder %s24, 1
      %s408 = scalar_select %p407, %s24, 1
      %p409 = scmp.lt.s32.totalorder %s25, 9
      %s410 = scalar_select %p409, %s25, 9
      %s411 = smul.addr %s410, 20
      %s412 = smul.addr %s408, 200
      %s413 = sadd.s32 %s411, %s412
      %s414 = smul.addr %s413, 4
      %s415 = scalar_lea.vmem %s0, %s414
      %s416 = sadd.s32 %s25, 1
      %p417 = scmp.lt.s32.totalorder %s24, 1
      %s418 = scalar_select %p417, %s24, 1
      %p419 = scmp.lt.s32.totalorder %s416, 9
      %s420 = scalar_select %p419, %s416, 9
      %s421 = smul.addr %s420, 20
      %s422 = smul.addr %s418, 200
      %s423 = sadd.s32 %s421, %s422
      %s424 = smul.addr %s423, 4
      %s425 = scalar_lea.vmem %s1, %s424
      %s426 = sadd.s32 %s25, 1
      %s427 = sadd.s32 %s25, 2
      %p428 = scmp.lt.s32.totalorder %s24, 1
      %s429 = scalar_select %p428, %s24, 1
      %p430 = scmp.lt.s32.totalorder %s427, 9
      %s431 = scalar_select %p430, %s427, 9
      %s432 = smul.addr %s431, 20
      %s433 = smul.addr %s429, 200
      %s434 = sadd.s32 %s432, %s433
      %s435 = smul.addr %s434, 4
      %s436 = scalar_lea.vmem %s2, %s435
      %s437 = sadd.s32 %s25, 2
      %p438 = scmp.lt.s32.totalorder %s24, 1
      %s439 = scalar_select %p438, %s24, 1
      %p440 = scmp.lt.s32.totalorder %s25, 7
      %s441 = scalar_select %p440, %s25, 7
      %s442 = smul.addr %s441, 8
      %s443 = smul.addr %s439, 64
      %s444 = sadd.s32 %s442, %s443
      %s445 = smul.addr %s444, 4
      %s446 = scalar_lea.vmem %s6, %s445
      %p447 = scmp.lt.s32.totalorder %s24, 1
      %s448 = scalar_select %p447, %s24, 1
      %p449 = scmp.lt.s32.totalorder %s25, 7
      %s450 = scalar_select %p449, %s25, 7
      %s451 = smul.addr %s448, 8
      %s452 = sadd.s32 %s450, %s451
      %s453 = scalar_lea.vmem %s7, %s452
      %p454 = scmp.lt.s32.totalorder %s24, 1
      %s455 = scalar_select %p454, %s24, 1
      %p456 = scmp.lt.s32.totalorder %s25, 7
      %s457 = scalar_select %p456, %s25, 7
      %s458 = smul.addr %s455, 8
      %s459 = sadd.s32 %s457, %s458
      %s460 = scalar_lea.vmem %s8, %s459
      %v461 = vld [vmem:[%s415] sm:$0xf]
      %v462 = vld [vmem:[%s415 + $0x4] sm:$0x1]
      %v463 = vld [vmem:[%s415 + $0x8] sm:$0xf]
      %v464 = vld [vmem:[%s415 + $0xc] sm:$0x1]
      %v465 = vld [vmem:[%s415 + $0x10] sm:$0xf]
      %v466 = vld [vmem:[%s415 + $0x14] sm:$0x1]
      %v467 = vld [vmem:[%s415 + $0x18] sm:$0xf]
      %v468 = vld [vmem:[%s415 + $0x1c] sm:$0x1]
      %v469 = vld [vmem:[%s415 + $0x20] sm:$0xf]
      %v470 = vld [vmem:[%s415 + $0x24] sm:$0x1]
      %v471 = vld [vmem:[%s415 + $0x28] sm:$0xf]
      %v472 = vld [vmem:[%s415 + $0x2c] sm:$0x1]
      %v473 = vld [vmem:[%s415 + $0x30] sm:$0xf]
      %v474 = vld [vmem:[%s415 + $0x34] sm:$0x1]
      %v475 = vld [vmem:[%s415 + $0x38] sm:$0xf]
      %v476 = vld [vmem:[%s415 + $0x3c] sm:$0x1]
      %v477 = vld [vmem:[%s415 + $0x40] sm:$0xf]
      %v478 = vld [vmem:[%s415 + $0x44] sm:$0x1]
      %v479 = vld [vmem:[%s415 + $0x48] sm:$0xf]
      %v480 = vld [vmem:[%s415 + $0x4c] sm:$0x1]
      %v481 = vld [vmem:[%s3] sm:$0xf]
      %v482 = vld [vmem:[%s3 + $0x4] sm:$0xf]
      %v483 = vld [vmem:[%s3 + $0x8] sm:$0xf]
      %v484 = vld [vmem:[%s3 + $0xc] sm:$0xf]
      %v485 = vld [vmem:[%s3 + $0x10] sm:$0xf]
      %v486 = vld [vmem:[%s3 + $0x14] sm:$0xf]
      %v487 = vld [vmem:[%s3 + $0x18] sm:$0xf]
      %v488 = vld [vmem:[%s3 + $0x1c] sm:$0xf]
      %v489 = vld [vmem:[%s3 + $0x20] sm:$0xf]
      %v490 = vld [vmem:[%s3 + $0x24] sm:$0xf]
      %v491 = vld [vmem:[%s3 + $0x28] sm:$0xf]
      %v492 = vld [vmem:[%s3 + $0x2c] sm:$0xf]
      %v493 = vld [vmem:[%s3 + $0x30] sm:$0xf]
      %v494 = vld [vmem:[%s3 + $0x34] sm:$0xf]
      %v495 = vld [vmem:[%s3 + $0x38] sm:$0xf]
      %v496 = vld [vmem:[%s3 + $0x3c] sm:$0xf]
      %vm497 = vsmask.f32 3328
      %vm498 = vsmask.f32 7440
      %vm499 = vmor %vm497, %vm498
      %v501 = vshrl.u32 %v461, 16
      %v503 = vrot.slane %v501, 4
      %v504 = vshll.u32 %v461, 16
      %v506 = vrot.slane %v504, 5
      %v507 = vor.u32 %v503, %v506
      %v508 = vrot.slane %v507, 4
      %v510 = vshll.u32 %v462, 16
      %v512 = vrot.slane %v510, 5
      %v513 = vsel %vm499, %v508, %v512
      %v515 = vshrl.u32 %v463, 16
      %v517 = vrot.slane %v515, 4
      %v518 = vshll.u32 %v463, 16
      %v520 = vrot.slane %v518, 5
      %v521 = vor.u32 %v517, %v520
      %v522 = vrot.slane %v521, 4
      %v524 = vshll.u32 %v464, 16
      %v526 = vrot.slane %v524, 5
      %v527 = vsel %vm499, %v522, %v526
      %v529 = vshrl.u32 %v465, 16
      %v531 = vrot.slane %v529, 4
      %v532 = vshll.u32 %v465, 16
      %v534 = vrot.slane %v532, 5
      %v535 = vor.u32 %v531, %v534
      %v536 = vrot.slane %v535, 4
      %v538 = vshll.u32 %v466, 16
      %v540 = vrot.slane %v538, 5
      %v541 = vsel %vm499, %v536, %v540
      %v543 = vshrl.u32 %v467, 16
      %v545 = vrot.slane %v543, 4
      %v546 = vshll.u32 %v467, 16
      %v548 = vrot.slane %v546, 5
      %v549 = vor.u32 %v545, %v548
      %v550 = vrot.slane %v549, 4
      %v552 = vshll.u32 %v468, 16
      %v554 = vrot.slane %v552, 5
      %v555 = vsel %vm499, %v550, %v554
      %v557 = vshrl.u32 %v469, 16
      %v559 = vrot.slane %v557, 4
      %v560 = vshll.u32 %v469, 16
      %v562 = vrot.slane %v560, 5
      %v563 = vor.u32 %v559, %v562
      %v564 = vrot.slane %v563, 4
      %v566 = vshll.u32 %v470, 16
      %v568 = vrot.slane %v566, 5
      %v569 = vsel %vm499, %v564, %v568
      %v571 = vshrl.u32 %v471, 16
      %v573 = vrot.slane %v571, 4
      %v574 = vshll.u32 %v471, 16
      %v576 = vrot.slane %v574, 5
      %v577 = vor.u32 %v573, %v576
      %v578 = vrot.slane %v577, 4
      %v580 = vshll.u32 %v472, 16
      %v582 = vrot.slane %v580, 5
      %v583 = vsel %vm499, %v578, %v582
      %v585 = vshrl.u32 %v473, 16
      %v587 = vrot.slane %v585, 4
      %v588 = vshll.u32 %v473, 16
      %v590 = vrot.slane %v588, 5
      %v591 = vor.u32 %v587, %v590
      %v592 = vrot.slane %v591, 4
      %v594 = vshll.u32 %v474, 16
      %v596 = vrot.slane %v594, 5
      %v597 = vsel %vm499, %v592, %v596
      %v599 = vshrl.u32 %v475, 16
      %v601 = vrot.slane %v599, 4
      %v602 = vshll.u32 %v475, 16
      %v604 = vrot.slane %v602, 5
      %v605 = vor.u32 %v601, %v604
      %v606 = vrot.slane %v605, 4
      %v608 = vshll.u32 %v476, 16
      %v610 = vrot.slane %v608, 5
      %v611 = vsel %vm499, %v606, %v610
      %s612 = scalar_lea.vmem %s3, 64
      %v613 = vld [vmem:[%s612] sm:$0xf]
      %v614 = vld [vmem:[%s612 + $0x4] sm:$0xf]
      %v615 = vld [vmem:[%s612 + $0x8] sm:$0xf]
      %v616 = vld [vmem:[%s612 + $0xc] sm:$0xf]
      %v617 = vld [vmem:[%s612 + $0x10] sm:$0xf]
      %v618 = vld [vmem:[%s612 + $0x14] sm:$0xf]
      %v619 = vld [vmem:[%s612 + $0x18] sm:$0xf]
      %v620 = vld [vmem:[%s612 + $0x1c] sm:$0xf]
      %v621 = vld [vmem:[%s612 + $0x20] sm:$0xf]
      %v622 = vld [vmem:[%s612 + $0x24] sm:$0xf]
      %v623 = vld [vmem:[%s612 + $0x28] sm:$0xf]
      %v624 = vld [vmem:[%s612 + $0x2c] sm:$0xf]
      %v625 = vld [vmem:[%s612 + $0x30] sm:$0xf]
      %v626 = vld [vmem:[%s612 + $0x34] sm:$0xf]
      %v627 = vld [vmem:[%s612 + $0x38] sm:$0xf]
      %v628 = vld [vmem:[%s612 + $0x3c] sm:$0xf]
      %v629 = vunpack.c.l.b16 %v513
      %v630 = vunpack.c.l.b16 %v527
      %v631 = vunpack.c.l.b16 %v541
      %v632 = vunpack.c.l.b16 %v555
      %v633 = vunpack.c.l.b16 %v569
      %v634 = vunpack.c.l.b16 %v583
      %v635 = vunpack.c.l.b16 %v597
      %v636 = vunpack.c.l.b16 %v611
      %v637 = vpack.c.b16 %v630, %v629
      %v638 = vpack.c.b16 %v632, %v631
      %v639 = vpack.c.b16 %v634, %v633
      %v640 = vpack.c.b16 %v636, %v635
      %v661 = vunpack.c.l.b16 %v613
      %v662 = vunpack.c.l.b16 %v614
      %v663 = vunpack.c.l.b16 %v615
      %v664 = vunpack.c.l.b16 %v616
      %v665 = vunpack.c.l.b16 %v617
      %v666 = vunpack.c.l.b16 %v618
      %v667 = vunpack.c.l.b16 %v619
      %v668 = vunpack.c.l.b16 %v620
      %v669 = vunpack.c.l.b16 %v621
      %v670 = vunpack.c.l.b16 %v622
      %v671 = vunpack.c.l.b16 %v623
      %v672 = vunpack.c.l.b16 %v624
      %v673 = vunpack.c.l.b16 %v625
      %v674 = vunpack.c.l.b16 %v626
      %v675 = vunpack.c.l.b16 %v627
      %v676 = vunpack.c.l.b16 %v628
      %v677 = vpack.c.b16 %v662, %v661
      %v678 = vpack.c.b16 %v664, %v663
      %v679 = vpack.c.b16 %v666, %v665
      %v680 = vpack.c.b16 %v668, %v667
      %v681 = vpack.c.b16 %v670, %v669
      %v682 = vpack.c.b16 %v672, %v671
      %v683 = vpack.c.b16 %v674, %v673
      %v684 = vpack.c.b16 %v676, %v675
      %693 = vmatpush.bf16.msra.mxu0 %v684
      %694 = vmatpush.bf16.msra.mxu0 %v683
      %695 = vmatpush.bf16.msra.mxu0 %v682
      %696 = vmatpush.bf16.msra.mxu0 %v681
      %697 = vmatpush.bf16.msra.mxu0 %v680
      %698 = vmatpush.bf16.msra.mxu0 %v679
      %699 = vmatpush.bf16.msra.mxu0 %v678
      %700 = vmatpush.bf16.msra.mxu0 %v677
      %701 = vmatmul.bf16.gmra.mxu0 %v637
      %v702 = vpop.f32.mrf.mxu0
      %v703 = vadd.f32 0.0, %v702
      %v704 = vpop.f32.mrf.mxu0
      %v705 = vadd.f32 0.0, %v704
      %706 = vmatmul.bf16.gmra.mxu0 %v638
      %v707 = vpop.f32.mrf.mxu0
      %v708 = vadd.f32 0.0, %v707
      %v709 = vpop.f32.mrf.mxu0
      %v710 = vadd.f32 0.0, %v709
      %711 = vmatmul.bf16.gmra.mxu0 %v639
      %v712 = vpop.f32.mrf.mxu0
      %v713 = vadd.f32 0.0, %v712
      %v714 = vpop.f32.mrf.mxu0
      %v715 = vadd.f32 0.0, %v714
      %716 = vmatmul.bf16.gmra.mxu0 %v640
      %v717 = vpop.f32.mrf.mxu0
      %v718 = vadd.f32 0.0, %v717
      %v719 = vpop.f32.mrf.mxu0
      %v720 = vadd.f32 0.0, %v719
      %721 = vdwg.mxu0
      %v730 = vunpack.c.l.b16 %v461
      %v731 = vunpack.c.l.b16 %v463
      %v732 = vunpack.c.l.b16 %v465
      %v733 = vunpack.c.l.b16 %v467
      %v734 = vunpack.c.l.b16 %v469
      %v735 = vunpack.c.l.b16 %v471
      %v736 = vunpack.c.l.b16 %v473
      %v737 = vunpack.c.l.b16 %v475
      %v738 = vpack.c.b16 %v731, %v730
      %v739 = vpack.c.b16 %v733, %v732
      %v740 = vpack.c.b16 %v735, %v734
      %v741 = vpack.c.b16 %v737, %v736
      %v762 = vunpack.c.l.b16 %v481
      %v763 = vunpack.c.l.b16 %v482
      %v764 = vunpack.c.l.b16 %v483
      %v765 = vunpack.c.l.b16 %v484
      %v766 = vunpack.c.l.b16 %v485
      %v767 = vunpack.c.l.b16 %v486
      %v768 = vunpack.c.l.b16 %v487
      %v769 = vunpack.c.l.b16 %v488
      %v770 = vunpack.c.l.b16 %v489
      %v771 = vunpack.c.l.b16 %v490
      %v772 = vunpack.c.l.b16 %v491
      %v773 = vunpack.c.l.b16 %v492
      %v774 = vunpack.c.l.b16 %v493
      %v775 = vunpack.c.l.b16 %v494
      %v776 = vunpack.c.l.b16 %v495
      %v777 = vunpack.c.l.b16 %v496
      %v778 = vpack.c.b16 %v763, %v762
      %v779 = vpack.c.b16 %v765, %v764
      %v780 = vpack.c.b16 %v767, %v766
      %v781 = vpack.c.b16 %v769, %v768
      %v782 = vpack.c.b16 %v771, %v770
      %v783 = vpack.c.b16 %v773, %v772
      %v784 = vpack.c.b16 %v775, %v774
      %v785 = vpack.c.b16 %v777, %v776
      %794 = vmatpush.bf16.msra.mxu0 %v785
      %795 = vmatpush.bf16.msra.mxu0 %v784
      %796 = vmatpush.bf16.msra.mxu0 %v783
      %797 = vmatpush.bf16.msra.mxu0 %v782
      %798 = vmatpush.bf16.msra.mxu0 %v781
      %799 = vmatpush.bf16.msra.mxu0 %v780
      %800 = vmatpush.bf16.msra.mxu0 %v779
      %801 = vmatpush.bf16.msra.mxu0 %v778
      %802 = vmatmul.bf16.gmra.mxu0 %v738
      %v803 = vpop.f32.mrf.mxu0
      %v804 = vadd.f32 %v703, %v803
      %v805 = vpop.f32.mrf.mxu0
      %v806 = vadd.f32 %v705, %v805
      %807 = vmatmul.bf16.gmra.mxu0 %v739
      %v808 = vpop.f32.mrf.mxu0
      %v809 = vadd.f32 %v708, %v808
      %v810 = vpop.f32.mrf.mxu0
      %v811 = vadd.f32 %v710, %v810
      %812 = vmatmul.bf16.gmra.mxu0 %v740
      %v813 = vpop.f32.mrf.mxu0
      %v814 = vadd.f32 %v713, %v813
      %v815 = vpop.f32.mrf.mxu0
      %v816 = vadd.f32 %v715, %v815
      %817 = vmatmul.bf16.gmra.mxu0 %v741
      %v818 = vpop.f32.mrf.mxu0
      %v819 = vadd.f32 %v718, %v818
      %v820 = vpop.f32.mrf.mxu0
      %v821 = vadd.f32 %v720, %v820
      %822 = vdwg.mxu0
      %vm831 = vcmask 1042432
      %vm832 = vcmask 1046532
      %vm833 = vmor %vm831, %vm832
      %v834 = vrot.slane %v461, 5
      %v835 = vrot.slane %v834, 4
      %v836 = vrot.slane %v462, 5
      %v837 = vsel %vm833, %v835, %v836
      %v838 = vrot.slane %v463, 5
      %v839 = vrot.slane %v838, 4
      %v840 = vrot.slane %v464, 5
      %v841 = vsel %vm833, %v839, %v840
      %v842 = vrot.slane %v465, 5
      %v843 = vrot.slane %v842, 4
      %v844 = vrot.slane %v466, 5
      %v845 = vsel %vm833, %v843, %v844
      %v846 = vrot.slane %v467, 5
      %v847 = vrot.slane %v846, 4
      %v848 = vrot.slane %v468, 5
      %v849 = vsel %vm833, %v847, %v848
      %v850 = vrot.slane %v469, 5
      %v851 = vrot.slane %v850, 4
      %v852 = vrot.slane %v470, 5
      %v853 = vsel %vm833, %v851, %v852
      %v854 = vrot.slane %v471, 5
      %v855 = vrot.slane %v854, 4
      %v856 = vrot.slane %v472, 5
      %v857 = vsel %vm833, %v855, %v856
      %v858 = vrot.slane %v473, 5
      %v859 = vrot.slane %v858, 4
      %v860 = vrot.slane %v474, 5
      %v861 = vsel %vm833, %v859, %v860
      %v862 = vrot.slane %v475, 5
      %v863 = vrot.slane %v862, 4
      %v864 = vrot.slane %v476, 5
      %v865 = vsel %vm833, %v863, %v864
      %s866 = scalar_lea.vmem %s3, 128
      %v867 = vld [vmem:[%s866] sm:$0xf]
      %v868 = vld [vmem:[%s866 + $0x4] sm:$0xf]
      %v869 = vld [vmem:[%s866 + $0x8] sm:$0xf]
      %v870 = vld [vmem:[%s866 + $0xc] sm:$0xf]
      %v871 = vld [vmem:[%s866 + $0x10] sm:$0xf]
      %v872 = vld [vmem:[%s866 + $0x14] sm:$0xf]
      %v873 = vld [vmem:[%s866 + $0x18] sm:$0xf]
      %v874 = vld [vmem:[%s866 + $0x1c] sm:$0xf]
      %v875 = vld [vmem:[%s866 + $0x20] sm:$0xf]
      %v876 = vld [vmem:[%s866 + $0x24] sm:$0xf]
      %v877 = vld [vmem:[%s866 + $0x28] sm:$0xf]
      %v878 = vld [vmem:[%s866 + $0x2c] sm:$0xf]
      %v879 = vld [vmem:[%s866 + $0x30] sm:$0xf]
      %v880 = vld [vmem:[%s866 + $0x34] sm:$0xf]
      %v881 = vld [vmem:[%s866 + $0x38] sm:$0xf]
      %v882 = vld [vmem:[%s866 + $0x3c] sm:$0xf]
      %v883 = vunpack.c.l.b16 %v837
      %v884 = vunpack.c.l.b16 %v841
      %v885 = vunpack.c.l.b16 %v845
      %v886 = vunpack.c.l.b16 %v849
      %v887 = vunpack.c.l.b16 %v853
      %v888 = vunpack.c.l.b16 %v857
      %v889 = vunpack.c.l.b16 %v861
      %v890 = vunpack.c.l.b16 %v865
      %v891 = vpack.c.b16 %v884, %v883
      %v892 = vpack.c.b16 %v886, %v885
      %v893 = vpack.c.b16 %v888, %v887
      %v894 = vpack.c.b16 %v890, %v889
      %v915 = vunpack.c.l.b16 %v867
      %v916 = vunpack.c.l.b16 %v868
      %v917 = vunpack.c.l.b16 %v869
      %v918 = vunpack.c.l.b16 %v870
      %v919 = vunpack.c.l.b16 %v871
      %v920 = vunpack.c.l.b16 %v872
      %v921 = vunpack.c.l.b16 %v873
      %v922 = vunpack.c.l.b16 %v874
      %v923 = vunpack.c.l.b16 %v875
      %v924 = vunpack.c.l.b16 %v876
      %v925 = vunpack.c.l.b16 %v877
      %v926 = vunpack.c.l.b16 %v878
      %v927 = vunpack.c.l.b16 %v879
      %v928 = vunpack.c.l.b16 %v880
      %v929 = vunpack.c.l.b16 %v881
      %v930 = vunpack.c.l.b16 %v882
      %v931 = vpack.c.b16 %v916, %v915
      %v932 = vpack.c.b16 %v918, %v917
      %v933 = vpack.c.b16 %v920, %v919
      %v934 = vpack.c.b16 %v922, %v921
      %v935 = vpack.c.b16 %v924, %v923
      %v936 = vpack.c.b16 %v926, %v925
      %v937 = vpack.c.b16 %v928, %v927
      %v938 = vpack.c.b16 %v930, %v929
      %947 = vmatpush.bf16.msra.mxu0 %v938
      %948 = vmatpush.bf16.msra.mxu0 %v937
      %949 = vmatpush.bf16.msra.mxu0 %v936
      %950 = vmatpush.bf16.msra.mxu0 %v935
      %951 = vmatpush.bf16.msra.mxu0 %v934
      %952 = vmatpush.bf16.msra.mxu0 %v933
      %953 = vmatpush.bf16.msra.mxu0 %v932
      %954 = vmatpush.bf16.msra.mxu0 %v931
      %955 = vmatmul.bf16.gmra.mxu0 %v891
      %v956 = vpop.f32.mrf.mxu0
      %v957 = vadd.f32 0.0, %v956
      %v958 = vpop.f32.mrf.mxu0
      %v959 = vadd.f32 0.0, %v958
      %960 = vmatmul.bf16.gmra.mxu0 %v892
      %v961 = vpop.f32.mrf.mxu0
      %v962 = vadd.f32 0.0, %v961
      %v963 = vpop.f32.mrf.mxu0
      %v964 = vadd.f32 0.0, %v963
      %965 = vmatmul.bf16.gmra.mxu0 %v893
      %v966 = vpop.f32.mrf.mxu0
      %v967 = vadd.f32 0.0, %v966
      %v968 = vpop.f32.mrf.mxu0
      %v969 = vadd.f32 0.0, %v968
      %970 = vmatmul.bf16.gmra.mxu0 %v894
      %v971 = vpop.f32.mrf.mxu0
      %v972 = vadd.f32 0.0, %v971
      %v973 = vpop.f32.mrf.mxu0
      %v974 = vadd.f32 0.0, %v973
      %975 = vdwg.mxu0
      %v976 = vadd.f32 %v804, %v957
      %v977 = vadd.f32 %v806, %v959
      %v978 = vadd.f32 %v809, %v962
      %v979 = vadd.f32 %v811, %v964
      %v980 = vadd.f32 %v814, %v967
      %v981 = vadd.f32 %v816, %v969
      %v982 = vadd.f32 %v819, %v972
      %v983 = vadd.f32 %v821, %v974
      %s984 = scalar_lea.vmem %s3, 192
      %v985 = vld [vmem:[%s984] sm:$0xf]
      %v986 = vld [vmem:[%s984 + $0x4] sm:$0xf]
      %v987 = vld [vmem:[%s984 + $0x8] sm:$0xf]
      %v988 = vld [vmem:[%s984 + $0xc] sm:$0xf]
      %v989 = vld [vmem:[%s984 + $0x10] sm:$0xf]
      %v990 = vld [vmem:[%s984 + $0x14] sm:$0xf]
      %v991 = vld [vmem:[%s984 + $0x18] sm:$0xf]
      %v992 = vld [vmem:[%s984 + $0x1c] sm:$0xf]
      %v993 = vld [vmem:[%s984 + $0x20] sm:$0xf]
      %v994 = vld [vmem:[%s984 + $0x24] sm:$0xf]
      %v995 = vld [vmem:[%s984 + $0x28] sm:$0xf]
      %v996 = vld [vmem:[%s984 + $0x2c] sm:$0xf]
      %v997 = vld [vmem:[%s984 + $0x30] sm:$0xf]
      %v998 = vld [vmem:[%s984 + $0x34] sm:$0xf]
      %v999 = vld [vmem:[%s984 + $0x38] sm:$0xf]
      %v1000 = vld [vmem:[%s984 + $0x3c] sm:$0xf]
      %v1002 = vunpack.c.l.b16 %v477
      %v1003 = vpack.c.b16 %v732, %v731
      %v1004 = vpack.c.b16 %v734, %v733
      %v1005 = vpack.c.b16 %v736, %v735
      %v1006 = vpack.c.b16 %v1002, %v737
      %v1027 = vunpack.c.l.b16 %v985
      %v1028 = vunpack.c.l.b16 %v986
      %v1029 = vunpack.c.l.b16 %v987
      %v1030 = vunpack.c.l.b16 %v988
      %v1031 = vunpack.c.l.b16 %v989
      %v1032 = vunpack.c.l.b16 %v990
      %v1033 = vunpack.c.l.b16 %v991
      %v1034 = vunpack.c.l.b16 %v992
      %v1035 = vunpack.c.l.b16 %v993
      %v1036 = vunpack.c.l.b16 %v994
      %v1037 = vunpack.c.l.b16 %v995
      %v1038 = vunpack.c.l.b16 %v996
      %v1039 = vunpack.c.l.b16 %v997
      %v1040 = vunpack.c.l.b16 %v998
      %v1041 = vunpack.c.l.b16 %v999
      %v1042 = vunpack.c.l.b16 %v1000
      %v1043 = vpack.c.b16 %v1028, %v1027
      %v1044 = vpack.c.b16 %v1030, %v1029
      %v1045 = vpack.c.b16 %v1032, %v1031
      %v1046 = vpack.c.b16 %v1034, %v1033
      %v1047 = vpack.c.b16 %v1036, %v1035
      %v1048 = vpack.c.b16 %v1038, %v1037
      %v1049 = vpack.c.b16 %v1040, %v1039
      %v1050 = vpack.c.b16 %v1042, %v1041
      %1059 = vmatpush.bf16.msra.mxu0 %v1050
      %1060 = vmatpush.bf16.msra.mxu0 %v1049
      %1061 = vmatpush.bf16.msra.mxu0 %v1048
      %1062 = vmatpush.bf16.msra.mxu0 %v1047
      %1063 = vmatpush.bf16.msra.mxu0 %v1046
      %1064 = vmatpush.bf16.msra.mxu0 %v1045
      %1065 = vmatpush.bf16.msra.mxu0 %v1044
      %1066 = vmatpush.bf16.msra.mxu0 %v1043
      %1067 = vmatmul.bf16.gmra.mxu0 %v1003
      %v1068 = vpop.f32.mrf.mxu0
      %v1069 = vadd.f32 0.0, %v1068
      %v1070 = vpop.f32.mrf.mxu0
      %v1071 = vadd.f32 0.0, %v1070
      %1072 = vmatmul.bf16.gmra.mxu0 %v1004
      %v1073 = vpop.f32.mrf.mxu0
      %v1074 = vadd.f32 0.0, %v1073
      %v1075 = vpop.f32.mrf.mxu0
      %v1076 = vadd.f32 0.0, %v1075
      %1077 = vmatmul.bf16.gmra.mxu0 %v1005
      %v1078 = vpop.f32.mrf.mxu0
      %v1079 = vadd.f32 0.0, %v1078
      %v1080 = vpop.f32.mrf.mxu0
      %v1081 = vadd.f32 0.0, %v1080
      %1082 = vmatmul.bf16.gmra.mxu0 %v1006
      %v1083 = vpop.f32.mrf.mxu0
      %v1084 = vadd.f32 0.0, %v1083
      %v1085 = vpop.f32.mrf.mxu0
      %v1086 = vadd.f32 0.0, %v1085
      %1087 = vdwg.mxu0
      %v1088 = vadd.f32 %v976, %v1069
      %v1089 = vadd.f32 %v977, %v1071
      %v1090 = vadd.f32 %v978, %v1074
      %v1091 = vadd.f32 %v979, %v1076
      %v1092 = vadd.f32 %v980, %v1079
      %v1093 = vadd.f32 %v981, %v1081
      %v1094 = vadd.f32 %v982, %v1084
      %v1095 = vadd.f32 %v983, %v1086
      %v1097 = vshrl.u32 %v477, 16
      %v1099 = vrot.slane %v1097, 4
      %v1100 = vshll.u32 %v477, 16
      %v1102 = vrot.slane %v1100, 5
      %v1103 = vor.u32 %v1099, %v1102
      %v1104 = vrot.slane %v1103, 4
      %v1106 = vshll.u32 %v478, 16
      %v1108 = vrot.slane %v1106, 5
      %v1109 = vsel %vm499, %v1104, %v1108
      %s1110 = scalar_lea.vmem %s3, 256
      %v1111 = vld [vmem:[%s1110] sm:$0xf]
      %v1112 = vld [vmem:[%s1110 + $0x4] sm:$0xf]
      %v1113 = vld [vmem:[%s1110 + $0x8] sm:$0xf]
      %v1114 = vld [vmem:[%s1110 + $0xc] sm:$0xf]
      %v1115 = vld [vmem:[%s1110 + $0x10] sm:$0xf]
      %v1116 = vld [vmem:[%s1110 + $0x14] sm:$0xf]
      %v1117 = vld [vmem:[%s1110 + $0x18] sm:$0xf]
      %v1118 = vld [vmem:[%s1110 + $0x1c] sm:$0xf]
      %v1119 = vld [vmem:[%s1110 + $0x20] sm:$0xf]
      %v1120 = vld [vmem:[%s1110 + $0x24] sm:$0xf]
      %v1121 = vld [vmem:[%s1110 + $0x28] sm:$0xf]
      %v1122 = vld [vmem:[%s1110 + $0x2c] sm:$0xf]
      %v1123 = vld [vmem:[%s1110 + $0x30] sm:$0xf]
      %v1124 = vld [vmem:[%s1110 + $0x34] sm:$0xf]
      %v1125 = vld [vmem:[%s1110 + $0x38] sm:$0xf]
      %v1126 = vld [vmem:[%s1110 + $0x3c] sm:$0xf]
      %v1127 = vunpack.c.l.b16 %v1109
      %v1128 = vpack.c.b16 %v631, %v630
      %v1129 = vpack.c.b16 %v633, %v632
      %v1130 = vpack.c.b16 %v635, %v634
      %v1131 = vpack.c.b16 %v1127, %v636
      %v1152 = vunpack.c.l.b16 %v1111
      %v1153 = vunpack.c.l.b16 %v1112
      %v1154 = vunpack.c.l.b16 %v1113
      %v1155 = vunpack.c.l.b16 %v1114
      %v1156 = vunpack.c.l.b16 %v1115
      %v1157 = vunpack.c.l.b16 %v1116
      %v1158 = vunpack.c.l.b16 %v1117
      %v1159 = vunpack.c.l.b16 %v1118
      %v1160 = vunpack.c.l.b16 %v1119
      %v1161 = vunpack.c.l.b16 %v1120
      %v1162 = vunpack.c.l.b16 %v1121
      %v1163 = vunpack.c.l.b16 %v1122
      %v1164 = vunpack.c.l.b16 %v1123
      %v1165 = vunpack.c.l.b16 %v1124
      %v1166 = vunpack.c.l.b16 %v1125
      %v1167 = vunpack.c.l.b16 %v1126
      %v1168 = vpack.c.b16 %v1153, %v1152
      %v1169 = vpack.c.b16 %v1155, %v1154
      %v1170 = vpack.c.b16 %v1157, %v1156
      %v1171 = vpack.c.b16 %v1159, %v1158
      %v1172 = vpack.c.b16 %v1161, %v1160
      %v1173 = vpack.c.b16 %v1163, %v1162
      %v1174 = vpack.c.b16 %v1165, %v1164
      %v1175 = vpack.c.b16 %v1167, %v1166
      %1184 = vmatpush.bf16.msra.mxu0 %v1175
      %1185 = vmatpush.bf16.msra.mxu0 %v1174
      %1186 = vmatpush.bf16.msra.mxu0 %v1173
      %1187 = vmatpush.bf16.msra.mxu0 %v1172
      %1188 = vmatpush.bf16.msra.mxu0 %v1171
      %1189 = vmatpush.bf16.msra.mxu0 %v1170
      %1190 = vmatpush.bf16.msra.mxu0 %v1169
      %1191 = vmatpush.bf16.msra.mxu0 %v1168
      %1192 = vmatmul.bf16.gmra.mxu0 %v1128
      %v1193 = vpop.f32.mrf.mxu0
      %v1194 = vadd.f32 0.0, %v1193
      %v1195 = vpop.f32.mrf.mxu0
      %v1196 = vadd.f32 0.0, %v1195
      %1197 = vmatmul.bf16.gmra.mxu0 %v1129
      %v1198 = vpop.f32.mrf.mxu0
      %v1199 = vadd.f32 0.0, %v1198
      %v1200 = vpop.f32.mrf.mxu0
      %v1201 = vadd.f32 0.0, %v1200
      %1202 = vmatmul.bf16.gmra.mxu0 %v1130
      %v1203 = vpop.f32.mrf.mxu0
      %v1204 = vadd.f32 0.0, %v1203
      %v1205 = vpop.f32.mrf.mxu0
      %v1206 = vadd.f32 0.0, %v1205
      %1207 = vmatmul.bf16.gmra.mxu0 %v1131
      %v1208 = vpop.f32.mrf.mxu0
      %v1209 = vadd.f32 0.0, %v1208
      %v1210 = vpop.f32.mrf.mxu0
      %v1211 = vadd.f32 0.0, %v1210
      %1212 = vdwg.mxu0
      %v1213 = vadd.f32 %v1088, %v1194
      %v1214 = vadd.f32 %v1089, %v1196
      %v1215 = vadd.f32 %v1090, %v1199
      %v1216 = vadd.f32 %v1091, %v1201
      %v1217 = vadd.f32 %v1092, %v1204
      %v1218 = vadd.f32 %v1093, %v1206
      %v1219 = vadd.f32 %v1094, %v1209
      %v1220 = vadd.f32 %v1095, %v1211
      %v1222 = vrot.slane %v477, 5
      %v1223 = vrot.slane %v1222, 4
      %v1224 = vrot.slane %v478, 5
      %v1225 = vsel %vm833, %v1223, %v1224
      %s1226 = scalar_lea.vmem %s3, 320
      %v1227 = vld [vmem:[%s1226] sm:$0xf]
      %v1228 = vld [vmem:[%s1226 + $0x4] sm:$0xf]
      %v1229 = vld [vmem:[%s1226 + $0x8] sm:$0xf]
      %v1230 = vld [vmem:[%s1226 + $0xc] sm:$0xf]
      %v1231 = vld [vmem:[%s1226 + $0x10] sm:$0xf]
      %v1232 = vld [vmem:[%s1226 + $0x14] sm:$0xf]
      %v1233 = vld [vmem:[%s1226 + $0x18] sm:$0xf]
      %v1234 = vld [vmem:[%s1226 + $0x1c] sm:$0xf]
      %v1235 = vld [vmem:[%s1226 + $0x20] sm:$0xf]
      %v1236 = vld [vmem:[%s1226 + $0x24] sm:$0xf]
      %v1237 = vld [vmem:[%s1226 + $0x28] sm:$0xf]
      %v1238 = vld [vmem:[%s1226 + $0x2c] sm:$0xf]
      %v1239 = vld [vmem:[%s1226 + $0x30] sm:$0xf]
      %v1240 = vld [vmem:[%s1226 + $0x34] sm:$0xf]
      %v1241 = vld [vmem:[%s1226 + $0x38] sm:$0xf]
      %v1242 = vld [vmem:[%s1226 + $0x3c] sm:$0xf]
      %v1243 = vunpack.c.l.b16 %v1225
      %v1244 = vpack.c.b16 %v885, %v884
      %v1245 = vpack.c.b16 %v887, %v886
      %v1246 = vpack.c.b16 %v889, %v888
      %v1247 = vpack.c.b16 %v1243, %v890
      %v1268 = vunpack.c.l.b16 %v1227
      %v1269 = vunpack.c.l.b16 %v1228
      %v1270 = vunpack.c.l.b16 %v1229
      %v1271 = vunpack.c.l.b16 %v1230
      %v1272 = vunpack.c.l.b16 %v1231
      %v1273 = vunpack.c.l.b16 %v1232
      %v1274 = vunpack.c.l.b16 %v1233
      %v1275 = vunpack.c.l.b16 %v1234
      %v1276 = vunpack.c.l.b16 %v1235
      %v1277 = vunpack.c.l.b16 %v1236
      %v1278 = vunpack.c.l.b16 %v1237
      %v1279 = vunpack.c.l.b16 %v1238
      %v1280 = vunpack.c.l.b16 %v1239
      %v1281 = vunpack.c.l.b16 %v1240
      %v1282 = vunpack.c.l.b16 %v1241
      %v1283 = vunpack.c.l.b16 %v1242
      %v1284 = vpack.c.b16 %v1269, %v1268
      %v1285 = vpack.c.b16 %v1271, %v1270
      %v1286 = vpack.c.b16 %v1273, %v1272
      %v1287 = vpack.c.b16 %v1275, %v1274
      %v1288 = vpack.c.b16 %v1277, %v1276
      %v1289 = vpack.c.b16 %v1279, %v1278
      %v1290 = vpack.c.b16 %v1281, %v1280
      %v1291 = vpack.c.b16 %v1283, %v1282
      %1300 = vmatpush.bf16.msra.mxu0 %v1291
      %1301 = vmatpush.bf16.msra.mxu0 %v1290
      %1302 = vmatpush.bf16.msra.mxu0 %v1289
      %1303 = vmatpush.bf16.msra.mxu0 %v1288
      %1304 = vmatpush.bf16.msra.mxu0 %v1287
      %1305 = vmatpush.bf16.msra.mxu0 %v1286
      %1306 = vmatpush.bf16.msra.mxu0 %v1285
      %1307 = vmatpush.bf16.msra.mxu0 %v1284
      %1308 = vmatmul.bf16.gmra.mxu0 %v1244
      %v1309 = vpop.f32.mrf.mxu0
      %v1310 = vadd.f32 0.0, %v1309
      %v1311 = vpop.f32.mrf.mxu0
      %v1312 = vadd.f32 0.0, %v1311
      %1313 = vmatmul.bf16.gmra.mxu0 %v1245
      %v1314 = vpop.f32.mrf.mxu0
      %v1315 = vadd.f32 0.0, %v1314
      %v1316 = vpop.f32.mrf.mxu0
      %v1317 = vadd.f32 0.0, %v1316
      %1318 = vmatmul.bf16.gmra.mxu0 %v1246
      %v1319 = vpop.f32.mrf.mxu0
      %v1320 = vadd.f32 0.0, %v1319
      %v1321 = vpop.f32.mrf.mxu0
      %v1322 = vadd.f32 0.0, %v1321
      %1323 = vmatmul.bf16.gmra.mxu0 %v1247
      %v1324 = vpop.f32.mrf.mxu0
      %v1325 = vadd.f32 0.0, %v1324
      %v1326 = vpop.f32.mrf.mxu0
      %v1327 = vadd.f32 0.0, %v1326
      %1328 = vdwg.mxu0
      %v1329 = vadd.f32 %v1213, %v1310
      %v1330 = vadd.f32 %v1214, %v1312
      %v1331 = vadd.f32 %v1215, %v1315
      %v1332 = vadd.f32 %v1216, %v1317
      %v1333 = vadd.f32 %v1217, %v1320
      %v1334 = vadd.f32 %v1218, %v1322
      %v1335 = vadd.f32 %v1219, %v1325
      %v1336 = vadd.f32 %v1220, %v1327
      %s1337 = scalar_lea.vmem %s3, 384
      %v1338 = vld [vmem:[%s1337] sm:$0xf]
      %v1339 = vld [vmem:[%s1337 + $0x4] sm:$0xf]
      %v1340 = vld [vmem:[%s1337 + $0x8] sm:$0xf]
      %v1341 = vld [vmem:[%s1337 + $0xc] sm:$0xf]
      %v1342 = vld [vmem:[%s1337 + $0x10] sm:$0xf]
      %v1343 = vld [vmem:[%s1337 + $0x14] sm:$0xf]
      %v1344 = vld [vmem:[%s1337 + $0x18] sm:$0xf]
      %v1345 = vld [vmem:[%s1337 + $0x1c] sm:$0xf]
      %v1346 = vld [vmem:[%s1337 + $0x20] sm:$0xf]
      %v1347 = vld [vmem:[%s1337 + $0x24] sm:$0xf]
      %v1348 = vld [vmem:[%s1337 + $0x28] sm:$0xf]
      %v1349 = vld [vmem:[%s1337 + $0x2c] sm:$0xf]
      %v1350 = vld [vmem:[%s1337 + $0x30] sm:$0xf]
      %v1351 = vld [vmem:[%s1337 + $0x34] sm:$0xf]
      %v1352 = vld [vmem:[%s1337 + $0x38] sm:$0xf]
      %v1353 = vld [vmem:[%s1337 + $0x3c] sm:$0xf]
      %v1355 = vunpack.c.l.b16 %v479
      %v1356 = vpack.c.b16 %v1355, %v1002
      %v1374 = vunpack.c.l.b16 %v1338
      %v1375 = vunpack.c.l.b16 %v1339
      %v1376 = vunpack.c.l.b16 %v1340
      %v1377 = vunpack.c.l.b16 %v1341
      %v1378 = vunpack.c.l.b16 %v1342
      %v1379 = vunpack.c.l.b16 %v1343
      %v1380 = vunpack.c.l.b16 %v1344
      %v1381 = vunpack.c.l.b16 %v1345
      %v1382 = vunpack.c.l.b16 %v1346
      %v1383 = vunpack.c.l.b16 %v1347
      %v1384 = vunpack.c.l.b16 %v1348
      %v1385 = vunpack.c.l.b16 %v1349
      %v1386 = vunpack.c.l.b16 %v1350
      %v1387 = vunpack.c.l.b16 %v1351
      %v1388 = vunpack.c.l.b16 %v1352
      %v1389 = vunpack.c.l.b16 %v1353
      %v1390 = vpack.c.b16 %v1375, %v1374
      %v1391 = vpack.c.b16 %v1377, %v1376
      %v1392 = vpack.c.b16 %v1379, %v1378
      %v1393 = vpack.c.b16 %v1381, %v1380
      %v1394 = vpack.c.b16 %v1383, %v1382
      %v1395 = vpack.c.b16 %v1385, %v1384
      %v1396 = vpack.c.b16 %v1387, %v1386
      %v1397 = vpack.c.b16 %v1389, %v1388
      %1406 = vmatpush.bf16.msra.mxu0 %v1397
      %1407 = vmatpush.bf16.msra.mxu0 %v1396
      %1408 = vmatpush.bf16.msra.mxu0 %v1395
      %1409 = vmatpush.bf16.msra.mxu0 %v1394
      %1410 = vmatpush.bf16.msra.mxu0 %v1393
      %1411 = vmatpush.bf16.msra.mxu0 %v1392
      %1412 = vmatpush.bf16.msra.mxu0 %v1391
      %1413 = vmatpush.bf16.msra.mxu0 %v1390
      %1414 = vmatmul.bf16.gmra.mxu0 %v739
      %v1415 = vpop.f32.mrf.mxu0
      %v1416 = vadd.f32 0.0, %v1415
      %v1417 = vpop.f32.mrf.mxu0
      %v1418 = vadd.f32 0.0, %v1417
      %1419 = vmatmul.bf16.gmra.mxu0 %v740
      %v1420 = vpop.f32.mrf.mxu0
      %v1421 = vadd.f32 0.0, %v1420
      %v1422 = vpop.f32.mrf.mxu0
      %v1423 = vadd.f32 0.0, %v1422
      %1424 = vmatmul.bf16.gmra.mxu0 %v741
      %v1425 = vpop.f32.mrf.mxu0
      %v1426 = vadd.f32 0.0, %v1425
      %v1427 = vpop.f32.mrf.mxu0
      %v1428 = vadd.f32 0.0, %v1427
      %1429 = vmatmul.bf16.gmra.mxu0 %v1356
      %v1430 = vpop.f32.mrf.mxu0
      %v1431 = vadd.f32 0.0, %v1430
      %v1432 = vpop.f32.mrf.mxu0
      %v1433 = vadd.f32 0.0, %v1432
      %1434 = vdwg.mxu0
      %v1435 = vadd.f32 %v1329, %v1416
      %v1436 = vadd.f32 %v1330, %v1418
      %v1437 = vadd.f32 %v1331, %v1421
      %v1438 = vadd.f32 %v1332, %v1423
      %v1439 = vadd.f32 %v1333, %v1426
      %v1440 = vadd.f32 %v1334, %v1428
      %v1441 = vadd.f32 %v1335, %v1431
      %v1442 = vadd.f32 %v1336, %v1433
      %v1444 = vshrl.u32 %v479, 16
      %v1446 = vrot.slane %v1444, 4
      %v1447 = vshll.u32 %v479, 16
      %v1449 = vrot.slane %v1447, 5
      %v1450 = vor.u32 %v1446, %v1449
      %v1451 = vrot.slane %v1450, 4
      %v1453 = vshll.u32 %v480, 16
      %v1455 = vrot.slane %v1453, 5
      %v1456 = vsel %vm499, %v1451, %v1455
      %s1457 = scalar_lea.vmem %s3, 448
      %v1458 = vld [vmem:[%s1457] sm:$0xf]
      %v1459 = vld [vmem:[%s1457 + $0x4] sm:$0xf]
      %v1460 = vld [vmem:[%s1457 + $0x8] sm:$0xf]
      %v1461 = vld [vmem:[%s1457 + $0xc] sm:$0xf]
      %v1462 = vld [vmem:[%s1457 + $0x10] sm:$0xf]
      %v1463 = vld [vmem:[%s1457 + $0x14] sm:$0xf]
      %v1464 = vld [vmem:[%s1457 + $0x18] sm:$0xf]
      %v1465 = vld [vmem:[%s1457 + $0x1c] sm:$0xf]
      %v1466 = vld [vmem:[%s1457 + $0x20] sm:$0xf]
      %v1467 = vld [vmem:[%s1457 + $0x24] sm:$0xf]
      %v1468 = vld [vmem:[%s1457 + $0x28] sm:$0xf]
      %v1469 = vld [vmem:[%s1457 + $0x2c] sm:$0xf]
      %v1470 = vld [vmem:[%s1457 + $0x30] sm:$0xf]
      %v1471 = vld [vmem:[%s1457 + $0x34] sm:$0xf]
      %v1472 = vld [vmem:[%s1457 + $0x38] sm:$0xf]
      %v1473 = vld [vmem:[%s1457 + $0x3c] sm:$0xf]
      %v1474 = vunpack.c.l.b16 %v1456
      %v1475 = vpack.c.b16 %v1474, %v1127
      %v1493 = vunpack.c.l.b16 %v1458
      %v1494 = vunpack.c.l.b16 %v1459
      %v1495 = vunpack.c.l.b16 %v1460
      %v1496 = vunpack.c.l.b16 %v1461
      %v1497 = vunpack.c.l.b16 %v1462
      %v1498 = vunpack.c.l.b16 %v1463
      %v1499 = vunpack.c.l.b16 %v1464
      %v1500 = vunpack.c.l.b16 %v1465
      %v1501 = vunpack.c.l.b16 %v1466
      %v1502 = vunpack.c.l.b16 %v1467
      %v1503 = vunpack.c.l.b16 %v1468
      %v1504 = vunpack.c.l.b16 %v1469
      %v1505 = vunpack.c.l.b16 %v1470
      %v1506 = vunpack.c.l.b16 %v1471
      %v1507 = vunpack.c.l.b16 %v1472
      %v1508 = vunpack.c.l.b16 %v1473
      %v1509 = vpack.c.b16 %v1494, %v1493
      %v1510 = vpack.c.b16 %v1496, %v1495
      %v1511 = vpack.c.b16 %v1498, %v1497
      %v1512 = vpack.c.b16 %v1500, %v1499
      %v1513 = vpack.c.b16 %v1502, %v1501
      %v1514 = vpack.c.b16 %v1504, %v1503
      %v1515 = vpack.c.b16 %v1506, %v1505
      %v1516 = vpack.c.b16 %v1508, %v1507
      %1525 = vmatpush.bf16.msra.mxu0 %v1516
      %1526 = vmatpush.bf16.msra.mxu0 %v1515
      %1527 = vmatpush.bf16.msra.mxu0 %v1514
      %1528 = vmatpush.bf16.msra.mxu0 %v1513
      %1529 = vmatpush.bf16.msra.mxu0 %v1512
      %1530 = vmatpush.bf16.msra.mxu0 %v1511
      %1531 = vmatpush.bf16.msra.mxu0 %v1510
      %1532 = vmatpush.bf16.msra.mxu0 %v1509
      %1533 = vmatmul.bf16.gmra.mxu0 %v638
      %v1534 = vpop.f32.mrf.mxu0
      %v1535 = vadd.f32 0.0, %v1534
      %v1536 = vpop.f32.mrf.mxu0
      %v1537 = vadd.f32 0.0, %v1536
      %1538 = vmatmul.bf16.gmra.mxu0 %v639
      %v1539 = vpop.f32.mrf.mxu0
      %v1540 = vadd.f32 0.0, %v1539
      %v1541 = vpop.f32.mrf.mxu0
      %v1542 = vadd.f32 0.0, %v1541
      %1543 = vmatmul.bf16.gmra.mxu0 %v640
      %v1544 = vpop.f32.mrf.mxu0
      %v1545 = vadd.f32 0.0, %v1544
      %v1546 = vpop.f32.mrf.mxu0
      %v1547 = vadd.f32 0.0, %v1546
      %1548 = vmatmul.bf16.gmra.mxu0 %v1475
      %v1549 = vpop.f32.mrf.mxu0
      %v1550 = vadd.f32 0.0, %v1549
      %v1551 = vpop.f32.mrf.mxu0
      %v1552 = vadd.f32 0.0, %v1551
      %1553 = vdwg.mxu0
      %v1554 = vadd.f32 %v1435, %v1535
      %v1555 = vadd.f32 %v1436, %v1537
      %v1556 = vadd.f32 %v1437, %v1540
      %v1557 = vadd.f32 %v1438, %v1542
      %v1558 = vadd.f32 %v1439, %v1545
      %v1559 = vadd.f32 %v1440, %v1547
      %v1560 = vadd.f32 %v1441, %v1550
      %v1561 = vadd.f32 %v1442, %v1552
      %v1563 = vrot.slane %v479, 5
      %v1564 = vrot.slane %v1563, 4
      %v1565 = vrot.slane %v480, 5
      %v1566 = vsel %vm833, %v1564, %v1565
      %s1567 = scalar_lea.vmem %s3, 512
      %v1568 = vld [vmem:[%s1567] sm:$0xf]
      %v1569 = vld [vmem:[%s1567 + $0x4] sm:$0xf]
      %v1570 = vld [vmem:[%s1567 + $0x8] sm:$0xf]
      %v1571 = vld [vmem:[%s1567 + $0xc] sm:$0xf]
      %v1572 = vld [vmem:[%s1567 + $0x10] sm:$0xf]
      %v1573 = vld [vmem:[%s1567 + $0x14] sm:$0xf]
      %v1574 = vld [vmem:[%s1567 + $0x18] sm:$0xf]
      %v1575 = vld [vmem:[%s1567 + $0x1c] sm:$0xf]
      %v1576 = vld [vmem:[%s1567 + $0x20] sm:$0xf]
      %v1577 = vld [vmem:[%s1567 + $0x24] sm:$0xf]
      %v1578 = vld [vmem:[%s1567 + $0x28] sm:$0xf]
      %v1579 = vld [vmem:[%s1567 + $0x2c] sm:$0xf]
      %v1580 = vld [vmem:[%s1567 + $0x30] sm:$0xf]
      %v1581 = vld [vmem:[%s1567 + $0x34] sm:$0xf]
      %v1582 = vld [vmem:[%s1567 + $0x38] sm:$0xf]
      %v1583 = vld [vmem:[%s1567 + $0x3c] sm:$0xf]
      %v1584 = vunpack.c.l.b16 %v1566
      %v1585 = vpack.c.b16 %v1584, %v1243
      %v1603 = vunpack.c.l.b16 %v1568
      %v1604 = vunpack.c.l.b16 %v1569
      %v1605 = vunpack.c.l.b16 %v1570
      %v1606 = vunpack.c.l.b16 %v1571
      %v1607 = vunpack.c.l.b16 %v1572
      %v1608 = vunpack.c.l.b16 %v1573
      %v1609 = vunpack.c.l.b16 %v1574
      %v1610 = vunpack.c.l.b16 %v1575
      %v1611 = vunpack.c.l.b16 %v1576
      %v1612 = vunpack.c.l.b16 %v1577
      %v1613 = vunpack.c.l.b16 %v1578
      %v1614 = vunpack.c.l.b16 %v1579
      %v1615 = vunpack.c.l.b16 %v1580
      %v1616 = vunpack.c.l.b16 %v1581
      %v1617 = vunpack.c.l.b16 %v1582
      %v1618 = vunpack.c.l.b16 %v1583
      %v1619 = vpack.c.b16 %v1604, %v1603
      %v1620 = vpack.c.b16 %v1606, %v1605
      %v1621 = vpack.c.b16 %v1608, %v1607
      %v1622 = vpack.c.b16 %v1610, %v1609
      %v1623 = vpack.c.b16 %v1612, %v1611
      %v1624 = vpack.c.b16 %v1614, %v1613
      %v1625 = vpack.c.b16 %v1616, %v1615
      %v1626 = vpack.c.b16 %v1618, %v1617
      %1635 = vmatpush.bf16.msra.mxu0 %v1626
      %1636 = vmatpush.bf16.msra.mxu0 %v1625
      %1637 = vmatpush.bf16.msra.mxu0 %v1624
      %1638 = vmatpush.bf16.msra.mxu0 %v1623
      %1639 = vmatpush.bf16.msra.mxu0 %v1622
      %1640 = vmatpush.bf16.msra.mxu0 %v1621
      %1641 = vmatpush.bf16.msra.mxu0 %v1620
      %1642 = vmatpush.bf16.msra.mxu0 %v1619
      %1643 = vmatmul.bf16.gmra.mxu0 %v892
      %v1644 = vpop.f32.mrf.mxu0
      %v1645 = vadd.f32 0.0, %v1644
      %v1646 = vpop.f32.mrf.mxu0
      %v1647 = vadd.f32 0.0, %v1646
      %1648 = vmatmul.bf16.gmra.mxu0 %v893
      %v1649 = vpop.f32.mrf.mxu0
      %v1650 = vadd.f32 0.0, %v1649
      %v1651 = vpop.f32.mrf.mxu0
      %v1652 = vadd.f32 0.0, %v1651
      %1653 = vmatmul.bf16.gmra.mxu0 %v894
      %v1654 = vpop.f32.mrf.mxu0
      %v1655 = vadd.f32 0.0, %v1654
      %v1656 = vpop.f32.mrf.mxu0
      %v1657 = vadd.f32 0.0, %v1656
      %1658 = vmatmul.bf16.gmra.mxu0 %v1585
      %v1659 = vpop.f32.mrf.mxu0
      %v1660 = vadd.f32 0.0, %v1659
      %v1661 = vpop.f32.mrf.mxu0
      %v1662 = vadd.f32 0.0, %v1661
      %1663 = vdwg.mxu0
      %v1664 = vadd.f32 %v1554, %v1645
      %v1665 = vadd.f32 %v1555, %v1647
      %v1666 = vadd.f32 %v1556, %v1650
      %v1667 = vadd.f32 %v1557, %v1652
      %v1668 = vadd.f32 %v1558, %v1655
      %v1669 = vadd.f32 %v1559, %v1657
      %v1670 = vadd.f32 %v1560, %v1660
      %v1671 = vadd.f32 %v1561, %v1662
      %v1672 = vld [vmem:[%s425] sm:$0xf]
      %v1673 = vld [vmem:[%s425 + $0x4] sm:$0x1]
      %v1674 = vld [vmem:[%s425 + $0x8] sm:$0xf]
      %v1675 = vld [vmem:[%s425 + $0xc] sm:$0x1]
      %v1676 = vld [vmem:[%s425 + $0x10] sm:$0xf]
      %v1677 = vld [vmem:[%s425 + $0x14] sm:$0x1]
      %v1678 = vld [vmem:[%s425 + $0x18] sm:$0xf]
      %v1679 = vld [vmem:[%s425 + $0x1c] sm:$0x1]
      %v1680 = vld [vmem:[%s425 + $0x20] sm:$0xf]
      %v1681 = vld [vmem:[%s425 + $0x24] sm:$0x1]
      %v1682 = vld [vmem:[%s425 + $0x28] sm:$0xf]
      %v1683 = vld [vmem:[%s425 + $0x2c] sm:$0x1]
      %v1684 = vld [vmem:[%s425 + $0x30] sm:$0xf]
      %v1685 = vld [vmem:[%s425 + $0x34] sm:$0x1]
      %v1686 = vld [vmem:[%s425 + $0x38] sm:$0xf]
      %v1687 = vld [vmem:[%s425 + $0x3c] sm:$0x1]
      %v1688 = vld [vmem:[%s425 + $0x40] sm:$0xf]
      %v1689 = vld [vmem:[%s425 + $0x44] sm:$0x1]
      %v1690 = vld [vmem:[%s425 + $0x48] sm:$0xf]
      %v1691 = vld [vmem:[%s425 + $0x4c] sm:$0x1]
      %s1692 = scalar_lea.vmem %s3, 576
      %v1693 = vld [vmem:[%s1692] sm:$0xf]
      %v1694 = vld [vmem:[%s1692 + $0x4] sm:$0xf]
      %v1695 = vld [vmem:[%s1692 + $0x8] sm:$0xf]
      %v1696 = vld [vmem:[%s1692 + $0xc] sm:$0xf]
      %v1697 = vld [vmem:[%s1692 + $0x10] sm:$0xf]
      %v1698 = vld [vmem:[%s1692 + $0x14] sm:$0xf]
      %v1699 = vld [vmem:[%s1692 + $0x18] sm:$0xf]
      %v1700 = vld [vmem:[%s1692 + $0x1c] sm:$0xf]
      %v1701 = vld [vmem:[%s1692 + $0x20] sm:$0xf]
      %v1702 = vld [vmem:[%s1692 + $0x24] sm:$0xf]
      %v1703 = vld [vmem:[%s1692 + $0x28] sm:$0xf]
      %v1704 = vld [vmem:[%s1692 + $0x2c] sm:$0xf]
      %v1705 = vld [vmem:[%s1692 + $0x30] sm:$0xf]
      %v1706 = vld [vmem:[%s1692 + $0x34] sm:$0xf]
      %v1707 = vld [vmem:[%s1692 + $0x38] sm:$0xf]
      %v1708 = vld [vmem:[%s1692 + $0x3c] sm:$0xf]
      %v1717 = vunpack.c.l.b16 %v1672
      %v1718 = vunpack.c.l.b16 %v1674
      %v1719 = vunpack.c.l.b16 %v1676
      %v1720 = vunpack.c.l.b16 %v1678
      %v1721 = vunpack.c.l.b16 %v1680
      %v1722 = vunpack.c.l.b16 %v1682
      %v1723 = vunpack.c.l.b16 %v1684
      %v1724 = vunpack.c.l.b16 %v1686
      %v1725 = vpack.c.b16 %v1718, %v1717
      %v1726 = vpack.c.b16 %v1720, %v1719
      %v1727 = vpack.c.b16 %v1722, %v1721
      %v1728 = vpack.c.b16 %v1724, %v1723
      %v1749 = vunpack.c.l.b16 %v1693
      %v1750 = vunpack.c.l.b16 %v1694
      %v1751 = vunpack.c.l.b16 %v1695
      %v1752 = vunpack.c.l.b16 %v1696
      %v1753 = vunpack.c.l.b16 %v1697
      %v1754 = vunpack.c.l.b16 %v1698
      %v1755 = vunpack.c.l.b16 %v1699
      %v1756 = vunpack.c.l.b16 %v1700
      %v1757 = vunpack.c.l.b16 %v1701
      %v1758 = vunpack.c.l.b16 %v1702
      %v1759 = vunpack.c.l.b16 %v1703
      %v1760 = vunpack.c.l.b16 %v1704
      %v1761 = vunpack.c.l.b16 %v1705
      %v1762 = vunpack.c.l.b16 %v1706
      %v1763 = vunpack.c.l.b16 %v1707
      %v1764 = vunpack.c.l.b16 %v1708
      %v1765 = vpack.c.b16 %v1750, %v1749
      %v1766 = vpack.c.b16 %v1752, %v1751
      %v1767 = vpack.c.b16 %v1754, %v1753
      %v1768 = vpack.c.b16 %v1756, %v1755
      %v1769 = vpack.c.b16 %v1758, %v1757
      %v1770 = vpack.c.b16 %v1760, %v1759
      %v1771 = vpack.c.b16 %v1762, %v1761
      %v1772 = vpack.c.b16 %v1764, %v1763
      %1781 = vmatpush.bf16.msra.mxu0 %v1772
      %1782 = vmatpush.bf16.msra.mxu0 %v1771
      %1783 = vmatpush.bf16.msra.mxu0 %v1770
      %1784 = vmatpush.bf16.msra.mxu0 %v1769
      %1785 = vmatpush.bf16.msra.mxu0 %v1768
      %1786 = vmatpush.bf16.msra.mxu0 %v1767
      %1787 = vmatpush.bf16.msra.mxu0 %v1766
      %1788 = vmatpush.bf16.msra.mxu0 %v1765
      %1789 = vmatmul.bf16.gmra.mxu0 %v1725
      %v1790 = vpop.f32.mrf.mxu0
      %v1791 = vadd.f32 0.0, %v1790
      %v1792 = vpop.f32.mrf.mxu0
      %v1793 = vadd.f32 0.0, %v1792
      %1794 = vmatmul.bf16.gmra.mxu0 %v1726
      %v1795 = vpop.f32.mrf.mxu0
      %v1796 = vadd.f32 0.0, %v1795
      %v1797 = vpop.f32.mrf.mxu0
      %v1798 = vadd.f32 0.0, %v1797
      %1799 = vmatmul.bf16.gmra.mxu0 %v1727
      %v1800 = vpop.f32.mrf.mxu0
      %v1801 = vadd.f32 0.0, %v1800
      %v1802 = vpop.f32.mrf.mxu0
      %v1803 = vadd.f32 0.0, %v1802
      %1804 = vmatmul.bf16.gmra.mxu0 %v1728
      %v1805 = vpop.f32.mrf.mxu0
      %v1806 = vadd.f32 0.0, %v1805
      %v1807 = vpop.f32.mrf.mxu0
      %v1808 = vadd.f32 0.0, %v1807
      %1809 = vdwg.mxu0
      %v1810 = vadd.f32 %v1664, %v1791
      %v1811 = vadd.f32 %v1665, %v1793
      %v1812 = vadd.f32 %v1666, %v1796
      %v1813 = vadd.f32 %v1667, %v1798
      %v1814 = vadd.f32 %v1668, %v1801
      %v1815 = vadd.f32 %v1669, %v1803
      %v1816 = vadd.f32 %v1670, %v1806
      %v1817 = vadd.f32 %v1671, %v1808
      %v1819 = vshrl.u32 %v1672, 16
      %v1821 = vrot.slane %v1819, 4
      %v1822 = vshll.u32 %v1672, 16
      %v1824 = vrot.slane %v1822, 5
      %v1825 = vor.u32 %v1821, %v1824
      %v1826 = vrot.slane %v1825, 4
      %v1828 = vshll.u32 %v1673, 16
      %v1830 = vrot.slane %v1828, 5
      %v1831 = vsel %vm499, %v1826, %v1830
      %v1833 = vshrl.u32 %v1674, 16
      %v1835 = vrot.slane %v1833, 4
      %v1836 = vshll.u32 %v1674, 16
      %v1838 = vrot.slane %v1836, 5
      %v1839 = vor.u32 %v1835, %v1838
      %v1840 = vrot.slane %v1839, 4
      %v1842 = vshll.u32 %v1675, 16
      %v1844 = vrot.slane %v1842, 5
      %v1845 = vsel %vm499, %v1840, %v1844
      %v1847 = vshrl.u32 %v1676, 16
      %v1849 = vrot.slane %v1847, 4
      %v1850 = vshll.u32 %v1676, 16
      %v1852 = vrot.slane %v1850, 5
      %v1853 = vor.u32 %v1849, %v1852
      %v1854 = vrot.slane %v1853, 4
      %v1856 = vshll.u32 %v1677, 16
      %v1858 = vrot.slane %v1856, 5
      %v1859 = vsel %vm499, %v1854, %v1858
      %v1861 = vshrl.u32 %v1678, 16
      %v1863 = vrot.slane %v1861, 4
      %v1864 = vshll.u32 %v1678, 16
      %v1866 = vrot.slane %v1864, 5
      %v1867 = vor.u32 %v1863, %v1866
      %v1868 = vrot.slane %v1867, 4
      %v1870 = vshll.u32 %v1679, 16
      %v1872 = vrot.slane %v1870, 5
      %v1873 = vsel %vm499, %v1868, %v1872
      %v1875 = vshrl.u32 %v1680, 16
      %v1877 = vrot.slane %v1875, 4
      %v1878 = vshll.u32 %v1680, 16
      %v1880 = vrot.slane %v1878, 5
      %v1881 = vor.u32 %v1877, %v1880
      %v1882 = vrot.slane %v1881, 4
      %v1884 = vshll.u32 %v1681, 16
      %v1886 = vrot.slane %v1884, 5
      %v1887 = vsel %vm499, %v1882, %v1886
      %v1889 = vshrl.u32 %v1682, 16
      %v1891 = vrot.slane %v1889, 4
      %v1892 = vshll.u32 %v1682, 16
      %v1894 = vrot.slane %v1892, 5
      %v1895 = vor.u32 %v1891, %v1894
      %v1896 = vrot.slane %v1895, 4
      %v1898 = vshll.u32 %v1683, 16
      %v1900 = vrot.slane %v1898, 5
      %v1901 = vsel %vm499, %v1896, %v1900
      %v1903 = vshrl.u32 %v1684, 16
      %v1905 = vrot.slane %v1903, 4
      %v1906 = vshll.u32 %v1684, 16
      %v1908 = vrot.slane %v1906, 5
      %v1909 = vor.u32 %v1905, %v1908
      %v1910 = vrot.slane %v1909, 4
      %v1912 = vshll.u32 %v1685, 16
      %v1914 = vrot.slane %v1912, 5
      %v1915 = vsel %vm499, %v1910, %v1914
      %v1917 = vshrl.u32 %v1686, 16
      %v1919 = vrot.slane %v1917, 4
      %v1920 = vshll.u32 %v1686, 16
      %v1922 = vrot.slane %v1920, 5
      %v1923 = vor.u32 %v1919, %v1922
      %v1924 = vrot.slane %v1923, 4
      %v1926 = vshll.u32 %v1687, 16
      %v1928 = vrot.slane %v1926, 5
      %v1929 = vsel %vm499, %v1924, %v1928
      %s1930 = scalar_lea.vmem %s3, 640
      %v1931 = vld [vmem:[%s1930] sm:$0xf]
      %v1932 = vld [vmem:[%s1930 + $0x4] sm:$0xf]
      %v1933 = vld [vmem:[%s1930 + $0x8] sm:$0xf]
      %v1934 = vld [vmem:[%s1930 + $0xc] sm:$0xf]
      %v1935 = vld [vmem:[%s1930 + $0x10] sm:$0xf]
      %v1936 = vld [vmem:[%s1930 + $0x14] sm:$0xf]
      %v1937 = vld [vmem:[%s1930 + $0x18] sm:$0xf]
      %v1938 = vld [vmem:[%s1930 + $0x1c] sm:$0xf]
      %v1939 = vld [vmem:[%s1930 + $0x20] sm:$0xf]
      %v1940 = vld [vmem:[%s1930 + $0x24] sm:$0xf]
      %v1941 = vld [vmem:[%s1930 + $0x28] sm:$0xf]
      %v1942 = vld [vmem:[%s1930 + $0x2c] sm:$0xf]
      %v1943 = vld [vmem:[%s1930 + $0x30] sm:$0xf]
      %v1944 = vld [vmem:[%s1930 + $0x34] sm:$0xf]
      %v1945 = vld [vmem:[%s1930 + $0x38] sm:$0xf]
      %v1946 = vld [vmem:[%s1930 + $0x3c] sm:$0xf]
      %v1947 = vunpack.c.l.b16 %v1831
      %v1948 = vunpack.c.l.b16 %v1845
      %v1949 = vunpack.c.l.b16 %v1859
      %v1950 = vunpack.c.l.b16 %v1873
      %v1951 = vunpack.c.l.b16 %v1887
      %v1952 = vunpack.c.l.b16 %v1901
      %v1953 = vunpack.c.l.b16 %v1915
      %v1954 = vunpack.c.l.b16 %v1929
      %v1955 = vpack.c.b16 %v1948, %v1947
      %v1956 = vpack.c.b16 %v1950, %v1949
      %v1957 = vpack.c.b16 %v1952, %v1951
      %v1958 = vpack.c.b16 %v1954, %v1953
      %v1979 = vunpack.c.l.b16 %v1931
      %v1980 = vunpack.c.l.b16 %v1932
      %v1981 = vunpack.c.l.b16 %v1933
      %v1982 = vunpack.c.l.b16 %v1934
      %v1983 = vunpack.c.l.b16 %v1935
      %v1984 = vunpack.c.l.b16 %v1936
      %v1985 = vunpack.c.l.b16 %v1937
      %v1986 = vunpack.c.l.b16 %v1938
      %v1987 = vunpack.c.l.b16 %v1939
      %v1988 = vunpack.c.l.b16 %v1940
      %v1989 = vunpack.c.l.b16 %v1941
      %v1990 = vunpack.c.l.b16 %v1942
      %v1991 = vunpack.c.l.b16 %v1943
      %v1992 = vunpack.c.l.b16 %v1944
      %v1993 = vunpack.c.l.b16 %v1945
      %v1994 = vunpack.c.l.b16 %v1946
      %v1995 = vpack.c.b16 %v1980, %v1979
      %v1996 = vpack.c.b16 %v1982, %v1981
      %v1997 = vpack.c.b16 %v1984, %v1983
      %v1998 = vpack.c.b16 %v1986, %v1985
      %v1999 = vpack.c.b16 %v1988, %v1987
      %v2000 = vpack.c.b16 %v1990, %v1989
      %v2001 = vpack.c.b16 %v1992, %v1991
      %v2002 = vpack.c.b16 %v1994, %v1993
      %2011 = vmatpush.bf16.msra.mxu0 %v2002
      %2012 = vmatpush.bf16.msra.mxu0 %v2001
      %2013 = vmatpush.bf16.msra.mxu0 %v2000
      %2014 = vmatpush.bf16.msra.mxu0 %v1999
      %2015 = vmatpush.bf16.msra.mxu0 %v1998
      %2016 = vmatpush.bf16.msra.mxu0 %v1997
      %2017 = vmatpush.bf16.msra.mxu0 %v1996
      %2018 = vmatpush.bf16.msra.mxu0 %v1995
      %2019 = vmatmul.bf16.gmra.mxu0 %v1955
      %v2020 = vpop.f32.mrf.mxu0
      %v2021 = vadd.f32 0.0, %v2020
      %v2022 = vpop.f32.mrf.mxu0
      %v2023 = vadd.f32 0.0, %v2022
      %2024 = vmatmul.bf16.gmra.mxu0 %v1956
      %v2025 = vpop.f32.mrf.mxu0
      %v2026 = vadd.f32 0.0, %v2025
      %v2027 = vpop.f32.mrf.mxu0
      %v2028 = vadd.f32 0.0, %v2027
      %2029 = vmatmul.bf16.gmra.mxu0 %v1957
      %v2030 = vpop.f32.mrf.mxu0
      %v2031 = vadd.f32 0.0, %v2030
      %v2032 = vpop.f32.mrf.mxu0
      %v2033 = vadd.f32 0.0, %v2032
      %2034 = vmatmul.bf16.gmra.mxu0 %v1958
      %v2035 = vpop.f32.mrf.mxu0
      %v2036 = vadd.f32 0.0, %v2035
      %v2037 = vpop.f32.mrf.mxu0
      %v2038 = vadd.f32 0.0, %v2037
      %2039 = vdwg.mxu0
      %v2040 = vadd.f32 %v1810, %v2021
      %v2041 = vadd.f32 %v1811, %v2023
      %v2042 = vadd.f32 %v1812, %v2026
      %v2043 = vadd.f32 %v1813, %v2028
      %v2044 = vadd.f32 %v1814, %v2031
      %v2045 = vadd.f32 %v1815, %v2033
      %v2046 = vadd.f32 %v1816, %v2036
      %v2047 = vadd.f32 %v1817, %v2038
      %v2056 = vrot.slane %v1672, 5
      %v2057 = vrot.slane %v2056, 4
      %v2058 = vrot.slane %v1673, 5
      %v2059 = vsel %vm833, %v2057, %v2058
      %v2060 = vrot.slane %v1674, 5
      %v2061 = vrot.slane %v2060, 4
      %v2062 = vrot.slane %v1675, 5
      %v2063 = vsel %vm833, %v2061, %v2062
      %v2064 = vrot.slane %v1676, 5
      %v2065 = vrot.slane %v2064, 4
      %v2066 = vrot.slane %v1677, 5
      %v2067 = vsel %vm833, %v2065, %v2066
      %v2068 = vrot.slane %v1678, 5
      %v2069 = vrot.slane %v2068, 4
      %v2070 = vrot.slane %v1679, 5
      %v2071 = vsel %vm833, %v2069, %v2070
      %v2072 = vrot.slane %v1680, 5
      %v2073 = vrot.slane %v2072, 4
      %v2074 = vrot.slane %v1681, 5
      %v2075 = vsel %vm833, %v2073, %v2074
      %v2076 = vrot.slane %v1682, 5
      %v2077 = vrot.slane %v2076, 4
      %v2078 = vrot.slane %v1683, 5
      %v2079 = vsel %vm833, %v2077, %v2078
      %v2080 = vrot.slane %v1684, 5
      %v2081 = vrot.slane %v2080, 4
      %v2082 = vrot.slane %v1685, 5
      %v2083 = vsel %vm833, %v2081, %v2082
      %v2084 = vrot.slane %v1686, 5
      %v2085 = vrot.slane %v2084, 4
      %v2086 = vrot.slane %v1687, 5
      %v2087 = vsel %vm833, %v2085, %v2086
      %s2088 = scalar_lea.vmem %s3, 704
      %v2089 = vld [vmem:[%s2088] sm:$0xf]
      %v2090 = vld [vmem:[%s2088 + $0x4] sm:$0xf]
      %v2091 = vld [vmem:[%s2088 + $0x8] sm:$0xf]
      %v2092 = vld [vmem:[%s2088 + $0xc] sm:$0xf]
      %v2093 = vld [vmem:[%s2088 + $0x10] sm:$0xf]
      %v2094 = vld [vmem:[%s2088 + $0x14] sm:$0xf]
      %v2095 = vld [vmem:[%s2088 + $0x18] sm:$0xf]
      %v2096 = vld [vmem:[%s2088 + $0x1c] sm:$0xf]
      %v2097 = vld [vmem:[%s2088 + $0x20] sm:$0xf]
      %v2098 = vld [vmem:[%s2088 + $0x24] sm:$0xf]
      %v2099 = vld [vmem:[%s2088 + $0x28] sm:$0xf]
      %v2100 = vld [vmem:[%s2088 + $0x2c] sm:$0xf]
      %v2101 = vld [vmem:[%s2088 + $0x30] sm:$0xf]
      %v2102 = vld [vmem:[%s2088 + $0x34] sm:$0xf]
      %v2103 = vld [vmem:[%s2088 + $0x38] sm:$0xf]
      %v2104 = vld [vmem:[%s2088 + $0x3c] sm:$0xf]
      %v2105 = vunpack.c.l.b16 %v2059
      %v2106 = vunpack.c.l.b16 %v2063
      %v2107 = vunpack.c.l.b16 %v2067
      %v2108 = vunpack.c.l.b16 %v2071
      %v2109 = vunpack.c.l.b16 %v2075
      %v2110 = vunpack.c.l.b16 %v2079
      %v2111 = vunpack.c.l.b16 %v2083
      %v2112 = vunpack.c.l.b16 %v2087
      %v2113 = vpack.c.b16 %v2106, %v2105
      %v2114 = vpack.c.b16 %v2108, %v2107
      %v2115 = vpack.c.b16 %v2110, %v2109
      %v2116 = vpack.c.b16 %v2112, %v2111
      %v2137 = vunpack.c.l.b16 %v2089
      %v2138 = vunpack.c.l.b16 %v2090
      %v2139 = vunpack.c.l.b16 %v2091
      %v2140 = vunpack.c.l.b16 %v2092
      %v2141 = vunpack.c.l.b16 %v2093
      %v2142 = vunpack.c.l.b16 %v2094
      %v2143 = vunpack.c.l.b16 %v2095
      %v2144 = vunpack.c.l.b16 %v2096
      %v2145 = vunpack.c.l.b16 %v2097
      %v2146 = vunpack.c.l.b16 %v2098
      %v2147 = vunpack.c.l.b16 %v2099
      %v2148 = vunpack.c.l.b16 %v2100
      %v2149 = vunpack.c.l.b16 %v2101
      %v2150 = vunpack.c.l.b16 %v2102
      %v2151 = vunpack.c.l.b16 %v2103
      %v2152 = vunpack.c.l.b16 %v2104
      %v2153 = vpack.c.b16 %v2138, %v2137
      %v2154 = vpack.c.b16 %v2140, %v2139
      %v2155 = vpack.c.b16 %v2142, %v2141
      %v2156 = vpack.c.b16 %v2144, %v2143
      %v2157 = vpack.c.b16 %v2146, %v2145
      %v2158 = vpack.c.b16 %v2148, %v2147
      %v2159 = vpack.c.b16 %v2150, %v2149
      %v2160 = vpack.c.b16 %v2152, %v2151
      %2169 = vmatpush.bf16.msra.mxu0 %v2160
      %2170 = vmatpush.bf16.msra.mxu0 %v2159
      %2171 = vmatpush.bf16.msra.mxu0 %v2158
      %2172 = vmatpush.bf16.msra.mxu0 %v2157
      %2173 = vmatpush.bf16.msra.mxu0 %v2156
      %2174 = vmatpush.bf16.msra.mxu0 %v2155
      %2175 = vmatpush.bf16.msra.mxu0 %v2154
      %2176 = vmatpush.bf16.msra.mxu0 %v2153
      %2177 = vmatmul.bf16.gmra.mxu0 %v2113
      %v2178 = vpop.f32.mrf.mxu0
      %v2179 = vadd.f32 0.0, %v2178
      %v2180 = vpop.f32.mrf.mxu0
      %v2181 = vadd.f32 0.0, %v2180
      %2182 = vmatmul.bf16.gmra.mxu0 %v2114
      %v2183 = vpop.f32.mrf.mxu0
      %v2184 = vadd.f32 0.0, %v2183
      %v2185 = vpop.f32.mrf.mxu0
      %v2186 = vadd.f32 0.0, %v2185
      %2187 = vmatmul.bf16.gmra.mxu0 %v2115
      %v2188 = vpop.f32.mrf.mxu0
      %v2189 = vadd.f32 0.0, %v2188
      %v2190 = vpop.f32.mrf.mxu0
      %v2191 = vadd.f32 0.0, %v2190
      %2192 = vmatmul.bf16.gmra.mxu0 %v2116
      %v2193 = vpop.f32.mrf.mxu0
      %v2194 = vadd.f32 0.0, %v2193
      %v2195 = vpop.f32.mrf.mxu0
      %v2196 = vadd.f32 0.0, %v2195
      %2197 = vdwg.mxu0
      %v2198 = vadd.f32 %v2040, %v2179
      %v2199 = vadd.f32 %v2041, %v2181
      %v2200 = vadd.f32 %v2042, %v2184
      %v2201 = vadd.f32 %v2043, %v2186
      %v2202 = vadd.f32 %v2044, %v2189
      %v2203 = vadd.f32 %v2045, %v2191
      %v2204 = vadd.f32 %v2046, %v2194
      %v2205 = vadd.f32 %v2047, %v2196
      %s2206 = scalar_lea.vmem %s3, 768
      %v2207 = vld [vmem:[%s2206] sm:$0xf]
      %v2208 = vld [vmem:[%s2206 + $0x4] sm:$0xf]
      %v2209 = vld [vmem:[%s2206 + $0x8] sm:$0xf]
      %v2210 = vld [vmem:[%s2206 + $0xc] sm:$0xf]
      %v2211 = vld [vmem:[%s2206 + $0x10] sm:$0xf]
      %v2212 = vld [vmem:[%s2206 + $0x14] sm:$0xf]
      %v2213 = vld [vmem:[%s2206 + $0x18] sm:$0xf]
      %v2214 = vld [vmem:[%s2206 + $0x1c] sm:$0xf]
      %v2215 = vld [vmem:[%s2206 + $0x20] sm:$0xf]
      %v2216 = vld [vmem:[%s2206 + $0x24] sm:$0xf]
      %v2217 = vld [vmem:[%s2206 + $0x28] sm:$0xf]
      %v2218 = vld [vmem:[%s2206 + $0x2c] sm:$0xf]
      %v2219 = vld [vmem:[%s2206 + $0x30] sm:$0xf]
      %v2220 = vld [vmem:[%s2206 + $0x34] sm:$0xf]
      %v2221 = vld [vmem:[%s2206 + $0x38] sm:$0xf]
      %v2222 = vld [vmem:[%s2206 + $0x3c] sm:$0xf]
      %v2224 = vunpack.c.l.b16 %v1688
      %v2225 = vpack.c.b16 %v1719, %v1718
      %v2226 = vpack.c.b16 %v1721, %v1720
      %v2227 = vpack.c.b16 %v1723, %v1722
      %v2228 = vpack.c.b16 %v2224, %v1724
      %v2249 = vunpack.c.l.b16 %v2207
      %v2250 = vunpack.c.l.b16 %v2208
      %v2251 = vunpack.c.l.b16 %v2209
      %v2252 = vunpack.c.l.b16 %v2210
      %v2253 = vunpack.c.l.b16 %v2211
      %v2254 = vunpack.c.l.b16 %v2212
      %v2255 = vunpack.c.l.b16 %v2213
      %v2256 = vunpack.c.l.b16 %v2214
      %v2257 = vunpack.c.l.b16 %v2215
      %v2258 = vunpack.c.l.b16 %v2216
      %v2259 = vunpack.c.l.b16 %v2217
      %v2260 = vunpack.c.l.b16 %v2218
      %v2261 = vunpack.c.l.b16 %v2219
      %v2262 = vunpack.c.l.b16 %v2220
      %v2263 = vunpack.c.l.b16 %v2221
      %v2264 = vunpack.c.l.b16 %v2222
      %v2265 = vpack.c.b16 %v2250, %v2249
      %v2266 = vpack.c.b16 %v2252, %v2251
      %v2267 = vpack.c.b16 %v2254, %v2253
      %v2268 = vpack.c.b16 %v2256, %v2255
      %v2269 = vpack.c.b16 %v2258, %v2257
      %v2270 = vpack.c.b16 %v2260, %v2259
      %v2271 = vpack.c.b16 %v2262, %v2261
      %v2272 = vpack.c.b16 %v2264, %v2263
      %2281 = vmatpush.bf16.msra.mxu0 %v2272
      %2282 = vmatpush.bf16.msra.mxu0 %v2271
      %2283 = vmatpush.bf16.msra.mxu0 %v2270
      %2284 = vmatpush.bf16.msra.mxu0 %v2269
      %2285 = vmatpush.bf16.msra.mxu0 %v2268
      %2286 = vmatpush.bf16.msra.mxu0 %v2267
      %2287 = vmatpush.bf16.msra.mxu0 %v2266
      %2288 = vmatpush.bf16.msra.mxu0 %v2265
      %2289 = vmatmul.bf16.gmra.mxu0 %v2225
      %v2290 = vpop.f32.mrf.mxu0
      %v2291 = vadd.f32 0.0, %v2290
      %v2292 = vpop.f32.mrf.mxu0
      %v2293 = vadd.f32 0.0, %v2292
      %2294 = vmatmul.bf16.gmra.mxu0 %v2226
      %v2295 = vpop.f32.mrf.mxu0
      %v2296 = vadd.f32 0.0, %v2295
      %v2297 = vpop.f32.mrf.mxu0
      %v2298 = vadd.f32 0.0, %v2297
      %2299 = vmatmul.bf16.gmra.mxu0 %v2227
      %v2300 = vpop.f32.mrf.mxu0
      %v2301 = vadd.f32 0.0, %v2300
      %v2302 = vpop.f32.mrf.mxu0
      %v2303 = vadd.f32 0.0, %v2302
      %2304 = vmatmul.bf16.gmra.mxu0 %v2228
      %v2305 = vpop.f32.mrf.mxu0
      %v2306 = vadd.f32 0.0, %v2305
      %v2307 = vpop.f32.mrf.mxu0
      %v2308 = vadd.f32 0.0, %v2307
      %2309 = vdwg.mxu0
      %v2310 = vadd.f32 %v2198, %v2291
      %v2311 = vadd.f32 %v2199, %v2293
      %v2312 = vadd.f32 %v2200, %v2296
      %v2313 = vadd.f32 %v2201, %v2298
      %v2314 = vadd.f32 %v2202, %v2301
      %v2315 = vadd.f32 %v2203, %v2303
      %v2316 = vadd.f32 %v2204, %v2306
      %v2317 = vadd.f32 %v2205, %v2308
      %v2319 = vshrl.u32 %v1688, 16
      %v2321 = vrot.slane %v2319, 4
      %v2322 = vshll.u32 %v1688, 16
      %v2324 = vrot.slane %v2322, 5
      %v2325 = vor.u32 %v2321, %v2324
      %v2326 = vrot.slane %v2325, 4
      %v2328 = vshll.u32 %v1689, 16
      %v2330 = vrot.slane %v2328, 5
      %v2331 = vsel %vm499, %v2326, %v2330
      %s2332 = scalar_lea.vmem %s3, 832
      %v2333 = vld [vmem:[%s2332] sm:$0xf]
      %v2334 = vld [vmem:[%s2332 + $0x4] sm:$0xf]
      %v2335 = vld [vmem:[%s2332 + $0x8] sm:$0xf]
      %v2336 = vld [vmem:[%s2332 + $0xc] sm:$0xf]
      %v2337 = vld [vmem:[%s2332 + $0x10] sm:$0xf]
      %v2338 = vld [vmem:[%s2332 + $0x14] sm:$0xf]
      %v2339 = vld [vmem:[%s2332 + $0x18] sm:$0xf]
      %v2340 = vld [vmem:[%s2332 + $0x1c] sm:$0xf]
      %v2341 = vld [vmem:[%s2332 + $0x20] sm:$0xf]
      %v2342 = vld [vmem:[%s2332 + $0x24] sm:$0xf]
      %v2343 = vld [vmem:[%s2332 + $0x28] sm:$0xf]
      %v2344 = vld [vmem:[%s2332 + $0x2c] sm:$0xf]
      %v2345 = vld [vmem:[%s2332 + $0x30] sm:$0xf]
      %v2346 = vld [vmem:[%s2332 + $0x34] sm:$0xf]
      %v2347 = vld [vmem:[%s2332 + $0x38] sm:$0xf]
      %v2348 = vld [vmem:[%s2332 + $0x3c] sm:$0xf]
      %v2349 = vunpack.c.l.b16 %v2331
      %v2350 = vpack.c.b16 %v1949, %v1948
      %v2351 = vpack.c.b16 %v1951, %v1950
      %v2352 = vpack.c.b16 %v1953, %v1952
      %v2353 = vpack.c.b16 %v2349, %v1954
      %v2374 = vunpack.c.l.b16 %v2333
      %v2375 = vunpack.c.l.b16 %v2334
      %v2376 = vunpack.c.l.b16 %v2335
      %v2377 = vunpack.c.l.b16 %v2336
      %v2378 = vunpack.c.l.b16 %v2337
      %v2379 = vunpack.c.l.b16 %v2338
      %v2380 = vunpack.c.l.b16 %v2339
      %v2381 = vunpack.c.l.b16 %v2340
      %v2382 = vunpack.c.l.b16 %v2341
      %v2383 = vunpack.c.l.b16 %v2342
      %v2384 = vunpack.c.l.b16 %v2343
      %v2385 = vunpack.c.l.b16 %v2344
      %v2386 = vunpack.c.l.b16 %v2345
      %v2387 = vunpack.c.l.b16 %v2346
      %v2388 = vunpack.c.l.b16 %v2347
      %v2389 = vunpack.c.l.b16 %v2348
      %v2390 = vpack.c.b16 %v2375, %v2374
      %v2391 = vpack.c.b16 %v2377, %v2376
      %v2392 = vpack.c.b16 %v2379, %v2378
      %v2393 = vpack.c.b16 %v2381, %v2380
      %v2394 = vpack.c.b16 %v2383, %v2382
      %v2395 = vpack.c.b16 %v2385, %v2384
      %v2396 = vpack.c.b16 %v2387, %v2386
      %v2397 = vpack.c.b16 %v2389, %v2388
      %2406 = vmatpush.bf16.msra.mxu0 %v2397
      %2407 = vmatpush.bf16.msra.mxu0 %v2396
      %2408 = vmatpush.bf16.msra.mxu0 %v2395
      %2409 = vmatpush.bf16.msra.mxu0 %v2394
      %2410 = vmatpush.bf16.msra.mxu0 %v2393
      %2411 = vmatpush.bf16.msra.mxu0 %v2392
      %2412 = vmatpush.bf16.msra.mxu0 %v2391
      %2413 = vmatpush.bf16.msra.mxu0 %v2390
      %2414 = vmatmul.bf16.gmra.mxu0 %v2350
      %v2415 = vpop.f32.mrf.mxu0
      %v2416 = vadd.f32 0.0, %v2415
      %v2417 = vpop.f32.mrf.mxu0
      %v2418 = vadd.f32 0.0, %v2417
      %2419 = vmatmul.bf16.gmra.mxu0 %v2351
      %v2420 = vpop.f32.mrf.mxu0
      %v2421 = vadd.f32 0.0, %v2420
      %v2422 = vpop.f32.mrf.mxu0
      %v2423 = vadd.f32 0.0, %v2422
      %2424 = vmatmul.bf16.gmra.mxu0 %v2352
      %v2425 = vpop.f32.mrf.mxu0
      %v2426 = vadd.f32 0.0, %v2425
      %v2427 = vpop.f32.mrf.mxu0
      %v2428 = vadd.f32 0.0, %v2427
      %2429 = vmatmul.bf16.gmra.mxu0 %v2353
      %v2430 = vpop.f32.mrf.mxu0
      %v2431 = vadd.f32 0.0, %v2430
      %v2432 = vpop.f32.mrf.mxu0
      %v2433 = vadd.f32 0.0, %v2432
      %2434 = vdwg.mxu0
      %v2435 = vadd.f32 %v2310, %v2416
      %v2436 = vadd.f32 %v2311, %v2418
      %v2437 = vadd.f32 %v2312, %v2421
      %v2438 = vadd.f32 %v2313, %v2423
      %v2439 = vadd.f32 %v2314, %v2426
      %v2440 = vadd.f32 %v2315, %v2428
      %v2441 = vadd.f32 %v2316, %v2431
      %v2442 = vadd.f32 %v2317, %v2433
      %v2444 = vrot.slane %v1688, 5
      %v2445 = vrot.slane %v2444, 4
      %v2446 = vrot.slane %v1689, 5
      %v2447 = vsel %vm833, %v2445, %v2446
      %s2448 = scalar_lea.vmem %s3, 896
      %v2449 = vld [vmem:[%s2448] sm:$0xf]
      %v2450 = vld [vmem:[%s2448 + $0x4] sm:$0xf]
      %v2451 = vld [vmem:[%s2448 + $0x8] sm:$0xf]
      %v2452 = vld [vmem:[%s2448 + $0xc] sm:$0xf]
      %v2453 = vld [vmem:[%s2448 + $0x10] sm:$0xf]
      %v2454 = vld [vmem:[%s2448 + $0x14] sm:$0xf]
      %v2455 = vld [vmem:[%s2448 + $0x18] sm:$0xf]
      %v2456 = vld [vmem:[%s2448 + $0x1c] sm:$0xf]
      %v2457 = vld [vmem:[%s2448 + $0x20] sm:$0xf]
      %v2458 = vld [vmem:[%s2448 + $0x24] sm:$0xf]
      %v2459 = vld [vmem:[%s2448 + $0x28] sm:$0xf]
      %v2460 = vld [vmem:[%s2448 + $0x2c] sm:$0xf]
      %v2461 = vld [vmem:[%s2448 + $0x30] sm:$0xf]
      %v2462 = vld [vmem:[%s2448 + $0x34] sm:$0xf]
      %v2463 = vld [vmem:[%s2448 + $0x38] sm:$0xf]
      %v2464 = vld [vmem:[%s2448 + $0x3c] sm:$0xf]
      %v2465 = vunpack.c.l.b16 %v2447
      %v2466 = vpack.c.b16 %v2107, %v2106
      %v2467 = vpack.c.b16 %v2109, %v2108
      %v2468 = vpack.c.b16 %v2111, %v2110
      %v2469 = vpack.c.b16 %v2465, %v2112
      %v2490 = vunpack.c.l.b16 %v2449
      %v2491 = vunpack.c.l.b16 %v2450
      %v2492 = vunpack.c.l.b16 %v2451
      %v2493 = vunpack.c.l.b16 %v2452
      %v2494 = vunpack.c.l.b16 %v2453
      %v2495 = vunpack.c.l.b16 %v2454
      %v2496 = vunpack.c.l.b16 %v2455
      %v2497 = vunpack.c.l.b16 %v2456
      %v2498 = vunpack.c.l.b16 %v2457
      %v2499 = vunpack.c.l.b16 %v2458
      %v2500 = vunpack.c.l.b16 %v2459
      %v2501 = vunpack.c.l.b16 %v2460
      %v2502 = vunpack.c.l.b16 %v2461
      %v2503 = vunpack.c.l.b16 %v2462
      %v2504 = vunpack.c.l.b16 %v2463
      %v2505 = vunpack.c.l.b16 %v2464
      %v2506 = vpack.c.b16 %v2491, %v2490
      %v2507 = vpack.c.b16 %v2493, %v2492
      %v2508 = vpack.c.b16 %v2495, %v2494
      %v2509 = vpack.c.b16 %v2497, %v2496
      %v2510 = vpack.c.b16 %v2499, %v2498
      %v2511 = vpack.c.b16 %v2501, %v2500
      %v2512 = vpack.c.b16 %v2503, %v2502
      %v2513 = vpack.c.b16 %v2505, %v2504
      %2522 = vmatpush.bf16.msra.mxu0 %v2513
      %2523 = vmatpush.bf16.msra.mxu0 %v2512
      %2524 = vmatpush.bf16.msra.mxu0 %v2511
      %2525 = vmatpush.bf16.msra.mxu0 %v2510
      %2526 = vmatpush.bf16.msra.mxu0 %v2509
      %2527 = vmatpush.bf16.msra.mxu0 %v2508
      %2528 = vmatpush.bf16.msra.mxu0 %v2507
      %2529 = vmatpush.bf16.msra.mxu0 %v2506
      %2530 = vmatmul.bf16.gmra.mxu0 %v2466
      %v2531 = vpop.f32.mrf.mxu0
      %v2532 = vadd.f32 0.0, %v2531
      %v2533 = vpop.f32.mrf.mxu0
      %v2534 = vadd.f32 0.0, %v2533
      %2535 = vmatmul.bf16.gmra.mxu0 %v2467
      %v2536 = vpop.f32.mrf.mxu0
      %v2537 = vadd.f32 0.0, %v2536
      %v2538 = vpop.f32.mrf.mxu0
      %v2539 = vadd.f32 0.0, %v2538
      %2540 = vmatmul.bf16.gmra.mxu0 %v2468
      %v2541 = vpop.f32.mrf.mxu0
      %v2542 = vadd.f32 0.0, %v2541
      %v2543 = vpop.f32.mrf.mxu0
      %v2544 = vadd.f32 0.0, %v2543
      %2545 = vmatmul.bf16.gmra.mxu0 %v2469
      %v2546 = vpop.f32.mrf.mxu0
      %v2547 = vadd.f32 0.0, %v2546
      %v2548 = vpop.f32.mrf.mxu0
      %v2549 = vadd.f32 0.0, %v2548
      %2550 = vdwg.mxu0
      %v2551 = vadd.f32 %v2435, %v2532
      %v2552 = vadd.f32 %v2436, %v2534
      %v2553 = vadd.f32 %v2437, %v2537
      %v2554 = vadd.f32 %v2438, %v2539
      %v2555 = vadd.f32 %v2439, %v2542
      %v2556 = vadd.f32 %v2440, %v2544
      %v2557 = vadd.f32 %v2441, %v2547
      %v2558 = vadd.f32 %v2442, %v2549
      %s2559 = scalar_lea.vmem %s3, 960
      %v2560 = vld [vmem:[%s2559] sm:$0xf]
      %v2561 = vld [vmem:[%s2559 + $0x4] sm:$0xf]
      %v2562 = vld [vmem:[%s2559 + $0x8] sm:$0xf]
      %v2563 = vld [vmem:[%s2559 + $0xc] sm:$0xf]
      %v2564 = vld [vmem:[%s2559 + $0x10] sm:$0xf]
      %v2565 = vld [vmem:[%s2559 + $0x14] sm:$0xf]
      %v2566 = vld [vmem:[%s2559 + $0x18] sm:$0xf]
      %v2567 = vld [vmem:[%s2559 + $0x1c] sm:$0xf]
      %v2568 = vld [vmem:[%s2559 + $0x20] sm:$0xf]
      %v2569 = vld [vmem:[%s2559 + $0x24] sm:$0xf]
      %v2570 = vld [vmem:[%s2559 + $0x28] sm:$0xf]
      %v2571 = vld [vmem:[%s2559 + $0x2c] sm:$0xf]
      %v2572 = vld [vmem:[%s2559 + $0x30] sm:$0xf]
      %v2573 = vld [vmem:[%s2559 + $0x34] sm:$0xf]
      %v2574 = vld [vmem:[%s2559 + $0x38] sm:$0xf]
      %v2575 = vld [vmem:[%s2559 + $0x3c] sm:$0xf]
      %v2577 = vunpack.c.l.b16 %v1690
      %v2578 = vpack.c.b16 %v2577, %v2224
      %v2596 = vunpack.c.l.b16 %v2560
      %v2597 = vunpack.c.l.b16 %v2561
      %v2598 = vunpack.c.l.b16 %v2562
      %v2599 = vunpack.c.l.b16 %v2563
      %v2600 = vunpack.c.l.b16 %v2564
      %v2601 = vunpack.c.l.b16 %v2565
      %v2602 = vunpack.c.l.b16 %v2566
      %v2603 = vunpack.c.l.b16 %v2567
      %v2604 = vunpack.c.l.b16 %v2568
      %v2605 = vunpack.c.l.b16 %v2569
      %v2606 = vunpack.c.l.b16 %v2570
      %v2607 = vunpack.c.l.b16 %v2571
      %v2608 = vunpack.c.l.b16 %v2572
      %v2609 = vunpack.c.l.b16 %v2573
      %v2610 = vunpack.c.l.b16 %v2574
      %v2611 = vunpack.c.l.b16 %v2575
      %v2612 = vpack.c.b16 %v2597, %v2596
      %v2613 = vpack.c.b16 %v2599, %v2598
      %v2614 = vpack.c.b16 %v2601, %v2600
      %v2615 = vpack.c.b16 %v2603, %v2602
      %v2616 = vpack.c.b16 %v2605, %v2604
      %v2617 = vpack.c.b16 %v2607, %v2606
      %v2618 = vpack.c.b16 %v2609, %v2608
      %v2619 = vpack.c.b16 %v2611, %v2610
      %2628 = vmatpush.bf16.msra.mxu0 %v2619
      %2629 = vmatpush.bf16.msra.mxu0 %v2618
      %2630 = vmatpush.bf16.msra.mxu0 %v2617
      %2631 = vmatpush.bf16.msra.mxu0 %v2616
      %2632 = vmatpush.bf16.msra.mxu0 %v2615
      %2633 = vmatpush.bf16.msra.mxu0 %v2614
      %2634 = vmatpush.bf16.msra.mxu0 %v2613
      %2635 = vmatpush.bf16.msra.mxu0 %v2612
      %2636 = vmatmul.bf16.gmra.mxu0 %v1726
      %v2637 = vpop.f32.mrf.mxu0
      %v2638 = vadd.f32 0.0, %v2637
      %v2639 = vpop.f32.mrf.mxu0
      %v2640 = vadd.f32 0.0, %v2639
      %2641 = vmatmul.bf16.gmra.mxu0 %v1727
      %v2642 = vpop.f32.mrf.mxu0
      %v2643 = vadd.f32 0.0, %v2642
      %v2644 = vpop.f32.mrf.mxu0
      %v2645 = vadd.f32 0.0, %v2644
      %2646 = vmatmul.bf16.gmra.mxu0 %v1728
      %v2647 = vpop.f32.mrf.mxu0
      %v2648 = vadd.f32 0.0, %v2647
      %v2649 = vpop.f32.mrf.mxu0
      %v2650 = vadd.f32 0.0, %v2649
      %2651 = vmatmul.bf16.gmra.mxu0 %v2578
      %v2652 = vpop.f32.mrf.mxu0
      %v2653 = vadd.f32 0.0, %v2652
      %v2654 = vpop.f32.mrf.mxu0
      %v2655 = vadd.f32 0.0, %v2654
      %2656 = vdwg.mxu0
      %v2657 = vadd.f32 %v2551, %v2638
      %v2658 = vadd.f32 %v2552, %v2640
      %v2659 = vadd.f32 %v2553, %v2643
      %v2660 = vadd.f32 %v2554, %v2645
      %v2661 = vadd.f32 %v2555, %v2648
      %v2662 = vadd.f32 %v2556, %v2650
      %v2663 = vadd.f32 %v2557, %v2653
      %v2664 = vadd.f32 %v2558, %v2655
      %v2666 = vshrl.u32 %v1690, 16
      %v2668 = vrot.slane %v2666, 4
      %v2669 = vshll.u32 %v1690, 16
      %v2671 = vrot.slane %v2669, 5
      %v2672 = vor.u32 %v2668, %v2671
      %v2673 = vrot.slane %v2672, 4
      %v2675 = vshll.u32 %v1691, 16
      %v2677 = vrot.slane %v2675, 5
      %v2678 = vsel %vm499, %v2673, %v2677
      %s2679 = scalar_lea.vmem %s3, 1024
      %v2680 = vld [vmem:[%s2679] sm:$0xf]
      %v2681 = vld [vmem:[%s2679 + $0x4] sm:$0xf]
      %v2682 = vld [vmem:[%s2679 + $0x8] sm:$0xf]
      %v2683 = vld [vmem:[%s2679 + $0xc] sm:$0xf]
      %v2684 = vld [vmem:[%s2679 + $0x10] sm:$0xf]
      %v2685 = vld [vmem:[%s2679 + $0x14] sm:$0xf]
      %v2686 = vld [vmem:[%s2679 + $0x18] sm:$0xf]
      %v2687 = vld [vmem:[%s2679 + $0x1c] sm:$0xf]
      %v2688 = vld [vmem:[%s2679 + $0x20] sm:$0xf]
      %v2689 = vld [vmem:[%s2679 + $0x24] sm:$0xf]
      %v2690 = vld [vmem:[%s2679 + $0x28] sm:$0xf]
      %v2691 = vld [vmem:[%s2679 + $0x2c] sm:$0xf]
      %v2692 = vld [vmem:[%s2679 + $0x30] sm:$0xf]
      %v2693 = vld [vmem:[%s2679 + $0x34] sm:$0xf]
      %v2694 = vld [vmem:[%s2679 + $0x38] sm:$0xf]
      %v2695 = vld [vmem:[%s2679 + $0x3c] sm:$0xf]
      %v2696 = vunpack.c.l.b16 %v2678
      %v2697 = vpack.c.b16 %v2696, %v2349
      %v2715 = vunpack.c.l.b16 %v2680
      %v2716 = vunpack.c.l.b16 %v2681
      %v2717 = vunpack.c.l.b16 %v2682
      %v2718 = vunpack.c.l.b16 %v2683
      %v2719 = vunpack.c.l.b16 %v2684
      %v2720 = vunpack.c.l.b16 %v2685
      %v2721 = vunpack.c.l.b16 %v2686
      %v2722 = vunpack.c.l.b16 %v2687
      %v2723 = vunpack.c.l.b16 %v2688
      %v2724 = vunpack.c.l.b16 %v2689
      %v2725 = vunpack.c.l.b16 %v2690
      %v2726 = vunpack.c.l.b16 %v2691
      %v2727 = vunpack.c.l.b16 %v2692
      %v2728 = vunpack.c.l.b16 %v2693
      %v2729 = vunpack.c.l.b16 %v2694
      %v2730 = vunpack.c.l.b16 %v2695
      %v2731 = vpack.c.b16 %v2716, %v2715
      %v2732 = vpack.c.b16 %v2718, %v2717
      %v2733 = vpack.c.b16 %v2720, %v2719
      %v2734 = vpack.c.b16 %v2722, %v2721
      %v2735 = vpack.c.b16 %v2724, %v2723
      %v2736 = vpack.c.b16 %v2726, %v2725
      %v2737 = vpack.c.b16 %v2728, %v2727
      %v2738 = vpack.c.b16 %v2730, %v2729
      %2747 = vmatpush.bf16.msra.mxu0 %v2738
      %2748 = vmatpush.bf16.msra.mxu0 %v2737
      %2749 = vmatpush.bf16.msra.mxu0 %v2736
      %2750 = vmatpush.bf16.msra.mxu0 %v2735
      %2751 = vmatpush.bf16.msra.mxu0 %v2734
      %2752 = vmatpush.bf16.msra.mxu0 %v2733
      %2753 = vmatpush.bf16.msra.mxu0 %v2732
      %2754 = vmatpush.bf16.msra.mxu0 %v2731
      %2755 = vmatmul.bf16.gmra.mxu0 %v1956
      %v2756 = vpop.f32.mrf.mxu0
      %v2757 = vadd.f32 0.0, %v2756
      %v2758 = vpop.f32.mrf.mxu0
      %v2759 = vadd.f32 0.0, %v2758
      %2760 = vmatmul.bf16.gmra.mxu0 %v1957
      %v2761 = vpop.f32.mrf.mxu0
      %v2762 = vadd.f32 0.0, %v2761
      %v2763 = vpop.f32.mrf.mxu0
      %v2764 = vadd.f32 0.0, %v2763
      %2765 = vmatmul.bf16.gmra.mxu0 %v1958
      %v2766 = vpop.f32.mrf.mxu0
      %v2767 = vadd.f32 0.0, %v2766
      %v2768 = vpop.f32.mrf.mxu0
      %v2769 = vadd.f32 0.0, %v2768
      %2770 = vmatmul.bf16.gmra.mxu0 %v2697
      %v2771 = vpop.f32.mrf.mxu0
      %v2772 = vadd.f32 0.0, %v2771
      %v2773 = vpop.f32.mrf.mxu0
      %v2774 = vadd.f32 0.0, %v2773
      %2775 = vdwg.mxu0
      %v2776 = vadd.f32 %v2657, %v2757
      %v2777 = vadd.f32 %v2658, %v2759
      %v2778 = vadd.f32 %v2659, %v2762
      %v2779 = vadd.f32 %v2660, %v2764
      %v2780 = vadd.f32 %v2661, %v2767
      %v2781 = vadd.f32 %v2662, %v2769
      %v2782 = vadd.f32 %v2663, %v2772
      %v2783 = vadd.f32 %v2664, %v2774
      %v2785 = vrot.slane %v1690, 5
      %v2786 = vrot.slane %v2785, 4
      %v2787 = vrot.slane %v1691, 5
      %v2788 = vsel %vm833, %v2786, %v2787
      %s2789 = scalar_lea.vmem %s3, 1088
      %v2790 = vld [vmem:[%s2789] sm:$0xf]
      %v2791 = vld [vmem:[%s2789 + $0x4] sm:$0xf]
      %v2792 = vld [vmem:[%s2789 + $0x8] sm:$0xf]
      %v2793 = vld [vmem:[%s2789 + $0xc] sm:$0xf]
      %v2794 = vld [vmem:[%s2789 + $0x10] sm:$0xf]
      %v2795 = vld [vmem:[%s2789 + $0x14] sm:$0xf]
      %v2796 = vld [vmem:[%s2789 + $0x18] sm:$0xf]
      %v2797 = vld [vmem:[%s2789 + $0x1c] sm:$0xf]
      %v2798 = vld [vmem:[%s2789 + $0x20] sm:$0xf]
      %v2799 = vld [vmem:[%s2789 + $0x24] sm:$0xf]
      %v2800 = vld [vmem:[%s2789 + $0x28] sm:$0xf]
      %v2801 = vld [vmem:[%s2789 + $0x2c] sm:$0xf]
      %v2802 = vld [vmem:[%s2789 + $0x30] sm:$0xf]
      %v2803 = vld [vmem:[%s2789 + $0x34] sm:$0xf]
      %v2804 = vld [vmem:[%s2789 + $0x38] sm:$0xf]
      %v2805 = vld [vmem:[%s2789 + $0x3c] sm:$0xf]
      %v2806 = vunpack.c.l.b16 %v2788
      %v2807 = vpack.c.b16 %v2806, %v2465
      %v2825 = vunpack.c.l.b16 %v2790
      %v2826 = vunpack.c.l.b16 %v2791
      %v2827 = vunpack.c.l.b16 %v2792
      %v2828 = vunpack.c.l.b16 %v2793
      %v2829 = vunpack.c.l.b16 %v2794
      %v2830 = vunpack.c.l.b16 %v2795
      %v2831 = vunpack.c.l.b16 %v2796
      %v2832 = vunpack.c.l.b16 %v2797
      %v2833 = vunpack.c.l.b16 %v2798
      %v2834 = vunpack.c.l.b16 %v2799
      %v2835 = vunpack.c.l.b16 %v2800
      %v2836 = vunpack.c.l.b16 %v2801
      %v2837 = vunpack.c.l.b16 %v2802
      %v2838 = vunpack.c.l.b16 %v2803
      %v2839 = vunpack.c.l.b16 %v2804
      %v2840 = vunpack.c.l.b16 %v2805
      %v2841 = vpack.c.b16 %v2826, %v2825
      %v2842 = vpack.c.b16 %v2828, %v2827
      %v2843 = vpack.c.b16 %v2830, %v2829
      %v2844 = vpack.c.b16 %v2832, %v2831
      %v2845 = vpack.c.b16 %v2834, %v2833
      %v2846 = vpack.c.b16 %v2836, %v2835
      %v2847 = vpack.c.b16 %v2838, %v2837
      %v2848 = vpack.c.b16 %v2840, %v2839
      %2857 = vmatpush.bf16.msra.mxu0 %v2848
      %2858 = vmatpush.bf16.msra.mxu0 %v2847
      %2859 = vmatpush.bf16.msra.mxu0 %v2846
      %2860 = vmatpush.bf16.msra.mxu0 %v2845
      %2861 = vmatpush.bf16.msra.mxu0 %v2844
      %2862 = vmatpush.bf16.msra.mxu0 %v2843
      %2863 = vmatpush.bf16.msra.mxu0 %v2842
      %2864 = vmatpush.bf16.msra.mxu0 %v2841
      %2865 = vmatmul.bf16.gmra.mxu0 %v2114
      %v2866 = vpop.f32.mrf.mxu0
      %v2867 = vadd.f32 0.0, %v2866
      %v2868 = vpop.f32.mrf.mxu0
      %v2869 = vadd.f32 0.0, %v2868
      %2870 = vmatmul.bf16.gmra.mxu0 %v2115
      %v2871 = vpop.f32.mrf.mxu0
      %v2872 = vadd.f32 0.0, %v2871
      %v2873 = vpop.f32.mrf.mxu0
      %v2874 = vadd.f32 0.0, %v2873
      %2875 = vmatmul.bf16.gmra.mxu0 %v2116
      %v2876 = vpop.f32.mrf.mxu0
      %v2877 = vadd.f32 0.0, %v2876
      %v2878 = vpop.f32.mrf.mxu0
      %v2879 = vadd.f32 0.0, %v2878
      %2880 = vmatmul.bf16.gmra.mxu0 %v2807
      %v2881 = vpop.f32.mrf.mxu0
      %v2882 = vadd.f32 0.0, %v2881
      %v2883 = vpop.f32.mrf.mxu0
      %v2884 = vadd.f32 0.0, %v2883
      %2885 = vdwg.mxu0
      %v2886 = vadd.f32 %v2776, %v2867
      %v2887 = vadd.f32 %v2777, %v2869
      %v2888 = vadd.f32 %v2778, %v2872
      %v2889 = vadd.f32 %v2779, %v2874
      %v2890 = vadd.f32 %v2780, %v2877
      %v2891 = vadd.f32 %v2781, %v2879
      %v2892 = vadd.f32 %v2782, %v2882
      %v2893 = vadd.f32 %v2783, %v2884
      %v2894 = vld [vmem:[%s436] sm:$0xf]
      %v2895 = vld [vmem:[%s436 + $0x4] sm:$0x1]
      %v2896 = vld [vmem:[%s436 + $0x8] sm:$0xf]
      %v2897 = vld [vmem:[%s436 + $0xc] sm:$0x1]
      %v2898 = vld [vmem:[%s436 + $0x10] sm:$0xf]
      %v2899 = vld [vmem:[%s436 + $0x14] sm:$0x1]
      %v2900 = vld [vmem:[%s436 + $0x18] sm:$0xf]
      %v2901 = vld [vmem:[%s436 + $0x1c] sm:$0x1]
      %v2902 = vld [vmem:[%s436 + $0x20] sm:$0xf]
      %v2903 = vld [vmem:[%s436 + $0x24] sm:$0x1]
      %v2904 = vld [vmem:[%s436 + $0x28] sm:$0xf]
      %v2905 = vld [vmem:[%s436 + $0x2c] sm:$0x1]
      %v2906 = vld [vmem:[%s436 + $0x30] sm:$0xf]
      %v2907 = vld [vmem:[%s436 + $0x34] sm:$0x1]
      %v2908 = vld [vmem:[%s436 + $0x38] sm:$0xf]
      %v2909 = vld [vmem:[%s436 + $0x3c] sm:$0x1]
      %v2910 = vld [vmem:[%s436 + $0x40] sm:$0xf]
      %v2911 = vld [vmem:[%s436 + $0x44] sm:$0x1]
      %v2912 = vld [vmem:[%s436 + $0x48] sm:$0xf]
      %v2913 = vld [vmem:[%s436 + $0x4c] sm:$0x1]
      %s2914 = scalar_lea.vmem %s3, 1152
      %v2915 = vld [vmem:[%s2914] sm:$0xf]
      %v2916 = vld [vmem:[%s2914 + $0x4] sm:$0xf]
      %v2917 = vld [vmem:[%s2914 + $0x8] sm:$0xf]
      %v2918 = vld [vmem:[%s2914 + $0xc] sm:$0xf]
      %v2919 = vld [vmem:[%s2914 + $0x10] sm:$0xf]
      %v2920 = vld [vmem:[%s2914 + $0x14] sm:$0xf]
      %v2921 = vld [vmem:[%s2914 + $0x18] sm:$0xf]
      %v2922 = vld [vmem:[%s2914 + $0x1c] sm:$0xf]
      %v2923 = vld [vmem:[%s2914 + $0x20] sm:$0xf]
      %v2924 = vld [vmem:[%s2914 + $0x24] sm:$0xf]
      %v2925 = vld [vmem:[%s2914 + $0x28] sm:$0xf]
      %v2926 = vld [vmem:[%s2914 + $0x2c] sm:$0xf]
      %v2927 = vld [vmem:[%s2914 + $0x30] sm:$0xf]
      %v2928 = vld [vmem:[%s2914 + $0x34] sm:$0xf]
      %v2929 = vld [vmem:[%s2914 + $0x38] sm:$0xf]
      %v2930 = vld [vmem:[%s2914 + $0x3c] sm:$0xf]
      %v2939 = vunpack.c.l.b16 %v2894
      %v2940 = vunpack.c.l.b16 %v2896
      %v2941 = vunpack.c.l.b16 %v2898
      %v2942 = vunpack.c.l.b16 %v2900
      %v2943 = vunpack.c.l.b16 %v2902
      %v2944 = vunpack.c.l.b16 %v2904
      %v2945 = vunpack.c.l.b16 %v2906
      %v2946 = vunpack.c.l.b16 %v2908
      %v2947 = vpack.c.b16 %v2940, %v2939
      %v2948 = vpack.c.b16 %v2942, %v2941
      %v2949 = vpack.c.b16 %v2944, %v2943
      %v2950 = vpack.c.b16 %v2946, %v2945
      %v2971 = vunpack.c.l.b16 %v2915
      %v2972 = vunpack.c.l.b16 %v2916
      %v2973 = vunpack.c.l.b16 %v2917
      %v2974 = vunpack.c.l.b16 %v2918
      %v2975 = vunpack.c.l.b16 %v2919
      %v2976 = vunpack.c.l.b16 %v2920
      %v2977 = vunpack.c.l.b16 %v2921
      %v2978 = vunpack.c.l.b16 %v2922
      %v2979 = vunpack.c.l.b16 %v2923
      %v2980 = vunpack.c.l.b16 %v2924
      %v2981 = vunpack.c.l.b16 %v2925
      %v2982 = vunpack.c.l.b16 %v2926
      %v2983 = vunpack.c.l.b16 %v2927
      %v2984 = vunpack.c.l.b16 %v2928
      %v2985 = vunpack.c.l.b16 %v2929
      %v2986 = vunpack.c.l.b16 %v2930
      %v2987 = vpack.c.b16 %v2972, %v2971
      %v2988 = vpack.c.b16 %v2974, %v2973
      %v2989 = vpack.c.b16 %v2976, %v2975
      %v2990 = vpack.c.b16 %v2978, %v2977
      %v2991 = vpack.c.b16 %v2980, %v2979
      %v2992 = vpack.c.b16 %v2982, %v2981
      %v2993 = vpack.c.b16 %v2984, %v2983
      %v2994 = vpack.c.b16 %v2986, %v2985
      %3003 = vmatpush.bf16.msra.mxu0 %v2994
      %3004 = vmatpush.bf16.msra.mxu0 %v2993
      %3005 = vmatpush.bf16.msra.mxu0 %v2992
      %3006 = vmatpush.bf16.msra.mxu0 %v2991
      %3007 = vmatpush.bf16.msra.mxu0 %v2990
      %3008 = vmatpush.bf16.msra.mxu0 %v2989
      %3009 = vmatpush.bf16.msra.mxu0 %v2988
      %3010 = vmatpush.bf16.msra.mxu0 %v2987
      %3011 = vmatmul.bf16.gmra.mxu0 %v2947
      %v3012 = vpop.f32.mrf.mxu0
      %v3013 = vadd.f32 0.0, %v3012
      %v3014 = vpop.f32.mrf.mxu0
      %v3015 = vadd.f32 0.0, %v3014
      %3016 = vmatmul.bf16.gmra.mxu0 %v2948
      %v3017 = vpop.f32.mrf.mxu0
      %v3018 = vadd.f32 0.0, %v3017
      %v3019 = vpop.f32.mrf.mxu0
      %v3020 = vadd.f32 0.0, %v3019
      %3021 = vmatmul.bf16.gmra.mxu0 %v2949
      %v3022 = vpop.f32.mrf.mxu0
      %v3023 = vadd.f32 0.0, %v3022
      %v3024 = vpop.f32.mrf.mxu0
      %v3025 = vadd.f32 0.0, %v3024
      %3026 = vmatmul.bf16.gmra.mxu0 %v2950
      %v3027 = vpop.f32.mrf.mxu0
      %v3028 = vadd.f32 0.0, %v3027
      %v3029 = vpop.f32.mrf.mxu0
      %v3030 = vadd.f32 0.0, %v3029
      %3031 = vdwg.mxu0
      %v3032 = vadd.f32 %v2886, %v3013
      %v3033 = vadd.f32 %v2887, %v3015
      %v3034 = vadd.f32 %v2888, %v3018
      %v3035 = vadd.f32 %v2889, %v3020
      %v3036 = vadd.f32 %v2890, %v3023
      %v3037 = vadd.f32 %v2891, %v3025
      %v3038 = vadd.f32 %v2892, %v3028
      %v3039 = vadd.f32 %v2893, %v3030
      %v3041 = vshrl.u32 %v2894, 16
      %v3043 = vrot.slane %v3041, 4
      %v3044 = vshll.u32 %v2894, 16
      %v3046 = vrot.slane %v3044, 5
      %v3047 = vor.u32 %v3043, %v3046
      %v3048 = vrot.slane %v3047, 4
      %v3050 = vshll.u32 %v2895, 16
      %v3052 = vrot.slane %v3050, 5
      %v3053 = vsel %vm499, %v3048, %v3052
      %v3055 = vshrl.u32 %v2896, 16
      %v3057 = vrot.slane %v3055, 4
      %v3058 = vshll.u32 %v2896, 16
      %v3060 = vrot.slane %v3058, 5
      %v3061 = vor.u32 %v3057, %v3060
      %v3062 = vrot.slane %v3061, 4
      %v3064 = vshll.u32 %v2897, 16
      %v3066 = vrot.slane %v3064, 5
      %v3067 = vsel %vm499, %v3062, %v3066
      %v3069 = vshrl.u32 %v2898, 16
      %v3071 = vrot.slane %v3069, 4
      %v3072 = vshll.u32 %v2898, 16
      %v3074 = vrot.slane %v3072, 5
      %v3075 = vor.u32 %v3071, %v3074
      %v3076 = vrot.slane %v3075, 4
      %v3078 = vshll.u32 %v2899, 16
      %v3080 = vrot.slane %v3078, 5
      %v3081 = vsel %vm499, %v3076, %v3080
      %v3083 = vshrl.u32 %v2900, 16
      %v3085 = vrot.slane %v3083, 4
      %v3086 = vshll.u32 %v2900, 16
      %v3088 = vrot.slane %v3086, 5
      %v3089 = vor.u32 %v3085, %v3088
      %v3090 = vrot.slane %v3089, 4
      %v3092 = vshll.u32 %v2901, 16
      %v3094 = vrot.slane %v3092, 5
      %v3095 = vsel %vm499, %v3090, %v3094
      %v3097 = vshrl.u32 %v2902, 16
      %v3099 = vrot.slane %v3097, 4
      %v3100 = vshll.u32 %v2902, 16
      %v3102 = vrot.slane %v3100, 5
      %v3103 = vor.u32 %v3099, %v3102
      %v3104 = vrot.slane %v3103, 4
      %v3106 = vshll.u32 %v2903, 16
      %v3108 = vrot.slane %v3106, 5
      %v3109 = vsel %vm499, %v3104, %v3108
      %v3111 = vshrl.u32 %v2904, 16
      %v3113 = vrot.slane %v3111, 4
      %v3114 = vshll.u32 %v2904, 16
      %v3116 = vrot.slane %v3114, 5
      %v3117 = vor.u32 %v3113, %v3116
      %v3118 = vrot.slane %v3117, 4
      %v3120 = vshll.u32 %v2905, 16
      %v3122 = vrot.slane %v3120, 5
      %v3123 = vsel %vm499, %v3118, %v3122
      %v3125 = vshrl.u32 %v2906, 16
      %v3127 = vrot.slane %v3125, 4
      %v3128 = vshll.u32 %v2906, 16
      %v3130 = vrot.slane %v3128, 5
      %v3131 = vor.u32 %v3127, %v3130
      %v3132 = vrot.slane %v3131, 4
      %v3134 = vshll.u32 %v2907, 16
      %v3136 = vrot.slane %v3134, 5
      %v3137 = vsel %vm499, %v3132, %v3136
      %v3139 = vshrl.u32 %v2908, 16
      %v3141 = vrot.slane %v3139, 4
      %v3142 = vshll.u32 %v2908, 16
      %v3144 = vrot.slane %v3142, 5
      %v3145 = vor.u32 %v3141, %v3144
      %v3146 = vrot.slane %v3145, 4
      %v3148 = vshll.u32 %v2909, 16
      %v3150 = vrot.slane %v3148, 5
      %v3151 = vsel %vm499, %v3146, %v3150
      %s3152 = scalar_lea.vmem %s3, 1216
      %v3153 = vld [vmem:[%s3152] sm:$0xf]
      %v3154 = vld [vmem:[%s3152 + $0x4] sm:$0xf]
      %v3155 = vld [vmem:[%s3152 + $0x8] sm:$0xf]
      %v3156 = vld [vmem:[%s3152 + $0xc] sm:$0xf]
      %v3157 = vld [vmem:[%s3152 + $0x10] sm:$0xf]
      %v3158 = vld [vmem:[%s3152 + $0x14] sm:$0xf]
      %v3159 = vld [vmem:[%s3152 + $0x18] sm:$0xf]
      %v3160 = vld [vmem:[%s3152 + $0x1c] sm:$0xf]
      %v3161 = vld [vmem:[%s3152 + $0x20] sm:$0xf]
      %v3162 = vld [vmem:[%s3152 + $0x24] sm:$0xf]
      %v3163 = vld [vmem:[%s3152 + $0x28] sm:$0xf]
      %v3164 = vld [vmem:[%s3152 + $0x2c] sm:$0xf]
      %v3165 = vld [vmem:[%s3152 + $0x30] sm:$0xf]
      %v3166 = vld [vmem:[%s3152 + $0x34] sm:$0xf]
      %v3167 = vld [vmem:[%s3152 + $0x38] sm:$0xf]
      %v3168 = vld [vmem:[%s3152 + $0x3c] sm:$0xf]
      %v3169 = vunpack.c.l.b16 %v3053
      %v3170 = vunpack.c.l.b16 %v3067
      %v3171 = vunpack.c.l.b16 %v3081
      %v3172 = vunpack.c.l.b16 %v3095
      %v3173 = vunpack.c.l.b16 %v3109
      %v3174 = vunpack.c.l.b16 %v3123
      %v3175 = vunpack.c.l.b16 %v3137
      %v3176 = vunpack.c.l.b16 %v3151
      %v3177 = vpack.c.b16 %v3170, %v3169
      %v3178 = vpack.c.b16 %v3172, %v3171
      %v3179 = vpack.c.b16 %v3174, %v3173
      %v3180 = vpack.c.b16 %v3176, %v3175
      %v3201 = vunpack.c.l.b16 %v3153
      %v3202 = vunpack.c.l.b16 %v3154
      %v3203 = vunpack.c.l.b16 %v3155
      %v3204 = vunpack.c.l.b16 %v3156
      %v3205 = vunpack.c.l.b16 %v3157
      %v3206 = vunpack.c.l.b16 %v3158
      %v3207 = vunpack.c.l.b16 %v3159
      %v3208 = vunpack.c.l.b16 %v3160
      %v3209 = vunpack.c.l.b16 %v3161
      %v3210 = vunpack.c.l.b16 %v3162
      %v3211 = vunpack.c.l.b16 %v3163
      %v3212 = vunpack.c.l.b16 %v3164
      %v3213 = vunpack.c.l.b16 %v3165
      %v3214 = vunpack.c.l.b16 %v3166
      %v3215 = vunpack.c.l.b16 %v3167
      %v3216 = vunpack.c.l.b16 %v3168
      %v3217 = vpack.c.b16 %v3202, %v3201
      %v3218 = vpack.c.b16 %v3204, %v3203
      %v3219 = vpack.c.b16 %v3206, %v3205
      %v3220 = vpack.c.b16 %v3208, %v3207
      %v3221 = vpack.c.b16 %v3210, %v3209
      %v3222 = vpack.c.b16 %v3212, %v3211
      %v3223 = vpack.c.b16 %v3214, %v3213
      %v3224 = vpack.c.b16 %v3216, %v3215
      %3233 = vmatpush.bf16.msra.mxu0 %v3224
      %3234 = vmatpush.bf16.msra.mxu0 %v3223
      %3235 = vmatpush.bf16.msra.mxu0 %v3222
      %3236 = vmatpush.bf16.msra.mxu0 %v3221
      %3237 = vmatpush.bf16.msra.mxu0 %v3220
      %3238 = vmatpush.bf16.msra.mxu0 %v3219
      %3239 = vmatpush.bf16.msra.mxu0 %v3218
      %3240 = vmatpush.bf16.msra.mxu0 %v3217
      %3241 = vmatmul.bf16.gmra.mxu0 %v3177
      %v3242 = vpop.f32.mrf.mxu0
      %v3243 = vadd.f32 0.0, %v3242
      %v3244 = vpop.f32.mrf.mxu0
      %v3245 = vadd.f32 0.0, %v3244
      %3246 = vmatmul.bf16.gmra.mxu0 %v3178
      %v3247 = vpop.f32.mrf.mxu0
      %v3248 = vadd.f32 0.0, %v3247
      %v3249 = vpop.f32.mrf.mxu0
      %v3250 = vadd.f32 0.0, %v3249
      %3251 = vmatmul.bf16.gmra.mxu0 %v3179
      %v3252 = vpop.f32.mrf.mxu0
      %v3253 = vadd.f32 0.0, %v3252
      %v3254 = vpop.f32.mrf.mxu0
      %v3255 = vadd.f32 0.0, %v3254
      %3256 = vmatmul.bf16.gmra.mxu0 %v3180
      %v3257 = vpop.f32.mrf.mxu0
      %v3258 = vadd.f32 0.0, %v3257
      %v3259 = vpop.f32.mrf.mxu0
      %v3260 = vadd.f32 0.0, %v3259
      %3261 = vdwg.mxu0
      %v3262 = vadd.f32 %v3032, %v3243
      %v3263 = vadd.f32 %v3033, %v3245
      %v3264 = vadd.f32 %v3034, %v3248
      %v3265 = vadd.f32 %v3035, %v3250
      %v3266 = vadd.f32 %v3036, %v3253
      %v3267 = vadd.f32 %v3037, %v3255
      %v3268 = vadd.f32 %v3038, %v3258
      %v3269 = vadd.f32 %v3039, %v3260
      %v3278 = vrot.slane %v2894, 5
      %v3279 = vrot.slane %v3278, 4
      %v3280 = vrot.slane %v2895, 5
      %v3281 = vsel %vm833, %v3279, %v3280
      %v3282 = vrot.slane %v2896, 5
      %v3283 = vrot.slane %v3282, 4
      %v3284 = vrot.slane %v2897, 5
      %v3285 = vsel %vm833, %v3283, %v3284
      %v3286 = vrot.slane %v2898, 5
      %v3287 = vrot.slane %v3286, 4
      %v3288 = vrot.slane %v2899, 5
      %v3289 = vsel %vm833, %v3287, %v3288
      %v3290 = vrot.slane %v2900, 5
      %v3291 = vrot.slane %v3290, 4
      %v3292 = vrot.slane %v2901, 5
      %v3293 = vsel %vm833, %v3291, %v3292
      %v3294 = vrot.slane %v2902, 5
      %v3295 = vrot.slane %v3294, 4
      %v3296 = vrot.slane %v2903, 5
      %v3297 = vsel %vm833, %v3295, %v3296
      %v3298 = vrot.slane %v2904, 5
      %v3299 = vrot.slane %v3298, 4
      %v3300 = vrot.slane %v2905, 5
      %v3301 = vsel %vm833, %v3299, %v3300
      %v3302 = vrot.slane %v2906, 5
      %v3303 = vrot.slane %v3302, 4
      %v3304 = vrot.slane %v2907, 5
      %v3305 = vsel %vm833, %v3303, %v3304
      %v3306 = vrot.slane %v2908, 5
      %v3307 = vrot.slane %v3306, 4
      %v3308 = vrot.slane %v2909, 5
      %v3309 = vsel %vm833, %v3307, %v3308
      %s3310 = scalar_lea.vmem %s3, 1280
      %v3311 = vld [vmem:[%s3310] sm:$0xf]
      %v3312 = vld [vmem:[%s3310 + $0x4] sm:$0xf]
      %v3313 = vld [vmem:[%s3310 + $0x8] sm:$0xf]
      %v3314 = vld [vmem:[%s3310 + $0xc] sm:$0xf]
      %v3315 = vld [vmem:[%s3310 + $0x10] sm:$0xf]
      %v3316 = vld [vmem:[%s3310 + $0x14] sm:$0xf]
      %v3317 = vld [vmem:[%s3310 + $0x18] sm:$0xf]
      %v3318 = vld [vmem:[%s3310 + $0x1c] sm:$0xf]
      %v3319 = vld [vmem:[%s3310 + $0x20] sm:$0xf]
      %v3320 = vld [vmem:[%s3310 + $0x24] sm:$0xf]
      %v3321 = vld [vmem:[%s3310 + $0x28] sm:$0xf]
      %v3322 = vld [vmem:[%s3310 + $0x2c] sm:$0xf]
      %v3323 = vld [vmem:[%s3310 + $0x30] sm:$0xf]
      %v3324 = vld [vmem:[%s3310 + $0x34] sm:$0xf]
      %v3325 = vld [vmem:[%s3310 + $0x38] sm:$0xf]
      %v3326 = vld [vmem:[%s3310 + $0x3c] sm:$0xf]
      %v3327 = vunpack.c.l.b16 %v3281
      %v3328 = vunpack.c.l.b16 %v3285
      %v3329 = vunpack.c.l.b16 %v3289
      %v3330 = vunpack.c.l.b16 %v3293
      %v3331 = vunpack.c.l.b16 %v3297
      %v3332 = vunpack.c.l.b16 %v3301
      %v3333 = vunpack.c.l.b16 %v3305
      %v3334 = vunpack.c.l.b16 %v3309
      %v3335 = vpack.c.b16 %v3328, %v3327
      %v3336 = vpack.c.b16 %v3330, %v3329
      %v3337 = vpack.c.b16 %v3332, %v3331
      %v3338 = vpack.c.b16 %v3334, %v3333
      %v3359 = vunpack.c.l.b16 %v3311
      %v3360 = vunpack.c.l.b16 %v3312
      %v3361 = vunpack.c.l.b16 %v3313
      %v3362 = vunpack.c.l.b16 %v3314
      %v3363 = vunpack.c.l.b16 %v3315
      %v3364 = vunpack.c.l.b16 %v3316
      %v3365 = vunpack.c.l.b16 %v3317
      %v3366 = vunpack.c.l.b16 %v3318
      %v3367 = vunpack.c.l.b16 %v3319
      %v3368 = vunpack.c.l.b16 %v3320
      %v3369 = vunpack.c.l.b16 %v3321
      %v3370 = vunpack.c.l.b16 %v3322
      %v3371 = vunpack.c.l.b16 %v3323
      %v3372 = vunpack.c.l.b16 %v3324
      %v3373 = vunpack.c.l.b16 %v3325
      %v3374 = vunpack.c.l.b16 %v3326
      %v3375 = vpack.c.b16 %v3360, %v3359
      %v3376 = vpack.c.b16 %v3362, %v3361
      %v3377 = vpack.c.b16 %v3364, %v3363
      %v3378 = vpack.c.b16 %v3366, %v3365
      %v3379 = vpack.c.b16 %v3368, %v3367
      %v3380 = vpack.c.b16 %v3370, %v3369
      %v3381 = vpack.c.b16 %v3372, %v3371
      %v3382 = vpack.c.b16 %v3374, %v3373
      %3391 = vmatpush.bf16.msra.mxu0 %v3382
      %3392 = vmatpush.bf16.msra.mxu0 %v3381
      %3393 = vmatpush.bf16.msra.mxu0 %v3380
      %3394 = vmatpush.bf16.msra.mxu0 %v3379
      %3395 = vmatpush.bf16.msra.mxu0 %v3378
      %3396 = vmatpush.bf16.msra.mxu0 %v3377
      %3397 = vmatpush.bf16.msra.mxu0 %v3376
      %3398 = vmatpush.bf16.msra.mxu0 %v3375
      %3399 = vmatmul.bf16.gmra.mxu0 %v3335
      %v3400 = vpop.f32.mrf.mxu0
      %v3401 = vadd.f32 0.0, %v3400
      %v3402 = vpop.f32.mrf.mxu0
      %v3403 = vadd.f32 0.0, %v3402
      %3404 = vmatmul.bf16.gmra.mxu0 %v3336
      %v3405 = vpop.f32.mrf.mxu0
      %v3406 = vadd.f32 0.0, %v3405
      %v3407 = vpop.f32.mrf.mxu0
      %v3408 = vadd.f32 0.0, %v3407
      %3409 = vmatmul.bf16.gmra.mxu0 %v3337
      %v3410 = vpop.f32.mrf.mxu0
      %v3411 = vadd.f32 0.0, %v3410
      %v3412 = vpop.f32.mrf.mxu0
      %v3413 = vadd.f32 0.0, %v3412
      %3414 = vmatmul.bf16.gmra.mxu0 %v3338
      %v3415 = vpop.f32.mrf.mxu0
      %v3416 = vadd.f32 0.0, %v3415
      %v3417 = vpop.f32.mrf.mxu0
      %v3418 = vadd.f32 0.0, %v3417
      %3419 = vdwg.mxu0
      %v3420 = vadd.f32 %v3262, %v3401
      %v3421 = vadd.f32 %v3263, %v3403
      %v3422 = vadd.f32 %v3264, %v3406
      %v3423 = vadd.f32 %v3265, %v3408
      %v3424 = vadd.f32 %v3266, %v3411
      %v3425 = vadd.f32 %v3267, %v3413
      %v3426 = vadd.f32 %v3268, %v3416
      %v3427 = vadd.f32 %v3269, %v3418
      %s3428 = scalar_lea.vmem %s3, 1344
      %v3429 = vld [vmem:[%s3428] sm:$0xf]
      %v3430 = vld [vmem:[%s3428 + $0x4] sm:$0xf]
      %v3431 = vld [vmem:[%s3428 + $0x8] sm:$0xf]
      %v3432 = vld [vmem:[%s3428 + $0xc] sm:$0xf]
      %v3433 = vld [vmem:[%s3428 + $0x10] sm:$0xf]
      %v3434 = vld [vmem:[%s3428 + $0x14] sm:$0xf]
      %v3435 = vld [vmem:[%s3428 + $0x18] sm:$0xf]
      %v3436 = vld [vmem:[%s3428 + $0x1c] sm:$0xf]
      %v3437 = vld [vmem:[%s3428 + $0x20] sm:$0xf]
      %v3438 = vld [vmem:[%s3428 + $0x24] sm:$0xf]
      %v3439 = vld [vmem:[%s3428 + $0x28] sm:$0xf]
      %v3440 = vld [vmem:[%s3428 + $0x2c] sm:$0xf]
      %v3441 = vld [vmem:[%s3428 + $0x30] sm:$0xf]
      %v3442 = vld [vmem:[%s3428 + $0x34] sm:$0xf]
      %v3443 = vld [vmem:[%s3428 + $0x38] sm:$0xf]
      %v3444 = vld [vmem:[%s3428 + $0x3c] sm:$0xf]
      %v3446 = vunpack.c.l.b16 %v2910
      %v3447 = vpack.c.b16 %v2941, %v2940
      %v3448 = vpack.c.b16 %v2943, %v2942
      %v3449 = vpack.c.b16 %v2945, %v2944
      %v3450 = vpack.c.b16 %v3446, %v2946
      %v3471 = vunpack.c.l.b16 %v3429
      %v3472 = vunpack.c.l.b16 %v3430
      %v3473 = vunpack.c.l.b16 %v3431
      %v3474 = vunpack.c.l.b16 %v3432
      %v3475 = vunpack.c.l.b16 %v3433
      %v3476 = vunpack.c.l.b16 %v3434
      %v3477 = vunpack.c.l.b16 %v3435
      %v3478 = vunpack.c.l.b16 %v3436
      %v3479 = vunpack.c.l.b16 %v3437
      %v3480 = vunpack.c.l.b16 %v3438
      %v3481 = vunpack.c.l.b16 %v3439
      %v3482 = vunpack.c.l.b16 %v3440
      %v3483 = vunpack.c.l.b16 %v3441
      %v3484 = vunpack.c.l.b16 %v3442
      %v3485 = vunpack.c.l.b16 %v3443
      %v3486 = vunpack.c.l.b16 %v3444
      %v3487 = vpack.c.b16 %v3472, %v3471
      %v3488 = vpack.c.b16 %v3474, %v3473
      %v3489 = vpack.c.b16 %v3476, %v3475
      %v3490 = vpack.c.b16 %v3478, %v3477
      %v3491 = vpack.c.b16 %v3480, %v3479
      %v3492 = vpack.c.b16 %v3482, %v3481
      %v3493 = vpack.c.b16 %v3484, %v3483
      %v3494 = vpack.c.b16 %v3486, %v3485
      %3503 = vmatpush.bf16.msra.mxu0 %v3494
      %3504 = vmatpush.bf16.msra.mxu0 %v3493
      %3505 = vmatpush.bf16.msra.mxu0 %v3492
      %3506 = vmatpush.bf16.msra.mxu0 %v3491
      %3507 = vmatpush.bf16.msra.mxu0 %v3490
      %3508 = vmatpush.bf16.msra.mxu0 %v3489
      %3509 = vmatpush.bf16.msra.mxu0 %v3488
      %3510 = vmatpush.bf16.msra.mxu0 %v3487
      %3511 = vmatmul.bf16.gmra.mxu0 %v3447
      %v3512 = vpop.f32.mrf.mxu0
      %v3513 = vadd.f32 0.0, %v3512
      %v3514 = vpop.f32.mrf.mxu0
      %v3515 = vadd.f32 0.0, %v3514
      %3516 = vmatmul.bf16.gmra.mxu0 %v3448
      %v3517 = vpop.f32.mrf.mxu0
      %v3518 = vadd.f32 0.0, %v3517
      %v3519 = vpop.f32.mrf.mxu0
      %v3520 = vadd.f32 0.0, %v3519
      %3521 = vmatmul.bf16.gmra.mxu0 %v3449
      %v3522 = vpop.f32.mrf.mxu0
      %v3523 = vadd.f32 0.0, %v3522
      %v3524 = vpop.f32.mrf.mxu0
      %v3525 = vadd.f32 0.0, %v3524
      %3526 = vmatmul.bf16.gmra.mxu0 %v3450
      %v3527 = vpop.f32.mrf.mxu0
      %v3528 = vadd.f32 0.0, %v3527
      %v3529 = vpop.f32.mrf.mxu0
      %v3530 = vadd.f32 0.0, %v3529
      %3531 = vdwg.mxu0
      %v3532 = vadd.f32 %v3420, %v3513
      %v3533 = vadd.f32 %v3421, %v3515
      %v3534 = vadd.f32 %v3422, %v3518
      %v3535 = vadd.f32 %v3423, %v3520
      %v3536 = vadd.f32 %v3424, %v3523
      %v3537 = vadd.f32 %v3425, %v3525
      %v3538 = vadd.f32 %v3426, %v3528
      %v3539 = vadd.f32 %v3427, %v3530
      %v3541 = vshrl.u32 %v2910, 16
      %v3543 = vrot.slane %v3541, 4
      %v3544 = vshll.u32 %v2910, 16
      %v3546 = vrot.slane %v3544, 5
      %v3547 = vor.u32 %v3543, %v3546
      %v3548 = vrot.slane %v3547, 4
      %v3550 = vshll.u32 %v2911, 16
      %v3552 = vrot.slane %v3550, 5
      %v3553 = vsel %vm499, %v3548, %v3552
      %s3554 = scalar_lea.vmem %s3, 1408
      %v3555 = vld [vmem:[%s3554] sm:$0xf]
      %v3556 = vld [vmem:[%s3554 + $0x4] sm:$0xf]
      %v3557 = vld [vmem:[%s3554 + $0x8] sm:$0xf]
      %v3558 = vld [vmem:[%s3554 + $0xc] sm:$0xf]
      %v3559 = vld [vmem:[%s3554 + $0x10] sm:$0xf]
      %v3560 = vld [vmem:[%s3554 + $0x14] sm:$0xf]
      %v3561 = vld [vmem:[%s3554 + $0x18] sm:$0xf]
      %v3562 = vld [vmem:[%s3554 + $0x1c] sm:$0xf]
      %v3563 = vld [vmem:[%s3554 + $0x20] sm:$0xf]
      %v3564 = vld [vmem:[%s3554 + $0x24] sm:$0xf]
      %v3565 = vld [vmem:[%s3554 + $0x28] sm:$0xf]
      %v3566 = vld [vmem:[%s3554 + $0x2c] sm:$0xf]
      %v3567 = vld [vmem:[%s3554 + $0x30] sm:$0xf]
      %v3568 = vld [vmem:[%s3554 + $0x34] sm:$0xf]
      %v3569 = vld [vmem:[%s3554 + $0x38] sm:$0xf]
      %v3570 = vld [vmem:[%s3554 + $0x3c] sm:$0xf]
      %v3571 = vunpack.c.l.b16 %v3553
      %v3572 = vpack.c.b16 %v3171, %v3170
      %v3573 = vpack.c.b16 %v3173, %v3172
      %v3574 = vpack.c.b16 %v3175, %v3174
      %v3575 = vpack.c.b16 %v3571, %v3176
      %v3596 = vunpack.c.l.b16 %v3555
      %v3597 = vunpack.c.l.b16 %v3556
      %v3598 = vunpack.c.l.b16 %v3557
      %v3599 = vunpack.c.l.b16 %v3558
      %v3600 = vunpack.c.l.b16 %v3559
      %v3601 = vunpack.c.l.b16 %v3560
      %v3602 = vunpack.c.l.b16 %v3561
      %v3603 = vunpack.c.l.b16 %v3562
      %v3604 = vunpack.c.l.b16 %v3563
      %v3605 = vunpack.c.l.b16 %v3564
      %v3606 = vunpack.c.l.b16 %v3565
      %v3607 = vunpack.c.l.b16 %v3566
      %v3608 = vunpack.c.l.b16 %v3567
      %v3609 = vunpack.c.l.b16 %v3568
      %v3610 = vunpack.c.l.b16 %v3569
      %v3611 = vunpack.c.l.b16 %v3570
      %v3612 = vpack.c.b16 %v3597, %v3596
      %v3613 = vpack.c.b16 %v3599, %v3598
      %v3614 = vpack.c.b16 %v3601, %v3600
      %v3615 = vpack.c.b16 %v3603, %v3602
      %v3616 = vpack.c.b16 %v3605, %v3604
      %v3617 = vpack.c.b16 %v3607, %v3606
      %v3618 = vpack.c.b16 %v3609, %v3608
      %v3619 = vpack.c.b16 %v3611, %v3610
      %3628 = vmatpush.bf16.msra.mxu0 %v3619
      %3629 = vmatpush.bf16.msra.mxu0 %v3618
      %3630 = vmatpush.bf16.msra.mxu0 %v3617
      %3631 = vmatpush.bf16.msra.mxu0 %v3616
      %3632 = vmatpush.bf16.msra.mxu0 %v3615
      %3633 = vmatpush.bf16.msra.mxu0 %v3614
      %3634 = vmatpush.bf16.msra.mxu0 %v3613
      %3635 = vmatpush.bf16.msra.mxu0 %v3612
      %3636 = vmatmul.bf16.gmra.mxu0 %v3572
      %v3637 = vpop.f32.mrf.mxu0
      %v3638 = vadd.f32 0.0, %v3637
      %v3639 = vpop.f32.mrf.mxu0
      %v3640 = vadd.f32 0.0, %v3639
      %3641 = vmatmul.bf16.gmra.mxu0 %v3573
      %v3642 = vpop.f32.mrf.mxu0
      %v3643 = vadd.f32 0.0, %v3642
      %v3644 = vpop.f32.mrf.mxu0
      %v3645 = vadd.f32 0.0, %v3644
      %3646 = vmatmul.bf16.gmra.mxu0 %v3574
      %v3647 = vpop.f32.mrf.mxu0
      %v3648 = vadd.f32 0.0, %v3647
      %v3649 = vpop.f32.mrf.mxu0
      %v3650 = vadd.f32 0.0, %v3649
      %3651 = vmatmul.bf16.gmra.mxu0 %v3575
      %v3652 = vpop.f32.mrf.mxu0
      %v3653 = vadd.f32 0.0, %v3652
      %v3654 = vpop.f32.mrf.mxu0
      %v3655 = vadd.f32 0.0, %v3654
      %3656 = vdwg.mxu0
      %v3657 = vadd.f32 %v3532, %v3638
      %v3658 = vadd.f32 %v3533, %v3640
      %v3659 = vadd.f32 %v3534, %v3643
      %v3660 = vadd.f32 %v3535, %v3645
      %v3661 = vadd.f32 %v3536, %v3648
      %v3662 = vadd.f32 %v3537, %v3650
      %v3663 = vadd.f32 %v3538, %v3653
      %v3664 = vadd.f32 %v3539, %v3655
      %v3666 = vrot.slane %v2910, 5
      %v3667 = vrot.slane %v3666, 4
      %v3668 = vrot.slane %v2911, 5
      %v3669 = vsel %vm833, %v3667, %v3668
      %s3670 = scalar_lea.vmem %s3, 1472
      %v3671 = vld [vmem:[%s3670] sm:$0xf]
      %v3672 = vld [vmem:[%s3670 + $0x4] sm:$0xf]
      %v3673 = vld [vmem:[%s3670 + $0x8] sm:$0xf]
      %v3674 = vld [vmem:[%s3670 + $0xc] sm:$0xf]
      %v3675 = vld [vmem:[%s3670 + $0x10] sm:$0xf]
      %v3676 = vld [vmem:[%s3670 + $0x14] sm:$0xf]
      %v3677 = vld [vmem:[%s3670 + $0x18] sm:$0xf]
      %v3678 = vld [vmem:[%s3670 + $0x1c] sm:$0xf]
      %v3679 = vld [vmem:[%s3670 + $0x20] sm:$0xf]
      %v3680 = vld [vmem:[%s3670 + $0x24] sm:$0xf]
      %v3681 = vld [vmem:[%s3670 + $0x28] sm:$0xf]
      %v3682 = vld [vmem:[%s3670 + $0x2c] sm:$0xf]
      %v3683 = vld [vmem:[%s3670 + $0x30] sm:$0xf]
      %v3684 = vld [vmem:[%s3670 + $0x34] sm:$0xf]
      %v3685 = vld [vmem:[%s3670 + $0x38] sm:$0xf]
      %v3686 = vld [vmem:[%s3670 + $0x3c] sm:$0xf]
      %v3687 = vunpack.c.l.b16 %v3669
      %v3688 = vpack.c.b16 %v3329, %v3328
      %v3689 = vpack.c.b16 %v3331, %v3330
      %v3690 = vpack.c.b16 %v3333, %v3332
      %v3691 = vpack.c.b16 %v3687, %v3334
      %v3712 = vunpack.c.l.b16 %v3671
      %v3713 = vunpack.c.l.b16 %v3672
      %v3714 = vunpack.c.l.b16 %v3673
      %v3715 = vunpack.c.l.b16 %v3674
      %v3716 = vunpack.c.l.b16 %v3675
      %v3717 = vunpack.c.l.b16 %v3676
      %v3718 = vunpack.c.l.b16 %v3677
      %v3719 = vunpack.c.l.b16 %v3678
      %v3720 = vunpack.c.l.b16 %v3679
      %v3721 = vunpack.c.l.b16 %v3680
      %v3722 = vunpack.c.l.b16 %v3681
      %v3723 = vunpack.c.l.b16 %v3682
      %v3724 = vunpack.c.l.b16 %v3683
      %v3725 = vunpack.c.l.b16 %v3684
      %v3726 = vunpack.c.l.b16 %v3685
      %v3727 = vunpack.c.l.b16 %v3686
      %v3728 = vpack.c.b16 %v3713, %v3712
      %v3729 = vpack.c.b16 %v3715, %v3714
      %v3730 = vpack.c.b16 %v3717, %v3716
      %v3731 = vpack.c.b16 %v3719, %v3718
      %v3732 = vpack.c.b16 %v3721, %v3720
      %v3733 = vpack.c.b16 %v3723, %v3722
      %v3734 = vpack.c.b16 %v3725, %v3724
      %v3735 = vpack.c.b16 %v3727, %v3726
      %3744 = vmatpush.bf16.msra.mxu0 %v3735
      %3745 = vmatpush.bf16.msra.mxu0 %v3734
      %3746 = vmatpush.bf16.msra.mxu0 %v3733
      %3747 = vmatpush.bf16.msra.mxu0 %v3732
      %3748 = vmatpush.bf16.msra.mxu0 %v3731
      %3749 = vmatpush.bf16.msra.mxu0 %v3730
      %3750 = vmatpush.bf16.msra.mxu0 %v3729
      %3751 = vmatpush.bf16.msra.mxu0 %v3728
      %3752 = vmatmul.bf16.gmra.mxu0 %v3688
      %v3753 = vpop.f32.mrf.mxu0
      %v3754 = vadd.f32 0.0, %v3753
      %v3755 = vpop.f32.mrf.mxu0
      %v3756 = vadd.f32 0.0, %v3755
      %3757 = vmatmul.bf16.gmra.mxu0 %v3689
      %v3758 = vpop.f32.mrf.mxu0
      %v3759 = vadd.f32 0.0, %v3758
      %v3760 = vpop.f32.mrf.mxu0
      %v3761 = vadd.f32 0.0, %v3760
      %3762 = vmatmul.bf16.gmra.mxu0 %v3690
      %v3763 = vpop.f32.mrf.mxu0
      %v3764 = vadd.f32 0.0, %v3763
      %v3765 = vpop.f32.mrf.mxu0
      %v3766 = vadd.f32 0.0, %v3765
      %3767 = vmatmul.bf16.gmra.mxu0 %v3691
      %v3768 = vpop.f32.mrf.mxu0
      %v3769 = vadd.f32 0.0, %v3768
      %v3770 = vpop.f32.mrf.mxu0
      %v3771 = vadd.f32 0.0, %v3770
      %3772 = vdwg.mxu0
      %v3773 = vadd.f32 %v3657, %v3754
      %v3774 = vadd.f32 %v3658, %v3756
      %v3775 = vadd.f32 %v3659, %v3759
      %v3776 = vadd.f32 %v3660, %v3761
      %v3777 = vadd.f32 %v3661, %v3764
      %v3778 = vadd.f32 %v3662, %v3766
      %v3779 = vadd.f32 %v3663, %v3769
      %v3780 = vadd.f32 %v3664, %v3771
      %s3781 = scalar_lea.vmem %s3, 1536
      %v3782 = vld [vmem:[%s3781] sm:$0xf]
      %v3783 = vld [vmem:[%s3781 + $0x4] sm:$0xf]
      %v3784 = vld [vmem:[%s3781 + $0x8] sm:$0xf]
      %v3785 = vld [vmem:[%s3781 + $0xc] sm:$0xf]
      %v3786 = vld [vmem:[%s3781 + $0x10] sm:$0xf]
      %v3787 = vld [vmem:[%s3781 + $0x14] sm:$0xf]
      %v3788 = vld [vmem:[%s3781 + $0x18] sm:$0xf]
      %v3789 = vld [vmem:[%s3781 + $0x1c] sm:$0xf]
      %v3790 = vld [vmem:[%s3781 + $0x20] sm:$0xf]
      %v3791 = vld [vmem:[%s3781 + $0x24] sm:$0xf]
      %v3792 = vld [vmem:[%s3781 + $0x28] sm:$0xf]
      %v3793 = vld [vmem:[%s3781 + $0x2c] sm:$0xf]
      %v3794 = vld [vmem:[%s3781 + $0x30] sm:$0xf]
      %v3795 = vld [vmem:[%s3781 + $0x34] sm:$0xf]
      %v3796 = vld [vmem:[%s3781 + $0x38] sm:$0xf]
      %v3797 = vld [vmem:[%s3781 + $0x3c] sm:$0xf]
      %v3799 = vunpack.c.l.b16 %v2912
      %v3800 = vpack.c.b16 %v3799, %v3446
      %v3818 = vunpack.c.l.b16 %v3782
      %v3819 = vunpack.c.l.b16 %v3783
      %v3820 = vunpack.c.l.b16 %v3784
      %v3821 = vunpack.c.l.b16 %v3785
      %v3822 = vunpack.c.l.b16 %v3786
      %v3823 = vunpack.c.l.b16 %v3787
      %v3824 = vunpack.c.l.b16 %v3788
      %v3825 = vunpack.c.l.b16 %v3789
      %v3826 = vunpack.c.l.b16 %v3790
      %v3827 = vunpack.c.l.b16 %v3791
      %v3828 = vunpack.c.l.b16 %v3792
      %v3829 = vunpack.c.l.b16 %v3793
      %v3830 = vunpack.c.l.b16 %v3794
      %v3831 = vunpack.c.l.b16 %v3795
      %v3832 = vunpack.c.l.b16 %v3796
      %v3833 = vunpack.c.l.b16 %v3797
      %v3834 = vpack.c.b16 %v3819, %v3818
      %v3835 = vpack.c.b16 %v3821, %v3820
      %v3836 = vpack.c.b16 %v3823, %v3822
      %v3837 = vpack.c.b16 %v3825, %v3824
      %v3838 = vpack.c.b16 %v3827, %v3826
      %v3839 = vpack.c.b16 %v3829, %v3828
      %v3840 = vpack.c.b16 %v3831, %v3830
      %v3841 = vpack.c.b16 %v3833, %v3832
      %3850 = vmatpush.bf16.msra.mxu0 %v3841
      %3851 = vmatpush.bf16.msra.mxu0 %v3840
      %3852 = vmatpush.bf16.msra.mxu0 %v3839
      %3853 = vmatpush.bf16.msra.mxu0 %v3838
      %3854 = vmatpush.bf16.msra.mxu0 %v3837
      %3855 = vmatpush.bf16.msra.mxu0 %v3836
      %3856 = vmatpush.bf16.msra.mxu0 %v3835
      %3857 = vmatpush.bf16.msra.mxu0 %v3834
      %3858 = vmatmul.bf16.gmra.mxu0 %v2948
      %v3859 = vpop.f32.mrf.mxu0
      %v3860 = vadd.f32 0.0, %v3859
      %v3861 = vpop.f32.mrf.mxu0
      %v3862 = vadd.f32 0.0, %v3861
      %3863 = vmatmul.bf16.gmra.mxu0 %v2949
      %v3864 = vpop.f32.mrf.mxu0
      %v3865 = vadd.f32 0.0, %v3864
      %v3866 = vpop.f32.mrf.mxu0
      %v3867 = vadd.f32 0.0, %v3866
      %3868 = vmatmul.bf16.gmra.mxu0 %v2950
      %v3869 = vpop.f32.mrf.mxu0
      %v3870 = vadd.f32 0.0, %v3869
      %v3871 = vpop.f32.mrf.mxu0
      %v3872 = vadd.f32 0.0, %v3871
      %3873 = vmatmul.bf16.gmra.mxu0 %v3800
      %v3874 = vpop.f32.mrf.mxu0
      %v3875 = vadd.f32 0.0, %v3874
      %v3876 = vpop.f32.mrf.mxu0
      %v3877 = vadd.f32 0.0, %v3876
      %3878 = vdwg.mxu0
      %v3879 = vadd.f32 %v3773, %v3860
      %v3880 = vadd.f32 %v3774, %v3862
      %v3881 = vadd.f32 %v3775, %v3865
      %v3882 = vadd.f32 %v3776, %v3867
      %v3883 = vadd.f32 %v3777, %v3870
      %v3884 = vadd.f32 %v3778, %v3872
      %v3885 = vadd.f32 %v3779, %v3875
      %v3886 = vadd.f32 %v3780, %v3877
      %v3888 = vshrl.u32 %v2912, 16
      %v3890 = vrot.slane %v3888, 4
      %v3891 = vshll.u32 %v2912, 16
      %v3893 = vrot.slane %v3891, 5
      %v3894 = vor.u32 %v3890, %v3893
      %v3895 = vrot.slane %v3894, 4
      %v3897 = vshll.u32 %v2913, 16
      %v3899 = vrot.slane %v3897, 5
      %v3900 = vsel %vm499, %v3895, %v3899
      %s3901 = scalar_lea.vmem %s3, 1600
      %v3902 = vld [vmem:[%s3901] sm:$0xf]
      %v3903 = vld [vmem:[%s3901 + $0x4] sm:$0xf]
      %v3904 = vld [vmem:[%s3901 + $0x8] sm:$0xf]
      %v3905 = vld [vmem:[%s3901 + $0xc] sm:$0xf]
      %v3906 = vld [vmem:[%s3901 + $0x10] sm:$0xf]
      %v3907 = vld [vmem:[%s3901 + $0x14] sm:$0xf]
      %v3908 = vld [vmem:[%s3901 + $0x18] sm:$0xf]
      %v3909 = vld [vmem:[%s3901 + $0x1c] sm:$0xf]
      %v3910 = vld [vmem:[%s3901 + $0x20] sm:$0xf]
      %v3911 = vld [vmem:[%s3901 + $0x24] sm:$0xf]
      %v3912 = vld [vmem:[%s3901 + $0x28] sm:$0xf]
      %v3913 = vld [vmem:[%s3901 + $0x2c] sm:$0xf]
      %v3914 = vld [vmem:[%s3901 + $0x30] sm:$0xf]
      %v3915 = vld [vmem:[%s3901 + $0x34] sm:$0xf]
      %v3916 = vld [vmem:[%s3901 + $0x38] sm:$0xf]
      %v3917 = vld [vmem:[%s3901 + $0x3c] sm:$0xf]
      %v3918 = vunpack.c.l.b16 %v3900
      %v3919 = vpack.c.b16 %v3918, %v3571
      %v3937 = vunpack.c.l.b16 %v3902
      %v3938 = vunpack.c.l.b16 %v3903
      %v3939 = vunpack.c.l.b16 %v3904
      %v3940 = vunpack.c.l.b16 %v3905
      %v3941 = vunpack.c.l.b16 %v3906
      %v3942 = vunpack.c.l.b16 %v3907
      %v3943 = vunpack.c.l.b16 %v3908
      %v3944 = vunpack.c.l.b16 %v3909
      %v3945 = vunpack.c.l.b16 %v3910
      %v3946 = vunpack.c.l.b16 %v3911
      %v3947 = vunpack.c.l.b16 %v3912
      %v3948 = vunpack.c.l.b16 %v3913
      %v3949 = vunpack.c.l.b16 %v3914
      %v3950 = vunpack.c.l.b16 %v3915
      %v3951 = vunpack.c.l.b16 %v3916
      %v3952 = vunpack.c.l.b16 %v3917
      %v3953 = vpack.c.b16 %v3938, %v3937
      %v3954 = vpack.c.b16 %v3940, %v3939
      %v3955 = vpack.c.b16 %v3942, %v3941
      %v3956 = vpack.c.b16 %v3944, %v3943
      %v3957 = vpack.c.b16 %v3946, %v3945
      %v3958 = vpack.c.b16 %v3948, %v3947
      %v3959 = vpack.c.b16 %v3950, %v3949
      %v3960 = vpack.c.b16 %v3952, %v3951
      %3969 = vmatpush.bf16.msra.mxu0 %v3960
      %3970 = vmatpush.bf16.msra.mxu0 %v3959
      %3971 = vmatpush.bf16.msra.mxu0 %v3958
      %3972 = vmatpush.bf16.msra.mxu0 %v3957
      %3973 = vmatpush.bf16.msra.mxu0 %v3956
      %3974 = vmatpush.bf16.msra.mxu0 %v3955
      %3975 = vmatpush.bf16.msra.mxu0 %v3954
      %3976 = vmatpush.bf16.msra.mxu0 %v3953
      %3977 = vmatmul.bf16.gmra.mxu0 %v3178
      %v3978 = vpop.f32.mrf.mxu0
      %v3979 = vadd.f32 0.0, %v3978
      %v3980 = vpop.f32.mrf.mxu0
      %v3981 = vadd.f32 0.0, %v3980
      %3982 = vmatmul.bf16.gmra.mxu0 %v3179
      %v3983 = vpop.f32.mrf.mxu0
      %v3984 = vadd.f32 0.0, %v3983
      %v3985 = vpop.f32.mrf.mxu0
      %v3986 = vadd.f32 0.0, %v3985
      %3987 = vmatmul.bf16.gmra.mxu0 %v3180
      %v3988 = vpop.f32.mrf.mxu0
      %v3989 = vadd.f32 0.0, %v3988
      %v3990 = vpop.f32.mrf.mxu0
      %v3991 = vadd.f32 0.0, %v3990
      %3992 = vmatmul.bf16.gmra.mxu0 %v3919
      %v3993 = vpop.f32.mrf.mxu0
      %v3994 = vadd.f32 0.0, %v3993
      %v3995 = vpop.f32.mrf.mxu0
      %v3996 = vadd.f32 0.0, %v3995
      %3997 = vdwg.mxu0
      %v3998 = vadd.f32 %v3879, %v3979
      %v3999 = vadd.f32 %v3880, %v3981
      %v4000 = vadd.f32 %v3881, %v3984
      %v4001 = vadd.f32 %v3882, %v3986
      %v4002 = vadd.f32 %v3883, %v3989
      %v4003 = vadd.f32 %v3884, %v3991
      %v4004 = vadd.f32 %v3885, %v3994
      %v4005 = vadd.f32 %v3886, %v3996
      %v4007 = vrot.slane %v2912, 5
      %v4008 = vrot.slane %v4007, 4
      %v4009 = vrot.slane %v2913, 5
      %v4010 = vsel %vm833, %v4008, %v4009
      %s4011 = scalar_lea.vmem %s3, 1664
      %v4012 = vld [vmem:[%s4011] sm:$0xf]
      %v4013 = vld [vmem:[%s4011 + $0x4] sm:$0xf]
      %v4014 = vld [vmem:[%s4011 + $0x8] sm:$0xf]
      %v4015 = vld [vmem:[%s4011 + $0xc] sm:$0xf]
      %v4016 = vld [vmem:[%s4011 + $0x10] sm:$0xf]
      %v4017 = vld [vmem:[%s4011 + $0x14] sm:$0xf]
      %v4018 = vld [vmem:[%s4011 + $0x18] sm:$0xf]
      %v4019 = vld [vmem:[%s4011 + $0x1c] sm:$0xf]
      %v4020 = vld [vmem:[%s4011 + $0x20] sm:$0xf]
      %v4021 = vld [vmem:[%s4011 + $0x24] sm:$0xf]
      %v4022 = vld [vmem:[%s4011 + $0x28] sm:$0xf]
      %v4023 = vld [vmem:[%s4011 + $0x2c] sm:$0xf]
      %v4024 = vld [vmem:[%s4011 + $0x30] sm:$0xf]
      %v4025 = vld [vmem:[%s4011 + $0x34] sm:$0xf]
      %v4026 = vld [vmem:[%s4011 + $0x38] sm:$0xf]
      %v4027 = vld [vmem:[%s4011 + $0x3c] sm:$0xf]
      %v4028 = vunpack.c.l.b16 %v4010
      %v4029 = vpack.c.b16 %v4028, %v3687
      %v4047 = vunpack.c.l.b16 %v4012
      %v4048 = vunpack.c.l.b16 %v4013
      %v4049 = vunpack.c.l.b16 %v4014
      %v4050 = vunpack.c.l.b16 %v4015
      %v4051 = vunpack.c.l.b16 %v4016
      %v4052 = vunpack.c.l.b16 %v4017
      %v4053 = vunpack.c.l.b16 %v4018
      %v4054 = vunpack.c.l.b16 %v4019
      %v4055 = vunpack.c.l.b16 %v4020
      %v4056 = vunpack.c.l.b16 %v4021
      %v4057 = vunpack.c.l.b16 %v4022
      %v4058 = vunpack.c.l.b16 %v4023
      %v4059 = vunpack.c.l.b16 %v4024
      %v4060 = vunpack.c.l.b16 %v4025
      %v4061 = vunpack.c.l.b16 %v4026
      %v4062 = vunpack.c.l.b16 %v4027
      %v4063 = vpack.c.b16 %v4048, %v4047
      %v4064 = vpack.c.b16 %v4050, %v4049
      %v4065 = vpack.c.b16 %v4052, %v4051
      %v4066 = vpack.c.b16 %v4054, %v4053
      %v4067 = vpack.c.b16 %v4056, %v4055
      %v4068 = vpack.c.b16 %v4058, %v4057
      %v4069 = vpack.c.b16 %v4060, %v4059
      %v4070 = vpack.c.b16 %v4062, %v4061
      %4079 = vmatpush.bf16.msra.mxu0 %v4070
      %4080 = vmatpush.bf16.msra.mxu0 %v4069
      %4081 = vmatpush.bf16.msra.mxu0 %v4068
      %4082 = vmatpush.bf16.msra.mxu0 %v4067
      %4083 = vmatpush.bf16.msra.mxu0 %v4066
      %4084 = vmatpush.bf16.msra.mxu0 %v4065
      %4085 = vmatpush.bf16.msra.mxu0 %v4064
      %4086 = vmatpush.bf16.msra.mxu0 %v4063
      %4087 = vmatmul.bf16.gmra.mxu0 %v3336
      %v4088 = vpop.f32.mrf.mxu0
      %v4089 = vadd.f32 0.0, %v4088
      %v4090 = vpop.f32.mrf.mxu0
      %v4091 = vadd.f32 0.0, %v4090
      %4092 = vmatmul.bf16.gmra.mxu0 %v3337
      %v4093 = vpop.f32.mrf.mxu0
      %v4094 = vadd.f32 0.0, %v4093
      %v4095 = vpop.f32.mrf.mxu0
      %v4096 = vadd.f32 0.0, %v4095
      %4097 = vmatmul.bf16.gmra.mxu0 %v3338
      %v4098 = vpop.f32.mrf.mxu0
      %v4099 = vadd.f32 0.0, %v4098
      %v4100 = vpop.f32.mrf.mxu0
      %v4101 = vadd.f32 0.0, %v4100
      %4102 = vmatmul.bf16.gmra.mxu0 %v4029
      %v4103 = vpop.f32.mrf.mxu0
      %v4104 = vadd.f32 0.0, %v4103
      %v4105 = vpop.f32.mrf.mxu0
      %v4106 = vadd.f32 0.0, %v4105
      %4107 = vdwg.mxu0
      %v4108 = vadd.f32 %v3998, %v4089
      %v4109 = vadd.f32 %v3999, %v4091
      %v4110 = vadd.f32 %v4000, %v4094
      %v4111 = vadd.f32 %v4001, %v4096
      %v4112 = vadd.f32 %v4002, %v4099
      %v4113 = vadd.f32 %v4003, %v4101
      %v4114 = vadd.f32 %v4004, %v4104
      %v4115 = vadd.f32 %v4005, %v4106
      %v4116 = vpack.c.bf16 %v4108, %v4108
      %v4117 = vpack.c.bf16 %v4109, %v4109
      %v4118 = vpack.c.bf16 %v4110, %v4110
      %v4119 = vpack.c.bf16 %v4111, %v4111
      %v4120 = vpack.c.bf16 %v4112, %v4112
      %v4121 = vpack.c.bf16 %v4113, %v4113
      %v4122 = vpack.c.bf16 %v4114, %v4114
      %v4123 = vpack.c.bf16 %v4115, %v4115
      %4124 = vst [vmem:[%s446] sm:$0xf] %v4116
      %4125 = vst [vmem:[%s446 + $0x4] sm:$0xf] %v4117
      %4126 = vst [vmem:[%s446 + $0x8] sm:$0xf] %v4118
      %4127 = vst [vmem:[%s446 + $0xc] sm:$0xf] %v4119
      %4128 = vst [vmem:[%s446 + $0x10] sm:$0xf] %v4120
      %4129 = vst [vmem:[%s446 + $0x14] sm:$0xf] %v4121
      %4130 = vst [vmem:[%s446 + $0x18] sm:$0xf] %v4122
      %4131 = vst [vmem:[%s446 + $0x1c] sm:$0xf] %v4123
      %v4132 = vadd.f32 %v4108, %v4109
      %v4133 = vadd.f32 %v4132, %v4110
      %v4134 = vadd.f32 %v4133, %v4111
      %v4135 = vadd.f32 %v4134, %v4112
      %v4136 = vadd.f32 %v4135, %v4113
      %v4137 = vadd.f32 %v4136, %v4114
      %v4138 = vadd.f32 %v4137, %v4115
      %v4139 = vrot.slane %v4138, 4
      %v4140 = vadd.f32 %v4138, %v4139
      %v4141 = vrot.slane %v4140, 2
      %v4142 = vadd.f32 %v4140, %v4141
      %v4143 = vrot.slane %v4142, 1
      %v4144 = vadd.f32 %v4142, %v4143
      %4145 = vst [vmem:[%s453] sm:$0x1] %v4144
      %v4146 = vmul.f32 %v4108, %v4108
      %v4147 = vmul.f32 %v4109, %v4109
      %v4148 = vmul.f32 %v4110, %v4110
      %v4149 = vmul.f32 %v4111, %v4111
      %v4150 = vmul.f32 %v4112, %v4112
      %v4151 = vmul.f32 %v4113, %v4113
      %v4152 = vmul.f32 %v4114, %v4114
      %v4153 = vmul.f32 %v4115, %v4115
      %v4154 = vadd.f32 %v4146, %v4147
      %v4155 = vadd.f32 %v4154, %v4148
      %v4156 = vadd.f32 %v4155, %v4149
      %v4157 = vadd.f32 %v4156, %v4150
      %v4158 = vadd.f32 %v4157, %v4151
      %v4159 = vadd.f32 %v4158, %v4152
      %v4160 = vadd.f32 %v4159, %v4153
      %v4161 = vrot.slane %v4160, 4
      %v4162 = vadd.f32 %v4160, %v4161
      %v4163 = vrot.slane %v4162, 2
      %v4164 = vadd.f32 %v4162, %v4163
      %v4165 = vrot.slane %v4164, 1
      %v4166 = vadd.f32 %v4164, %v4165
      %4167 = vst [vmem:[%s460] sm:$0x1] %v4166
      %p4168 = scmp.lt.s32.totalorder %s24, 1
      %s4169 = scalar_select %p4168, %s24, 1
      %p4170 = scmp.lt.s32.totalorder %s25, 7
      %s4171 = scalar_select %p4170, %s25, 7
      %s4172 = smul.addr %s4171, 8
      %s4173 = smul.addr %s4169, 64
      %s4174 = sadd.s32 %s4172, %s4173
      %s4175 = smul.addr %s4174, 4
      %s4176 = scalar_lea.vmem %s6, %s4175
      %p4177 = scmp.lt.s32.totalorder %s24, 1
      %s4178 = scalar_select %p4177, %s24, 1
      %p4179 = scmp.lt.s32.totalorder %s25, 7
      %s4180 = scalar_select %p4179, %s25, 7
      %s4181 = smul.addr %s4178, 8
      %s4182 = sadd.s32 %s4180, %s4181
      %s4183 = scalar_lea.vmem %s7, %s4182
      %p4184 = scmp.lt.s32.totalorder %s24, 1
      %s4185 = scalar_select %p4184, %s24, 1
      %p4186 = scmp.lt.s32.totalorder %s25, 7
      %s4187 = scalar_select %p4186, %s25, 7
      %s4188 = smul.addr %s4185, 8
      %s4189 = sadd.s32 %s4187, %s4188
      %s4190 = scalar_lea.vmem %s8, %s4189
      // Predicated region
      $region45: #{conv_block_forward.3} parent=43 // pred_check
        %p4191 = pneg %p203
      $region46: #{conv_block_forward.3} parent=43 // pred_check_branch
        %4193 = sbr.rel (%p4191) target = $region48
      $region47: #{conv_block_forward.3} parent=43 // pred_region
        _
      $region48: #{conv_block_forward.3} parent=43 // pred_fallthru
        _
      // Predicated region
      $region49: #{conv_block_forward.3} parent=43 // pred_check
        %p4194 = pneg %p231
      $region50: #{conv_block_forward.3} parent=43 // pred_check_branch
        %4196 = sbr.rel (%p4194) target = $region52
      $region51: #{conv_block_forward.3} parent=43 // pred_region
        _
      $region52: #{conv_block_forward.3} parent=43 // pred_fallthru
        _
      // Predicated region
      $region53: #{conv_block_forward.3} parent=43 // pred_check
        %p4197 = pneg %p259
      $region54: #{conv_block_forward.3} parent=43 // pred_check_branch
        %4199 = sbr.rel (%p4197) target = $region56
      $region55: #{conv_block_forward.3} parent=43 // pred_region
        _
      $region56: #{conv_block_forward.3} parent=43 // pred_fallthru
        _
    $region44: #{conv_block_forward.3} parent=5 // pred_fallthru
      _
    %p4200 = scmp.le.s32.totalorder 2, %s15
    // Predicated region
    $region57: #{conv_block_forward.3} parent=5 // pred_check
      %p4201 = pneg %p4200
    $region58: #{conv_block_forward.3} parent=5 // pred_check_branch
      %4203 = sbr.rel (%p4201) target = $region60
    $region59: #{conv_block_forward.3} parent=5 // pred_region
      %s4204 = ssub.s32 %s15, 2
      // Predicated region
      $region61: #{conv_block_forward.3} parent=59 // pred_check
        %p4205 = pneg %p209
      $region62: #{conv_block_forward.3} parent=59 // pred_check_branch
        %4207 = sbr.rel (%p4205) target = $region64
      $region63: #{conv_block_forward.3} parent=59 // pred_region
        %p4208 = scmp.lt.s32.totalorder %s26, 1
        %s4209 = scalar_select %p4208, %s26, 1
        %p4210 = scmp.lt.s32.totalorder %s27, 7
        %s4211 = scalar_select %p4210, %s27, 7
        %s4212 = smul.addr %s4211, 8
        %s4213 = smul.addr %s4209, 64
        %s4214 = sadd.s32 %s4212, %s4213
        %s4215 = smul.addr %s4214, 4
        %s4216 = scalar_lea.vmem %s6, %s4215
      $region64: #{conv_block_forward.3} parent=59 // pred_fallthru
        _
      // Predicated region
      $region65: #{conv_block_forward.3} parent=59 // pred_check
        %p4217 = pneg %p237
      $region66: #{conv_block_forward.3} parent=59 // pred_check_branch
        %4219 = sbr.rel (%p4217) target = $region68
      $region67: #{conv_block_forward.3} parent=59 // pred_region
        %p4220 = scmp.lt.s32.totalorder %s26, 1
        %s4221 = scalar_select %p4220, %s26, 1
        %p4222 = scmp.lt.s32.totalorder %s27, 7
        %s4223 = scalar_select %p4222, %s27, 7
        %s4224 = smul.addr %s4221, 8
        %s4225 = sadd.s32 %s4223, %s4224
        %s4226 = scalar_lea.vmem %s7, %s4225
      $region68: #{conv_block_forward.3} parent=59 // pred_fallthru
        _
      // Predicated region
      $region69: #{conv_block_forward.3} parent=59 // pred_check
        %p4227 = pneg %p265
      $region70: #{conv_block_forward.3} parent=59 // pred_check_branch
        %4229 = sbr.rel (%p4227) target = $region72
      $region71: #{conv_block_forward.3} parent=59 // pred_region
        %p4230 = scmp.lt.s32.totalorder %s26, 1
        %s4231 = scalar_select %p4230, %s26, 1
        %p4232 = scmp.lt.s32.totalorder %s27, 7
        %s4233 = scalar_select %p4232, %s27, 7
        %s4234 = smul.addr %s4231, 8
        %s4235 = sadd.s32 %s4233, %s4234
        %s4236 = scalar_lea.vmem %s8, %s4235
      $region72: #{conv_block_forward.3} parent=59 // pred_fallthru
        _
    $region60: #{conv_block_forward.3} parent=5 // pred_fallthru
      _
  $region6: #{conv_block_forward.3} parent=0 // loop_footer
    %s19 = sadd.s32 1, %s15
  $region7: #{conv_block_forward.3} parent=0 // loop_footer_branch
    %14 = sbr.rel target = $region3
  $region8: #{conv_block_forward.3} parent=0 // loop_exit
    _

// kernel: conv_block_forward.4
$region0: #{conv_block_forward.4}
  #allocation0 [shape = 'u32[]', space=smem, size = 0x4, offset = 0x4, fixed_abs, tag = 'smem constant byte address 0x4 - core index']
  #allocation1 [shape = 'u32[72,128]{1,0:T(1,128)}', space=vmem, size = 0x9000, scoped, tag = 'internal scratch']
  %s0 = inlined_call_operand.vmem [shape: bf16[2,10,10,10,128], index: 0, kind: input, shape index: {}, may-alias: {0,1,2}]
  %s1 = inlined_call_operand.vmem [shape: bf16[2,10,10,10,128], index: 1, kind: input, shape index: {}, may-alias: {0,1,2}]
  %s2 = inlined_call_operand.vmem [shape: bf16[2,10,10,10,128], index: 2, kind: input, shape index: {}, may-alias: {0,1,2}]
  %s3 = inlined_call_operand.vmem [shape: bf16[3,3,3,128,128], index: 3, kind: input, shape index: {}]
  %s4 = inlined_call_operand.vmem [shape: f32[1,128], index: 4, kind: input, shape index: {}]
  %s5 = inlined_call_operand.vmem [shape: f32[1,128], index: 5, kind: input, shape index: {}]
  %s6 = inlined_call_operand.vmem [shape: bf16[2,8,64,128], index: 6, kind: output, shape index: {0}]
  %s7 = inlined_call_operand.vmem [shape: f32[2,8,1,128], index: 7, kind: output, shape index: {1}]
  %s8 = inlined_call_operand.vmem [shape: f32[2,8,1,128], index: 8, kind: output, shape index: {2}]
  %9 = xla_tuple %s6, %s7, %s8
  %s10 = sld [smem:[#allocation0]]
  $region73: #{conv_block_forward.4} parent=0
    _
  %s12 = ssub.s32 1, %s10
  %s13 = scalar_select 0, %s12, %s10
  loop: start=0, step=1, limit=18
  $region2: #{conv_block_forward.4} parent=0 // loop_pre_header
    _
  $region3: #{conv_block_forward.4} parent=0 // loop_header
    %s15 = sphi 0, %s19
    %p16 = scmp.ge.s32.totalorder %s15, 18
    %s22 = sphi 0, %s34
    %s23 = sphi 0, %s30
    %s24 = sphi 0, %s22
    %s25 = sphi 0, %s23
    %s26 = sphi 0, %s24
    %s27 = sphi 0, %s25
    %s39 = sphi 0, %s41
    %s42 = sphi 0, %s39
    %s43 = sphi 0, %s42
    %s59 = sphi 0, %s43
    %s69 = sphi 0, %s71
    %s72 = sphi 0, %s69
    %s73 = sphi 0, %s72
    %s89 = sphi 0, %s73
    %s99 = sphi 0, %s101
    %s102 = sphi 0, %s99
    %s103 = sphi 0, %s102
    %s119 = sphi 0, %s103
    %s123 = sphi 0, %s123
    %s125 = sphi 0, %s123
    %s126 = sphi 0, %s125
    %s140 = sphi 0, %s126
    %s144 = sphi 0, %s144
    %s146 = sphi 0, %s144
    %s147 = sphi 0, %s146
    %s161 = sphi 0, %s147
    %s165 = sphi 0, %s165
    %s167 = sphi 0, %s165
    %s168 = sphi 0, %s167
    %s182 = sphi 0, %s168
    %s190 = sphi 0, %s192
    %s193 = sphi 0, %s190
    %s194 = sphi 0, %s193
    %s210 = sphi 0, %s194
    %s218 = sphi 0, %s220
    %s221 = sphi 0, %s218
    %s222 = sphi 0, %s221
    %s238 = sphi 0, %s222
    %s246 = sphi 0, %s248
    %s249 = sphi 0, %s246
    %s250 = sphi 0, %s249
    %s266 = sphi 0, %s250
  $region4: #{conv_block_forward.4} parent=0 // loop_header_branch
    %18 = sbr.rel (%p16) target = $region8
  $region5: #{conv_block_forward.4} parent=0 // loop_body
    %s20 = ssub.s32 %s15, 1
    %s21 = ssub.s32 %s15, 2
    %s28 = sadd.s32 1, %s23
    %p29 = scmp.ge.s32.totalorder %s28, 8
    %s30 = scalar_select %p29, 0, %s28
    %s31 = sadd.s32 1, %s22
    %s32 = scalar_select %p29, %s31, %s22
    %p33 = scmp.ge.s32.totalorder %s32, 2
    %s34 = scalar_select %p33, 0, %s32
    %s35 = ssub.s32 %s22, %s34
    %s36 = ssub.s32 %s23, %s30
    %s37 = sor.u32 %s35, %s36
    %p38 = scmp.eq.s32.totalorder %s37, 0
    %s40 = sadd.s32 %s39, 1
    %s41 = scalar_select %p38, %s39, %s40
    %p44 = pneg %p38
    %p45 = scmp.eq.s32.totalorder %s15, 15
    %p46 = por %p44, %p45
    %p47 = scmp.ne.s32.totalorder %s39, %s42
    %p48 = scmp.eq.s32.totalorder %s15, 0
    %p49 = por %p47, %p48
    %p50 = scmp.ne.s32.totalorder %s39, %s42
    %p51 = scmp.eq.s32.totalorder %s20, 15
    %p52 = por %p50, %p51
    %p53 = scmp.ne.s32.totalorder %s42, %s43
    %p54 = scmp.eq.s32.totalorder %s20, 0
    %p55 = por %p53, %p54
    %p56 = scmp.ne.s32.totalorder %s42, %s43
    %p57 = scmp.eq.s32.totalorder %s21, 15
    %p58 = por %p56, %p57
    %p60 = scmp.ne.s32.totalorder %s43, %s59
    %p61 = scmp.eq.s32.totalorder %s21, 0
    %p62 = por %p60, %p61
    %s63 = sadd.s32 %s23, 1
    %s64 = sadd.s32 %s30, 1
    %s65 = ssub.s32 %s22, %s34
    %s66 = ssub.s32 %s63, %s64
    %s67 = sor.u32 %s65, %s66
    %p68 = scmp.eq.s32.totalorder %s67, 0
    %s70 = sadd.s32 %s69, 1
    %s71 = scalar_select %p68, %s69, %s70
    %p74 = pneg %p68
    %p75 = scmp.eq.s32.totalorder %s15, 15
    %p76 = por %p74, %p75
    %p77 = scmp.ne.s32.totalorder %s69, %s72
    %p78 = scmp.eq.s32.totalorder %s15, 0
    %p79 = por %p77, %p78
    %p80 = scmp.ne.s32.totalorder %s69, %s72
    %p81 = scmp.eq.s32.totalorder %s20, 15
    %p82 = por %p80, %p81
    %p83 = scmp.ne.s32.totalorder %s72, %s73
    %p84 = scmp.eq.s32.totalorder %s20, 0
    %p85 = por %p83, %p84
    %p86 = scmp.ne.s32.totalorder %s72, %s73
    %p87 = scmp.eq.s32.totalorder %s21, 15
    %p88 = por %p86, %p87
    %p90 = scmp.ne.s32.totalorder %s73, %s89
    %p91 = scmp.eq.s32.totalorder %s21, 0
    %p92 = por %p90, %p91
    %s93 = sadd.s32 %s23, 2
    %s94 = sadd.s32 %s30, 2
    %s95 = ssub.s32 %s22, %s34
    %s96 = ssub.s32 %s93, %s94
    %s97 = sor.u32 %s95, %s96
    %p98 = scmp.eq.s32.totalorder %s97, 0
    %s100 = sadd.s32 %s99, 1
    %s101 = scalar_select %p98, %s99, %s100
    %p104 = pneg %p98
    %p105 = scmp.eq.s32.totalorder %s15, 15
    %p106 = por %p104, %p105
    %p107 = scmp.ne.s32.totalorder %s99, %s102
    %p108 = scmp.eq.s32.totalorder %s15, 0
    %p109 = por %p107, %p108
    %p110 = scmp.ne.s32.totalorder %s99, %s102
    %p111 = scmp.eq.s32.totalorder %s20, 15
    %p112 = por %p110, %p111
    %p113 = scmp.ne.s32.totalorder %s102, %s103
    %p114 = scmp.eq.s32.totalorder %s20, 0
    %p115 = por %p113, %p114
    %p116 = scmp.ne.s32.totalorder %s102, %s103
    %p117 = scmp.eq.s32.totalorder %s21, 15
    %p118 = por %p116, %p117
    %p120 = scmp.ne.s32.totalorder %s103, %s119
    %p121 = scmp.eq.s32.totalorder %s21, 0
    %p122 = por %p120, %p121
    %s124 = sadd.s32 %s123, 1
    %p127 = scmp.eq.s32.totalorder %s15, 15
    %p128 = scmp.ne.s32.totalorder %s123, %s125
    %p129 = scmp.eq.s32.totalorder %s15, 0
    %p130 = por %p128, %p129
    %p131 = scmp.ne.s32.totalorder %s123, %s125
    %p132 = scmp.eq.s32.totalorder %s20, 15
    %p133 = por %p131, %p132
    %p134 = scmp.ne.s32.totalorder %s125, %s126
    %p135 = scmp.eq.s32.totalorder %s20, 0
    %p136 = por %p134, %p135
    %p137 = scmp.ne.s32.totalorder %s125, %s126
    %p138 = scmp.eq.s32.totalorder %s21, 15
    %p139 = por %p137, %p138
    %p141 = scmp.ne.s32.totalorder %s126, %s140
    %p142 = scmp.eq.s32.totalorder %s21, 0
    %p143 = por %p141, %p142
    %s145 = sadd.s32 %s144, 1
    %p148 = scmp.eq.s32.totalorder %s15, 15
    %p149 = scmp.ne.s32.totalorder %s144, %s146
    %p150 = scmp.eq.s32.totalorder %s15, 0
    %p151 = por %p149, %p150
    %p152 = scmp.ne.s32.totalorder %s144, %s146
    %p153 = scmp.eq.s32.totalorder %s20, 15
    %p154 = por %p152, %p153
    %p155 = scmp.ne.s32.totalorder %s146, %s147
    %p156 = scmp.eq.s32.totalorder %s20, 0
    %p157 = por %p155, %p156
    %p158 = scmp.ne.s32.totalorder %s146, %s147
    %p159 = scmp.eq.s32.totalorder %s21, 15
    %p160 = por %p158, %p159
    %p162 = scmp.ne.s32.totalorder %s147, %s161
    %p163 = scmp.eq.s32.totalorder %s21, 0
    %p164 = por %p162, %p163
    %s166 = sadd.s32 %s165, 1
    %p169 = scmp.eq.s32.totalorder %s15, 15
    %p170 = scmp.ne.s32.totalorder %s165, %s167
    %p171 = scmp.eq.s32.totalorder %s15, 0
    %p172 = por %p170, %p171
    %p173 = scmp.ne.s32.totalorder %s165, %s167
    %p174 = scmp.eq.s32.totalorder %s20, 15
    %p175 = por %p173, %p174
    %p176 = scmp.ne.s32.totalorder %s167, %s168
    %p177 = scmp.eq.s32.totalorder %s20, 0
    %p178 = por %p176, %p177
    %p179 = scmp.ne.s32.totalorder %s167, %s168
    %p180 = scmp.eq.s32.totalorder %s21, 15
    %p181 = por %p179, %p180
    %p183 = scmp.ne.s32.totalorder %s168, %s182
    %p184 = scmp.eq.s32.totalorder %s21, 0
    %p185 = por %p183, %p184
    %s186 = ssub.s32 %s22, %s34
    %s187 = ssub.s32 %s23, %s30
    %s188 = sor.u32 %s186, %s187
    %p189 = scmp.eq.s32.totalorder %s188, 0
    %s191 = sadd.s32 %s190, 1
    %s192 = scalar_select %p189, %s190, %s191
    %p195 = pneg %p189
    %p196 = scmp.eq.s32.totalorder %s15, 15
    %p197 = por %p195, %p196
    %p198 = scmp.ne.s32.totalorder %s190, %s193
    %p199 = scmp.eq.s32.totalorder %s15, 0
    %p200 = por %p198, %p199
    %p201 = scmp.ne.s32.totalorder %s190, %s193
    %p202 = scmp.eq.s32.totalorder %s20, 15
    %p203 = por %p201, %p202
    %p204 = scmp.ne.s32.totalorder %s193, %s194
    %p205 = scmp.eq.s32.totalorder %s20, 0
    %p206 = por %p204, %p205
    %p207 = scmp.ne.s32.totalorder %s193, %s194
    %p208 = scmp.eq.s32.totalorder %s21, 15
    %p209 = por %p207, %p208
    %p211 = scmp.ne.s32.totalorder %s194, %s210
    %p212 = scmp.eq.s32.totalorder %s21, 0
    %p213 = por %p211, %p212
    %s214 = ssub.s32 %s22, %s34
    %s215 = ssub.s32 %s23, %s30
    %s216 = sor.u32 %s214, %s215
    %p217 = scmp.eq.s32.totalorder %s216, 0
    %s219 = sadd.s32 %s218, 1
    %s220 = scalar_select %p217, %s218, %s219
    %p223 = pneg %p217
    %p224 = scmp.eq.s32.totalorder %s15, 15
    %p225 = por %p223, %p224
    %p226 = scmp.ne.s32.totalorder %s218, %s221
    %p227 = scmp.eq.s32.totalorder %s15, 0
    %p228 = por %p226, %p227
    %p229 = scmp.ne.s32.totalorder %s218, %s221
    %p230 = scmp.eq.s32.totalorder %s20, 15
    %p231 = por %p229, %p230
    %p232 = scmp.ne.s32.totalorder %s221, %s222
    %p233 = scmp.eq.s32.totalorder %s20, 0
    %p234 = por %p232, %p233
    %p235 = scmp.ne.s32.totalorder %s221, %s222
    %p236 = scmp.eq.s32.totalorder %s21, 15
    %p237 = por %p235, %p236
    %p239 = scmp.ne.s32.totalorder %s222, %s238
    %p240 = scmp.eq.s32.totalorder %s21, 0
    %p241 = por %p239, %p240
    %s242 = ssub.s32 %s22, %s34
    %s243 = ssub.s32 %s23, %s30
    %s244 = sor.u32 %s242, %s243
    %p245 = scmp.eq.s32.totalorder %s244, 0
    %s247 = sadd.s32 %s246, 1
    %s248 = scalar_select %p245, %s246, %s247
    %p251 = pneg %p245
    %p252 = scmp.eq.s32.totalorder %s15, 15
    %p253 = por %p251, %p252
    %p254 = scmp.ne.s32.totalorder %s246, %s249
    %p255 = scmp.eq.s32.totalorder %s15, 0
    %p256 = por %p254, %p255
    %p257 = scmp.ne.s32.totalorder %s246, %s249
    %p258 = scmp.eq.s32.totalorder %s20, 15
    %p259 = por %p257, %p258
    %p260 = scmp.ne.s32.totalorder %s249, %s250
    %p261 = scmp.eq.s32.totalorder %s20, 0
    %p262 = por %p260, %p261
    %p263 = scmp.ne.s32.totalorder %s249, %s250
    %p264 = scmp.eq.s32.totalorder %s21, 15
    %p265 = por %p263, %p264
    %p267 = scmp.ne.s32.totalorder %s250, %s266
    %p268 = scmp.eq.s32.totalorder %s21, 0
    %p269 = por %p267, %p268
    %p270 = scmp.le.s32.totalorder 1, %s15
    %p271 = scmp.lt.s32.totalorder %s15, 17
    %p272 = pnand %p270, %p271
    %p273 = pneg %p272
    // Predicated region
    $region9: #{conv_block_forward.4} parent=5 // pred_check
      _
    $region10: #{conv_block_forward.4} parent=5 // pred_check_branch
      %275 = sbr.rel (%p272) target = $region12
    $region11: #{conv_block_forward.4} parent=5 // pred_region
      %s276 = ssub.s32 %s15, 1
      // Predicated region
      $region13: #{conv_block_forward.4} parent=11 // pred_check
        %p277 = pneg %p136
      $region14: #{conv_block_forward.4} parent=11 // pred_check_branch
        %279 = sbr.rel (%p277) target = $region16
      $region15: #{conv_block_forward.4} parent=11 // pred_region
        _
      $region16: #{conv_block_forward.4} parent=11 // pred_fallthru
        _
      // Predicated region
      $region17: #{conv_block_forward.4} parent=11 // pred_check
        %p280 = pneg %p157
      $region18: #{conv_block_forward.4} parent=11 // pred_check_branch
        %282 = sbr.rel (%p280) target = $region20
      $region19: #{conv_block_forward.4} parent=11 // pred_region
        _
      $region20: #{conv_block_forward.4} parent=11 // pred_fallthru
        _
      // Predicated region
      $region21: #{conv_block_forward.4} parent=11 // pred_check
        %p283 = pneg %p178
      $region22: #{conv_block_forward.4} parent=11 // pred_check_branch
        %285 = sbr.rel (%p283) target = $region24
      $region23: #{conv_block_forward.4} parent=11 // pred_region
        _
      $region24: #{conv_block_forward.4} parent=11 // pred_fallthru
        _
    $region12: #{conv_block_forward.4} parent=5 // pred_fallthru
      _
    %p286 = scmp.lt.s32.totalorder %s15, 16
    // Predicated region
    $region25: #{conv_block_forward.4} parent=5 // pred_check
      %p287 = pneg %p286
    $region26: #{conv_block_forward.4} parent=5 // pred_check_branch
      %289 = sbr.rel (%p287) target = $region28
    $region27: #{conv_block_forward.4} parent=5 // pred_region
      // Predicated region
      $region29: #{conv_block_forward.4} parent=27 // pred_check
        %p290 = pneg %p49
      $region30: #{conv_block_forward.4} parent=27 // pred_check_branch
        %292 = sbr.rel (%p290) target = $region32
      $region31: #{conv_block_forward.4} parent=27 // pred_region
        %p293 = scmp.lt.s32.totalorder %s22, 1
        %s294 = scalar_select %p293, %s22, 1
        %p295 = scmp.lt.s32.totalorder %s23, 9
        %s296 = scalar_select %p295, %s23, 9
        %s297 = smul.addr %s296, 20
        %s298 = smul.addr %s294, 200
        %s299 = sadd.s32 %s297, %s298
        %s300 = smul.addr %s299, 4
        %s301 = scalar_lea.vmem %s0, %s300
      $region32: #{conv_block_forward.4} parent=27 // pred_fallthru
        _
      // Predicated region
      $region33: #{conv_block_forward.4} parent=27 // pred_check
        %p302 = pneg %p79
      $region34: #{conv_block_forward.4} parent=27 // pred_check_branch
        %304 = sbr.rel (%p302) target = $region36
      $region35: #{conv_block_forward.4} parent=27 // pred_region
        %s305 = sadd.s32 %s23, 1
        %p306 = scmp.lt.s32.totalorder %s22, 1
        %s307 = scalar_select %p306, %s22, 1
        %p308 = scmp.lt.s32.totalorder %s305, 9
        %s309 = scalar_select %p308, %s305, 9
        %s310 = smul.addr %s309, 20
        %s311 = smul.addr %s307, 200
        %s312 = sadd.s32 %s310, %s311
        %s313 = smul.addr %s312, 4
        %s314 = scalar_lea.vmem %s1, %s313
        %s315 = sadd.s32 %s23, 1
      $region36: #{conv_block_forward.4} parent=27 // pred_fallthru
        _
      // Predicated region
      $region37: #{conv_block_forward.4} parent=27 // pred_check
        %p316 = pneg %p109
      $region38: #{conv_block_forward.4} parent=27 // pred_check_branch
        %318 = sbr.rel (%p316) target = $region40
      $region39: #{conv_block_forward.4} parent=27 // pred_region
        %s319 = sadd.s32 %s23, 2
        %p320 = scmp.lt.s32.totalorder %s22, 1
        %s321 = scalar_select %p320, %s22, 1
        %p322 = scmp.lt.s32.totalorder %s319, 9
        %s323 = scalar_select %p322, %s319, 9
        %s324 = smul.addr %s323, 20
        %s325 = smul.addr %s321, 200
        %s326 = sadd.s32 %s324, %s325
        %s327 = smul.addr %s326, 4
        %s328 = scalar_lea.vmem %s2, %s327
        %s329 = sadd.s32 %s23, 2
      $region40: #{conv_block_forward.4} parent=27 // pred_fallthru
        _
    $region28: #{conv_block_forward.4} parent=5 // pred_fallthru
      _
    %p330 = scmp.le.s32.totalorder 1, %s15
    %p331 = scmp.lt.s32.totalorder %s15, 17
    %p332 = pnand %p330, %p331
    %p333 = pneg %p332
    // Predicated region
    $region41: #{conv_block_forward.4} parent=5 // pred_check
      _
    $region42: #{conv_block_forward.4} parent=5 // pred_check_branch
      %335 = sbr.rel (%p332) target = $region44
    $region43: #{conv_block_forward.4} parent=5 // pred_region
      %s336 = ssub.s32 %s15, 1
      %p337 = scmp.lt.s32.totalorder %s24, 1
      %s338 = scalar_select %p337, %s24, 1
      %p339 = scmp.lt.s32.totalorder %s25, 9
      %s340 = scalar_select %p339, %s25, 9
      %s341 = smul.addr %s340, 20
      %s342 = smul.addr %s338, 200
      %s343 = sadd.s32 %s341, %s342
      %s344 = smul.addr %s343, 4
      %s345 = scalar_lea.vmem %s0, %s344
      %p346 = pneg %p55
      %p347 = pneg %p52
      %s348 = sadd.s32 %s25, 1
      %p349 = scmp.lt.s32.totalorder %s24, 1
      %s350 = scalar_select %p349, %s24, 1
      %p351 = scmp.lt.s32.totalorder %s348, 9
      %s352 = scalar_select %p351, %s348, 9
      %s353 = smul.addr %s352, 20
      %s354 = smul.addr %s350, 200
      %s355 = sadd.s32 %s353, %s354
      %s356 = smul.addr %s355, 4
      %s357 = scalar_lea.vmem %s1, %s356
      %p358 = pneg %p85
      %p359 = pneg %p82
      %s360 = sadd.s32 %s25, 2
      %p361 = scmp.lt.s32.totalorder %s24, 1
      %s362 = scalar_select %p361, %s24, 1
      %p363 = scmp.lt.s32.totalorder %s360, 9
      %s364 = scalar_select %p363, %s360, 9
      %s365 = smul.addr %s364, 20
      %s366 = smul.addr %s362, 200
      %s367 = sadd.s32 %s365, %s366
      %s368 = smul.addr %s367, 4
      %s369 = scalar_lea.vmem %s2, %s368
      %p370 = pneg %p115
      %p371 = pneg %p112
      %p372 = pneg %p136
      %p373 = pneg %p133
      %p374 = pneg %p157
      %p375 = pneg %p154
      %p376 = pneg %p178
      %p377 = pneg %p175
      %p378 = pneg %p206
      %p379 = pneg %p203
      %p380 = scmp.lt.s32.totalorder %s24, 1
      %s381 = scalar_select %p380, %s24, 1
      %p382 = scmp.lt.s32.totalorder %s25, 7
      %s383 = scalar_select %p382, %s25, 7
      %s384 = smul.addr %s383, 8
      %s385 = smul.addr %s381, 64
      %s386 = sadd.s32 %s384, %s385
      %s387 = smul.addr %s386, 4
      %s388 = scalar_lea.vmem %s6, %s387
      %p389 = pneg %p234
      %p390 = pneg %p231
      %p391 = scmp.lt.s32.totalorder %s24, 1
      %s392 = scalar_select %p391, %s24, 1
      %p393 = scmp.lt.s32.totalorder %s25, 7
      %s394 = scalar_select %p393, %s25, 7
      %s395 = smul.addr %s392, 8
      %s396 = sadd.s32 %s394, %s395
      %s397 = scalar_lea.vmem %s7, %s396
      %p398 = pneg %p262
      %p399 = pneg %p259
      %p400 = scmp.lt.s32.totalorder %s24, 1
      %s401 = scalar_select %p400, %s24, 1
      %p402 = scmp.lt.s32.totalorder %s25, 7
      %s403 = scalar_select %p402, %s25, 7
      %s404 = smul.addr %s401, 8
      %s405 = sadd.s32 %s403, %s404
      %s406 = scalar_lea.vmem %s8, %s405
      %p407 = scmp.lt.s32.totalorder %s24, 1
      %s408 = scalar_select %p407, %s24, 1
      %p409 = scmp.lt.s32.totalorder %s25, 9
      %s410 = scalar_select %p409, %s25, 9
      %s411 = smul.addr %s410, 20
      %s412 = smul.addr %s408, 200
      %s413 = sadd.s32 %s411, %s412
      %s414 = smul.addr %s413, 4
      %s415 = scalar_lea.vmem %s0, %s414
      %s416 = sadd.s32 %s25, 1
      %p417 = scmp.lt.s32.totalorder %s24, 1
      %s418 = scalar_select %p417, %s24, 1
      %p419 = scmp.lt.s32.totalorder %s416, 9
      %s420 = scalar_select %p419, %s416, 9
      %s421 = smul.addr %s420, 20
      %s422 = smul.addr %s418, 200
      %s423 = sadd.s32 %s421, %s422
      %s424 = smul.addr %s423, 4
      %s425 = scalar_lea.vmem %s1, %s424
      %s426 = sadd.s32 %s25, 1
      %s427 = sadd.s32 %s25, 2
      %p428 = scmp.lt.s32.totalorder %s24, 1
      %s429 = scalar_select %p428, %s24, 1
      %p430 = scmp.lt.s32.totalorder %s427, 9
      %s431 = scalar_select %p430, %s427, 9
      %s432 = smul.addr %s431, 20
      %s433 = smul.addr %s429, 200
      %s434 = sadd.s32 %s432, %s433
      %s435 = smul.addr %s434, 4
      %s436 = scalar_lea.vmem %s2, %s435
      %s437 = sadd.s32 %s25, 2
      %p438 = scmp.lt.s32.totalorder %s24, 1
      %s439 = scalar_select %p438, %s24, 1
      %p440 = scmp.lt.s32.totalorder %s25, 7
      %s441 = scalar_select %p440, %s25, 7
      %s442 = smul.addr %s441, 8
      %s443 = smul.addr %s439, 64
      %s444 = sadd.s32 %s442, %s443
      %s445 = smul.addr %s444, 4
      %s446 = scalar_lea.vmem %s6, %s445
      %p447 = scmp.lt.s32.totalorder %s24, 1
      %s448 = scalar_select %p447, %s24, 1
      %p449 = scmp.lt.s32.totalorder %s25, 7
      %s450 = scalar_select %p449, %s25, 7
      %s451 = smul.addr %s448, 8
      %s452 = sadd.s32 %s450, %s451
      %s453 = scalar_lea.vmem %s7, %s452
      %p454 = scmp.lt.s32.totalorder %s24, 1
      %s455 = scalar_select %p454, %s24, 1
      %p456 = scmp.lt.s32.totalorder %s25, 7
      %s457 = scalar_select %p456, %s25, 7
      %s458 = smul.addr %s455, 8
      %s459 = sadd.s32 %s457, %s458
      %s460 = scalar_lea.vmem %s8, %s459
      %v461 = vlaneseq
      %v462 = vshrl.u32 %v461, 7
      %v463 = vadd.s32 %v462, 8
      %vm464 = vcmp.ge.s32.totalorder %v462, 1
      %vm465 = vcmp.ge.s32.totalorder %v463, 1
      %vm466 = vmand 0, %vm464
      %vm467 = vmand 0, %vm465
      %vm468 = vmand 1, %vm464
      %vm469 = vmand 1, %vm465
      %vm470 = vcmp.le.s32.totalorder %v462, 8
      %vm471 = vcmp.le.s32.totalorder %v463, 8
      %vm472 = vmand %vm466, %vm470
      %vm473 = vmand %vm467, %vm471
      %vm474 = vmand %vm468, %vm470
      %vm475 = vmand %vm469, %vm471
      %v476 = vld [vmem:[%s4] sm:$0x1]
      %v477 = vld [vmem:[%s5] sm:$0x1]
      %v478 = vld [vmem:[%s415] sm:$0xf]
      %v479 = vld [vmem:[%s415 + $0x4] sm:$0x1]
      %v480 = vld [vmem:[%s415 + $0x8] sm:$0xf]
      %v481 = vld [vmem:[%s415 + $0xc] sm:$0x1]
      %v482 = vld [vmem:[%s415 + $0x10] sm:$0xf]
      %v483 = vld [vmem:[%s415 + $0x14] sm:$0x1]
      %v484 = vld [vmem:[%s415 + $0x18] sm:$0xf]
      %v485 = vld [vmem:[%s415 + $0x1c] sm:$0x1]
      %v486 = vld [vmem:[%s415 + $0x20] sm:$0xf]
      %v487 = vld [vmem:[%s415 + $0x24] sm:$0x1]
      %v488 = vld [vmem:[%s415 + $0x28] sm:$0xf]
      %v489 = vld [vmem:[%s415 + $0x2c] sm:$0x1]
      %v490 = vld [vmem:[%s415 + $0x30] sm:$0xf]
      %v491 = vld [vmem:[%s415 + $0x34] sm:$0x1]
      %v492 = vld [vmem:[%s415 + $0x38] sm:$0xf]
      %v493 = vld [vmem:[%s415 + $0x3c] sm:$0x1]
      %v494 = vld [vmem:[%s415 + $0x40] sm:$0xf]
      %v495 = vld [vmem:[%s415 + $0x44] sm:$0x1]
      %v496 = vld [vmem:[%s415 + $0x48] sm:$0xf]
      %v497 = vld [vmem:[%s415 + $0x4c] sm:$0x1]
      %v498 = vunpack.c.l.bf16 %v478
      %v499 = vunpack.c.l.bf16 %v479
      %v500 = vunpack.c.l.bf16 %v480
      %v501 = vunpack.c.l.bf16 %v481
      %v502 = vunpack.c.l.bf16 %v482
      %v503 = vunpack.c.l.bf16 %v483
      %v504 = vunpack.c.l.bf16 %v484
      %v505 = vunpack.c.l.bf16 %v485
      %v506 = vunpack.c.l.bf16 %v486
      %v507 = vunpack.c.l.bf16 %v487
      %v508 = vunpack.c.l.bf16 %v488
      %v509 = vunpack.c.l.bf16 %v489
      %v510 = vunpack.c.l.bf16 %v490
      %v511 = vunpack.c.l.bf16 %v491
      %v512 = vunpack.c.l.bf16 %v492
      %v513 = vunpack.c.l.bf16 %v493
      %v514 = vunpack.c.l.bf16 %v494
      %v515 = vunpack.c.l.bf16 %v495
      %v516 = vunpack.c.l.bf16 %v496
      %v517 = vunpack.c.l.bf16 %v497
      %v519 = vperm.slane %v476, 0
      %v521 = vmul.f32 %v498, %v519
      %v522 = vmul.f32 %v499, %v519
      %v523 = vmul.f32 %v500, %v519
      %v524 = vmul.f32 %v501, %v519
      %v525 = vmul.f32 %v502, %v519
      %v526 = vmul.f32 %v503, %v519
      %v527 = vmul.f32 %v504, %v519
      %v528 = vmul.f32 %v505, %v519
      %v529 = vmul.f32 %v506, %v519
      %v530 = vmul.f32 %v507, %v519
      %v531 = vmul.f32 %v508, %v519
      %v532 = vmul.f32 %v509, %v519
      %v533 = vmul.f32 %v510, %v519
      %v534 = vmul.f32 %v511, %v519
      %v535 = vmul.f32 %v512, %v519
      %v536 = vmul.f32 %v513, %v519
      %v537 = vmul.f32 %v514, %v519
      %v538 = vmul.f32 %v515, %v519
      %v539 = vmul.f32 %v516, %v519
      %v540 = vmul.f32 %v517, %v519
      %v542 = vperm.slane %v477, 0
      %v544 = vadd.f32 %v521, %v542
      %v545 = vadd.f32 %v522, %v542
      %v546 = vadd.f32 %v523, %v542
      %v547 = vadd.f32 %v524, %v542
      %v548 = vadd.f32 %v525, %v542
      %v549 = vadd.f32 %v526, %v542
      %v550 = vadd.f32 %v527, %v542
      %v551 = vadd.f32 %v528, %v542
      %v552 = vadd.f32 %v529, %v542
      %v553 = vadd.f32 %v530, %v542
      %v554 = vadd.f32 %v531, %v542
      %v555 = vadd.f32 %v532, %v542
      %v556 = vadd.f32 %v533, %v542
      %v557 = vadd.f32 %v534, %v542
      %v558 = vadd.f32 %v535, %v542
      %v559 = vadd.f32 %v536, %v542
      %v560 = vadd.f32 %v537, %v542
      %v561 = vadd.f32 %v538, %v542
      %v562 = vadd.f32 %v539, %v542
      %v563 = vadd.f32 %v540, %v542
      %vm564 = vcmp.ge.f32.partialorder %v544, 0.0
      %vm565 = vcmp.ge.f32.partialorder %v545, 0.0
      %vm566 = vcmp.ge.f32.partialorder %v546, 0.0
      %vm567 = vcmp.ge.f32.partialorder %v547, 0.0
      %vm568 = vcmp.ge.f32.partialorder %v548, 0.0
      %vm569 = vcmp.ge.f32.partialorder %v549, 0.0
      %vm570 = vcmp.ge.f32.partialorder %v550, 0.0
      %vm571 = vcmp.ge.f32.partialorder %v551, 0.0
      %vm572 = vcmp.ge.f32.partialorder %v552, 0.0
      %vm573 = vcmp.ge.f32.partialorder %v553, 0.0
      %vm574 = vcmp.ge.f32.partialorder %v554, 0.0
      %vm575 = vcmp.ge.f32.partialorder %v555, 0.0
      %vm576 = vcmp.ge.f32.partialorder %v556, 0.0
      %vm577 = vcmp.ge.f32.partialorder %v557, 0.0
      %vm578 = vcmp.ge.f32.partialorder %v558, 0.0
      %vm579 = vcmp.ge.f32.partialorder %v559, 0.0
      %vm580 = vcmp.ge.f32.partialorder %v560, 0.0
      %vm581 = vcmp.ge.f32.partialorder %v561, 0.0
      %vm582 = vcmp.ge.f32.partialorder %v562, 0.0
      %vm583 = vcmp.ge.f32.partialorder %v563, 0.0
      %v584 = vmul.f32 %v544, 0.01
      %v585 = vmul.f32 %v545, 0.01
      %v586 = vmul.f32 %v546, 0.01
      %v587 = vmul.f32 %v547, 0.01
      %v588 = vmul.f32 %v548, 0.01
      %v589 = vmul.f32 %v549, 0.01
      %v590 = vmul.f32 %v550, 0.01
      %v591 = vmul.f32 %v551, 0.01
      %v592 = vmul.f32 %v552, 0.01
      %v593 = vmul.f32 %v553, 0.01
      %v594 = vmul.f32 %v554, 0.01
      %v595 = vmul.f32 %v555, 0.01
      %v596 = vmul.f32 %v556, 0.01
      %v597 = vmul.f32 %v557, 0.01
      %v598 = vmul.f32 %v558, 0.01
      %v599 = vmul.f32 %v559, 0.01
      %v600 = vmul.f32 %v560, 0.01
      %v601 = vmul.f32 %v561, 0.01
      %v602 = vmul.f32 %v562, 0.01
      %v603 = vmul.f32 %v563, 0.01
      %v604 = vsel %vm564, %v544, %v584
      %v605 = vsel %vm565, %v545, %v585
      %v606 = vsel %vm566, %v546, %v586
      %v607 = vsel %vm567, %v547, %v587
      %v608 = vsel %vm568, %v548, %v588
      %v609 = vsel %vm569, %v549, %v589
      %v610 = vsel %vm570, %v550, %v590
      %v611 = vsel %vm571, %v551, %v591
      %v612 = vsel %vm572, %v552, %v592
      %v613 = vsel %vm573, %v553, %v593
      %v614 = vsel %vm574, %v554, %v594
      %v615 = vsel %vm575, %v555, %v595
      %v616 = vsel %vm576, %v556, %v596
      %v617 = vsel %vm577, %v557, %v597
      %v618 = vsel %vm578, %v558, %v598
      %v619 = vsel %vm579, %v559, %v599
      %v620 = vsel %vm580, %v560, %v600
      %v621 = vsel %vm581, %v561, %v601
      %v622 = vsel %vm582, %v562, %v602
      %v623 = vsel %vm583, %v563, %v603
      %p624 = scmp.ge.s32.totalorder %s25, 1
      %s625 = scalar_select %p624, 1, 0
      %v626 = vstv %s625
      %vm627 = vcmp.eq.s32.totalorder %v626, 1
      %vm628 = vmand %vm472, %vm627
      %vm629 = vmand %vm473, %vm627
      %vm630 = vmand %vm474, %vm627
      %vm631 = vmand %vm475, %vm627
      %p632 = scmp.le.s32.totalorder %s25, 8
      %s633 = scalar_select %p632, 1, 0
      %v634 = vstv %s633
      %vm635 = vcmp.eq.s32.totalorder %v634, 1
      %vm636 = vmand %vm628, %vm635
      %vm637 = vmand %vm629, %vm635
      %vm638 = vmand %vm630, %vm635
      %vm639 = vmand %vm631, %vm635
      %v640 = vsel %vm636, %v604, 0.0
      %v641 = vsel %vm637, %v605, 0.0
      %v642 = vsel %vm638, %v606, 0.0
      %v643 = vsel %vm639, %v607, 0.0
      %v644 = vsel %vm638, %v608, 0.0
      %v645 = vsel %vm639, %v609, 0.0
      %v646 = vsel %vm638, %v610, 0.0
      %v647 = vsel %vm639, %v611, 0.0
      %v648 = vsel %vm638, %v612, 0.0
      %v649 = vsel %vm639, %v613, 0.0
      %v650 = vsel %vm638, %v614, 0.0
      %v651 = vsel %vm639, %v615, 0.0
      %v652 = vsel %vm638, %v616, 0.0
      %v653 = vsel %vm639, %v617, 0.0
      %v654 = vsel %vm638, %v618, 0.0
      %v655 = vsel %vm639, %v619, 0.0
      %v656 = vsel %vm638, %v620, 0.0
      %v657 = vsel %vm639, %v621, 0.0
      %v658 = vsel %vm636, %v622, 0.0
      %v659 = vsel %vm637, %v623, 0.0
      %v660 = vpack.c.bf16 %v640, %v640
      %v661 = vpack.c.bf16 %v641, %v641
      %v662 = vpack.c.bf16 %v642, %v642
      %v663 = vpack.c.bf16 %v643, %v643
      %v664 = vpack.c.bf16 %v644, %v644
      %v665 = vpack.c.bf16 %v645, %v645
      %v666 = vpack.c.bf16 %v646, %v646
      %v667 = vpack.c.bf16 %v647, %v647
      %v668 = vpack.c.bf16 %v648, %v648
      %v669 = vpack.c.bf16 %v649, %v649
      %v670 = vpack.c.bf16 %v650, %v650
      %v671 = vpack.c.bf16 %v651, %v651
      %v672 = vpack.c.bf16 %v652, %v652
      %v673 = vpack.c.bf16 %v653, %v653
      %v674 = vpack.c.bf16 %v654, %v654
      %v675 = vpack.c.bf16 %v655, %v655
      %v676 = vpack.c.bf16 %v656, %v656
      %v677 = vpack.c.bf16 %v657, %v657
      %v678 = vpack.c.bf16 %v658, %v658
      %v679 = vpack.c.bf16 %v659, %v659
      %v680 = vld [vmem:[%s3] sm:$0xf]
      %v681 = vld [vmem:[%s3 + $0x4] sm:$0xf]
      %v682 = vld [vmem:[%s3 + $0x8] sm:$0xf]
      %v683 = vld [vmem:[%s3 + $0xc] sm:$0xf]
      %v684 = vld [vmem:[%s3 + $0x10] sm:$0xf]
      %v685 = vld [vmem:[%s3 + $0x14] sm:$0xf]
      %v686 = vld [vmem:[%s3 + $0x18] sm:$0xf]
      %v687 = vld [vmem:[%s3 + $0x1c] sm:$0xf]
      %v688 = vld [vmem:[%s3 + $0x20] sm:$0xf]
      %v689 = vld [vmem:[%s3 + $0x24] sm:$0xf]
      %v690 = vld [vmem:[%s3 + $0x28] sm:$0xf]
      %v691 = vld [vmem:[%s3 + $0x2c] sm:$0xf]
      %v692 = vld [vmem:[%s3 + $0x30] sm:$0xf]
      %v693 = vld [vmem:[%s3 + $0x34] sm:$0xf]
      %v694 = vld [vmem:[%s3 + $0x38] sm:$0xf]
      %v695 = vld [vmem:[%s3 + $0x3c] sm:$0xf]
      %vm696 = vsmask.f32 3328
      %vm697 = vsmask.f32 7440
      %vm698 = vmor %vm696, %vm697
      %v700 = vshrl.u32 %v660, 16
      %v702 = vrot.slane %v700, 4
      %v703 = vshll.u32 %v660, 16
      %v705 = vrot.slane %v703, 5
      %v706 = vor.u32 %v702, %v705
      %v707 = vrot.slane %v706, 4
      %v709 = vshll.u32 %v661, 16
      %v711 = vrot.slane %v709, 5
      %v712 = vsel %vm698, %v707, %v711
      %v714 = vshrl.u32 %v662, 16
      %v716 = vrot.slane %v714, 4
      %v717 = vshll.u32 %v662, 16
      %v719 = vrot.slane %v717, 5
      %v720 = vor.u32 %v716, %v719
      %v721 = vrot.slane %v720, 4
      %v723 = vshll.u32 %v663, 16
      %v725 = vrot.slane %v723, 5
      %v726 = vsel %vm698, %v721, %v725
      %v728 = vshrl.u32 %v664, 16
      %v730 = vrot.slane %v728, 4
      %v731 = vshll.u32 %v664, 16
      %v733 = vrot.slane %v731, 5
      %v734 = vor.u32 %v730, %v733
      %v735 = vrot.slane %v734, 4
      %v737 = vshll.u32 %v665, 16
      %v739 = vrot.slane %v737, 5
      %v740 = vsel %vm698, %v735, %v739
      %v742 = vshrl.u32 %v666, 16
      %v744 = vrot.slane %v742, 4
      %v745 = vshll.u32 %v666, 16
      %v747 = vrot.slane %v745, 5
      %v748 = vor.u32 %v744, %v747
      %v749 = vrot.slane %v748, 4
      %v751 = vshll.u32 %v667, 16
      %v753 = vrot.slane %v751, 5
      %v754 = vsel %vm698, %v749, %v753
      %v756 = vshrl.u32 %v668, 16
      %v758 = vrot.slane %v756, 4
      %v759 = vshll.u32 %v668, 16
      %v761 = vrot.slane %v759, 5
      %v762 = vor.u32 %v758, %v761
      %v763 = vrot.slane %v762, 4
      %v765 = vshll.u32 %v669, 16
      %v767 = vrot.slane %v765, 5
      %v768 = vsel %vm698, %v763, %v767
      %v770 = vshrl.u32 %v670, 16
      %v772 = vrot.slane %v770, 4
      %v773 = vshll.u32 %v670, 16
      %v775 = vrot.slane %v773, 5
      %v776 = vor.u32 %v772, %v775
      %v777 = vrot.slane %v776, 4
      %v779 = vshll.u32 %v671, 16
      %v781 = vrot.slane %v779, 5
      %v782 = vsel %vm698, %v777, %v781
      %v784 = vshrl.u32 %v672, 16
      %v786 = vrot.slane %v784, 4
      %v787 = vshll.u32 %v672, 16
      %v789 = vrot.slane %v787, 5
      %v790 = vor.u32 %v786, %v789
      %v791 = vrot.slane %v790, 4
      %v793 = vshll.u32 %v673, 16
      %v795 = vrot.slane %v793, 5
      %v796 = vsel %vm698, %v791, %v795
      %v798 = vshrl.u32 %v674, 16
      %v800 = vrot.slane %v798, 4
      %v801 = vshll.u32 %v674, 16
      %v803 = vrot.slane %v801, 5
      %v804 = vor.u32 %v800, %v803
      %v805 = vrot.slane %v804, 4
      %v807 = vshll.u32 %v675, 16
      %v809 = vrot.slane %v807, 5
      %v810 = vsel %vm698, %v805, %v809
      %s811 = scalar_lea.vmem %s3, 64
      %v812 = vld [vmem:[%s811] sm:$0xf]
      %v813 = vld [vmem:[%s811 + $0x4] sm:$0xf]
      %v814 = vld [vmem:[%s811 + $0x8] sm:$0xf]
      %v815 = vld [vmem:[%s811 + $0xc] sm:$0xf]
      %v816 = vld [vmem:[%s811 + $0x10] sm:$0xf]
      %v817 = vld [vmem:[%s811 + $0x14] sm:$0xf]
      %v818 = vld [vmem:[%s811 + $0x18] sm:$0xf]
      %v819 = vld [vmem:[%s811 + $0x1c] sm:$0xf]
      %v820 = vld [vmem:[%s811 + $0x20] sm:$0xf]
      %v821 = vld [vmem:[%s811 + $0x24] sm:$0xf]
      %v822 = vld [vmem:[%s811 + $0x28] sm:$0xf]
      %v823 = vld [vmem:[%s811 + $0x2c] sm:$0xf]
      %v824 = vld [vmem:[%s811 + $0x30] sm:$0xf]
      %v825 = vld [vmem:[%s811 + $0x34] sm:$0xf]
      %v826 = vld [vmem:[%s811 + $0x38] sm:$0xf]
      %v827 = vld [vmem:[%s811 + $0x3c] sm:$0xf]
      %v828 = vunpack.c.l.b16 %v712
      %v829 = vunpack.c.l.b16 %v726
      %v830 = vunpack.c.l.b16 %v740
      %v831 = vunpack.c.l.b16 %v754
      %v832 = vunpack.c.l.b16 %v768
      %v833 = vunpack.c.l.b16 %v782
      %v834 = vunpack.c.l.b16 %v796
      %v835 = vunpack.c.l.b16 %v810
      %v836 = vpack.c.b16 %v829, %v828
      %v837 = vpack.c.b16 %v831, %v830
      %v838 = vpack.c.b16 %v833, %v832
      %v839 = vpack.c.b16 %v835, %v834
      %v860 = vunpack.c.l.b16 %v812
      %v861 = vunpack.c.l.b16 %v813
      %v862 = vunpack.c.l.b16 %v814
      %v863 = vunpack.c.l.b16 %v815
      %v864 = vunpack.c.l.b16 %v816
      %v865 = vunpack.c.l.b16 %v817
      %v866 = vunpack.c.l.b16 %v818
      %v867 = vunpack.c.l.b16 %v819
      %v868 = vunpack.c.l.b16 %v820
      %v869 = vunpack.c.l.b16 %v821
      %v870 = vunpack.c.l.b16 %v822
      %v871 = vunpack.c.l.b16 %v823
      %v872 = vunpack.c.l.b16 %v824
      %v873 = vunpack.c.l.b16 %v825
      %v874 = vunpack.c.l.b16 %v826
      %v875 = vunpack.c.l.b16 %v827
      %v876 = vpack.c.b16 %v861, %v860
      %v877 = vpack.c.b16 %v863, %v862
      %v878 = vpack.c.b16 %v865, %v864
      %v879 = vpack.c.b16 %v867, %v866
      %v880 = vpack.c.b16 %v869, %v868
      %v881 = vpack.c.b16 %v871, %v870
      %v882 = vpack.c.b16 %v873, %v872
      %v883 = vpack.c.b16 %v875, %v874
      %892 = vmatpush.bf16.msra.mxu0 %v883
      %893 = vmatpush.bf16.msra.mxu0 %v882
      %894 = vmatpush.bf16.msra.mxu0 %v881
      %895 = vmatpush.bf16.msra.mxu0 %v880
      %896 = vmatpush.bf16.msra.mxu0 %v879
      %897 = vmatpush.bf16.msra.mxu0 %v878
      %898 = vmatpush.bf16.msra.mxu0 %v877
      %899 = vmatpush.bf16.msra.mxu0 %v876
      %900 = vmatmul.bf16.gmra.mxu0 %v836
      %v901 = vpop.f32.mrf.mxu0
      %v902 = vadd.f32 0.0, %v901
      %v903 = vpop.f32.mrf.mxu0
      %v904 = vadd.f32 0.0, %v903
      %905 = vmatmul.bf16.gmra.mxu0 %v837
      %v906 = vpop.f32.mrf.mxu0
      %v907 = vadd.f32 0.0, %v906
      %v908 = vpop.f32.mrf.mxu0
      %v909 = vadd.f32 0.0, %v908
      %910 = vmatmul.bf16.gmra.mxu0 %v838
      %v911 = vpop.f32.mrf.mxu0
      %v912 = vadd.f32 0.0, %v911
      %v913 = vpop.f32.mrf.mxu0
      %v914 = vadd.f32 0.0, %v913
      %915 = vmatmul.bf16.gmra.mxu0 %v839
      %v916 = vpop.f32.mrf.mxu0
      %v917 = vadd.f32 0.0, %v916
      %v918 = vpop.f32.mrf.mxu0
      %v919 = vadd.f32 0.0, %v918
      %920 = vdwg.mxu0
      %v929 = vunpack.c.l.b16 %v660
      %v930 = vunpack.c.l.b16 %v662
      %v931 = vunpack.c.l.b16 %v664
      %v932 = vunpack.c.l.b16 %v666
      %v933 = vunpack.c.l.b16 %v668
      %v934 = vunpack.c.l.b16 %v670
      %v935 = vunpack.c.l.b16 %v672
      %v936 = vunpack.c.l.b16 %v674
      %v937 = vpack.c.b16 %v930, %v929
      %v938 = vpack.c.b16 %v932, %v931
      %v939 = vpack.c.b16 %v934, %v933
      %v940 = vpack.c.b16 %v936, %v935
      %v961 = vunpack.c.l.b16 %v680
      %v962 = vunpack.c.l.b16 %v681
      %v963 = vunpack.c.l.b16 %v682
      %v964 = vunpack.c.l.b16 %v683
      %v965 = vunpack.c.l.b16 %v684
      %v966 = vunpack.c.l.b16 %v685
      %v967 = vunpack.c.l.b16 %v686
      %v968 = vunpack.c.l.b16 %v687
      %v969 = vunpack.c.l.b16 %v688
      %v970 = vunpack.c.l.b16 %v689
      %v971 = vunpack.c.l.b16 %v690
      %v972 = vunpack.c.l.b16 %v691
      %v973 = vunpack.c.l.b16 %v692
      %v974 = vunpack.c.l.b16 %v693
      %v975 = vunpack.c.l.b16 %v694
      %v976 = vunpack.c.l.b16 %v695
      %v977 = vpack.c.b16 %v962, %v961
      %v978 = vpack.c.b16 %v964, %v963
      %v979 = vpack.c.b16 %v966, %v965
      %v980 = vpack.c.b16 %v968, %v967
      %v981 = vpack.c.b16 %v970, %v969
      %v982 = vpack.c.b16 %v972, %v971
      %v983 = vpack.c.b16 %v974, %v973
      %v984 = vpack.c.b16 %v976, %v975
      %993 = vmatpush.bf16.msra.mxu0 %v984
      %994 = vmatpush.bf16.msra.mxu0 %v983
      %995 = vmatpush.bf16.msra.mxu0 %v982
      %996 = vmatpush.bf16.msra.mxu0 %v981
      %997 = vmatpush.bf16.msra.mxu0 %v980
      %998 = vmatpush.bf16.msra.mxu0 %v979
      %999 = vmatpush.bf16.msra.mxu0 %v978
      %1000 = vmatpush.bf16.msra.mxu0 %v977
      %1001 = vmatmul.bf16.gmra.mxu0 %v937
      %v1002 = vpop.f32.mrf.mxu0
      %v1003 = vadd.f32 %v902, %v1002
      %v1004 = vpop.f32.mrf.mxu0
      %v1005 = vadd.f32 %v904, %v1004
      %1006 = vmatmul.bf16.gmra.mxu0 %v938
      %v1007 = vpop.f32.mrf.mxu0
      %v1008 = vadd.f32 %v907, %v1007
      %v1009 = vpop.f32.mrf.mxu0
      %v1010 = vadd.f32 %v909, %v1009
      %1011 = vmatmul.bf16.gmra.mxu0 %v939
      %v1012 = vpop.f32.mrf.mxu0
      %v1013 = vadd.f32 %v912, %v1012
      %v1014 = vpop.f32.mrf.mxu0
      %v1015 = vadd.f32 %v914, %v1014
      %1016 = vmatmul.bf16.gmra.mxu0 %v940
      %v1017 = vpop.f32.mrf.mxu0
      %v1018 = vadd.f32 %v917, %v1017
      %v1019 = vpop.f32.mrf.mxu0
      %v1020 = vadd.f32 %v919, %v1019
      %1021 = vdwg.mxu0
      %vm1030 = vcmask 1042432
      %vm1031 = vcmask 1046532
      %vm1032 = vmor %vm1030, %vm1031
      %v1033 = vrot.slane %v660, 5
      %v1034 = vrot.slane %v1033, 4
      %v1035 = vrot.slane %v661, 5
      %v1036 = vsel %vm1032, %v1034, %v1035
      %v1037 = vrot.slane %v662, 5
      %v1038 = vrot.slane %v1037, 4
      %v1039 = vrot.slane %v663, 5
      %v1040 = vsel %vm1032, %v1038, %v1039
      %v1041 = vrot.slane %v664, 5
      %v1042 = vrot.slane %v1041, 4
      %v1043 = vrot.slane %v665, 5
      %v1044 = vsel %vm1032, %v1042, %v1043
      %v1045 = vrot.slane %v666, 5
      %v1046 = vrot.slane %v1045, 4
      %v1047 = vrot.slane %v667, 5
      %v1048 = vsel %vm1032, %v1046, %v1047
      %v1049 = vrot.slane %v668, 5
      %v1050 = vrot.slane %v1049, 4
      %v1051 = vrot.slane %v669, 5
      %v1052 = vsel %vm1032, %v1050, %v1051
      %v1053 = vrot.slane %v670, 5
      %v1054 = vrot.slane %v1053, 4
      %v1055 = vrot.slane %v671, 5
      %v1056 = vsel %vm1032, %v1054, %v1055
      %v1057 = vrot.slane %v672, 5
      %v1058 = vrot.slane %v1057, 4
      %v1059 = vrot.slane %v673, 5
      %v1060 = vsel %vm1032, %v1058, %v1059
      %v1061 = vrot.slane %v674, 5
      %v1062 = vrot.slane %v1061, 4
      %v1063 = vrot.slane %v675, 5
      %v1064 = vsel %vm1032, %v1062, %v1063
      %s1065 = scalar_lea.vmem %s3, 128
      %v1066 = vld [vmem:[%s1065] sm:$0xf]
      %v1067 = vld [vmem:[%s1065 + $0x4] sm:$0xf]
      %v1068 = vld [vmem:[%s1065 + $0x8] sm:$0xf]
      %v1069 = vld [vmem:[%s1065 + $0xc] sm:$0xf]
      %v1070 = vld [vmem:[%s1065 + $0x10] sm:$0xf]
      %v1071 = vld [vmem:[%s1065 + $0x14] sm:$0xf]
      %v1072 = vld [vmem:[%s1065 + $0x18] sm:$0xf]
      %v1073 = vld [vmem:[%s1065 + $0x1c] sm:$0xf]
      %v1074 = vld [vmem:[%s1065 + $0x20] sm:$0xf]
      %v1075 = vld [vmem:[%s1065 + $0x24] sm:$0xf]
      %v1076 = vld [vmem:[%s1065 + $0x28] sm:$0xf]
      %v1077 = vld [vmem:[%s1065 + $0x2c] sm:$0xf]
      %v1078 = vld [vmem:[%s1065 + $0x30] sm:$0xf]
      %v1079 = vld [vmem:[%s1065 + $0x34] sm:$0xf]
      %v1080 = vld [vmem:[%s1065 + $0x38] sm:$0xf]
      %v1081 = vld [vmem:[%s1065 + $0x3c] sm:$0xf]
      %v1082 = vunpack.c.l.b16 %v1036
      %v1083 = vunpack.c.l.b16 %v1040
      %v1084 = vunpack.c.l.b16 %v1044
      %v1085 = vunpack.c.l.b16 %v1048
      %v1086 = vunpack.c.l.b16 %v1052
      %v1087 = vunpack.c.l.b16 %v1056
      %v1088 = vunpack.c.l.b16 %v1060
      %v1089 = vunpack.c.l.b16 %v1064
      %v1090 = vpack.c.b16 %v1083, %v1082
      %v1091 = vpack.c.b16 %v1085, %v1084
      %v1092 = vpack.c.b16 %v1087, %v1086
      %v1093 = vpack.c.b16 %v1089, %v1088
      %v1114 = vunpack.c.l.b16 %v1066
      %v1115 = vunpack.c.l.b16 %v1067
      %v1116 = vunpack.c.l.b16 %v1068
      %v1117 = vunpack.c.l.b16 %v1069
      %v1118 = vunpack.c.l.b16 %v1070
      %v1119 = vunpack.c.l.b16 %v1071
      %v1120 = vunpack.c.l.b16 %v1072
      %v1121 = vunpack.c.l.b16 %v1073
      %v1122 = vunpack.c.l.b16 %v1074
      %v1123 = vunpack.c.l.b16 %v1075
      %v1124 = vunpack.c.l.b16 %v1076
      %v1125 = vunpack.c.l.b16 %v1077
      %v1126 = vunpack.c.l.b16 %v1078
      %v1127 = vunpack.c.l.b16 %v1079
      %v1128 = vunpack.c.l.b16 %v1080
      %v1129 = vunpack.c.l.b16 %v1081
      %v1130 = vpack.c.b16 %v1115, %v1114
      %v1131 = vpack.c.b16 %v1117, %v1116
      %v1132 = vpack.c.b16 %v1119, %v1118
      %v1133 = vpack.c.b16 %v1121, %v1120
      %v1134 = vpack.c.b16 %v1123, %v1122
      %v1135 = vpack.c.b16 %v1125, %v1124
      %v1136 = vpack.c.b16 %v1127, %v1126
      %v1137 = vpack.c.b16 %v1129, %v1128
      %1146 = vmatpush.bf16.msra.mxu0 %v1137
      %1147 = vmatpush.bf16.msra.mxu0 %v1136
      %1148 = vmatpush.bf16.msra.mxu0 %v1135
      %1149 = vmatpush.bf16.msra.mxu0 %v1134
      %1150 = vmatpush.bf16.msra.mxu0 %v1133
      %1151 = vmatpush.bf16.msra.mxu0 %v1132
      %1152 = vmatpush.bf16.msra.mxu0 %v1131
      %1153 = vmatpush.bf16.msra.mxu0 %v1130
      %1154 = vmatmul.bf16.gmra.mxu0 %v1090
      %v1155 = vpop.f32.mrf.mxu0
      %v1156 = vadd.f32 0.0, %v1155
      %v1157 = vpop.f32.mrf.mxu0
      %v1158 = vadd.f32 0.0, %v1157
      %1159 = vmatmul.bf16.gmra.mxu0 %v1091
      %v1160 = vpop.f32.mrf.mxu0
      %v1161 = vadd.f32 0.0, %v1160
      %v1162 = vpop.f32.mrf.mxu0
      %v1163 = vadd.f32 0.0, %v1162
      %1164 = vmatmul.bf16.gmra.mxu0 %v1092
      %v1165 = vpop.f32.mrf.mxu0
      %v1166 = vadd.f32 0.0, %v1165
      %v1167 = vpop.f32.mrf.mxu0
      %v1168 = vadd.f32 0.0, %v1167
      %1169 = vmatmul.bf16.gmra.mxu0 %v1093
      %v1170 = vpop.f32.mrf.mxu0
      %v1171 = vadd.f32 0.0, %v1170
      %v1172 = vpop.f32.mrf.mxu0
      %v1173 = vadd.f32 0.0, %v1172
      %1174 = vdwg.mxu0
      %v1175 = vadd.f32 %v1003, %v1156
      %v1176 = vadd.f32 %v1005, %v1158
      %v1177 = vadd.f32 %v1008, %v1161
      %v1178 = vadd.f32 %v1010, %v1163
      %v1179 = vadd.f32 %v1013, %v1166
      %v1180 = vadd.f32 %v1015, %v1168
      %v1181 = vadd.f32 %v1018, %v1171
      %v1182 = vadd.f32 %v1020, %v1173
      %s1183 = scalar_lea.vmem %s3, 192
      %v1184 = vld [vmem:[%s1183] sm:$0xf]
      %v1185 = vld [vmem:[%s1183 + $0x4] sm:$0xf]
      %v1186 = vld [vmem:[%s1183 + $0x8] sm:$0xf]
      %v1187 = vld [vmem:[%s1183 + $0xc] sm:$0xf]
      %v1188 = vld [vmem:[%s1183 + $0x10] sm:$0xf]
      %v1189 = vld [vmem:[%s1183 + $0x14] sm:$0xf]
      %v1190 = vld [vmem:[%s1183 + $0x18] sm:$0xf]
      %v1191 = vld [vmem:[%s1183 + $0x1c] sm:$0xf]
      %v1192 = vld [vmem:[%s1183 + $0x20] sm:$0xf]
      %v1193 = vld [vmem:[%s1183 + $0x24] sm:$0xf]
      %v1194 = vld [vmem:[%s1183 + $0x28] sm:$0xf]
      %v1195 = vld [vmem:[%s1183 + $0x2c] sm:$0xf]
      %v1196 = vld [vmem:[%s1183 + $0x30] sm:$0xf]
      %v1197 = vld [vmem:[%s1183 + $0x34] sm:$0xf]
      %v1198 = vld [vmem:[%s1183 + $0x38] sm:$0xf]
      %v1199 = vld [vmem:[%s1183 + $0x3c] sm:$0xf]
      %v1201 = vunpack.c.l.b16 %v676
      %v1202 = vpack.c.b16 %v931, %v930
      %v1203 = vpack.c.b16 %v933, %v932
      %v1204 = vpack.c.b16 %v935, %v934
      %v1205 = vpack.c.b16 %v1201, %v936
      %v1226 = vunpack.c.l.b16 %v1184
      %v1227 = vunpack.c.l.b16 %v1185
      %v1228 = vunpack.c.l.b16 %v1186
      %v1229 = vunpack.c.l.b16 %v1187
      %v1230 = vunpack.c.l.b16 %v1188
      %v1231 = vunpack.c.l.b16 %v1189
      %v1232 = vunpack.c.l.b16 %v1190
      %v1233 = vunpack.c.l.b16 %v1191
      %v1234 = vunpack.c.l.b16 %v1192
      %v1235 = vunpack.c.l.b16 %v1193
      %v1236 = vunpack.c.l.b16 %v1194
      %v1237 = vunpack.c.l.b16 %v1195
      %v1238 = vunpack.c.l.b16 %v1196
      %v1239 = vunpack.c.l.b16 %v1197
      %v1240 = vunpack.c.l.b16 %v1198
      %v1241 = vunpack.c.l.b16 %v1199
      %v1242 = vpack.c.b16 %v1227, %v1226
      %v1243 = vpack.c.b16 %v1229, %v1228
      %v1244 = vpack.c.b16 %v1231, %v1230
      %v1245 = vpack.c.b16 %v1233, %v1232
      %v1246 = vpack.c.b16 %v1235, %v1234
      %v1247 = vpack.c.b16 %v1237, %v1236
      %v1248 = vpack.c.b16 %v1239, %v1238
      %v1249 = vpack.c.b16 %v1241, %v1240
      %1258 = vmatpush.bf16.msra.mxu0 %v1249
      %1259 = vmatpush.bf16.msra.mxu0 %v1248
      %1260 = vmatpush.bf16.msra.mxu0 %v1247
      %1261 = vmatpush.bf16.msra.mxu0 %v1246
      %1262 = vmatpush.bf16.msra.mxu0 %v1245
      %1263 = vmatpush.bf16.msra.mxu0 %v1244
      %1264 = vmatpush.bf16.msra.mxu0 %v1243
      %1265 = vmatpush.bf16.msra.mxu0 %v1242
      %1266 = vmatmul.bf16.gmra.mxu0 %v1202
      %v1267 = vpop.f32.mrf.mxu0
      %v1268 = vadd.f32 0.0, %v1267
      %v1269 = vpop.f32.mrf.mxu0
      %v1270 = vadd.f32 0.0, %v1269
      %1271 = vmatmul.bf16.gmra.mxu0 %v1203
      %v1272 = vpop.f32.mrf.mxu0
      %v1273 = vadd.f32 0.0, %v1272
      %v1274 = vpop.f32.mrf.mxu0
      %v1275 = vadd.f32 0.0, %v1274
      %1276 = vmatmul.bf16.gmra.mxu0 %v1204
      %v1277 = vpop.f32.mrf.mxu0
      %v1278 = vadd.f32 0.0, %v1277
      %v1279 = vpop.f32.mrf.mxu0
      %v1280 = vadd.f32 0.0, %v1279
      %1281 = vmatmul.bf16.gmra.mxu0 %v1205
      %v1282 = vpop.f32.mrf.mxu0
      %v1283 = vadd.f32 0.0, %v1282
      %v1284 = vpop.f32.mrf.mxu0
      %v1285 = vadd.f32 0.0, %v1284
      %1286 = vdwg.mxu0
      %v1287 = vadd.f32 %v1175, %v1268
      %v1288 = vadd.f32 %v1176, %v1270
      %v1289 = vadd.f32 %v1177, %v1273
      %v1290 = vadd.f32 %v1178, %v1275
      %v1291 = vadd.f32 %v1179, %v1278
      %v1292 = vadd.f32 %v1180, %v1280
      %v1293 = vadd.f32 %v1181, %v1283
      %v1294 = vadd.f32 %v1182, %v1285
      %v1296 = vshrl.u32 %v676, 16
      %v1298 = vrot.slane %v1296, 4
      %v1299 = vshll.u32 %v676, 16
      %v1301 = vrot.slane %v1299, 5
      %v1302 = vor.u32 %v1298, %v1301
      %v1303 = vrot.slane %v1302, 4
      %v1305 = vshll.u32 %v677, 16
      %v1307 = vrot.slane %v1305, 5
      %v1308 = vsel %vm698, %v1303, %v1307
      %s1309 = scalar_lea.vmem %s3, 256
      %v1310 = vld [vmem:[%s1309] sm:$0xf]
      %v1311 = vld [vmem:[%s1309 + $0x4] sm:$0xf]
      %v1312 = vld [vmem:[%s1309 + $0x8] sm:$0xf]
      %v1313 = vld [vmem:[%s1309 + $0xc] sm:$0xf]
      %v1314 = vld [vmem:[%s1309 + $0x10] sm:$0xf]
      %v1315 = vld [vmem:[%s1309 + $0x14] sm:$0xf]
      %v1316 = vld [vmem:[%s1309 + $0x18] sm:$0xf]
      %v1317 = vld [vmem:[%s1309 + $0x1c] sm:$0xf]
      %v1318 = vld [vmem:[%s1309 + $0x20] sm:$0xf]
      %v1319 = vld [vmem:[%s1309 + $0x24] sm:$0xf]
      %v1320 = vld [vmem:[%s1309 + $0x28] sm:$0xf]
      %v1321 = vld [vmem:[%s1309 + $0x2c] sm:$0xf]
      %v1322 = vld [vmem:[%s1309 + $0x30] sm:$0xf]
      %v1323 = vld [vmem:[%s1309 + $0x34] sm:$0xf]
      %v1324 = vld [vmem:[%s1309 + $0x38] sm:$0xf]
      %v1325 = vld [vmem:[%s1309 + $0x3c] sm:$0xf]
      %v1326 = vunpack.c.l.b16 %v1308
      %v1327 = vpack.c.b16 %v830, %v829
      %v1328 = vpack.c.b16 %v832, %v831
      %v1329 = vpack.c.b16 %v834, %v833
      %v1330 = vpack.c.b16 %v1326, %v835
      %v1351 = vunpack.c.l.b16 %v1310
      %v1352 = vunpack.c.l.b16 %v1311
      %v1353 = vunpack.c.l.b16 %v1312
      %v1354 = vunpack.c.l.b16 %v1313
      %v1355 = vunpack.c.l.b16 %v1314
      %v1356 = vunpack.c.l.b16 %v1315
      %v1357 = vunpack.c.l.b16 %v1316
      %v1358 = vunpack.c.l.b16 %v1317
      %v1359 = vunpack.c.l.b16 %v1318
      %v1360 = vunpack.c.l.b16 %v1319
      %v1361 = vunpack.c.l.b16 %v1320
      %v1362 = vunpack.c.l.b16 %v1321
      %v1363 = vunpack.c.l.b16 %v1322
      %v1364 = vunpack.c.l.b16 %v1323
      %v1365 = vunpack.c.l.b16 %v1324
      %v1366 = vunpack.c.l.b16 %v1325
      %v1367 = vpack.c.b16 %v1352, %v1351
      %v1368 = vpack.c.b16 %v1354, %v1353
      %v1369 = vpack.c.b16 %v1356, %v1355
      %v1370 = vpack.c.b16 %v1358, %v1357
      %v1371 = vpack.c.b16 %v1360, %v1359
      %v1372 = vpack.c.b16 %v1362, %v1361
      %v1373 = vpack.c.b16 %v1364, %v1363
      %v1374 = vpack.c.b16 %v1366, %v1365
      %1383 = vmatpush.bf16.msra.mxu0 %v1374
      %1384 = vmatpush.bf16.msra.mxu0 %v1373
      %1385 = vmatpush.bf16.msra.mxu0 %v1372
      %1386 = vmatpush.bf16.msra.mxu0 %v1371
      %1387 = vmatpush.bf16.msra.mxu0 %v1370
      %1388 = vmatpush.bf16.msra.mxu0 %v1369
      %1389 = vmatpush.bf16.msra.mxu0 %v1368
      %1390 = vmatpush.bf16.msra.mxu0 %v1367
      %1391 = vmatmul.bf16.gmra.mxu0 %v1327
      %v1392 = vpop.f32.mrf.mxu0
      %v1393 = vadd.f32 0.0, %v1392
      %v1394 = vpop.f32.mrf.mxu0
      %v1395 = vadd.f32 0.0, %v1394
      %1396 = vmatmul.bf16.gmra.mxu0 %v1328
      %v1397 = vpop.f32.mrf.mxu0
      %v1398 = vadd.f32 0.0, %v1397
      %v1399 = vpop.f32.mrf.mxu0
      %v1400 = vadd.f32 0.0, %v1399
      %1401 = vmatmul.bf16.gmra.mxu0 %v1329
      %v1402 = vpop.f32.mrf.mxu0
      %v1403 = vadd.f32 0.0, %v1402
      %v1404 = vpop.f32.mrf.mxu0
      %v1405 = vadd.f32 0.0, %v1404
      %1406 = vmatmul.bf16.gmra.mxu0 %v1330
      %v1407 = vpop.f32.mrf.mxu0
      %v1408 = vadd.f32 0.0, %v1407
      %v1409 = vpop.f32.mrf.mxu0
      %v1410 = vadd.f32 0.0, %v1409
      %1411 = vdwg.mxu0
      %v1412 = vadd.f32 %v1287, %v1393
      %v1413 = vadd.f32 %v1288, %v1395
      %v1414 = vadd.f32 %v1289, %v1398
      %v1415 = vadd.f32 %v1290, %v1400
      %v1416 = vadd.f32 %v1291, %v1403
      %v1417 = vadd.f32 %v1292, %v1405
      %v1418 = vadd.f32 %v1293, %v1408
      %v1419 = vadd.f32 %v1294, %v1410
      %v1421 = vrot.slane %v676, 5
      %v1422 = vrot.slane %v1421, 4
      %v1423 = vrot.slane %v677, 5
      %v1424 = vsel %vm1032, %v1422, %v1423
      %s1425 = scalar_lea.vmem %s3, 320
      %v1426 = vld [vmem:[%s1425] sm:$0xf]
      %v1427 = vld [vmem:[%s1425 + $0x4] sm:$0xf]
      %v1428 = vld [vmem:[%s1425 + $0x8] sm:$0xf]
      %v1429 = vld [vmem:[%s1425 + $0xc] sm:$0xf]
      %v1430 = vld [vmem:[%s1425 + $0x10] sm:$0xf]
      %v1431 = vld [vmem:[%s1425 + $0x14] sm:$0xf]
      %v1432 = vld [vmem:[%s1425 + $0x18] sm:$0xf]
      %v1433 = vld [vmem:[%s1425 + $0x1c] sm:$0xf]
      %v1434 = vld [vmem:[%s1425 + $0x20] sm:$0xf]
      %v1435 = vld [vmem:[%s1425 + $0x24] sm:$0xf]
      %v1436 = vld [vmem:[%s1425 + $0x28] sm:$0xf]
      %v1437 = vld [vmem:[%s1425 + $0x2c] sm:$0xf]
      %v1438 = vld [vmem:[%s1425 + $0x30] sm:$0xf]
      %v1439 = vld [vmem:[%s1425 + $0x34] sm:$0xf]
      %v1440 = vld [vmem:[%s1425 + $0x38] sm:$0xf]
      %v1441 = vld [vmem:[%s1425 + $0x3c] sm:$0xf]
      %v1442 = vunpack.c.l.b16 %v1424
      %v1443 = vpack.c.b16 %v1084, %v1083
      %v1444 = vpack.c.b16 %v1086, %v1085
      %v1445 = vpack.c.b16 %v1088, %v1087
      %v1446 = vpack.c.b16 %v1442, %v1089
      %v1467 = vunpack.c.l.b16 %v1426
      %v1468 = vunpack.c.l.b16 %v1427
      %v1469 = vunpack.c.l.b16 %v1428
      %v1470 = vunpack.c.l.b16 %v1429
      %v1471 = vunpack.c.l.b16 %v1430
      %v1472 = vunpack.c.l.b16 %v1431
      %v1473 = vunpack.c.l.b16 %v1432
      %v1474 = vunpack.c.l.b16 %v1433
      %v1475 = vunpack.c.l.b16 %v1434
      %v1476 = vunpack.c.l.b16 %v1435
      %v1477 = vunpack.c.l.b16 %v1436
      %v1478 = vunpack.c.l.b16 %v1437
      %v1479 = vunpack.c.l.b16 %v1438
      %v1480 = vunpack.c.l.b16 %v1439
      %v1481 = vunpack.c.l.b16 %v1440
      %v1482 = vunpack.c.l.b16 %v1441
      %v1483 = vpack.c.b16 %v1468, %v1467
      %v1484 = vpack.c.b16 %v1470, %v1469
      %v1485 = vpack.c.b16 %v1472, %v1471
      %v1486 = vpack.c.b16 %v1474, %v1473
      %v1487 = vpack.c.b16 %v1476, %v1475
      %v1488 = vpack.c.b16 %v1478, %v1477
      %v1489 = vpack.c.b16 %v1480, %v1479
      %v1490 = vpack.c.b16 %v1482, %v1481
      %1499 = vmatpush.bf16.msra.mxu0 %v1490
      %1500 = vmatpush.bf16.msra.mxu0 %v1489
      %1501 = vmatpush.bf16.msra.mxu0 %v1488
      %1502 = vmatpush.bf16.msra.mxu0 %v1487
      %1503 = vmatpush.bf16.msra.mxu0 %v1486
      %1504 = vmatpush.bf16.msra.mxu0 %v1485
      %1505 = vmatpush.bf16.msra.mxu0 %v1484
      %1506 = vmatpush.bf16.msra.mxu0 %v1483
      %1507 = vmatmul.bf16.gmra.mxu0 %v1443
      %v1508 = vpop.f32.mrf.mxu0
      %v1509 = vadd.f32 0.0, %v1508
      %v1510 = vpop.f32.mrf.mxu0
      %v1511 = vadd.f32 0.0, %v1510
      %1512 = vmatmul.bf16.gmra.mxu0 %v1444
      %v1513 = vpop.f32.mrf.mxu0
      %v1514 = vadd.f32 0.0, %v1513
      %v1515 = vpop.f32.mrf.mxu0
      %v1516 = vadd.f32 0.0, %v1515
      %1517 = vmatmul.bf16.gmra.mxu0 %v1445
      %v1518 = vpop.f32.mrf.mxu0
      %v1519 = vadd.f32 0.0, %v1518
      %v1520 = vpop.f32.mrf.mxu0
      %v1521 = vadd.f32 0.0, %v1520
      %1522 = vmatmul.bf16.gmra.mxu0 %v1446
      %v1523 = vpop.f32.mrf.mxu0
      %v1524 = vadd.f32 0.0, %v1523
      %v1525 = vpop.f32.mrf.mxu0
      %v1526 = vadd.f32 0.0, %v1525
      %1527 = vdwg.mxu0
      %v1528 = vadd.f32 %v1412, %v1509
      %v1529 = vadd.f32 %v1413, %v1511
      %v1530 = vadd.f32 %v1414, %v1514
      %v1531 = vadd.f32 %v1415, %v1516
      %v1532 = vadd.f32 %v1416, %v1519
      %v1533 = vadd.f32 %v1417, %v1521
      %v1534 = vadd.f32 %v1418, %v1524
      %v1535 = vadd.f32 %v1419, %v1526
      %s1536 = scalar_lea.vmem %s3, 384
      %v1537 = vld [vmem:[%s1536] sm:$0xf]
      %v1538 = vld [vmem:[%s1536 + $0x4] sm:$0xf]
      %v1539 = vld [vmem:[%s1536 + $0x8] sm:$0xf]
      %v1540 = vld [vmem:[%s1536 + $0xc] sm:$0xf]
      %v1541 = vld [vmem:[%s1536 + $0x10] sm:$0xf]
      %v1542 = vld [vmem:[%s1536 + $0x14] sm:$0xf]
      %v1543 = vld [vmem:[%s1536 + $0x18] sm:$0xf]
      %v1544 = vld [vmem:[%s1536 + $0x1c] sm:$0xf]
      %v1545 = vld [vmem:[%s1536 + $0x20] sm:$0xf]
      %v1546 = vld [vmem:[%s1536 + $0x24] sm:$0xf]
      %v1547 = vld [vmem:[%s1536 + $0x28] sm:$0xf]
      %v1548 = vld [vmem:[%s1536 + $0x2c] sm:$0xf]
      %v1549 = vld [vmem:[%s1536 + $0x30] sm:$0xf]
      %v1550 = vld [vmem:[%s1536 + $0x34] sm:$0xf]
      %v1551 = vld [vmem:[%s1536 + $0x38] sm:$0xf]
      %v1552 = vld [vmem:[%s1536 + $0x3c] sm:$0xf]
      %v1554 = vunpack.c.l.b16 %v678
      %v1555 = vpack.c.b16 %v1554, %v1201
      %v1573 = vunpack.c.l.b16 %v1537
      %v1574 = vunpack.c.l.b16 %v1538
      %v1575 = vunpack.c.l.b16 %v1539
      %v1576 = vunpack.c.l.b16 %v1540
      %v1577 = vunpack.c.l.b16 %v1541
      %v1578 = vunpack.c.l.b16 %v1542
      %v1579 = vunpack.c.l.b16 %v1543
      %v1580 = vunpack.c.l.b16 %v1544
      %v1581 = vunpack.c.l.b16 %v1545
      %v1582 = vunpack.c.l.b16 %v1546
      %v1583 = vunpack.c.l.b16 %v1547
      %v1584 = vunpack.c.l.b16 %v1548
      %v1585 = vunpack.c.l.b16 %v1549
      %v1586 = vunpack.c.l.b16 %v1550
      %v1587 = vunpack.c.l.b16 %v1551
      %v1588 = vunpack.c.l.b16 %v1552
      %v1589 = vpack.c.b16 %v1574, %v1573
      %v1590 = vpack.c.b16 %v1576, %v1575
      %v1591 = vpack.c.b16 %v1578, %v1577
      %v1592 = vpack.c.b16 %v1580, %v1579
      %v1593 = vpack.c.b16 %v1582, %v1581
      %v1594 = vpack.c.b16 %v1584, %v1583
      %v1595 = vpack.c.b16 %v1586, %v1585
      %v1596 = vpack.c.b16 %v1588, %v1587
      %1605 = vmatpush.bf16.msra.mxu0 %v1596
      %1606 = vmatpush.bf16.msra.mxu0 %v1595
      %1607 = vmatpush.bf16.msra.mxu0 %v1594
      %1608 = vmatpush.bf16.msra.mxu0 %v1593
      %1609 = vmatpush.bf16.msra.mxu0 %v1592
      %1610 = vmatpush.bf16.msra.mxu0 %v1591
      %1611 = vmatpush.bf16.msra.mxu0 %v1590
      %1612 = vmatpush.bf16.msra.mxu0 %v1589
      %1613 = vmatmul.bf16.gmra.mxu0 %v938
      %v1614 = vpop.f32.mrf.mxu0
      %v1615 = vadd.f32 0.0, %v1614
      %v1616 = vpop.f32.mrf.mxu0
      %v1617 = vadd.f32 0.0, %v1616
      %1618 = vmatmul.bf16.gmra.mxu0 %v939
      %v1619 = vpop.f32.mrf.mxu0
      %v1620 = vadd.f32 0.0, %v1619
      %v1621 = vpop.f32.mrf.mxu0
      %v1622 = vadd.f32 0.0, %v1621
      %1623 = vmatmul.bf16.gmra.mxu0 %v940
      %v1624 = vpop.f32.mrf.mxu0
      %v1625 = vadd.f32 0.0, %v1624
      %v1626 = vpop.f32.mrf.mxu0
      %v1627 = vadd.f32 0.0, %v1626
      %1628 = vmatmul.bf16.gmra.mxu0 %v1555
      %v1629 = vpop.f32.mrf.mxu0
      %v1630 = vadd.f32 0.0, %v1629
      %v1631 = vpop.f32.mrf.mxu0
      %v1632 = vadd.f32 0.0, %v1631
      %1633 = vdwg.mxu0
      %v1634 = vadd.f32 %v1528, %v1615
      %v1635 = vadd.f32 %v1529, %v1617
      %v1636 = vadd.f32 %v1530, %v1620
      %v1637 = vadd.f32 %v1531, %v1622
      %v1638 = vadd.f32 %v1532, %v1625
      %v1639 = vadd.f32 %v1533, %v1627
      %v1640 = vadd.f32 %v1534, %v1630
      %v1641 = vadd.f32 %v1535, %v1632
      %v1643 = vshrl.u32 %v678, 16
      %v1645 = vrot.slane %v1643, 4
      %v1646 = vshll.u32 %v678, 16
      %v1648 = vrot.slane %v1646, 5
      %v1649 = vor.u32 %v1645, %v1648
      %v1650 = vrot.slane %v1649, 4
      %v1652 = vshll.u32 %v679, 16
      %v1654 = vrot.slane %v1652, 5
      %v1655 = vsel %vm698, %v1650, %v1654
      %s1656 = scalar_lea.vmem %s3, 448
      %v1657 = vld [vmem:[%s1656] sm:$0xf]
      %v1658 = vld [vmem:[%s1656 + $0x4] sm:$0xf]
      %v1659 = vld [vmem:[%s1656 + $0x8] sm:$0xf]
      %v1660 = vld [vmem:[%s1656 + $0xc] sm:$0xf]
      %v1661 = vld [vmem:[%s1656 + $0x10] sm:$0xf]
      %v1662 = vld [vmem:[%s1656 + $0x14] sm:$0xf]
      %v1663 = vld [vmem:[%s1656 + $0x18] sm:$0xf]
      %v1664 = vld [vmem:[%s1656 + $0x1c] sm:$0xf]
      %v1665 = vld [vmem:[%s1656 + $0x20] sm:$0xf]
      %v1666 = vld [vmem:[%s1656 + $0x24] sm:$0xf]
      %v1667 = vld [vmem:[%s1656 + $0x28] sm:$0xf]
      %v1668 = vld [vmem:[%s1656 + $0x2c] sm:$0xf]
      %v1669 = vld [vmem:[%s1656 + $0x30] sm:$0xf]
      %v1670 = vld [vmem:[%s1656 + $0x34] sm:$0xf]
      %v1671 = vld [vmem:[%s1656 + $0x38] sm:$0xf]
      %v1672 = vld [vmem:[%s1656 + $0x3c] sm:$0xf]
      %v1673 = vunpack.c.l.b16 %v1655
      %v1674 = vpack.c.b16 %v1673, %v1326
      %v1692 = vunpack.c.l.b16 %v1657
      %v1693 = vunpack.c.l.b16 %v1658
      %v1694 = vunpack.c.l.b16 %v1659
      %v1695 = vunpack.c.l.b16 %v1660
      %v1696 = vunpack.c.l.b16 %v1661
      %v1697 = vunpack.c.l.b16 %v1662
      %v1698 = vunpack.c.l.b16 %v1663
      %v1699 = vunpack.c.l.b16 %v1664
      %v1700 = vunpack.c.l.b16 %v1665
      %v1701 = vunpack.c.l.b16 %v1666
      %v1702 = vunpack.c.l.b16 %v1667
      %v1703 = vunpack.c.l.b16 %v1668
      %v1704 = vunpack.c.l.b16 %v1669
      %v1705 = vunpack.c.l.b16 %v1670
      %v1706 = vunpack.c.l.b16 %v1671
      %v1707 = vunpack.c.l.b16 %v1672
      %v1708 = vpack.c.b16 %v1693, %v1692
      %v1709 = vpack.c.b16 %v1695, %v1694
      %v1710 = vpack.c.b16 %v1697, %v1696
      %v1711 = vpack.c.b16 %v1699, %v1698
      %v1712 = vpack.c.b16 %v1701, %v1700
      %v1713 = vpack.c.b16 %v1703, %v1702
      %v1714 = vpack.c.b16 %v1705, %v1704
      %v1715 = vpack.c.b16 %v1707, %v1706
      %1724 = vmatpush.bf16.msra.mxu0 %v1715
      %1725 = vmatpush.bf16.msra.mxu0 %v1714
      %1726 = vmatpush.bf16.msra.mxu0 %v1713
      %1727 = vmatpush.bf16.msra.mxu0 %v1712
      %1728 = vmatpush.bf16.msra.mxu0 %v1711
      %1729 = vmatpush.bf16.msra.mxu0 %v1710
      %1730 = vmatpush.bf16.msra.mxu0 %v1709
      %1731 = vmatpush.bf16.msra.mxu0 %v1708
      %1732 = vmatmul.bf16.gmra.mxu0 %v837
      %v1733 = vpop.f32.mrf.mxu0
      %v1734 = vadd.f32 0.0, %v1733
      %v1735 = vpop.f32.mrf.mxu0
      %v1736 = vadd.f32 0.0, %v1735
      %1737 = vmatmul.bf16.gmra.mxu0 %v838
      %v1738 = vpop.f32.mrf.mxu0
      %v1739 = vadd.f32 0.0, %v1738
      %v1740 = vpop.f32.mrf.mxu0
      %v1741 = vadd.f32 0.0, %v1740
      %1742 = vmatmul.bf16.gmra.mxu0 %v839
      %v1743 = vpop.f32.mrf.mxu0
      %v1744 = vadd.f32 0.0, %v1743
      %v1745 = vpop.f32.mrf.mxu0
      %v1746 = vadd.f32 0.0, %v1745
      %1747 = vmatmul.bf16.gmra.mxu0 %v1674
      %v1748 = vpop.f32.mrf.mxu0
      %v1749 = vadd.f32 0.0, %v1748
      %v1750 = vpop.f32.mrf.mxu0
      %v1751 = vadd.f32 0.0, %v1750
      %1752 = vdwg.mxu0
      %v1753 = vadd.f32 %v1634, %v1734
      %v1754 = vadd.f32 %v1635, %v1736
      %v1755 = vadd.f32 %v1636, %v1739
      %v1756 = vadd.f32 %v1637, %v1741
      %v1757 = vadd.f32 %v1638, %v1744
      %v1758 = vadd.f32 %v1639, %v1746
      %v1759 = vadd.f32 %v1640, %v1749
      %v1760 = vadd.f32 %v1641, %v1751
      %v1762 = vrot.slane %v678, 5
      %v1763 = vrot.slane %v1762, 4
      %v1764 = vrot.slane %v679, 5
      %v1765 = vsel %vm1032, %v1763, %v1764
      %s1766 = scalar_lea.vmem %s3, 512
      %v1767 = vld [vmem:[%s1766] sm:$0xf]
      %v1768 = vld [vmem:[%s1766 + $0x4] sm:$0xf]
      %v1769 = vld [vmem:[%s1766 + $0x8] sm:$0xf]
      %v1770 = vld [vmem:[%s1766 + $0xc] sm:$0xf]
      %v1771 = vld [vmem:[%s1766 + $0x10] sm:$0xf]
      %v1772 = vld [vmem:[%s1766 + $0x14] sm:$0xf]
      %v1773 = vld [vmem:[%s1766 + $0x18] sm:$0xf]
      %v1774 = vld [vmem:[%s1766 + $0x1c] sm:$0xf]
      %v1775 = vld [vmem:[%s1766 + $0x20] sm:$0xf]
      %v1776 = vld [vmem:[%s1766 + $0x24] sm:$0xf]
      %v1777 = vld [vmem:[%s1766 + $0x28] sm:$0xf]
      %v1778 = vld [vmem:[%s1766 + $0x2c] sm:$0xf]
      %v1779 = vld [vmem:[%s1766 + $0x30] sm:$0xf]
      %v1780 = vld [vmem:[%s1766 + $0x34] sm:$0xf]
      %v1781 = vld [vmem:[%s1766 + $0x38] sm:$0xf]
      %v1782 = vld [vmem:[%s1766 + $0x3c] sm:$0xf]
      %v1783 = vunpack.c.l.b16 %v1765
      %v1784 = vpack.c.b16 %v1783, %v1442
      %v1802 = vunpack.c.l.b16 %v1767
      %v1803 = vunpack.c.l.b16 %v1768
      %v1804 = vunpack.c.l.b16 %v1769
      %v1805 = vunpack.c.l.b16 %v1770
      %v1806 = vunpack.c.l.b16 %v1771
      %v1807 = vunpack.c.l.b16 %v1772
      %v1808 = vunpack.c.l.b16 %v1773
      %v1809 = vunpack.c.l.b16 %v1774
      %v1810 = vunpack.c.l.b16 %v1775
      %v1811 = vunpack.c.l.b16 %v1776
      %v1812 = vunpack.c.l.b16 %v1777
      %v1813 = vunpack.c.l.b16 %v1778
      %v1814 = vunpack.c.l.b16 %v1779
      %v1815 = vunpack.c.l.b16 %v1780
      %v1816 = vunpack.c.l.b16 %v1781
      %v1817 = vunpack.c.l.b16 %v1782
      %v1818 = vpack.c.b16 %v1803, %v1802
      %v1819 = vpack.c.b16 %v1805, %v1804
      %v1820 = vpack.c.b16 %v1807, %v1806
      %v1821 = vpack.c.b16 %v1809, %v1808
      %v1822 = vpack.c.b16 %v1811, %v1810
      %v1823 = vpack.c.b16 %v1813, %v1812
      %v1824 = vpack.c.b16 %v1815, %v1814
      %v1825 = vpack.c.b16 %v1817, %v1816
      %1834 = vmatpush.bf16.msra.mxu0 %v1825
      %1835 = vmatpush.bf16.msra.mxu0 %v1824
      %1836 = vmatpush.bf16.msra.mxu0 %v1823
      %1837 = vmatpush.bf16.msra.mxu0 %v1822
      %1838 = vmatpush.bf16.msra.mxu0 %v1821
      %1839 = vmatpush.bf16.msra.mxu0 %v1820
      %1840 = vmatpush.bf16.msra.mxu0 %v1819
      %1841 = vmatpush.bf16.msra.mxu0 %v1818
      %1842 = vmatmul.bf16.gmra.mxu0 %v1091
      %v1843 = vpop.f32.mrf.mxu0
      %v1844 = vadd.f32 0.0, %v1843
      %v1845 = vpop.f32.mrf.mxu0
      %v1846 = vadd.f32 0.0, %v1845
      %1847 = vmatmul.bf16.gmra.mxu0 %v1092
      %v1848 = vpop.f32.mrf.mxu0
      %v1849 = vadd.f32 0.0, %v1848
      %v1850 = vpop.f32.mrf.mxu0
      %v1851 = vadd.f32 0.0, %v1850
      %1852 = vmatmul.bf16.gmra.mxu0 %v1093
      %v1853 = vpop.f32.mrf.mxu0
      %v1854 = vadd.f32 0.0, %v1853
      %v1855 = vpop.f32.mrf.mxu0
      %v1856 = vadd.f32 0.0, %v1855
      %1857 = vmatmul.bf16.gmra.mxu0 %v1784
      %v1858 = vpop.f32.mrf.mxu0
      %v1859 = vadd.f32 0.0, %v1858
      %v1860 = vpop.f32.mrf.mxu0
      %v1861 = vadd.f32 0.0, %v1860
      %1862 = vdwg.mxu0
      %v1863 = vadd.f32 %v1753, %v1844
      %v1864 = vadd.f32 %v1754, %v1846
      %v1865 = vadd.f32 %v1755, %v1849
      %v1866 = vadd.f32 %v1756, %v1851
      %v1867 = vadd.f32 %v1757, %v1854
      %v1868 = vadd.f32 %v1758, %v1856
      %v1869 = vadd.f32 %v1759, %v1859
      %v1870 = vadd.f32 %v1760, %v1861
      %v1871 = vld [vmem:[%s425] sm:$0xf]
      %v1872 = vld [vmem:[%s425 + $0x4] sm:$0x1]
      %v1873 = vld [vmem:[%s425 + $0x8] sm:$0xf]
      %v1874 = vld [vmem:[%s425 + $0xc] sm:$0x1]
      %v1875 = vld [vmem:[%s425 + $0x10] sm:$0xf]
      %v1876 = vld [vmem:[%s425 + $0x14] sm:$0x1]
      %v1877 = vld [vmem:[%s425 + $0x18] sm:$0xf]
      %v1878 = vld [vmem:[%s425 + $0x1c] sm:$0x1]
      %v1879 = vld [vmem:[%s425 + $0x20] sm:$0xf]
      %v1880 = vld [vmem:[%s425 + $0x24] sm:$0x1]
      %v1881 = vld [vmem:[%s425 + $0x28] sm:$0xf]
      %v1882 = vld [vmem:[%s425 + $0x2c] sm:$0x1]
      %v1883 = vld [vmem:[%s425 + $0x30] sm:$0xf]
      %v1884 = vld [vmem:[%s425 + $0x34] sm:$0x1]
      %v1885 = vld [vmem:[%s425 + $0x38] sm:$0xf]
      %v1886 = vld [vmem:[%s425 + $0x3c] sm:$0x1]
      %v1887 = vld [vmem:[%s425 + $0x40] sm:$0xf]
      %v1888 = vld [vmem:[%s425 + $0x44] sm:$0x1]
      %v1889 = vld [vmem:[%s425 + $0x48] sm:$0xf]
      %v1890 = vld [vmem:[%s425 + $0x4c] sm:$0x1]
      %v1891 = vunpack.c.l.bf16 %v1871
      %v1892 = vunpack.c.l.bf16 %v1872
      %v1893 = vunpack.c.l.bf16 %v1873
      %v1894 = vunpack.c.l.bf16 %v1874
      %v1895 = vunpack.c.l.bf16 %v1875
      %v1896 = vunpack.c.l.bf16 %v1876
      %v1897 = vunpack.c.l.bf16 %v1877
      %v1898 = vunpack.c.l.bf16 %v1878
      %v1899 = vunpack.c.l.bf16 %v1879
      %v1900 = vunpack.c.l.bf16 %v1880
      %v1901 = vunpack.c.l.bf16 %v1881
      %v1902 = vunpack.c.l.bf16 %v1882
      %v1903 = vunpack.c.l.bf16 %v1883
      %v1904 = vunpack.c.l.bf16 %v1884
      %v1905 = vunpack.c.l.bf16 %v1885
      %v1906 = vunpack.c.l.bf16 %v1886
      %v1907 = vunpack.c.l.bf16 %v1887
      %v1908 = vunpack.c.l.bf16 %v1888
      %v1909 = vunpack.c.l.bf16 %v1889
      %v1910 = vunpack.c.l.bf16 %v1890
      %v1911 = vmul.f32 %v1891, %v519
      %v1912 = vmul.f32 %v1892, %v519
      %v1913 = vmul.f32 %v1893, %v519
      %v1914 = vmul.f32 %v1894, %v519
      %v1915 = vmul.f32 %v1895, %v519
      %v1916 = vmul.f32 %v1896, %v519
      %v1917 = vmul.f32 %v1897, %v519
      %v1918 = vmul.f32 %v1898, %v519
      %v1919 = vmul.f32 %v1899, %v519
      %v1920 = vmul.f32 %v1900, %v519
      %v1921 = vmul.f32 %v1901, %v519
      %v1922 = vmul.f32 %v1902, %v519
      %v1923 = vmul.f32 %v1903, %v519
      %v1924 = vmul.f32 %v1904, %v519
      %v1925 = vmul.f32 %v1905, %v519
      %v1926 = vmul.f32 %v1906, %v519
      %v1927 = vmul.f32 %v1907, %v519
      %v1928 = vmul.f32 %v1908, %v519
      %v1929 = vmul.f32 %v1909, %v519
      %v1930 = vmul.f32 %v1910, %v519
      %v1931 = vadd.f32 %v1911, %v542
      %v1932 = vadd.f32 %v1912, %v542
      %v1933 = vadd.f32 %v1913, %v542
      %v1934 = vadd.f32 %v1914, %v542
      %v1935 = vadd.f32 %v1915, %v542
      %v1936 = vadd.f32 %v1916, %v542
      %v1937 = vadd.f32 %v1917, %v542
      %v1938 = vadd.f32 %v1918, %v542
      %v1939 = vadd.f32 %v1919, %v542
      %v1940 = vadd.f32 %v1920, %v542
      %v1941 = vadd.f32 %v1921, %v542
      %v1942 = vadd.f32 %v1922, %v542
      %v1943 = vadd.f32 %v1923, %v542
      %v1944 = vadd.f32 %v1924, %v542
      %v1945 = vadd.f32 %v1925, %v542
      %v1946 = vadd.f32 %v1926, %v542
      %v1947 = vadd.f32 %v1927, %v542
      %v1948 = vadd.f32 %v1928, %v542
      %v1949 = vadd.f32 %v1929, %v542
      %v1950 = vadd.f32 %v1930, %v542
      %vm1951 = vcmp.ge.f32.partialorder %v1931, 0.0
      %vm1952 = vcmp.ge.f32.partialorder %v1932, 0.0
      %vm1953 = vcmp.ge.f32.partialorder %v1933, 0.0
      %vm1954 = vcmp.ge.f32.partialorder %v1934, 0.0
      %vm1955 = vcmp.ge.f32.partialorder %v1935, 0.0
      %vm1956 = vcmp.ge.f32.partialorder %v1936, 0.0
      %vm1957 = vcmp.ge.f32.partialorder %v1937, 0.0
      %vm1958 = vcmp.ge.f32.partialorder %v1938, 0.0
      %vm1959 = vcmp.ge.f32.partialorder %v1939, 0.0
      %vm1960 = vcmp.ge.f32.partialorder %v1940, 0.0
      %vm1961 = vcmp.ge.f32.partialorder %v1941, 0.0
      %vm1962 = vcmp.ge.f32.partialorder %v1942, 0.0
      %vm1963 = vcmp.ge.f32.partialorder %v1943, 0.0
      %vm1964 = vcmp.ge.f32.partialorder %v1944, 0.0
      %vm1965 = vcmp.ge.f32.partialorder %v1945, 0.0
      %vm1966 = vcmp.ge.f32.partialorder %v1946, 0.0
      %vm1967 = vcmp.ge.f32.partialorder %v1947, 0.0
      %vm1968 = vcmp.ge.f32.partialorder %v1948, 0.0
      %vm1969 = vcmp.ge.f32.partialorder %v1949, 0.0
      %vm1970 = vcmp.ge.f32.partialorder %v1950, 0.0
      %v1971 = vmul.f32 %v1931, 0.01
      %v1972 = vmul.f32 %v1932, 0.01
      %v1973 = vmul.f32 %v1933, 0.01
      %v1974 = vmul.f32 %v1934, 0.01
      %v1975 = vmul.f32 %v1935, 0.01
      %v1976 = vmul.f32 %v1936, 0.01
      %v1977 = vmul.f32 %v1937, 0.01
      %v1978 = vmul.f32 %v1938, 0.01
      %v1979 = vmul.f32 %v1939, 0.01
      %v1980 = vmul.f32 %v1940, 0.01
      %v1981 = vmul.f32 %v1941, 0.01
      %v1982 = vmul.f32 %v1942, 0.01
      %v1983 = vmul.f32 %v1943, 0.01
      %v1984 = vmul.f32 %v1944, 0.01
      %v1985 = vmul.f32 %v1945, 0.01
      %v1986 = vmul.f32 %v1946, 0.01
      %v1987 = vmul.f32 %v1947, 0.01
      %v1988 = vmul.f32 %v1948, 0.01
      %v1989 = vmul.f32 %v1949, 0.01
      %v1990 = vmul.f32 %v1950, 0.01
      %v1991 = vsel %vm1951, %v1931, %v1971
      %v1992 = vsel %vm1952, %v1932, %v1972
      %v1993 = vsel %vm1953, %v1933, %v1973
      %v1994 = vsel %vm1954, %v1934, %v1974
      %v1995 = vsel %vm1955, %v1935, %v1975
      %v1996 = vsel %vm1956, %v1936, %v1976
      %v1997 = vsel %vm1957, %v1937, %v1977
      %v1998 = vsel %vm1958, %v1938, %v1978
      %v1999 = vsel %vm1959, %v1939, %v1979
      %v2000 = vsel %vm1960, %v1940, %v1980
      %v2001 = vsel %vm1961, %v1941, %v1981
      %v2002 = vsel %vm1962, %v1942, %v1982
      %v2003 = vsel %vm1963, %v1943, %v1983
      %v2004 = vsel %vm1964, %v1944, %v1984
      %v2005 = vsel %vm1965, %v1945, %v1985
      %v2006 = vsel %vm1966, %v1946, %v1986
      %v2007 = vsel %vm1967, %v1947, %v1987
      %v2008 = vsel %vm1968, %v1948, %v1988
      %v2009 = vsel %vm1969, %v1949, %v1989
      %v2010 = vsel %vm1970, %v1950, %v1990
      %s2011 = sadd.s32 %s25, 1
      %p2012 = scmp.ge.s32.totalorder %s2011, 1
      %s2013 = scalar_select %p2012, 1, 0
      %v2014 = vstv %s2013
      %vm2015 = vcmp.eq.s32.totalorder %v2014, 1
      %vm2016 = vmand %vm472, %vm2015
      %vm2017 = vmand %vm473, %vm2015
      %vm2018 = vmand %vm474, %vm2015
      %vm2019 = vmand %vm475, %vm2015
      %p2020 = scmp.le.s32.totalorder %s2011, 8
      %s2021 = scalar_select %p2020, 1, 0
      %v2022 = vstv %s2021
      %vm2023 = vcmp.eq.s32.totalorder %v2022, 1
      %vm2024 = vmand %vm2016, %vm2023
      %vm2025 = vmand %vm2017, %vm2023
      %vm2026 = vmand %vm2018, %vm2023
      %vm2027 = vmand %vm2019, %vm2023
      %v2028 = vsel %vm2024, %v1991, 0.0
      %v2029 = vsel %vm2025, %v1992, 0.0
      %v2030 = vsel %vm2026, %v1993, 0.0
      %v2031 = vsel %vm2027, %v1994, 0.0
      %v2032 = vsel %vm2026, %v1995, 0.0
      %v2033 = vsel %vm2027, %v1996, 0.0
      %v2034 = vsel %vm2026, %v1997, 0.0
      %v2035 = vsel %vm2027, %v1998, 0.0
      %v2036 = vsel %vm2026, %v1999, 0.0
      %v2037 = vsel %vm2027, %v2000, 0.0
      %v2038 = vsel %vm2026, %v2001, 0.0
      %v2039 = vsel %vm2027, %v2002, 0.0
      %v2040 = vsel %vm2026, %v2003, 0.0
      %v2041 = vsel %vm2027, %v2004, 0.0
      %v2042 = vsel %vm2026, %v2005, 0.0
      %v2043 = vsel %vm2027, %v2006, 0.0
      %v2044 = vsel %vm2026, %v2007, 0.0
      %v2045 = vsel %vm2027, %v2008, 0.0
      %v2046 = vsel %vm2024, %v2009, 0.0
      %v2047 = vsel %vm2025, %v2010, 0.0
      %v2048 = vpack.c.bf16 %v2028, %v2028
      %v2049 = vpack.c.bf16 %v2029, %v2029
      %v2050 = vpack.c.bf16 %v2030, %v2030
      %v2051 = vpack.c.bf16 %v2031, %v2031
      %v2052 = vpack.c.bf16 %v2032, %v2032
      %v2053 = vpack.c.bf16 %v2033, %v2033
      %v2054 = vpack.c.bf16 %v2034, %v2034
      %v2055 = vpack.c.bf16 %v2035, %v2035
      %v2056 = vpack.c.bf16 %v2036, %v2036
      %v2057 = vpack.c.bf16 %v2037, %v2037
      %v2058 = vpack.c.bf16 %v2038, %v2038
      %v2059 = vpack.c.bf16 %v2039, %v2039
      %v2060 = vpack.c.bf16 %v2040, %v2040
      %v2061 = vpack.c.bf16 %v2041, %v2041
      %v2062 = vpack.c.bf16 %v2042, %v2042
      %v2063 = vpack.c.bf16 %v2043, %v2043
      %v2064 = vpack.c.bf16 %v2044, %v2044
      %v2065 = vpack.c.bf16 %v2045, %v2045
      %v2066 = vpack.c.bf16 %v2046, %v2046
      %v2067 = vpack.c.bf16 %v2047, %v2047
      %s2068 = scalar_lea.vmem %s3, 576
      %v2069 = vld [vmem:[%s2068] sm:$0xf]
      %v2070 = vld [vmem:[%s2068 + $0x4] sm:$0xf]
      %v2071 = vld [vmem:[%s2068 + $0x8] sm:$0xf]
      %v2072 = vld [vmem:[%s2068 + $0xc] sm:$0xf]
      %v2073 = vld [vmem:[%s2068 + $0x10] sm:$0xf]
      %v2074 = vld [vmem:[%s2068 + $0x14] sm:$0xf]
      %v2075 = vld [vmem:[%s2068 + $0x18] sm:$0xf]
      %v2076 = vld [vmem:[%s2068 + $0x1c] sm:$0xf]
      %v2077 = vld [vmem:[%s2068 + $0x20] sm:$0xf]
      %v2078 = vld [vmem:[%s2068 + $0x24] sm:$0xf]
      %v2079 = vld [vmem:[%s2068 + $0x28] sm:$0xf]
      %v2080 = vld [vmem:[%s2068 + $0x2c] sm:$0xf]
      %v2081 = vld [vmem:[%s2068 + $0x30] sm:$0xf]
      %v2082 = vld [vmem:[%s2068 + $0x34] sm:$0xf]
      %v2083 = vld [vmem:[%s2068 + $0x38] sm:$0xf]
      %v2084 = vld [vmem:[%s2068 + $0x3c] sm:$0xf]
      %v2093 = vunpack.c.l.b16 %v2048
      %v2094 = vunpack.c.l.b16 %v2050
      %v2095 = vunpack.c.l.b16 %v2052
      %v2096 = vunpack.c.l.b16 %v2054
      %v2097 = vunpack.c.l.b16 %v2056
      %v2098 = vunpack.c.l.b16 %v2058
      %v2099 = vunpack.c.l.b16 %v2060
      %v2100 = vunpack.c.l.b16 %v2062
      %v2101 = vpack.c.b16 %v2094, %v2093
      %v2102 = vpack.c.b16 %v2096, %v2095
      %v2103 = vpack.c.b16 %v2098, %v2097
      %v2104 = vpack.c.b16 %v2100, %v2099
      %v2125 = vunpack.c.l.b16 %v2069
      %v2126 = vunpack.c.l.b16 %v2070
      %v2127 = vunpack.c.l.b16 %v2071
      %v2128 = vunpack.c.l.b16 %v2072
      %v2129 = vunpack.c.l.b16 %v2073
      %v2130 = vunpack.c.l.b16 %v2074
      %v2131 = vunpack.c.l.b16 %v2075
      %v2132 = vunpack.c.l.b16 %v2076
      %v2133 = vunpack.c.l.b16 %v2077
      %v2134 = vunpack.c.l.b16 %v2078
      %v2135 = vunpack.c.l.b16 %v2079
      %v2136 = vunpack.c.l.b16 %v2080
      %v2137 = vunpack.c.l.b16 %v2081
      %v2138 = vunpack.c.l.b16 %v2082
      %v2139 = vunpack.c.l.b16 %v2083
      %v2140 = vunpack.c.l.b16 %v2084
      %v2141 = vpack.c.b16 %v2126, %v2125
      %v2142 = vpack.c.b16 %v2128, %v2127
      %v2143 = vpack.c.b16 %v2130, %v2129
      %v2144 = vpack.c.b16 %v2132, %v2131
      %v2145 = vpack.c.b16 %v2134, %v2133
      %v2146 = vpack.c.b16 %v2136, %v2135
      %v2147 = vpack.c.b16 %v2138, %v2137
      %v2148 = vpack.c.b16 %v2140, %v2139
      %2157 = vmatpush.bf16.msra.mxu0 %v2148
      %2158 = vmatpush.bf16.msra.mxu0 %v2147
      %2159 = vmatpush.bf16.msra.mxu0 %v2146
      %2160 = vmatpush.bf16.msra.mxu0 %v2145
      %2161 = vmatpush.bf16.msra.mxu0 %v2144
      %2162 = vmatpush.bf16.msra.mxu0 %v2143
      %2163 = vmatpush.bf16.msra.mxu0 %v2142
      %2164 = vmatpush.bf16.msra.mxu0 %v2141
      %2165 = vmatmul.bf16.gmra.mxu0 %v2101
      %v2166 = vpop.f32.mrf.mxu0
      %v2167 = vadd.f32 0.0, %v2166
      %v2168 = vpop.f32.mrf.mxu0
      %v2169 = vadd.f32 0.0, %v2168
      %2170 = vmatmul.bf16.gmra.mxu0 %v2102
      %v2171 = vpop.f32.mrf.mxu0
      %v2172 = vadd.f32 0.0, %v2171
      %v2173 = vpop.f32.mrf.mxu0
      %v2174 = vadd.f32 0.0, %v2173
      %2175 = vmatmul.bf16.gmra.mxu0 %v2103
      %v2176 = vpop.f32.mrf.mxu0
      %v2177 = vadd.f32 0.0, %v2176
      %v2178 = vpop.f32.mrf.mxu0
      %v2179 = vadd.f32 0.0, %v2178
      %2180 = vmatmul.bf16.gmra.mxu0 %v2104
      %v2181 = vpop.f32.mrf.mxu0
      %v2182 = vadd.f32 0.0, %v2181
      %v2183 = vpop.f32.mrf.mxu0
      %v2184 = vadd.f32 0.0, %v2183
      %2185 = vdwg.mxu0
      %v2186 = vadd.f32 %v1863, %v2167
      %v2187 = vadd.f32 %v1864, %v2169
      %v2188 = vadd.f32 %v1865, %v2172
      %v2189 = vadd.f32 %v1866, %v2174
      %v2190 = vadd.f32 %v1867, %v2177
      %v2191 = vadd.f32 %v1868, %v2179
      %v2192 = vadd.f32 %v1869, %v2182
      %v2193 = vadd.f32 %v1870, %v2184
      %v2195 = vshrl.u32 %v2048, 16
      %v2197 = vrot.slane %v2195, 4
      %v2198 = vshll.u32 %v2048, 16
      %v2200 = vrot.slane %v2198, 5
      %v2201 = vor.u32 %v2197, %v2200
      %v2202 = vrot.slane %v2201, 4
      %v2204 = vshll.u32 %v2049, 16
      %v2206 = vrot.slane %v2204, 5
      %v2207 = vsel %vm698, %v2202, %v2206
      %v2209 = vshrl.u32 %v2050, 16
      %v2211 = vrot.slane %v2209, 4
      %v2212 = vshll.u32 %v2050, 16
      %v2214 = vrot.slane %v2212, 5
      %v2215 = vor.u32 %v2211, %v2214
      %v2216 = vrot.slane %v2215, 4
      %v2218 = vshll.u32 %v2051, 16
      %v2220 = vrot.slane %v2218, 5
      %v2221 = vsel %vm698, %v2216, %v2220
      %v2223 = vshrl.u32 %v2052, 16
      %v2225 = vrot.slane %v2223, 4
      %v2226 = vshll.u32 %v2052, 16
      %v2228 = vrot.slane %v2226, 5
      %v2229 = vor.u32 %v2225, %v2228
      %v2230 = vrot.slane %v2229, 4
      %v2232 = vshll.u32 %v2053, 16
      %v2234 = vrot.slane %v2232, 5
      %v2235 = vsel %vm698, %v2230, %v2234
      %v2237 = vshrl.u32 %v2054, 16
      %v2239 = vrot.slane %v2237, 4
      %v2240 = vshll.u32 %v2054, 16
      %v2242 = vrot.slane %v2240, 5
      %v2243 = vor.u32 %v2239, %v2242
      %v2244 = vrot.slane %v2243, 4
      %v2246 = vshll.u32 %v2055, 16
      %v2248 = vrot.slane %v2246, 5
      %v2249 = vsel %vm698, %v2244, %v2248
      %v2251 = vshrl.u32 %v2056, 16
      %v2253 = vrot.slane %v2251, 4
      %v2254 = vshll.u32 %v2056, 16
      %v2256 = vrot.slane %v2254, 5
      %v2257 = vor.u32 %v2253, %v2256
      %v2258 = vrot.slane %v2257, 4
      %v2260 = vshll.u32 %v2057, 16
      %v2262 = vrot.slane %v2260, 5
      %v2263 = vsel %vm698, %v2258, %v2262
      %v2265 = vshrl.u32 %v2058, 16
      %v2267 = vrot.slane %v2265, 4
      %v2268 = vshll.u32 %v2058, 16
      %v2270 = vrot.slane %v2268, 5
      %v2271 = vor.u32 %v2267, %v2270
      %v2272 = vrot.slane %v2271, 4
      %v2274 = vshll.u32 %v2059, 16
      %v2276 = vrot.slane %v2274, 5
      %v2277 = vsel %vm698, %v2272, %v2276
      %v2279 = vshrl.u32 %v2060, 16
      %v2281 = vrot.slane %v2279, 4
      %v2282 = vshll.u32 %v2060, 16
      %v2284 = vrot.slane %v2282, 5
      %v2285 = vor.u32 %v2281, %v2284
      %v2286 = vrot.slane %v2285, 4
      %v2288 = vshll.u32 %v2061, 16
      %v2290 = vrot.slane %v2288, 5
      %v2291 = vsel %vm698, %v2286, %v2290
      %v2293 = vshrl.u32 %v2062, 16
      %v2295 = vrot.slane %v2293, 4
      %v2296 = vshll.u32 %v2062, 16
      %v2298 = vrot.slane %v2296, 5
      %v2299 = vor.u32 %v2295, %v2298
      %v2300 = vrot.slane %v2299, 4
      %v2302 = vshll.u32 %v2063, 16
      %v2304 = vrot.slane %v2302, 5
      %v2305 = vsel %vm698, %v2300, %v2304
      %s2306 = scalar_lea.vmem %s3, 640
      %v2307 = vld [vmem:[%s2306] sm:$0xf]
      %v2308 = vld [vmem:[%s2306 + $0x4] sm:$0xf]
      %v2309 = vld [vmem:[%s2306 + $0x8] sm:$0xf]
      %v2310 = vld [vmem:[%s2306 + $0xc] sm:$0xf]
      %v2311 = vld [vmem:[%s2306 + $0x10] sm:$0xf]
      %v2312 = vld [vmem:[%s2306 + $0x14] sm:$0xf]
      %v2313 = vld [vmem:[%s2306 + $0x18] sm:$0xf]
      %v2314 = vld [vmem:[%s2306 + $0x1c] sm:$0xf]
      %v2315 = vld [vmem:[%s2306 + $0x20] sm:$0xf]
      %v2316 = vld [vmem:[%s2306 + $0x24] sm:$0xf]
      %v2317 = vld [vmem:[%s2306 + $0x28] sm:$0xf]
      %v2318 = vld [vmem:[%s2306 + $0x2c] sm:$0xf]
      %v2319 = vld [vmem:[%s2306 + $0x30] sm:$0xf]
      %v2320 = vld [vmem:[%s2306 + $0x34] sm:$0xf]
      %v2321 = vld [vmem:[%s2306 + $0x38] sm:$0xf]
      %v2322 = vld [vmem:[%s2306 + $0x3c] sm:$0xf]
      %v2323 = vunpack.c.l.b16 %v2207
      %v2324 = vunpack.c.l.b16 %v2221
      %v2325 = vunpack.c.l.b16 %v2235
      %v2326 = vunpack.c.l.b16 %v2249
      %v2327 = vunpack.c.l.b16 %v2263
      %v2328 = vunpack.c.l.b16 %v2277
      %v2329 = vunpack.c.l.b16 %v2291
      %v2330 = vunpack.c.l.b16 %v2305
      %v2331 = vpack.c.b16 %v2324, %v2323
      %v2332 = vpack.c.b16 %v2326, %v2325
      %v2333 = vpack.c.b16 %v2328, %v2327
      %v2334 = vpack.c.b16 %v2330, %v2329
      %v2355 = vunpack.c.l.b16 %v2307
      %v2356 = vunpack.c.l.b16 %v2308
      %v2357 = vunpack.c.l.b16 %v2309
      %v2358 = vunpack.c.l.b16 %v2310
      %v2359 = vunpack.c.l.b16 %v2311
      %v2360 = vunpack.c.l.b16 %v2312
      %v2361 = vunpack.c.l.b16 %v2313
      %v2362 = vunpack.c.l.b16 %v2314
      %v2363 = vunpack.c.l.b16 %v2315
      %v2364 = vunpack.c.l.b16 %v2316
      %v2365 = vunpack.c.l.b16 %v2317
      %v2366 = vunpack.c.l.b16 %v2318
      %v2367 = vunpack.c.l.b16 %v2319
      %v2368 = vunpack.c.l.b16 %v2320
      %v2369 = vunpack.c.l.b16 %v2321
      %v2370 = vunpack.c.l.b16 %v2322
      %v2371 = vpack.c.b16 %v2356, %v2355
      %v2372 = vpack.c.b16 %v2358, %v2357
      %v2373 = vpack.c.b16 %v2360, %v2359
      %v2374 = vpack.c.b16 %v2362, %v2361
      %v2375 = vpack.c.b16 %v2364, %v2363
      %v2376 = vpack.c.b16 %v2366, %v2365
      %v2377 = vpack.c.b16 %v2368, %v2367
      %v2378 = vpack.c.b16 %v2370, %v2369
      %2387 = vmatpush.bf16.msra.mxu0 %v2378
      %2388 = vmatpush.bf16.msra.mxu0 %v2377
      %2389 = vmatpush.bf16.msra.mxu0 %v2376
      %2390 = vmatpush.bf16.msra.mxu0 %v2375
      %2391 = vmatpush.bf16.msra.mxu0 %v2374
      %2392 = vmatpush.bf16.msra.mxu0 %v2373
      %2393 = vmatpush.bf16.msra.mxu0 %v2372
      %2394 = vmatpush.bf16.msra.mxu0 %v2371
      %2395 = vmatmul.bf16.gmra.mxu0 %v2331
      %v2396 = vpop.f32.mrf.mxu0
      %v2397 = vadd.f32 0.0, %v2396
      %v2398 = vpop.f32.mrf.mxu0
      %v2399 = vadd.f32 0.0, %v2398
      %2400 = vmatmul.bf16.gmra.mxu0 %v2332
      %v2401 = vpop.f32.mrf.mxu0
      %v2402 = vadd.f32 0.0, %v2401
      %v2403 = vpop.f32.mrf.mxu0
      %v2404 = vadd.f32 0.0, %v2403
      %2405 = vmatmul.bf16.gmra.mxu0 %v2333
      %v2406 = vpop.f32.mrf.mxu0
      %v2407 = vadd.f32 0.0, %v2406
      %v2408 = vpop.f32.mrf.mxu0
      %v2409 = vadd.f32 0.0, %v2408
      %2410 = vmatmul.bf16.gmra.mxu0 %v2334
      %v2411 = vpop.f32.mrf.mxu0
      %v2412 = vadd.f32 0.0, %v2411
      %v2413 = vpop.f32.mrf.mxu0
      %v2414 = vadd.f32 0.0, %v2413
      %2415 = vdwg.mxu0
      %v2416 = vadd.f32 %v2186, %v2397
      %v2417 = vadd.f32 %v2187, %v2399
      %v2418 = vadd.f32 %v2188, %v2402
      %v2419 = vadd.f32 %v2189, %v2404
      %v2420 = vadd.f32 %v2190, %v2407
      %v2421 = vadd.f32 %v2191, %v2409
      %v2422 = vadd.f32 %v2192, %v2412
      %v2423 = vadd.f32 %v2193, %v2414
      %v2432 = vrot.slane %v2048, 5
      %v2433 = vrot.slane %v2432, 4
      %v2434 = vrot.slane %v2049, 5
      %v2435 = vsel %vm1032, %v2433, %v2434
      %v2436 = vrot.slane %v2050, 5
      %v2437 = vrot.slane %v2436, 4
      %v2438 = vrot.slane %v2051, 5
      %v2439 = vsel %vm1032, %v2437, %v2438
      %v2440 = vrot.slane %v2052, 5
      %v2441 = vrot.slane %v2440, 4
      %v2442 = vrot.slane %v2053, 5
      %v2443 = vsel %vm1032, %v2441, %v2442
      %v2444 = vrot.slane %v2054, 5
      %v2445 = vrot.slane %v2444, 4
      %v2446 = vrot.slane %v2055, 5
      %v2447 = vsel %vm1032, %v2445, %v2446
      %v2448 = vrot.slane %v2056, 5
      %v2449 = vrot.slane %v2448, 4
      %v2450 = vrot.slane %v2057, 5
      %v2451 = vsel %vm1032, %v2449, %v2450
      %v2452 = vrot.slane %v2058, 5
      %v2453 = vrot.slane %v2452, 4
      %v2454 = vrot.slane %v2059, 5
      %v2455 = vsel %vm1032, %v2453, %v2454
      %v2456 = vrot.slane %v2060, 5
      %v2457 = vrot.slane %v2456, 4
      %v2458 = vrot.slane %v2061, 5
      %v2459 = vsel %vm1032, %v2457, %v2458
      %v2460 = vrot.slane %v2062, 5
      %v2461 = vrot.slane %v2460, 4
      %v2462 = vrot.slane %v2063, 5
      %v2463 = vsel %vm1032, %v2461, %v2462
      %s2464 = scalar_lea.vmem %s3, 704
      %v2465 = vld [vmem:[%s2464] sm:$0xf]
      %v2466 = vld [vmem:[%s2464 + $0x4] sm:$0xf]
      %v2467 = vld [vmem:[%s2464 + $0x8] sm:$0xf]
      %v2468 = vld [vmem:[%s2464 + $0xc] sm:$0xf]
      %v2469 = vld [vmem:[%s2464 + $0x10] sm:$0xf]
      %v2470 = vld [vmem:[%s2464 + $0x14] sm:$0xf]
      %v2471 = vld [vmem:[%s2464 + $0x18] sm:$0xf]
      %v2472 = vld [vmem:[%s2464 + $0x1c] sm:$0xf]
      %v2473 = vld [vmem:[%s2464 + $0x20] sm:$0xf]
      %v2474 = vld [vmem:[%s2464 + $0x24] sm:$0xf]
      %v2475 = vld [vmem:[%s2464 + $0x28] sm:$0xf]
      %v2476 = vld [vmem:[%s2464 + $0x2c] sm:$0xf]
      %v2477 = vld [vmem:[%s2464 + $0x30] sm:$0xf]
      %v2478 = vld [vmem:[%s2464 + $0x34] sm:$0xf]
      %v2479 = vld [vmem:[%s2464 + $0x38] sm:$0xf]
      %v2480 = vld [vmem:[%s2464 + $0x3c] sm:$0xf]
      %v2481 = vunpack.c.l.b16 %v2435
      %v2482 = vunpack.c.l.b16 %v2439
      %v2483 = vunpack.c.l.b16 %v2443
      %v2484 = vunpack.c.l.b16 %v2447
      %v2485 = vunpack.c.l.b16 %v2451
      %v2486 = vunpack.c.l.b16 %v2455
      %v2487 = vunpack.c.l.b16 %v2459
      %v2488 = vunpack.c.l.b16 %v2463
      %v2489 = vpack.c.b16 %v2482, %v2481
      %v2490 = vpack.c.b16 %v2484, %v2483
      %v2491 = vpack.c.b16 %v2486, %v2485
      %v2492 = vpack.c.b16 %v2488, %v2487
      %v2513 = vunpack.c.l.b16 %v2465
      %v2514 = vunpack.c.l.b16 %v2466
      %v2515 = vunpack.c.l.b16 %v2467
      %v2516 = vunpack.c.l.b16 %v2468
      %v2517 = vunpack.c.l.b16 %v2469
      %v2518 = vunpack.c.l.b16 %v2470
      %v2519 = vunpack.c.l.b16 %v2471
      %v2520 = vunpack.c.l.b16 %v2472
      %v2521 = vunpack.c.l.b16 %v2473
      %v2522 = vunpack.c.l.b16 %v2474
      %v2523 = vunpack.c.l.b16 %v2475
      %v2524 = vunpack.c.l.b16 %v2476
      %v2525 = vunpack.c.l.b16 %v2477
      %v2526 = vunpack.c.l.b16 %v2478
      %v2527 = vunpack.c.l.b16 %v2479
      %v2528 = vunpack.c.l.b16 %v2480
      %v2529 = vpack.c.b16 %v2514, %v2513
      %v2530 = vpack.c.b16 %v2516, %v2515
      %v2531 = vpack.c.b16 %v2518, %v2517
      %v2532 = vpack.c.b16 %v2520, %v2519
      %v2533 = vpack.c.b16 %v2522, %v2521
      %v2534 = vpack.c.b16 %v2524, %v2523
      %v2535 = vpack.c.b16 %v2526, %v2525
      %v2536 = vpack.c.b16 %v2528, %v2527
      %2545 = vmatpush.bf16.msra.mxu0 %v2536
      %2546 = vmatpush.bf16.msra.mxu0 %v2535
      %2547 = vmatpush.bf16.msra.mxu0 %v2534
      %2548 = vmatpush.bf16.msra.mxu0 %v2533
      %2549 = vmatpush.bf16.msra.mxu0 %v2532
      %2550 = vmatpush.bf16.msra.mxu0 %v2531
      %2551 = vmatpush.bf16.msra.mxu0 %v2530
      %2552 = vmatpush.bf16.msra.mxu0 %v2529
      %2553 = vmatmul.bf16.gmra.mxu0 %v2489
      %v2554 = vpop.f32.mrf.mxu0
      %v2555 = vadd.f32 0.0, %v2554
      %v2556 = vpop.f32.mrf.mxu0
      %v2557 = vadd.f32 0.0, %v2556
      %2558 = vmatmul.bf16.gmra.mxu0 %v2490
      %v2559 = vpop.f32.mrf.mxu0
      %v2560 = vadd.f32 0.0, %v2559
      %v2561 = vpop.f32.mrf.mxu0
      %v2562 = vadd.f32 0.0, %v2561
      %2563 = vmatmul.bf16.gmra.mxu0 %v2491
      %v2564 = vpop.f32.mrf.mxu0
      %v2565 = vadd.f32 0.0, %v2564
      %v2566 = vpop.f32.mrf.mxu0
      %v2567 = vadd.f32 0.0, %v2566
      %2568 = vmatmul.bf16.gmra.mxu0 %v2492
      %v2569 = vpop.f32.mrf.mxu0
      %v2570 = vadd.f32 0.0, %v2569
      %v2571 = vpop.f32.mrf.mxu0
      %v2572 = vadd.f32 0.0, %v2571
      %2573 = vdwg.mxu0
      %v2574 = vadd.f32 %v2416, %v2555
      %v2575 = vadd.f32 %v2417, %v2557
      %v2576 = vadd.f32 %v2418, %v2560
      %v2577 = vadd.f32 %v2419, %v2562
      %v2578 = vadd.f32 %v2420, %v2565
      %v2579 = vadd.f32 %v2421, %v2567
      %v2580 = vadd.f32 %v2422, %v2570
      %v2581 = vadd.f32 %v2423, %v2572
      %s2582 = scalar_lea.vmem %s3, 768
      %v2583 = vld [vmem:[%s2582] sm:$0xf]
      %v2584 = vld [vmem:[%s2582 + $0x4] sm:$0xf]
      %v2585 = vld [vmem:[%s2582 + $0x8] sm:$0xf]
      %v2586 = vld [vmem:[%s2582 + $0xc] sm:$0xf]
      %v2587 = vld [vmem:[%s2582 + $0x10] sm:$0xf]
      %v2588 = vld [vmem:[%s2582 + $0x14] sm:$0xf]
      %v2589 = vld [vmem:[%s2582 + $0x18] sm:$0xf]
      %v2590 = vld [vmem:[%s2582 + $0x1c] sm:$0xf]
      %v2591 = vld [vmem:[%s2582 + $0x20] sm:$0xf]
      %v2592 = vld [vmem:[%s2582 + $0x24] sm:$0xf]
      %v2593 = vld [vmem:[%s2582 + $0x28] sm:$0xf]
      %v2594 = vld [vmem:[%s2582 + $0x2c] sm:$0xf]
      %v2595 = vld [vmem:[%s2582 + $0x30] sm:$0xf]
      %v2596 = vld [vmem:[%s2582 + $0x34] sm:$0xf]
      %v2597 = vld [vmem:[%s2582 + $0x38] sm:$0xf]
      %v2598 = vld [vmem:[%s2582 + $0x3c] sm:$0xf]
      %v2600 = vunpack.c.l.b16 %v2064
      %v2601 = vpack.c.b16 %v2095, %v2094
      %v2602 = vpack.c.b16 %v2097, %v2096
      %v2603 = vpack.c.b16 %v2099, %v2098
      %v2604 = vpack.c.b16 %v2600, %v2100
      %v2625 = vunpack.c.l.b16 %v2583
      %v2626 = vunpack.c.l.b16 %v2584
      %v2627 = vunpack.c.l.b16 %v2585
      %v2628 = vunpack.c.l.b16 %v2586
      %v2629 = vunpack.c.l.b16 %v2587
      %v2630 = vunpack.c.l.b16 %v2588
      %v2631 = vunpack.c.l.b16 %v2589
      %v2632 = vunpack.c.l.b16 %v2590
      %v2633 = vunpack.c.l.b16 %v2591
      %v2634 = vunpack.c.l.b16 %v2592
      %v2635 = vunpack.c.l.b16 %v2593
      %v2636 = vunpack.c.l.b16 %v2594
      %v2637 = vunpack.c.l.b16 %v2595
      %v2638 = vunpack.c.l.b16 %v2596
      %v2639 = vunpack.c.l.b16 %v2597
      %v2640 = vunpack.c.l.b16 %v2598
      %v2641 = vpack.c.b16 %v2626, %v2625
      %v2642 = vpack.c.b16 %v2628, %v2627
      %v2643 = vpack.c.b16 %v2630, %v2629
      %v2644 = vpack.c.b16 %v2632, %v2631
      %v2645 = vpack.c.b16 %v2634, %v2633
      %v2646 = vpack.c.b16 %v2636, %v2635
      %v2647 = vpack.c.b16 %v2638, %v2637
      %v2648 = vpack.c.b16 %v2640, %v2639
      %2657 = vmatpush.bf16.msra.mxu0 %v2648
      %2658 = vmatpush.bf16.msra.mxu0 %v2647
      %2659 = vmatpush.bf16.msra.mxu0 %v2646
      %2660 = vmatpush.bf16.msra.mxu0 %v2645
      %2661 = vmatpush.bf16.msra.mxu0 %v2644
      %2662 = vmatpush.bf16.msra.mxu0 %v2643
      %2663 = vmatpush.bf16.msra.mxu0 %v2642
      %2664 = vmatpush.bf16.msra.mxu0 %v2641
      %2665 = vmatmul.bf16.gmra.mxu0 %v2601
      %v2666 = vpop.f32.mrf.mxu0
      %v2667 = vadd.f32 0.0, %v2666
      %v2668 = vpop.f32.mrf.mxu0
      %v2669 = vadd.f32 0.0, %v2668
      %2670 = vmatmul.bf16.gmra.mxu0 %v2602
      %v2671 = vpop.f32.mrf.mxu0
      %v2672 = vadd.f32 0.0, %v2671
      %v2673 = vpop.f32.mrf.mxu0
      %v2674 = vadd.f32 0.0, %v2673
      %2675 = vmatmul.bf16.gmra.mxu0 %v2603
      %v2676 = vpop.f32.mrf.mxu0
      %v2677 = vadd.f32 0.0, %v2676
      %v2678 = vpop.f32.mrf.mxu0
      %v2679 = vadd.f32 0.0, %v2678
      %2680 = vmatmul.bf16.gmra.mxu0 %v2604
      %v2681 = vpop.f32.mrf.mxu0
      %v2682 = vadd.f32 0.0, %v2681
      %v2683 = vpop.f32.mrf.mxu0
      %v2684 = vadd.f32 0.0, %v2683
      %2685 = vdwg.mxu0
      %v2686 = vadd.f32 %v2574, %v2667
      %v2687 = vadd.f32 %v2575, %v2669
      %v2688 = vadd.f32 %v2576, %v2672
      %v2689 = vadd.f32 %v2577, %v2674
      %v2690 = vadd.f32 %v2578, %v2677
      %v2691 = vadd.f32 %v2579, %v2679
      %v2692 = vadd.f32 %v2580, %v2682
      %v2693 = vadd.f32 %v2581, %v2684
      %v2695 = vshrl.u32 %v2064, 16
      %v2697 = vrot.slane %v2695, 4
      %v2698 = vshll.u32 %v2064, 16
      %v2700 = vrot.slane %v2698, 5
      %v2701 = vor.u32 %v2697, %v2700
      %v2702 = vrot.slane %v2701, 4
      %v2704 = vshll.u32 %v2065, 16
      %v2706 = vrot.slane %v2704, 5
      %v2707 = vsel %vm698, %v2702, %v2706
      %s2708 = scalar_lea.vmem %s3, 832
      %v2709 = vld [vmem:[%s2708] sm:$0xf]
      %v2710 = vld [vmem:[%s2708 + $0x4] sm:$0xf]
      %v2711 = vld [vmem:[%s2708 + $0x8] sm:$0xf]
      %v2712 = vld [vmem:[%s2708 + $0xc] sm:$0xf]
      %v2713 = vld [vmem:[%s2708 + $0x10] sm:$0xf]
      %v2714 = vld [vmem:[%s2708 + $0x14] sm:$0xf]
      %v2715 = vld [vmem:[%s2708 + $0x18] sm:$0xf]
      %v2716 = vld [vmem:[%s2708 + $0x1c] sm:$0xf]
      %v2717 = vld [vmem:[%s2708 + $0x20] sm:$0xf]
      %v2718 = vld [vmem:[%s2708 + $0x24] sm:$0xf]
      %v2719 = vld [vmem:[%s2708 + $0x28] sm:$0xf]
      %v2720 = vld [vmem:[%s2708 + $0x2c] sm:$0xf]
      %v2721 = vld [vmem:[%s2708 + $0x30] sm:$0xf]
      %v2722 = vld [vmem:[%s2708 + $0x34] sm:$0xf]
      %v2723 = vld [vmem:[%s2708 + $0x38] sm:$0xf]
      %v2724 = vld [vmem:[%s2708 + $0x3c] sm:$0xf]
      %v2725 = vunpack.c.l.b16 %v2707
      %v2726 = vpack.c.b16 %v2325, %v2324
      %v2727 = vpack.c.b16 %v2327, %v2326
      %v2728 = vpack.c.b16 %v2329, %v2328
      %v2729 = vpack.c.b16 %v2725, %v2330
      %v2750 = vunpack.c.l.b16 %v2709
      %v2751 = vunpack.c.l.b16 %v2710
      %v2752 = vunpack.c.l.b16 %v2711
      %v2753 = vunpack.c.l.b16 %v2712
      %v2754 = vunpack.c.l.b16 %v2713
      %v2755 = vunpack.c.l.b16 %v2714
      %v2756 = vunpack.c.l.b16 %v2715
      %v2757 = vunpack.c.l.b16 %v2716
      %v2758 = vunpack.c.l.b16 %v2717
      %v2759 = vunpack.c.l.b16 %v2718
      %v2760 = vunpack.c.l.b16 %v2719
      %v2761 = vunpack.c.l.b16 %v2720
      %v2762 = vunpack.c.l.b16 %v2721
      %v2763 = vunpack.c.l.b16 %v2722
      %v2764 = vunpack.c.l.b16 %v2723
      %v2765 = vunpack.c.l.b16 %v2724
      %v2766 = vpack.c.b16 %v2751, %v2750
      %v2767 = vpack.c.b16 %v2753, %v2752
      %v2768 = vpack.c.b16 %v2755, %v2754
      %v2769 = vpack.c.b16 %v2757, %v2756
      %v2770 = vpack.c.b16 %v2759, %v2758
      %v2771 = vpack.c.b16 %v2761, %v2760
      %v2772 = vpack.c.b16 %v2763, %v2762
      %v2773 = vpack.c.b16 %v2765, %v2764
      %2782 = vmatpush.bf16.msra.mxu0 %v2773
      %2783 = vmatpush.bf16.msra.mxu0 %v2772
      %2784 = vmatpush.bf16.msra.mxu0 %v2771
      %2785 = vmatpush.bf16.msra.mxu0 %v2770
      %2786 = vmatpush.bf16.msra.mxu0 %v2769
      %2787 = vmatpush.bf16.msra.mxu0 %v2768
      %2788 = vmatpush.bf16.msra.mxu0 %v2767
      %2789 = vmatpush.bf16.msra.mxu0 %v2766
      %2790 = vmatmul.bf16.gmra.mxu0 %v2726
      %v2791 = vpop.f32.mrf.mxu0
      %v2792 = vadd.f32 0.0, %v2791
      %v2793 = vpop.f32.mrf.mxu0
      %v2794 = vadd.f32 0.0, %v2793
      %2795 = vmatmul.bf16.gmra.mxu0 %v2727
      %v2796 = vpop.f32.mrf.mxu0
      %v2797 = vadd.f32 0.0, %v2796
      %v2798 = vpop.f32.mrf.mxu0
      %v2799 = vadd.f32 0.0, %v2798
      %2800 = vmatmul.bf16.gmra.mxu0 %v2728
      %v2801 = vpop.f32.mrf.mxu0
      %v2802 = vadd.f32 0.0, %v2801
      %v2803 = vpop.f32.mrf.mxu0
      %v2804 = vadd.f32 0.0, %v2803
      %2805 = vmatmul.bf16.gmra.mxu0 %v2729
      %v2806 = vpop.f32.mrf.mxu0
      %v2807 = vadd.f32 0.0, %v2806
      %v2808 = vpop.f32.mrf.mxu0
      %v2809 = vadd.f32 0.0, %v2808
      %2810 = vdwg.mxu0
      %v2811 = vadd.f32 %v2686, %v2792
      %v2812 = vadd.f32 %v2687, %v2794
      %v2813 = vadd.f32 %v2688, %v2797
      %v2814 = vadd.f32 %v2689, %v2799
      %v2815 = vadd.f32 %v2690, %v2802
      %v2816 = vadd.f32 %v2691, %v2804
      %v2817 = vadd.f32 %v2692, %v2807
      %v2818 = vadd.f32 %v2693, %v2809
      %v2820 = vrot.slane %v2064, 5
      %v2821 = vrot.slane %v2820, 4
      %v2822 = vrot.slane %v2065, 5
      %v2823 = vsel %vm1032, %v2821, %v2822
      %s2824 = scalar_lea.vmem %s3, 896
      %v2825 = vld [vmem:[%s2824] sm:$0xf]
      %v2826 = vld [vmem:[%s2824 + $0x4] sm:$0xf]
      %v2827 = vld [vmem:[%s2824 + $0x8] sm:$0xf]
      %v2828 = vld [vmem:[%s2824 + $0xc] sm:$0xf]
      %v2829 = vld [vmem:[%s2824 + $0x10] sm:$0xf]
      %v2830 = vld [vmem:[%s2824 + $0x14] sm:$0xf]
      %v2831 = vld [vmem:[%s2824 + $0x18] sm:$0xf]
      %v2832 = vld [vmem:[%s2824 + $0x1c] sm:$0xf]
      %v2833 = vld [vmem:[%s2824 + $0x20] sm:$0xf]
      %v2834 = vld [vmem:[%s2824 + $0x24] sm:$0xf]
      %v2835 = vld [vmem:[%s2824 + $0x28] sm:$0xf]
      %v2836 = vld [vmem:[%s2824 + $0x2c] sm:$0xf]
      %v2837 = vld [vmem:[%s2824 + $0x30] sm:$0xf]
      %v2838 = vld [vmem:[%s2824 + $0x34] sm:$0xf]
      %v2839 = vld [vmem:[%s2824 + $0x38] sm:$0xf]
      %v2840 = vld [vmem:[%s2824 + $0x3c] sm:$0xf]
      %v2841 = vunpack.c.l.b16 %v2823
      %v2842 = vpack.c.b16 %v2483, %v2482
      %v2843 = vpack.c.b16 %v2485, %v2484
      %v2844 = vpack.c.b16 %v2487, %v2486
      %v2845 = vpack.c.b16 %v2841, %v2488
      %v2866 = vunpack.c.l.b16 %v2825
      %v2867 = vunpack.c.l.b16 %v2826
      %v2868 = vunpack.c.l.b16 %v2827
      %v2869 = vunpack.c.l.b16 %v2828
      %v2870 = vunpack.c.l.b16 %v2829
      %v2871 = vunpack.c.l.b16 %v2830
      %v2872 = vunpack.c.l.b16 %v2831
      %v2873 = vunpack.c.l.b16 %v2832
      %v2874 = vunpack.c.l.b16 %v2833
      %v2875 = vunpack.c.l.b16 %v2834
      %v2876 = vunpack.c.l.b16 %v2835
      %v2877 = vunpack.c.l.b16 %v2836
      %v2878 = vunpack.c.l.b16 %v2837
      %v2879 = vunpack.c.l.b16 %v2838
      %v2880 = vunpack.c.l.b16 %v2839
      %v2881 = vunpack.c.l.b16 %v2840
      %v2882 = vpack.c.b16 %v2867, %v2866
      %v2883 = vpack.c.b16 %v2869, %v2868
      %v2884 = vpack.c.b16 %v2871, %v2870
      %v2885 = vpack.c.b16 %v2873, %v2872
      %v2886 = vpack.c.b16 %v2875, %v2874
      %v2887 = vpack.c.b16 %v2877, %v2876
      %v2888 = vpack.c.b16 %v2879, %v2878
      %v2889 = vpack.c.b16 %v2881, %v2880
      %2898 = vmatpush.bf16.msra.mxu0 %v2889
      %2899 = vmatpush.bf16.msra.mxu0 %v2888
      %2900 = vmatpush.bf16.msra.mxu0 %v2887
      %2901 = vmatpush.bf16.msra.mxu0 %v2886
      %2902 = vmatpush.bf16.msra.mxu0 %v2885
      %2903 = vmatpush.bf16.msra.mxu0 %v2884
      %2904 = vmatpush.bf16.msra.mxu0 %v2883
      %2905 = vmatpush.bf16.msra.mxu0 %v2882
      %2906 = vmatmul.bf16.gmra.mxu0 %v2842
      %v2907 = vpop.f32.mrf.mxu0
      %v2908 = vadd.f32 0.0, %v2907
      %v2909 = vpop.f32.mrf.mxu0
      %v2910 = vadd.f32 0.0, %v2909
      %2911 = vmatmul.bf16.gmra.mxu0 %v2843
      %v2912 = vpop.f32.mrf.mxu0
      %v2913 = vadd.f32 0.0, %v2912
      %v2914 = vpop.f32.mrf.mxu0
      %v2915 = vadd.f32 0.0, %v2914
      %2916 = vmatmul.bf16.gmra.mxu0 %v2844
      %v2917 = vpop.f32.mrf.mxu0
      %v2918 = vadd.f32 0.0, %v2917
      %v2919 = vpop.f32.mrf.mxu0
      %v2920 = vadd.f32 0.0, %v2919
      %2921 = vmatmul.bf16.gmra.mxu0 %v2845
      %v2922 = vpop.f32.mrf.mxu0
      %v2923 = vadd.f32 0.0, %v2922
      %v2924 = vpop.f32.mrf.mxu0
      %v2925 = vadd.f32 0.0, %v2924
      %2926 = vdwg.mxu0
      %v2927 = vadd.f32 %v2811, %v2908
      %v2928 = vadd.f32 %v2812, %v2910
      %v2929 = vadd.f32 %v2813, %v2913
      %v2930 = vadd.f32 %v2814, %v2915
      %v2931 = vadd.f32 %v2815, %v2918
      %v2932 = vadd.f32 %v2816, %v2920
      %v2933 = vadd.f32 %v2817, %v2923
      %v2934 = vadd.f32 %v2818, %v2925
      %s2935 = scalar_lea.vmem %s3, 960
      %v2936 = vld [vmem:[%s2935] sm:$0xf]
      %v2937 = vld [vmem:[%s2935 + $0x4] sm:$0xf]
      %v2938 = vld [vmem:[%s2935 + $0x8] sm:$0xf]
      %v2939 = vld [vmem:[%s2935 + $0xc] sm:$0xf]
      %v2940 = vld [vmem:[%s2935 + $0x10] sm:$0xf]
      %v2941 = vld [vmem:[%s2935 + $0x14] sm:$0xf]
      %v2942 = vld [vmem:[%s2935 + $0x18] sm:$0xf]
      %v2943 = vld [vmem:[%s2935 + $0x1c] sm:$0xf]
      %v2944 = vld [vmem:[%s2935 + $0x20] sm:$0xf]
      %v2945 = vld [vmem:[%s2935 + $0x24] sm:$0xf]
      %v2946 = vld [vmem:[%s2935 + $0x28] sm:$0xf]
      %v2947 = vld [vmem:[%s2935 + $0x2c] sm:$0xf]
      %v2948 = vld [vmem:[%s2935 + $0x30] sm:$0xf]
      %v2949 = vld [vmem:[%s2935 + $0x34] sm:$0xf]
      %v2950 = vld [vmem:[%s2935 + $0x38] sm:$0xf]
      %v2951 = vld [vmem:[%s2935 + $0x3c] sm:$0xf]
      %v2953 = vunpack.c.l.b16 %v2066
      %v2954 = vpack.c.b16 %v2953, %v2600
      %v2972 = vunpack.c.l.b16 %v2936
      %v2973 = vunpack.c.l.b16 %v2937
      %v2974 = vunpack.c.l.b16 %v2938
      %v2975 = vunpack.c.l.b16 %v2939
      %v2976 = vunpack.c.l.b16 %v2940
      %v2977 = vunpack.c.l.b16 %v2941
      %v2978 = vunpack.c.l.b16 %v2942
      %v2979 = vunpack.c.l.b16 %v2943
      %v2980 = vunpack.c.l.b16 %v2944
      %v2981 = vunpack.c.l.b16 %v2945
      %v2982 = vunpack.c.l.b16 %v2946
      %v2983 = vunpack.c.l.b16 %v2947
      %v2984 = vunpack.c.l.b16 %v2948
      %v2985 = vunpack.c.l.b16 %v2949
      %v2986 = vunpack.c.l.b16 %v2950
      %v2987 = vunpack.c.l.b16 %v2951
      %v2988 = vpack.c.b16 %v2973, %v2972
      %v2989 = vpack.c.b16 %v2975, %v2974
      %v2990 = vpack.c.b16 %v2977, %v2976
      %v2991 = vpack.c.b16 %v2979, %v2978
      %v2992 = vpack.c.b16 %v2981, %v2980
      %v2993 = vpack.c.b16 %v2983, %v2982
      %v2994 = vpack.c.b16 %v2985, %v2984
      %v2995 = vpack.c.b16 %v2987, %v2986
      %3004 = vmatpush.bf16.msra.mxu0 %v2995
      %3005 = vmatpush.bf16.msra.mxu0 %v2994
      %3006 = vmatpush.bf16.msra.mxu0 %v2993
      %3007 = vmatpush.bf16.msra.mxu0 %v2992
      %3008 = vmatpush.bf16.msra.mxu0 %v2991
      %3009 = vmatpush.bf16.msra.mxu0 %v2990
      %3010 = vmatpush.bf16.msra.mxu0 %v2989
      %3011 = vmatpush.bf16.msra.mxu0 %v2988
      %3012 = vmatmul.bf16.gmra.mxu0 %v2102
      %v3013 = vpop.f32.mrf.mxu0
      %v3014 = vadd.f32 0.0, %v3013
      %v3015 = vpop.f32.mrf.mxu0
      %v3016 = vadd.f32 0.0, %v3015
      %3017 = vmatmul.bf16.gmra.mxu0 %v2103
      %v3018 = vpop.f32.mrf.mxu0
      %v3019 = vadd.f32 0.0, %v3018
      %v3020 = vpop.f32.mrf.mxu0
      %v3021 = vadd.f32 0.0, %v3020
      %3022 = vmatmul.bf16.gmra.mxu0 %v2104
      %v3023 = vpop.f32.mrf.mxu0
      %v3024 = vadd.f32 0.0, %v3023
      %v3025 = vpop.f32.mrf.mxu0
      %v3026 = vadd.f32 0.0, %v3025
      %3027 = vmatmul.bf16.gmra.mxu0 %v2954
      %v3028 = vpop.f32.mrf.mxu0
      %v3029 = vadd.f32 0.0, %v3028
      %v3030 = vpop.f32.mrf.mxu0
      %v3031 = vadd.f32 0.0, %v3030
      %3032 = vdwg.mxu0
      %v3033 = vadd.f32 %v2927, %v3014
      %v3034 = vadd.f32 %v2928, %v3016
      %v3035 = vadd.f32 %v2929, %v3019
      %v3036 = vadd.f32 %v2930, %v3021
      %v3037 = vadd.f32 %v2931, %v3024
      %v3038 = vadd.f32 %v2932, %v3026
      %v3039 = vadd.f32 %v2933, %v3029
      %v3040 = vadd.f32 %v2934, %v3031
      %v3042 = vshrl.u32 %v2066, 16
      %v3044 = vrot.slane %v3042, 4
      %v3045 = vshll.u32 %v2066, 16
      %v3047 = vrot.slane %v3045, 5
      %v3048 = vor.u32 %v3044, %v3047
      %v3049 = vrot.slane %v3048, 4
      %v3051 = vshll.u32 %v2067, 16
      %v3053 = vrot.slane %v3051, 5
      %v3054 = vsel %vm698, %v3049, %v3053
      %s3055 = scalar_lea.vmem %s3, 1024
      %v3056 = vld [vmem:[%s3055] sm:$0xf]
      %v3057 = vld [vmem:[%s3055 + $0x4] sm:$0xf]
      %v3058 = vld [vmem:[%s3055 + $0x8] sm:$0xf]
      %v3059 = vld [vmem:[%s3055 + $0xc] sm:$0xf]
      %v3060 = vld [vmem:[%s3055 + $0x10] sm:$0xf]
      %v3061 = vld [vmem:[%s3055 + $0x14] sm:$0xf]
      %v3062 = vld [vmem:[%s3055 + $0x18] sm:$0xf]
      %v3063 = vld [vmem:[%s3055 + $0x1c] sm:$0xf]
      %v3064 = vld [vmem:[%s3055 + $0x20] sm:$0xf]
      %v3065 = vld [vmem:[%s3055 + $0x24] sm:$0xf]
      %v3066 = vld [vmem:[%s3055 + $0x28] sm:$0xf]
      %v3067 = vld [vmem:[%s3055 + $0x2c] sm:$0xf]
      %v3068 = vld [vmem:[%s3055 + $0x30] sm:$0xf]
      %v3069 = vld [vmem:[%s3055 + $0x34] sm:$0xf]
      %v3070 = vld [vmem:[%s3055 + $0x38] sm:$0xf]
      %v3071 = vld [vmem:[%s3055 + $0x3c] sm:$0xf]
      %v3072 = vunpack.c.l.b16 %v3054
      %v3073 = vpack.c.b16 %v3072, %v2725
      %v3091 = vunpack.c.l.b16 %v3056
      %v3092 = vunpack.c.l.b16 %v3057
      %v3093 = vunpack.c.l.b16 %v3058
      %v3094 = vunpack.c.l.b16 %v3059
      %v3095 = vunpack.c.l.b16 %v3060
      %v3096 = vunpack.c.l.b16 %v3061
      %v3097 = vunpack.c.l.b16 %v3062
      %v3098 = vunpack.c.l.b16 %v3063
      %v3099 = vunpack.c.l.b16 %v3064
      %v3100 = vunpack.c.l.b16 %v3065
      %v3101 = vunpack.c.l.b16 %v3066
      %v3102 = vunpack.c.l.b16 %v3067
      %v3103 = vunpack.c.l.b16 %v3068
      %v3104 = vunpack.c.l.b16 %v3069
      %v3105 = vunpack.c.l.b16 %v3070
      %v3106 = vunpack.c.l.b16 %v3071
      %v3107 = vpack.c.b16 %v3092, %v3091
      %v3108 = vpack.c.b16 %v3094, %v3093
      %v3109 = vpack.c.b16 %v3096, %v3095
      %v3110 = vpack.c.b16 %v3098, %v3097
      %v3111 = vpack.c.b16 %v3100, %v3099
      %v3112 = vpack.c.b16 %v3102, %v3101
      %v3113 = vpack.c.b16 %v3104, %v3103
      %v3114 = vpack.c.b16 %v3106, %v3105
      %3123 = vmatpush.bf16.msra.mxu0 %v3114
      %3124 = vmatpush.bf16.msra.mxu0 %v3113
      %3125 = vmatpush.bf16.msra.mxu0 %v3112
      %3126 = vmatpush.bf16.msra.mxu0 %v3111
      %3127 = vmatpush.bf16.msra.mxu0 %v3110
      %3128 = vmatpush.bf16.msra.mxu0 %v3109
      %3129 = vmatpush.bf16.msra.mxu0 %v3108
      %3130 = vmatpush.bf16.msra.mxu0 %v3107
      %3131 = vmatmul.bf16.gmra.mxu0 %v2332
      %v3132 = vpop.f32.mrf.mxu0
      %v3133 = vadd.f32 0.0, %v3132
      %v3134 = vpop.f32.mrf.mxu0
      %v3135 = vadd.f32 0.0, %v3134
      %3136 = vmatmul.bf16.gmra.mxu0 %v2333
      %v3137 = vpop.f32.mrf.mxu0
      %v3138 = vadd.f32 0.0, %v3137
      %v3139 = vpop.f32.mrf.mxu0
      %v3140 = vadd.f32 0.0, %v3139
      %3141 = vmatmul.bf16.gmra.mxu0 %v2334
      %v3142 = vpop.f32.mrf.mxu0
      %v3143 = vadd.f32 0.0, %v3142
      %v3144 = vpop.f32.mrf.mxu0
      %v3145 = vadd.f32 0.0, %v3144
      %3146 = vmatmul.bf16.gmra.mxu0 %v3073
      %v3147 = vpop.f32.mrf.mxu0
      %v3148 = vadd.f32 0.0, %v3147
      %v3149 = vpop.f32.mrf.mxu0
      %v3150 = vadd.f32 0.0, %v3149
      %3151 = vdwg.mxu0
      %v3152 = vadd.f32 %v3033, %v3133
      %v3153 = vadd.f32 %v3034, %v3135
      %v3154 = vadd.f32 %v3035, %v3138
      %v3155 = vadd.f32 %v3036, %v3140
      %v3156 = vadd.f32 %v3037, %v3143
      %v3157 = vadd.f32 %v3038, %v3145
      %v3158 = vadd.f32 %v3039, %v3148
      %v3159 = vadd.f32 %v3040, %v3150
      %v3161 = vrot.slane %v2066, 5
      %v3162 = vrot.slane %v3161, 4
      %v3163 = vrot.slane %v2067, 5
      %v3164 = vsel %vm1032, %v3162, %v3163
      %s3165 = scalar_lea.vmem %s3, 1088
      %v3166 = vld [vmem:[%s3165] sm:$0xf]
      %v3167 = vld [vmem:[%s3165 + $0x4] sm:$0xf]
      %v3168 = vld [vmem:[%s3165 + $0x8] sm:$0xf]
      %v3169 = vld [vmem:[%s3165 + $0xc] sm:$0xf]
      %v3170 = vld [vmem:[%s3165 + $0x10] sm:$0xf]
      %v3171 = vld [vmem:[%s3165 + $0x14] sm:$0xf]
      %v3172 = vld [vmem:[%s3165 + $0x18] sm:$0xf]
      %v3173 = vld [vmem:[%s3165 + $0x1c] sm:$0xf]
      %v3174 = vld [vmem:[%s3165 + $0x20] sm:$0xf]
      %v3175 = vld [vmem:[%s3165 + $0x24] sm:$0xf]
      %v3176 = vld [vmem:[%s3165 + $0x28] sm:$0xf]
      %v3177 = vld [vmem:[%s3165 + $0x2c] sm:$0xf]
      %v3178 = vld [vmem:[%s3165 + $0x30] sm:$0xf]
      %v3179 = vld [vmem:[%s3165 + $0x34] sm:$0xf]
      %v3180 = vld [vmem:[%s3165 + $0x38] sm:$0xf]
      %v3181 = vld [vmem:[%s3165 + $0x3c] sm:$0xf]
      %v3182 = vunpack.c.l.b16 %v3164
      %v3183 = vpack.c.b16 %v3182, %v2841
      %v3201 = vunpack.c.l.b16 %v3166
      %v3202 = vunpack.c.l.b16 %v3167
      %v3203 = vunpack.c.l.b16 %v3168
      %v3204 = vunpack.c.l.b16 %v3169
      %v3205 = vunpack.c.l.b16 %v3170
      %v3206 = vunpack.c.l.b16 %v3171
      %v3207 = vunpack.c.l.b16 %v3172
      %v3208 = vunpack.c.l.b16 %v3173
      %v3209 = vunpack.c.l.b16 %v3174
      %v3210 = vunpack.c.l.b16 %v3175
      %v3211 = vunpack.c.l.b16 %v3176
      %v3212 = vunpack.c.l.b16 %v3177
      %v3213 = vunpack.c.l.b16 %v3178
      %v3214 = vunpack.c.l.b16 %v3179
      %v3215 = vunpack.c.l.b16 %v3180
      %v3216 = vunpack.c.l.b16 %v3181
      %v3217 = vpack.c.b16 %v3202, %v3201
      %v3218 = vpack.c.b16 %v3204, %v3203
      %v3219 = vpack.c.b16 %v3206, %v3205
      %v3220 = vpack.c.b16 %v3208, %v3207
      %v3221 = vpack.c.b16 %v3210, %v3209
      %v3222 = vpack.c.b16 %v3212, %v3211
      %v3223 = vpack.c.b16 %v3214, %v3213
      %v3224 = vpack.c.b16 %v3216, %v3215
      %3233 = vmatpush.bf16.msra.mxu0 %v3224
      %3234 = vmatpush.bf16.msra.mxu0 %v3223
      %3235 = vmatpush.bf16.msra.mxu0 %v3222
      %3236 = vmatpush.bf16.msra.mxu0 %v3221
      %3237 = vmatpush.bf16.msra.mxu0 %v3220
      %3238 = vmatpush.bf16.msra.mxu0 %v3219
      %3239 = vmatpush.bf16.msra.mxu0 %v3218
      %3240 = vmatpush.bf16.msra.mxu0 %v3217
      %3241 = vmatmul.bf16.gmra.mxu0 %v2490
      %v3242 = vpop.f32.mrf.mxu0
      %v3243 = vadd.f32 0.0, %v3242
      %v3244 = vpop.f32.mrf.mxu0
      %v3245 = vadd.f32 0.0, %v3244
      %3246 = vmatmul.bf16.gmra.mxu0 %v2491
      %v3247 = vpop.f32.mrf.mxu0
      %v3248 = vadd.f32 0.0, %v3247
      %v3249 = vpop.f32.mrf.mxu0
      %v3250 = vadd.f32 0.0, %v3249
      %3251 = vmatmul.bf16.gmra.mxu0 %v2492
      %v3252 = vpop.f32.mrf.mxu0
      %v3253 = vadd.f32 0.0, %v3252
      %v3254 = vpop.f32.mrf.mxu0
      %v3255 = vadd.f32 0.0, %v3254
      %3256 = vmatmul.bf16.gmra.mxu0 %v3183
      %v3257 = vpop.f32.mrf.mxu0
      %v3258 = vadd.f32 0.0, %v3257
      %v3259 = vpop.f32.mrf.mxu0
      %v3260 = vadd.f32 0.0, %v3259
      %3261 = vdwg.mxu0
      %v3262 = vadd.f32 %v3152, %v3243
      %v3263 = vadd.f32 %v3153, %v3245
      %v3264 = vadd.f32 %v3154, %v3248
      %v3265 = vadd.f32 %v3155, %v3250
      %v3266 = vadd.f32 %v3156, %v3253
      %v3267 = vadd.f32 %v3157, %v3255
      %v3268 = vadd.f32 %v3158, %v3258
      %v3269 = vadd.f32 %v3159, %v3260
      %v3270 = vld [vmem:[%s436] sm:$0xf]
      %v3271 = vld [vmem:[%s436 + $0x4] sm:$0x1]
      %v3272 = vld [vmem:[%s436 + $0x8] sm:$0xf]
      %v3273 = vld [vmem:[%s436 + $0xc] sm:$0x1]
      %v3274 = vld [vmem:[%s436 + $0x10] sm:$0xf]
      %v3275 = vld [vmem:[%s436 + $0x14] sm:$0x1]
      %v3276 = vld [vmem:[%s436 + $0x18] sm:$0xf]
      %v3277 = vld [vmem:[%s436 + $0x1c] sm:$0x1]
      %v3278 = vld [vmem:[%s436 + $0x20] sm:$0xf]
      %v3279 = vld [vmem:[%s436 + $0x24] sm:$0x1]
      %v3280 = vld [vmem:[%s436 + $0x28] sm:$0xf]
      %v3281 = vld [vmem:[%s436 + $0x2c] sm:$0x1]
      %v3282 = vld [vmem:[%s436 + $0x30] sm:$0xf]
      %v3283 = vld [vmem:[%s436 + $0x34] sm:$0x1]
      %v3284 = vld [vmem:[%s436 + $0x38] sm:$0xf]
      %v3285 = vld [vmem:[%s436 + $0x3c] sm:$0x1]
      %v3286 = vld [vmem:[%s436 + $0x40] sm:$0xf]
      %v3287 = vld [vmem:[%s436 + $0x44] sm:$0x1]
      %v3288 = vld [vmem:[%s436 + $0x48] sm:$0xf]
      %v3289 = vld [vmem:[%s436 + $0x4c] sm:$0x1]
      %v3290 = vunpack.c.l.bf16 %v3270
      %v3291 = vunpack.c.l.bf16 %v3271
      %v3292 = vunpack.c.l.bf16 %v3272
      %v3293 = vunpack.c.l.bf16 %v3273
      %v3294 = vunpack.c.l.bf16 %v3274
      %v3295 = vunpack.c.l.bf16 %v3275
      %v3296 = vunpack.c.l.bf16 %v3276
      %v3297 = vunpack.c.l.bf16 %v3277
      %v3298 = vunpack.c.l.bf16 %v3278
      %v3299 = vunpack.c.l.bf16 %v3279
      %v3300 = vunpack.c.l.bf16 %v3280
      %v3301 = vunpack.c.l.bf16 %v3281
      %v3302 = vunpack.c.l.bf16 %v3282
      %v3303 = vunpack.c.l.bf16 %v3283
      %v3304 = vunpack.c.l.bf16 %v3284
      %v3305 = vunpack.c.l.bf16 %v3285
      %v3306 = vunpack.c.l.bf16 %v3286
      %v3307 = vunpack.c.l.bf16 %v3287
      %v3308 = vunpack.c.l.bf16 %v3288
      %v3309 = vunpack.c.l.bf16 %v3289
      %v3310 = vmul.f32 %v3290, %v519
      %v3311 = vmul.f32 %v3291, %v519
      %v3312 = vmul.f32 %v3292, %v519
      %v3313 = vmul.f32 %v3293, %v519
      %v3314 = vmul.f32 %v3294, %v519
      %v3315 = vmul.f32 %v3295, %v519
      %v3316 = vmul.f32 %v3296, %v519
      %v3317 = vmul.f32 %v3297, %v519
      %v3318 = vmul.f32 %v3298, %v519
      %v3319 = vmul.f32 %v3299, %v519
      %v3320 = vmul.f32 %v3300, %v519
      %v3321 = vmul.f32 %v3301, %v519
      %v3322 = vmul.f32 %v3302, %v519
      %v3323 = vmul.f32 %v3303, %v519
      %v3324 = vmul.f32 %v3304, %v519
      %v3325 = vmul.f32 %v3305, %v519
      %v3326 = vmul.f32 %v3306, %v519
      %v3327 = vmul.f32 %v3307, %v519
      %v3328 = vmul.f32 %v3308, %v519
      %v3329 = vmul.f32 %v3309, %v519
      %v3330 = vadd.f32 %v3310, %v542
      %v3331 = vadd.f32 %v3311, %v542
      %v3332 = vadd.f32 %v3312, %v542
      %v3333 = vadd.f32 %v3313, %v542
      %v3334 = vadd.f32 %v3314, %v542
      %v3335 = vadd.f32 %v3315, %v542
      %v3336 = vadd.f32 %v3316, %v542
      %v3337 = vadd.f32 %v3317, %v542
      %v3338 = vadd.f32 %v3318, %v542
      %v3339 = vadd.f32 %v3319, %v542
      %v3340 = vadd.f32 %v3320, %v542
      %v3341 = vadd.f32 %v3321, %v542
      %v3342 = vadd.f32 %v3322, %v542
      %v3343 = vadd.f32 %v3323, %v542
      %v3344 = vadd.f32 %v3324, %v542
      %v3345 = vadd.f32 %v3325, %v542
      %v3346 = vadd.f32 %v3326, %v542
      %v3347 = vadd.f32 %v3327, %v542
      %v3348 = vadd.f32 %v3328, %v542
      %v3349 = vadd.f32 %v3329, %v542
      %vm3350 = vcmp.ge.f32.partialorder %v3330, 0.0
      %vm3351 = vcmp.ge.f32.partialorder %v3331, 0.0
      %vm3352 = vcmp.ge.f32.partialorder %v3332, 0.0
      %vm3353 = vcmp.ge.f32.partialorder %v3333, 0.0
      %vm3354 = vcmp.ge.f32.partialorder %v3334, 0.0
      %vm3355 = vcmp.ge.f32.partialorder %v3335, 0.0
      %vm3356 = vcmp.ge.f32.partialorder %v3336, 0.0
      %vm3357 = vcmp.ge.f32.partialorder %v3337, 0.0
      %vm3358 = vcmp.ge.f32.partialorder %v3338, 0.0
      %vm3359 = vcmp.ge.f32.partialorder %v3339, 0.0
      %vm3360 = vcmp.ge.f32.partialorder %v3340, 0.0
      %vm3361 = vcmp.ge.f32.partialorder %v3341, 0.0
      %vm3362 = vcmp.ge.f32.partialorder %v3342, 0.0
      %vm3363 = vcmp.ge.f32.partialorder %v3343, 0.0
      %vm3364 = vcmp.ge.f32.partialorder %v3344, 0.0
      %vm3365 = vcmp.ge.f32.partialorder %v3345, 0.0
      %vm3366 = vcmp.ge.f32.partialorder %v3346, 0.0
      %vm3367 = vcmp.ge.f32.partialorder %v3347, 0.0
      %vm3368 = vcmp.ge.f32.partialorder %v3348, 0.0
      %vm3369 = vcmp.ge.f32.partialorder %v3349, 0.0
      %v3370 = vmul.f32 %v3330, 0.01
      %v3371 = vmul.f32 %v3331, 0.01
      %v3372 = vmul.f32 %v3332, 0.01
      %v3373 = vmul.f32 %v3333, 0.01
      %v3374 = vmul.f32 %v3334, 0.01
      %v3375 = vmul.f32 %v3335, 0.01
      %v3376 = vmul.f32 %v3336, 0.01
      %v3377 = vmul.f32 %v3337, 0.01
      %v3378 = vmul.f32 %v3338, 0.01
      %v3379 = vmul.f32 %v3339, 0.01
      %v3380 = vmul.f32 %v3340, 0.01
      %v3381 = vmul.f32 %v3341, 0.01
      %v3382 = vmul.f32 %v3342, 0.01
      %v3383 = vmul.f32 %v3343, 0.01
      %v3384 = vmul.f32 %v3344, 0.01
      %v3385 = vmul.f32 %v3345, 0.01
      %v3386 = vmul.f32 %v3346, 0.01
      %v3387 = vmul.f32 %v3347, 0.01
      %v3388 = vmul.f32 %v3348, 0.01
      %v3389 = vmul.f32 %v3349, 0.01
      %v3390 = vsel %vm3350, %v3330, %v3370
      %v3391 = vsel %vm3351, %v3331, %v3371
      %v3392 = vsel %vm3352, %v3332, %v3372
      %v3393 = vsel %vm3353, %v3333, %v3373
      %v3394 = vsel %vm3354, %v3334, %v3374
      %v3395 = vsel %vm3355, %v3335, %v3375
      %v3396 = vsel %vm3356, %v3336, %v3376
      %v3397 = vsel %vm3357, %v3337, %v3377
      %v3398 = vsel %vm3358, %v3338, %v3378
      %v3399 = vsel %vm3359, %v3339, %v3379
      %v3400 = vsel %vm3360, %v3340, %v3380
      %v3401 = vsel %vm3361, %v3341, %v3381
      %v3402 = vsel %vm3362, %v3342, %v3382
      %v3403 = vsel %vm3363, %v3343, %v3383
      %v3404 = vsel %vm3364, %v3344, %v3384
      %v3405 = vsel %vm3365, %v3345, %v3385
      %v3406 = vsel %vm3366, %v3346, %v3386
      %v3407 = vsel %vm3367, %v3347, %v3387
      %v3408 = vsel %vm3368, %v3348, %v3388
      %v3409 = vsel %vm3369, %v3349, %v3389
      %s3410 = sadd.s32 %s25, 2
      %p3411 = scmp.ge.s32.totalorder %s3410, 1
      %s3412 = scalar_select %p3411, 1, 0
      %v3413 = vstv %s3412
      %vm3414 = vcmp.eq.s32.totalorder %v3413, 1
      %vm3415 = vmand %vm472, %vm3414
      %vm3416 = vmand %vm473, %vm3414
      %vm3417 = vmand %vm474, %vm3414
      %vm3418 = vmand %vm475, %vm3414
      %p3419 = scmp.le.s32.totalorder %s3410, 8
      %s3420 = scalar_select %p3419, 1, 0
      %v3421 = vstv %s3420
      %vm3422 = vcmp.eq.s32.totalorder %v3421, 1
      %vm3423 = vmand %vm3415, %vm3422
      %vm3424 = vmand %vm3416, %vm3422
      %vm3425 = vmand %vm3417, %vm3422
      %vm3426 = vmand %vm3418, %vm3422
      %v3427 = vsel %vm3423, %v3390, 0.0
      %v3428 = vsel %vm3424, %v3391, 0.0
      %v3429 = vsel %vm3425, %v3392, 0.0
      %v3430 = vsel %vm3426, %v3393, 0.0
      %v3431 = vsel %vm3425, %v3394, 0.0
      %v3432 = vsel %vm3426, %v3395, 0.0
      %v3433 = vsel %vm3425, %v3396, 0.0
      %v3434 = vsel %vm3426, %v3397, 0.0
      %v3435 = vsel %vm3425, %v3398, 0.0
      %v3436 = vsel %vm3426, %v3399, 0.0
      %v3437 = vsel %vm3425, %v3400, 0.0
      %v3438 = vsel %vm3426, %v3401, 0.0
      %v3439 = vsel %vm3425, %v3402, 0.0
      %v3440 = vsel %vm3426, %v3403, 0.0
      %v3441 = vsel %vm3425, %v3404, 0.0
      %v3442 = vsel %vm3426, %v3405, 0.0
      %v3443 = vsel %vm3425, %v3406, 0.0
      %v3444 = vsel %vm3426, %v3407, 0.0
      %v3445 = vsel %vm3423, %v3408, 0.0
      %v3446 = vsel %vm3424, %v3409, 0.0
      %v3447 = vpack.c.bf16 %v3427, %v3427
      %v3448 = vpack.c.bf16 %v3428, %v3428
      %v3449 = vpack.c.bf16 %v3429, %v3429
      %v3450 = vpack.c.bf16 %v3430, %v3430
      %v3451 = vpack.c.bf16 %v3431, %v3431
      %v3452 = vpack.c.bf16 %v3432, %v3432
      %v3453 = vpack.c.bf16 %v3433, %v3433
      %v3454 = vpack.c.bf16 %v3434, %v3434
      %v3455 = vpack.c.bf16 %v3435, %v3435
      %v3456 = vpack.c.bf16 %v3436, %v3436
      %v3457 = vpack.c.bf16 %v3437, %v3437
      %v3458 = vpack.c.bf16 %v3438, %v3438
      %v3459 = vpack.c.bf16 %v3439, %v3439
      %v3460 = vpack.c.bf16 %v3440, %v3440
      %v3461 = vpack.c.bf16 %v3441, %v3441
      %v3462 = vpack.c.bf16 %v3442, %v3442
      %v3463 = vpack.c.bf16 %v3443, %v3443
      %v3464 = vpack.c.bf16 %v3444, %v3444
      %v3465 = vpack.c.bf16 %v3445, %v3445
      %v3466 = vpack.c.bf16 %v3446, %v3446
      %s3467 = scalar_lea.vmem %s3, 1152
      %v3468 = vld [vmem:[%s3467] sm:$0xf]
      %v3469 = vld [vmem:[%s3467 + $0x4] sm:$0xf]
      %v3470 = vld [vmem:[%s3467 + $0x8] sm:$0xf]
      %v3471 = vld [vmem:[%s3467 + $0xc] sm:$0xf]
      %v3472 = vld [vmem:[%s3467 + $0x10] sm:$0xf]
      %v3473 = vld [vmem:[%s3467 + $0x14] sm:$0xf]
      %v3474 = vld [vmem:[%s3467 + $0x18] sm:$0xf]
      %v3475 = vld [vmem:[%s3467 + $0x1c] sm:$0xf]
      %v3476 = vld [vmem:[%s3467 + $0x20] sm:$0xf]
      %v3477 = vld [vmem:[%s3467 + $0x24] sm:$0xf]
      %v3478 = vld [vmem:[%s3467 + $0x28] sm:$0xf]
      %v3479 = vld [vmem:[%s3467 + $0x2c] sm:$0xf]
      %v3480 = vld [vmem:[%s3467 + $0x30] sm:$0xf]
      %v3481 = vld [vmem:[%s3467 + $0x34] sm:$0xf]
      %v3482 = vld [vmem:[%s3467 + $0x38] sm:$0xf]
      %v3483 = vld [vmem:[%s3467 + $0x3c] sm:$0xf]
      %v3492 = vunpack.c.l.b16 %v3447
      %v3493 = vunpack.c.l.b16 %v3449
      %v3494 = vunpack.c.l.b16 %v3451
      %v3495 = vunpack.c.l.b16 %v3453
      %v3496 = vunpack.c.l.b16 %v3455
      %v3497 = vunpack.c.l.b16 %v3457
      %v3498 = vunpack.c.l.b16 %v3459
      %v3499 = vunpack.c.l.b16 %v3461
      %v3500 = vpack.c.b16 %v3493, %v3492
      %v3501 = vpack.c.b16 %v3495, %v3494
      %v3502 = vpack.c.b16 %v3497, %v3496
      %v3503 = vpack.c.b16 %v3499, %v3498
      %v3524 = vunpack.c.l.b16 %v3468
      %v3525 = vunpack.c.l.b16 %v3469
      %v3526 = vunpack.c.l.b16 %v3470
      %v3527 = vunpack.c.l.b16 %v3471
      %v3528 = vunpack.c.l.b16 %v3472
      %v3529 = vunpack.c.l.b16 %v3473
      %v3530 = vunpack.c.l.b16 %v3474
      %v3531 = vunpack.c.l.b16 %v3475
      %v3532 = vunpack.c.l.b16 %v3476
      %v3533 = vunpack.c.l.b16 %v3477
      %v3534 = vunpack.c.l.b16 %v3478
      %v3535 = vunpack.c.l.b16 %v3479
      %v3536 = vunpack.c.l.b16 %v3480
      %v3537 = vunpack.c.l.b16 %v3481
      %v3538 = vunpack.c.l.b16 %v3482
      %v3539 = vunpack.c.l.b16 %v3483
      %v3540 = vpack.c.b16 %v3525, %v3524
      %v3541 = vpack.c.b16 %v3527, %v3526
      %v3542 = vpack.c.b16 %v3529, %v3528
      %v3543 = vpack.c.b16 %v3531, %v3530
      %v3544 = vpack.c.b16 %v3533, %v3532
      %v3545 = vpack.c.b16 %v3535, %v3534
      %v3546 = vpack.c.b16 %v3537, %v3536
      %v3547 = vpack.c.b16 %v3539, %v3538
      %3556 = vmatpush.bf16.msra.mxu0 %v3547
      %3557 = vmatpush.bf16.msra.mxu0 %v3546
      %3558 = vmatpush.bf16.msra.mxu0 %v3545
      %3559 = vmatpush.bf16.msra.mxu0 %v3544
      %3560 = vmatpush.bf16.msra.mxu0 %v3543
      %3561 = vmatpush.bf16.msra.mxu0 %v3542
      %3562 = vmatpush.bf16.msra.mxu0 %v3541
      %3563 = vmatpush.bf16.msra.mxu0 %v3540
      %3564 = vmatmul.bf16.gmra.mxu0 %v3500
      %v3565 = vpop.f32.mrf.mxu0
      %v3566 = vadd.f32 0.0, %v3565
      %v3567 = vpop.f32.mrf.mxu0
      %v3568 = vadd.f32 0.0, %v3567
      %3569 = vmatmul.bf16.gmra.mxu0 %v3501
      %v3570 = vpop.f32.mrf.mxu0
      %v3571 = vadd.f32 0.0, %v3570
      %v3572 = vpop.f32.mrf.mxu0
      %v3573 = vadd.f32 0.0, %v3572
      %3574 = vmatmul.bf16.gmra.mxu0 %v3502
      %v3575 = vpop.f32.mrf.mxu0
      %v3576 = vadd.f32 0.0, %v3575
      %v3577 = vpop.f32.mrf.mxu0
      %v3578 = vadd.f32 0.0, %v3577
      %3579 = vmatmul.bf16.gmra.mxu0 %v3503
      %v3580 = vpop.f32.mrf.mxu0
      %v3581 = vadd.f32 0.0, %v3580
      %v3582 = vpop.f32.mrf.mxu0
      %v3583 = vadd.f32 0.0, %v3582
      %3584 = vdwg.mxu0
      %v3585 = vadd.f32 %v3262, %v3566
      %v3586 = vadd.f32 %v3263, %v3568
      %v3587 = vadd.f32 %v3264, %v3571
      %v3588 = vadd.f32 %v3265, %v3573
      %v3589 = vadd.f32 %v3266, %v3576
      %v3590 = vadd.f32 %v3267, %v3578
      %v3591 = vadd.f32 %v3268, %v3581
      %v3592 = vadd.f32 %v3269, %v3583
      %v3594 = vshrl.u32 %v3447, 16
      %v3596 = vrot.slane %v3594, 4
      %v3597 = vshll.u32 %v3447, 16
      %v3599 = vrot.slane %v3597, 5
      %v3600 = vor.u32 %v3596, %v3599
      %v3601 = vrot.slane %v3600, 4
      %v3603 = vshll.u32 %v3448, 16
      %v3605 = vrot.slane %v3603, 5
      %v3606 = vsel %vm698, %v3601, %v3605
      %v3608 = vshrl.u32 %v3449, 16
      %v3610 = vrot.slane %v3608, 4
      %v3611 = vshll.u32 %v3449, 16
      %v3613 = vrot.slane %v3611, 5
      %v3614 = vor.u32 %v3610, %v3613
      %v3615 = vrot.slane %v3614, 4
      %v3617 = vshll.u32 %v3450, 16
      %v3619 = vrot.slane %v3617, 5
      %v3620 = vsel %vm698, %v3615, %v3619
      %v3622 = vshrl.u32 %v3451, 16
      %v3624 = vrot.slane %v3622, 4
      %v3625 = vshll.u32 %v3451, 16
      %v3627 = vrot.slane %v3625, 5
      %v3628 = vor.u32 %v3624, %v3627
      %v3629 = vrot.slane %v3628, 4
      %v3631 = vshll.u32 %v3452, 16
      %v3633 = vrot.slane %v3631, 5
      %v3634 = vsel %vm698, %v3629, %v3633
      %v3636 = vshrl.u32 %v3453, 16
      %v3638 = vrot.slane %v3636, 4
      %v3639 = vshll.u32 %v3453, 16
      %v3641 = vrot.slane %v3639, 5
      %v3642 = vor.u32 %v3638, %v3641
      %v3643 = vrot.slane %v3642, 4
      %v3645 = vshll.u32 %v3454, 16
      %v3647 = vrot.slane %v3645, 5
      %v3648 = vsel %vm698, %v3643, %v3647
      %v3650 = vshrl.u32 %v3455, 16
      %v3652 = vrot.slane %v3650, 4
      %v3653 = vshll.u32 %v3455, 16
      %v3655 = vrot.slane %v3653, 5
      %v3656 = vor.u32 %v3652, %v3655
      %v3657 = vrot.slane %v3656, 4
      %v3659 = vshll.u32 %v3456, 16
      %v3661 = vrot.slane %v3659, 5
      %v3662 = vsel %vm698, %v3657, %v3661
      %v3664 = vshrl.u32 %v3457, 16
      %v3666 = vrot.slane %v3664, 4
      %v3667 = vshll.u32 %v3457, 16
      %v3669 = vrot.slane %v3667, 5
      %v3670 = vor.u32 %v3666, %v3669
      %v3671 = vrot.slane %v3670, 4
      %v3673 = vshll.u32 %v3458, 16
      %v3675 = vrot.slane %v3673, 5
      %v3676 = vsel %vm698, %v3671, %v3675
      %v3678 = vshrl.u32 %v3459, 16
      %v3680 = vrot.slane %v3678, 4
      %v3681 = vshll.u32 %v3459, 16
      %v3683 = vrot.slane %v3681, 5
      %v3684 = vor.u32 %v3680, %v3683
      %v3685 = vrot.slane %v3684, 4
      %v3687 = vshll.u32 %v3460, 16
      %v3689 = vrot.slane %v3687, 5
      %v3690 = vsel %vm698, %v3685, %v3689
      %v3692 = vshrl.u32 %v3461, 16
      %v3694 = vrot.slane %v3692, 4
      %v3695 = vshll.u32 %v3461, 16
      %v3697 = vrot.slane %v3695, 5
      %v3698 = vor.u32 %v3694, %v3697
      %v3699 = vrot.slane %v3698, 4
      %v3701 = vshll.u32 %v3462, 16
      %v3703 = vrot.slane %v3701, 5
      %v3704 = vsel %vm698, %v3699, %v3703
      %s3705 = scalar_lea.vmem %s3, 1216
      %v3706 = vld [vmem:[%s3705] sm:$0xf]
      %v3707 = vld [vmem:[%s3705 + $0x4] sm:$0xf]
      %v3708 = vld [vmem:[%s3705 + $0x8] sm:$0xf]
      %v3709 = vld [vmem:[%s3705 + $0xc] sm:$0xf]
      %v3710 = vld [vmem:[%s3705 + $0x10] sm:$0xf]
      %v3711 = vld [vmem:[%s3705 + $0x14] sm:$0xf]
      %v3712 = vld [vmem:[%s3705 + $0x18] sm:$0xf]
      %v3713 = vld [vmem:[%s3705 + $0x1c] sm:$0xf]
      %v3714 = vld [vmem:[%s3705 + $0x20] sm:$0xf]
      %v3715 = vld [vmem:[%s3705 + $0x24] sm:$0xf]
      %v3716 = vld [vmem:[%s3705 + $0x28] sm:$0xf]
      %v3717 = vld [vmem:[%s3705 + $0x2c] sm:$0xf]
      %v3718 = vld [vmem:[%s3705 + $0x30] sm:$0xf]
      %v3719 = vld [vmem:[%s3705 + $0x34] sm:$0xf]
      %v3720 = vld [vmem:[%s3705 + $0x38] sm:$0xf]
      %v3721 = vld [vmem:[%s3705 + $0x3c] sm:$0xf]
      %v3722 = vunpack.c.l.b16 %v3606
      %v3723 = vunpack.c.l.b16 %v3620
      %v3724 = vunpack.c.l.b16 %v3634
      %v3725 = vunpack.c.l.b16 %v3648
      %v3726 = vunpack.c.l.b16 %v3662
      %v3727 = vunpack.c.l.b16 %v3676
      %v3728 = vunpack.c.l.b16 %v3690
      %v3729 = vunpack.c.l.b16 %v3704
      %v3730 = vpack.c.b16 %v3723, %v3722
      %v3731 = vpack.c.b16 %v3725, %v3724
      %v3732 = vpack.c.b16 %v3727, %v3726
      %v3733 = vpack.c.b16 %v3729, %v3728
      %v3754 = vunpack.c.l.b16 %v3706
      %v3755 = vunpack.c.l.b16 %v3707
      %v3756 = vunpack.c.l.b16 %v3708
      %v3757 = vunpack.c.l.b16 %v3709
      %v3758 = vunpack.c.l.b16 %v3710
      %v3759 = vunpack.c.l.b16 %v3711
      %v3760 = vunpack.c.l.b16 %v3712
      %v3761 = vunpack.c.l.b16 %v3713
      %v3762 = vunpack.c.l.b16 %v3714
      %v3763 = vunpack.c.l.b16 %v3715
      %v3764 = vunpack.c.l.b16 %v3716
      %v3765 = vunpack.c.l.b16 %v3717
      %v3766 = vunpack.c.l.b16 %v3718
      %v3767 = vunpack.c.l.b16 %v3719
      %v3768 = vunpack.c.l.b16 %v3720
      %v3769 = vunpack.c.l.b16 %v3721
      %v3770 = vpack.c.b16 %v3755, %v3754
      %v3771 = vpack.c.b16 %v3757, %v3756
      %v3772 = vpack.c.b16 %v3759, %v3758
      %v3773 = vpack.c.b16 %v3761, %v3760
      %v3774 = vpack.c.b16 %v3763, %v3762
      %v3775 = vpack.c.b16 %v3765, %v3764
      %v3776 = vpack.c.b16 %v3767, %v3766
      %v3777 = vpack.c.b16 %v3769, %v3768
      %3786 = vmatpush.bf16.msra.mxu0 %v3777
      %3787 = vmatpush.bf16.msra.mxu0 %v3776
      %3788 = vmatpush.bf16.msra.mxu0 %v3775
      %3789 = vmatpush.bf16.msra.mxu0 %v3774
      %3790 = vmatpush.bf16.msra.mxu0 %v3773
      %3791 = vmatpush.bf16.msra.mxu0 %v3772
      %3792 = vmatpush.bf16.msra.mxu0 %v3771
      %3793 = vmatpush.bf16.msra.mxu0 %v3770
      %3794 = vmatmul.bf16.gmra.mxu0 %v3730
      %v3795 = vpop.f32.mrf.mxu0
      %v3796 = vadd.f32 0.0, %v3795
      %v3797 = vpop.f32.mrf.mxu0
      %v3798 = vadd.f32 0.0, %v3797
      %3799 = vmatmul.bf16.gmra.mxu0 %v3731
      %v3800 = vpop.f32.mrf.mxu0
      %v3801 = vadd.f32 0.0, %v3800
      %v3802 = vpop.f32.mrf.mxu0
      %v3803 = vadd.f32 0.0, %v3802
      %3804 = vmatmul.bf16.gmra.mxu0 %v3732
      %v3805 = vpop.f32.mrf.mxu0
      %v3806 = vadd.f32 0.0, %v3805
      %v3807 = vpop.f32.mrf.mxu0
      %v3808 = vadd.f32 0.0, %v3807
      %3809 = vmatmul.bf16.gmra.mxu0 %v3733
      %v3810 = vpop.f32.mrf.mxu0
      %v3811 = vadd.f32 0.0, %v3810
      %v3812 = vpop.f32.mrf.mxu0
      %v3813 = vadd.f32 0.0, %v3812
      %3814 = vdwg.mxu0
      %v3815 = vadd.f32 %v3585, %v3796
      %v3816 = vadd.f32 %v3586, %v3798
      %v3817 = vadd.f32 %v3587, %v3801
      %v3818 = vadd.f32 %v3588, %v3803
      %v3819 = vadd.f32 %v3589, %v3806
      %v3820 = vadd.f32 %v3590, %v3808
      %v3821 = vadd.f32 %v3591, %v3811
      %v3822 = vadd.f32 %v3592, %v3813
      %v3831 = vrot.slane %v3447, 5
      %v3832 = vrot.slane %v3831, 4
      %v3833 = vrot.slane %v3448, 5
      %v3834 = vsel %vm1032, %v3832, %v3833
      %v3835 = vrot.slane %v3449, 5
      %v3836 = vrot.slane %v3835, 4
      %v3837 = vrot.slane %v3450, 5
      %v3838 = vsel %vm1032, %v3836, %v3837
      %v3839 = vrot.slane %v3451, 5
      %v3840 = vrot.slane %v3839, 4
      %v3841 = vrot.slane %v3452, 5
      %v3842 = vsel %vm1032, %v3840, %v3841
      %v3843 = vrot.slane %v3453, 5
      %v3844 = vrot.slane %v3843, 4
      %v3845 = vrot.slane %v3454, 5
      %v3846 = vsel %vm1032, %v3844, %v3845
      %v3847 = vrot.slane %v3455, 5
      %v3848 = vrot.slane %v3847, 4
      %v3849 = vrot.slane %v3456, 5
      %v3850 = vsel %vm1032, %v3848, %v3849
      %v3851 = vrot.slane %v3457, 5
      %v3852 = vrot.slane %v3851, 4
      %v3853 = vrot.slane %v3458, 5
      %v3854 = vsel %vm1032, %v3852, %v3853
      %v3855 = vrot.slane %v3459, 5
      %v3856 = vrot.slane %v3855, 4
      %v3857 = vrot.slane %v3460, 5
      %v3858 = vsel %vm1032, %v3856, %v3857
      %v3859 = vrot.slane %v3461, 5
      %v3860 = vrot.slane %v3859, 4
      %v3861 = vrot.slane %v3462, 5
      %v3862 = vsel %vm1032, %v3860, %v3861
      %s3863 = scalar_lea.vmem %s3, 1280
      %v3864 = vld [vmem:[%s3863] sm:$0xf]
      %v3865 = vld [vmem:[%s3863 + $0x4] sm:$0xf]
      %v3866 = vld [vmem:[%s3863 + $0x8] sm:$0xf]
      %v3867 = vld [vmem:[%s3863 + $0xc] sm:$0xf]
      %v3868 = vld [vmem:[%s3863 + $0x10] sm:$0xf]
      %v3869 = vld [vmem:[%s3863 + $0x14] sm:$0xf]
      %v3870 = vld [vmem:[%s3863 + $0x18] sm:$0xf]
      %v3871 = vld [vmem:[%s3863 + $0x1c] sm:$0xf]
      %v3872 = vld [vmem:[%s3863 + $0x20] sm:$0xf]
      %v3873 = vld [vmem:[%s3863 + $0x24] sm:$0xf]
      %v3874 = vld [vmem:[%s3863 + $0x28] sm:$0xf]
      %v3875 = vld [vmem:[%s3863 + $0x2c] sm:$0xf]
      %v3876 = vld [vmem:[%s3863 + $0x30] sm:$0xf]
      %v3877 = vld [vmem:[%s3863 + $0x34] sm:$0xf]
      %v3878 = vld [vmem:[%s3863 + $0x38] sm:$0xf]
      %v3879 = vld [vmem:[%s3863 + $0x3c] sm:$0xf]
      %v3880 = vunpack.c.l.b16 %v3834
      %v3881 = vunpack.c.l.b16 %v3838
      %v3882 = vunpack.c.l.b16 %v3842
      %v3883 = vunpack.c.l.b16 %v3846
      %v3884 = vunpack.c.l.b16 %v3850
      %v3885 = vunpack.c.l.b16 %v3854
      %v3886 = vunpack.c.l.b16 %v3858
      %v3887 = vunpack.c.l.b16 %v3862
      %v3888 = vpack.c.b16 %v3881, %v3880
      %v3889 = vpack.c.b16 %v3883, %v3882
      %v3890 = vpack.c.b16 %v3885, %v3884
      %v3891 = vpack.c.b16 %v3887, %v3886
      %v3912 = vunpack.c.l.b16 %v3864
      %v3913 = vunpack.c.l.b16 %v3865
      %v3914 = vunpack.c.l.b16 %v3866
      %v3915 = vunpack.c.l.b16 %v3867
      %v3916 = vunpack.c.l.b16 %v3868
      %v3917 = vunpack.c.l.b16 %v3869
      %v3918 = vunpack.c.l.b16 %v3870
      %v3919 = vunpack.c.l.b16 %v3871
      %v3920 = vunpack.c.l.b16 %v3872
      %v3921 = vunpack.c.l.b16 %v3873
      %v3922 = vunpack.c.l.b16 %v3874
      %v3923 = vunpack.c.l.b16 %v3875
      %v3924 = vunpack.c.l.b16 %v3876
      %v3925 = vunpack.c.l.b16 %v3877
      %v3926 = vunpack.c.l.b16 %v3878
      %v3927 = vunpack.c.l.b16 %v3879
      %v3928 = vpack.c.b16 %v3913, %v3912
      %v3929 = vpack.c.b16 %v3915, %v3914
      %v3930 = vpack.c.b16 %v3917, %v3916
      %v3931 = vpack.c.b16 %v3919, %v3918
      %v3932 = vpack.c.b16 %v3921, %v3920
      %v3933 = vpack.c.b16 %v3923, %v3922
      %v3934 = vpack.c.b16 %v3925, %v3924
      %v3935 = vpack.c.b16 %v3927, %v3926
      %3944 = vmatpush.bf16.msra.mxu0 %v3935
      %3945 = vmatpush.bf16.msra.mxu0 %v3934
      %3946 = vmatpush.bf16.msra.mxu0 %v3933
      %3947 = vmatpush.bf16.msra.mxu0 %v3932
      %3948 = vmatpush.bf16.msra.mxu0 %v3931
      %3949 = vmatpush.bf16.msra.mxu0 %v3930
      %3950 = vmatpush.bf16.msra.mxu0 %v3929
      %3951 = vmatpush.bf16.msra.mxu0 %v3928
      %3952 = vmatmul.bf16.gmra.mxu0 %v3888
      %v3953 = vpop.f32.mrf.mxu0
      %v3954 = vadd.f32 0.0, %v3953
      %v3955 = vpop.f32.mrf.mxu0
      %v3956 = vadd.f32 0.0, %v3955
      %3957 = vmatmul.bf16.gmra.mxu0 %v3889
      %v3958 = vpop.f32.mrf.mxu0
      %v3959 = vadd.f32 0.0, %v3958
      %v3960 = vpop.f32.mrf.mxu0
      %v3961 = vadd.f32 0.0, %v3960
      %3962 = vmatmul.bf16.gmra.mxu0 %v3890
      %v3963 = vpop.f32.mrf.mxu0
      %v3964 = vadd.f32 0.0, %v3963
      %v3965 = vpop.f32.mrf.mxu0
      %v3966 = vadd.f32 0.0, %v3965
      %3967 = vmatmul.bf16.gmra.mxu0 %v3891
      %v3968 = vpop.f32.mrf.mxu0
      %v3969 = vadd.f32 0.0, %v3968
      %v3970 = vpop.f32.mrf.mxu0
      %v3971 = vadd.f32 0.0, %v3970
      %3972 = vdwg.mxu0
      %v3973 = vadd.f32 %v3815, %v3954
      %v3974 = vadd.f32 %v3816, %v3956
      %v3975 = vadd.f32 %v3817, %v3959
      %v3976 = vadd.f32 %v3818, %v3961
      %v3977 = vadd.f32 %v3819, %v3964
      %v3978 = vadd.f32 %v3820, %v3966
      %v3979 = vadd.f32 %v3821, %v3969
      %v3980 = vadd.f32 %v3822, %v3971
      %s3981 = scalar_lea.vmem %s3, 1344
      %v3982 = vld [vmem:[%s3981] sm:$0xf]
      %v3983 = vld [vmem:[%s3981 + $0x4] sm:$0xf]
      %v3984 = vld [vmem:[%s3981 + $0x8] sm:$0xf]
      %v3985 = vld [vmem:[%s3981 + $0xc] sm:$0xf]
      %v3986 = vld [vmem:[%s3981 + $0x10] sm:$0xf]
      %v3987 = vld [vmem:[%s3981 + $0x14] sm:$0xf]
      %v3988 = vld [vmem:[%s3981 + $0x18] sm:$0xf]
      %v3989 = vld [vmem:[%s3981 + $0x1c] sm:$0xf]
      %v3990 = vld [vmem:[%s3981 + $0x20] sm:$0xf]
      %v3991 = vld [vmem:[%s3981 + $0x24] sm:$0xf]
      %v3992 = vld [vmem:[%s3981 + $0x28] sm:$0xf]
      %v3993 = vld [vmem:[%s3981 + $0x2c] sm:$0xf]
      %v3994 = vld [vmem:[%s3981 + $0x30] sm:$0xf]
      %v3995 = vld [vmem:[%s3981 + $0x34] sm:$0xf]
      %v3996 = vld [vmem:[%s3981 + $0x38] sm:$0xf]
      %v3997 = vld [vmem:[%s3981 + $0x3c] sm:$0xf]
      %v3999 = vunpack.c.l.b16 %v3463
      %v4000 = vpack.c.b16 %v3494, %v3493
      %v4001 = vpack.c.b16 %v3496, %v3495
      %v4002 = vpack.c.b16 %v3498, %v3497
      %v4003 = vpack.c.b16 %v3999, %v3499
      %v4024 = vunpack.c.l.b16 %v3982
      %v4025 = vunpack.c.l.b16 %v3983
      %v4026 = vunpack.c.l.b16 %v3984
      %v4027 = vunpack.c.l.b16 %v3985
      %v4028 = vunpack.c.l.b16 %v3986
      %v4029 = vunpack.c.l.b16 %v3987
      %v4030 = vunpack.c.l.b16 %v3988
      %v4031 = vunpack.c.l.b16 %v3989
      %v4032 = vunpack.c.l.b16 %v3990
      %v4033 = vunpack.c.l.b16 %v3991
      %v4034 = vunpack.c.l.b16 %v3992
      %v4035 = vunpack.c.l.b16 %v3993
      %v4036 = vunpack.c.l.b16 %v3994
      %v4037 = vunpack.c.l.b16 %v3995
      %v4038 = vunpack.c.l.b16 %v3996
      %v4039 = vunpack.c.l.b16 %v3997
      %v4040 = vpack.c.b16 %v4025, %v4024
      %v4041 = vpack.c.b16 %v4027, %v4026
      %v4042 = vpack.c.b16 %v4029, %v4028
      %v4043 = vpack.c.b16 %v4031, %v4030
      %v4044 = vpack.c.b16 %v4033, %v4032
      %v4045 = vpack.c.b16 %v4035, %v4034
      %v4046 = vpack.c.b16 %v4037, %v4036
      %v4047 = vpack.c.b16 %v4039, %v4038
      %4056 = vmatpush.bf16.msra.mxu0 %v4047
      %4057 = vmatpush.bf16.msra.mxu0 %v4046
      %4058 = vmatpush.bf16.msra.mxu0 %v4045
      %4059 = vmatpush.bf16.msra.mxu0 %v4044
      %4060 = vmatpush.bf16.msra.mxu0 %v4043
      %4061 = vmatpush.bf16.msra.mxu0 %v4042
      %4062 = vmatpush.bf16.msra.mxu0 %v4041
      %4063 = vmatpush.bf16.msra.mxu0 %v4040
      %4064 = vmatmul.bf16.gmra.mxu0 %v4000
      %v4065 = vpop.f32.mrf.mxu0
      %v4066 = vadd.f32 0.0, %v4065
      %v4067 = vpop.f32.mrf.mxu0
      %v4068 = vadd.f32 0.0, %v4067
      %4069 = vmatmul.bf16.gmra.mxu0 %v4001
      %v4070 = vpop.f32.mrf.mxu0
      %v4071 = vadd.f32 0.0, %v4070
      %v4072 = vpop.f32.mrf.mxu0
      %v4073 = vadd.f32 0.0, %v4072
      %4074 = vmatmul.bf16.gmra.mxu0 %v4002
      %v4075 = vpop.f32.mrf.mxu0
      %v4076 = vadd.f32 0.0, %v4075
      %v4077 = vpop.f32.mrf.mxu0
      %v4078 = vadd.f32 0.0, %v4077
      %4079 = vmatmul.bf16.gmra.mxu0 %v4003
      %v4080 = vpop.f32.mrf.mxu0
      %v4081 = vadd.f32 0.0, %v4080
      %v4082 = vpop.f32.mrf.mxu0
      %v4083 = vadd.f32 0.0, %v4082
      %4084 = vdwg.mxu0
      %v4085 = vadd.f32 %v3973, %v4066
      %v4086 = vadd.f32 %v3974, %v4068
      %v4087 = vadd.f32 %v3975, %v4071
      %v4088 = vadd.f32 %v3976, %v4073
      %v4089 = vadd.f32 %v3977, %v4076
      %v4090 = vadd.f32 %v3978, %v4078
      %v4091 = vadd.f32 %v3979, %v4081
      %v4092 = vadd.f32 %v3980, %v4083
      %v4094 = vshrl.u32 %v3463, 16
      %v4096 = vrot.slane %v4094, 4
      %v4097 = vshll.u32 %v3463, 16
      %v4099 = vrot.slane %v4097, 5
      %v4100 = vor.u32 %v4096, %v4099
      %v4101 = vrot.slane %v4100, 4
      %v4103 = vshll.u32 %v3464, 16
      %v4105 = vrot.slane %v4103, 5
      %v4106 = vsel %vm698, %v4101, %v4105
      %s4107 = scalar_lea.vmem %s3, 1408
      %v4108 = vld [vmem:[%s4107] sm:$0xf]
      %v4109 = vld [vmem:[%s4107 + $0x4] sm:$0xf]
      %v4110 = vld [vmem:[%s4107 + $0x8] sm:$0xf]
      %v4111 = vld [vmem:[%s4107 + $0xc] sm:$0xf]
      %v4112 = vld [vmem:[%s4107 + $0x10] sm:$0xf]
      %v4113 = vld [vmem:[%s4107 + $0x14] sm:$0xf]
      %v4114 = vld [vmem:[%s4107 + $0x18] sm:$0xf]
      %v4115 = vld [vmem:[%s4107 + $0x1c] sm:$0xf]
      %v4116 = vld [vmem:[%s4107 + $0x20] sm:$0xf]
      %v4117 = vld [vmem:[%s4107 + $0x24] sm:$0xf]
      %v4118 = vld [vmem:[%s4107 + $0x28] sm:$0xf]
      %v4119 = vld [vmem:[%s4107 + $0x2c] sm:$0xf]
      %v4120 = vld [vmem:[%s4107 + $0x30] sm:$0xf]
      %v4121 = vld [vmem:[%s4107 + $0x34] sm:$0xf]
      %v4122 = vld [vmem:[%s4107 + $0x38] sm:$0xf]
      %v4123 = vld [vmem:[%s4107 + $0x3c] sm:$0xf]
      %v4124 = vunpack.c.l.b16 %v4106
      %v4125 = vpack.c.b16 %v3724, %v3723
      %v4126 = vpack.c.b16 %v3726, %v3725
      %v4127 = vpack.c.b16 %v3728, %v3727
      %v4128 = vpack.c.b16 %v4124, %v3729
      %v4149 = vunpack.c.l.b16 %v4108
      %v4150 = vunpack.c.l.b16 %v4109
      %v4151 = vunpack.c.l.b16 %v4110
      %v4152 = vunpack.c.l.b16 %v4111
      %v4153 = vunpack.c.l.b16 %v4112
      %v4154 = vunpack.c.l.b16 %v4113
      %v4155 = vunpack.c.l.b16 %v4114
      %v4156 = vunpack.c.l.b16 %v4115
      %v4157 = vunpack.c.l.b16 %v4116
      %v4158 = vunpack.c.l.b16 %v4117
      %v4159 = vunpack.c.l.b16 %v4118
      %v4160 = vunpack.c.l.b16 %v4119
      %v4161 = vunpack.c.l.b16 %v4120
      %v4162 = vunpack.c.l.b16 %v4121
      %v4163 = vunpack.c.l.b16 %v4122
      %v4164 = vunpack.c.l.b16 %v4123
      %v4165 = vpack.c.b16 %v4150, %v4149
      %v4166 = vpack.c.b16 %v4152, %v4151
      %v4167 = vpack.c.b16 %v4154, %v4153
      %v4168 = vpack.c.b16 %v4156, %v4155
      %v4169 = vpack.c.b16 %v4158, %v4157
      %v4170 = vpack.c.b16 %v4160, %v4159
      %v4171 = vpack.c.b16 %v4162, %v4161
      %v4172 = vpack.c.b16 %v4164, %v4163
      %4181 = vmatpush.bf16.msra.mxu0 %v4172
      %4182 = vmatpush.bf16.msra.mxu0 %v4171
      %4183 = vmatpush.bf16.msra.mxu0 %v4170
      %4184 = vmatpush.bf16.msra.mxu0 %v4169
      %4185 = vmatpush.bf16.msra.mxu0 %v4168
      %4186 = vmatpush.bf16.msra.mxu0 %v4167
      %4187 = vmatpush.bf16.msra.mxu0 %v4166
      %4188 = vmatpush.bf16.msra.mxu0 %v4165
      %4189 = vmatmul.bf16.gmra.mxu0 %v4125
      %v4190 = vpop.f32.mrf.mxu0
      %v4191 = vadd.f32 0.0, %v4190
      %v4192 = vpop.f32.mrf.mxu0
      %v4193 = vadd.f32 0.0, %v4192
      %4194 = vmatmul.bf16.gmra.mxu0 %v4126
      %v4195 = vpop.f32.mrf.mxu0
      %v4196 = vadd.f32 0.0, %v4195
      %v4197 = vpop.f32.mrf.mxu0
      %v4198 = vadd.f32 0.0, %v4197
      %4199 = vmatmul.bf16.gmra.mxu0 %v4127
      %v4200 = vpop.f32.mrf.mxu0
      %v4201 = vadd.f32 0.0, %v4200
      %v4202 = vpop.f32.mrf.mxu0
      %v4203 = vadd.f32 0.0, %v4202
      %4204 = vmatmul.bf16.gmra.mxu0 %v4128
      %v4205 = vpop.f32.mrf.mxu0
      %v4206 = vadd.f32 0.0, %v4205
      %v4207 = vpop.f32.mrf.mxu0
      %v4208 = vadd.f32 0.0, %v4207
      %4209 = vdwg.mxu0
      %v4210 = vadd.f32 %v4085, %v4191
      %v4211 = vadd.f32 %v4086, %v4193
      %v4212 = vadd.f32 %v4087, %v4196
      %v4213 = vadd.f32 %v4088, %v4198
      %v4214 = vadd.f32 %v4089, %v4201
      %v4215 = vadd.f32 %v4090, %v4203
      %v4216 = vadd.f32 %v4091, %v4206
      %v4217 = vadd.f32 %v4092, %v4208
      %v4219 = vrot.slane %v3463, 5
      %v4220 = vrot.slane %v4219, 4
      %v4221 = vrot.slane %v3464, 5
      %v4222 = vsel %vm1032, %v4220, %v4221
      %s4223 = scalar_lea.vmem %s3, 1472
      %v4224 = vld [vmem:[%s4223] sm:$0xf]
      %v4225 = vld [vmem:[%s4223 + $0x4] sm:$0xf]
      %v4226 = vld [vmem:[%s4223 + $0x8] sm:$0xf]
      %v4227 = vld [vmem:[%s4223 + $0xc] sm:$0xf]
      %v4228 = vld [vmem:[%s4223 + $0x10] sm:$0xf]
      %v4229 = vld [vmem:[%s4223 + $0x14] sm:$0xf]
      %v4230 = vld [vmem:[%s4223 + $0x18] sm:$0xf]
      %v4231 = vld [vmem:[%s4223 + $0x1c] sm:$0xf]
      %v4232 = vld [vmem:[%s4223 + $0x20] sm:$0xf]
      %v4233 = vld [vmem:[%s4223 + $0x24] sm:$0xf]
      %v4234 = vld [vmem:[%s4223 + $0x28] sm:$0xf]
      %v4235 = vld [vmem:[%s4223 + $0x2c] sm:$0xf]
      %v4236 = vld [vmem:[%s4223 + $0x30] sm:$0xf]
      %v4237 = vld [vmem:[%s4223 + $0x34] sm:$0xf]
      %v4238 = vld [vmem:[%s4223 + $0x38] sm:$0xf]
      %v4239 = vld [vmem:[%s4223 + $0x3c] sm:$0xf]
      %v4240 = vunpack.c.l.b16 %v4222
      %v4241 = vpack.c.b16 %v3882, %v3881
      %v4242 = vpack.c.b16 %v3884, %v3883
      %v4243 = vpack.c.b16 %v3886, %v3885
      %v4244 = vpack.c.b16 %v4240, %v3887
      %v4265 = vunpack.c.l.b16 %v4224
      %v4266 = vunpack.c.l.b16 %v4225
      %v4267 = vunpack.c.l.b16 %v4226
      %v4268 = vunpack.c.l.b16 %v4227
      %v4269 = vunpack.c.l.b16 %v4228
      %v4270 = vunpack.c.l.b16 %v4229
      %v4271 = vunpack.c.l.b16 %v4230
      %v4272 = vunpack.c.l.b16 %v4231
      %v4273 = vunpack.c.l.b16 %v4232
      %v4274 = vunpack.c.l.b16 %v4233
      %v4275 = vunpack.c.l.b16 %v4234
      %v4276 = vunpack.c.l.b16 %v4235
      %v4277 = vunpack.c.l.b16 %v4236
      %v4278 = vunpack.c.l.b16 %v4237
      %v4279 = vunpack.c.l.b16 %v4238
      %v4280 = vunpack.c.l.b16 %v4239
      %v4281 = vpack.c.b16 %v4266, %v4265
      %v4282 = vpack.c.b16 %v4268, %v4267
      %v4283 = vpack.c.b16 %v4270, %v4269
      %v4284 = vpack.c.b16 %v4272, %v4271
      %v4285 = vpack.c.b16 %v4274, %v4273
      %v4286 = vpack.c.b16 %v4276, %v4275
      %v4287 = vpack.c.b16 %v4278, %v4277
      %v4288 = vpack.c.b16 %v4280, %v4279
      %4297 = vmatpush.bf16.msra.mxu0 %v4288
      %4298 = vmatpush.bf16.msra.mxu0 %v4287
      %4299 = vmatpush.bf16.msra.mxu0 %v4286
      %4300 = vmatpush.bf16.msra.mxu0 %v4285
      %4301 = vmatpush.bf16.msra.mxu0 %v4284
      %4302 = vmatpush.bf16.msra.mxu0 %v4283
      %4303 = vmatpush.bf16.msra.mxu0 %v4282
      %4304 = vmatpush.bf16.msra.mxu0 %v4281
      %4305 = vmatmul.bf16.gmra.mxu0 %v4241
      %v4306 = vpop.f32.mrf.mxu0
      %v4307 = vadd.f32 0.0, %v4306
      %v4308 = vpop.f32.mrf.mxu0
      %v4309 = vadd.f32 0.0, %v4308
      %4310 = vmatmul.bf16.gmra.mxu0 %v4242
      %v4311 = vpop.f32.mrf.mxu0
      %v4312 = vadd.f32 0.0, %v4311
      %v4313 = vpop.f32.mrf.mxu0
      %v4314 = vadd.f32 0.0, %v4313
      %4315 = vmatmul.bf16.gmra.mxu0 %v4243
      %v4316 = vpop.f32.mrf.mxu0
      %v4317 = vadd.f32 0.0, %v4316
      %v4318 = vpop.f32.mrf.mxu0
      %v4319 = vadd.f32 0.0, %v4318
      %4320 = vmatmul.bf16.gmra.mxu0 %v4244
      %v4321 = vpop.f32.mrf.mxu0
      %v4322 = vadd.f32 0.0, %v4321
      %v4323 = vpop.f32.mrf.mxu0
      %v4324 = vadd.f32 0.0, %v4323
      %4325 = vdwg.mxu0
      %v4326 = vadd.f32 %v4210, %v4307
      %v4327 = vadd.f32 %v4211, %v4309
      %v4328 = vadd.f32 %v4212, %v4312
      %v4329 = vadd.f32 %v4213, %v4314
      %v4330 = vadd.f32 %v4214, %v4317
      %v4331 = vadd.f32 %v4215, %v4319
      %v4332 = vadd.f32 %v4216, %v4322
      %v4333 = vadd.f32 %v4217, %v4324
      %s4334 = scalar_lea.vmem %s3, 1536
      %v4335 = vld [vmem:[%s4334] sm:$0xf]
      %v4336 = vld [vmem:[%s4334 + $0x4] sm:$0xf]
      %v4337 = vld [vmem:[%s4334 + $0x8] sm:$0xf]
      %v4338 = vld [vmem:[%s4334 + $0xc] sm:$0xf]
      %v4339 = vld [vmem:[%s4334 + $0x10] sm:$0xf]
      %v4340 = vld [vmem:[%s4334 + $0x14] sm:$0xf]
      %v4341 = vld [vmem:[%s4334 + $0x18] sm:$0xf]
      %v4342 = vld [vmem:[%s4334 + $0x1c] sm:$0xf]
      %v4343 = vld [vmem:[%s4334 + $0x20] sm:$0xf]
      %v4344 = vld [vmem:[%s4334 + $0x24] sm:$0xf]
      %v4345 = vld [vmem:[%s4334 + $0x28] sm:$0xf]
      %v4346 = vld [vmem:[%s4334 + $0x2c] sm:$0xf]
      %v4347 = vld [vmem:[%s4334 + $0x30] sm:$0xf]
      %v4348 = vld [vmem:[%s4334 + $0x34] sm:$0xf]
      %v4349 = vld [vmem:[%s4334 + $0x38] sm:$0xf]
      %v4350 = vld [vmem:[%s4334 + $0x3c] sm:$0xf]
      %v4352 = vunpack.c.l.b16 %v3465
      %v4353 = vpack.c.b16 %v4352, %v3999
      %v4371 = vunpack.c.l.b16 %v4335
      %v4372 = vunpack.c.l.b16 %v4336
      %v4373 = vunpack.c.l.b16 %v4337
      %v4374 = vunpack.c.l.b16 %v4338
      %v4375 = vunpack.c.l.b16 %v4339
      %v4376 = vunpack.c.l.b16 %v4340
      %v4377 = vunpack.c.l.b16 %v4341
      %v4378 = vunpack.c.l.b16 %v4342
      %v4379 = vunpack.c.l.b16 %v4343
      %v4380 = vunpack.c.l.b16 %v4344
      %v4381 = vunpack.c.l.b16 %v4345
      %v4382 = vunpack.c.l.b16 %v4346
      %v4383 = vunpack.c.l.b16 %v4347
      %v4384 = vunpack.c.l.b16 %v4348
      %v4385 = vunpack.c.l.b16 %v4349
      %v4386 = vunpack.c.l.b16 %v4350
      %v4387 = vpack.c.b16 %v4372, %v4371
      %v4388 = vpack.c.b16 %v4374, %v4373
      %v4389 = vpack.c.b16 %v4376, %v4375
      %v4390 = vpack.c.b16 %v4378, %v4377
      %v4391 = vpack.c.b16 %v4380, %v4379
      %v4392 = vpack.c.b16 %v4382, %v4381
      %v4393 = vpack.c.b16 %v4384, %v4383
      %v4394 = vpack.c.b16 %v4386, %v4385
      %4403 = vmatpush.bf16.msra.mxu0 %v4394
      %4404 = vmatpush.bf16.msra.mxu0 %v4393
      %4405 = vmatpush.bf16.msra.mxu0 %v4392
      %4406 = vmatpush.bf16.msra.mxu0 %v4391
      %4407 = vmatpush.bf16.msra.mxu0 %v4390
      %4408 = vmatpush.bf16.msra.mxu0 %v4389
      %4409 = vmatpush.bf16.msra.mxu0 %v4388
      %4410 = vmatpush.bf16.msra.mxu0 %v4387
      %4411 = vmatmul.bf16.gmra.mxu0 %v3501
      %v4412 = vpop.f32.mrf.mxu0
      %v4413 = vadd.f32 0.0, %v4412
      %v4414 = vpop.f32.mrf.mxu0
      %v4415 = vadd.f32 0.0, %v4414
      %4416 = vmatmul.bf16.gmra.mxu0 %v3502
      %v4417 = vpop.f32.mrf.mxu0
      %v4418 = vadd.f32 0.0, %v4417
      %v4419 = vpop.f32.mrf.mxu0
      %v4420 = vadd.f32 0.0, %v4419
      %4421 = vmatmul.bf16.gmra.mxu0 %v3503
      %v4422 = vpop.f32.mrf.mxu0
      %v4423 = vadd.f32 0.0, %v4422
      %v4424 = vpop.f32.mrf.mxu0
      %v4425 = vadd.f32 0.0, %v4424
      %4426 = vmatmul.bf16.gmra.mxu0 %v4353
      %v4427 = vpop.f32.mrf.mxu0
      %v4428 = vadd.f32 0.0, %v4427
      %v4429 = vpop.f32.mrf.mxu0
      %v4430 = vadd.f32 0.0, %v4429
      %4431 = vdwg.mxu0
      %v4432 = vadd.f32 %v4326, %v4413
      %v4433 = vadd.f32 %v4327, %v4415
      %v4434 = vadd.f32 %v4328, %v4418
      %v4435 = vadd.f32 %v4329, %v4420
      %v4436 = vadd.f32 %v4330, %v4423
      %v4437 = vadd.f32 %v4331, %v4425
      %v4438 = vadd.f32 %v4332, %v4428
      %v4439 = vadd.f32 %v4333, %v4430
      %v4441 = vshrl.u32 %v3465, 16
      %v4443 = vrot.slane %v4441, 4
      %v4444 = vshll.u32 %v3465, 16
      %v4446 = vrot.slane %v4444, 5
      %v4447 = vor.u32 %v4443, %v4446
      %v4448 = vrot.slane %v4447, 4
      %v4450 = vshll.u32 %v3466, 16
      %v4452 = vrot.slane %v4450, 5
      %v4453 = vsel %vm698, %v4448, %v4452
      %s4454 = scalar_lea.vmem %s3, 1600
      %v4455 = vld [vmem:[%s4454] sm:$0xf]
      %v4456 = vld [vmem:[%s4454 + $0x4] sm:$0xf]
      %v4457 = vld [vmem:[%s4454 + $0x8] sm:$0xf]
      %v4458 = vld [vmem:[%s4454 + $0xc] sm:$0xf]
      %v4459 = vld [vmem:[%s4454 + $0x10] sm:$0xf]
      %v4460 = vld [vmem:[%s4454 + $0x14] sm:$0xf]
      %v4461 = vld [vmem:[%s4454 + $0x18] sm:$0xf]
      %v4462 = vld [vmem:[%s4454 + $0x1c] sm:$0xf]
      %v4463 = vld [vmem:[%s4454 + $0x20] sm:$0xf]
      %v4464 = vld [vmem:[%s4454 + $0x24] sm:$0xf]
      %v4465 = vld [vmem:[%s4454 + $0x28] sm:$0xf]
      %v4466 = vld [vmem:[%s4454 + $0x2c] sm:$0xf]
      %v4467 = vld [vmem:[%s4454 + $0x30] sm:$0xf]
      %v4468 = vld [vmem:[%s4454 + $0x34] sm:$0xf]
      %v4469 = vld [vmem:[%s4454 + $0x38] sm:$0xf]
      %v4470 = vld [vmem:[%s4454 + $0x3c] sm:$0xf]
      %v4471 = vunpack.c.l.b16 %v4453
      %v4472 = vpack.c.b16 %v4471, %v4124
      %v4490 = vunpack.c.l.b16 %v4455
      %v4491 = vunpack.c.l.b16 %v4456
      %v4492 = vunpack.c.l.b16 %v4457
      %v4493 = vunpack.c.l.b16 %v4458
      %v4494 = vunpack.c.l.b16 %v4459
      %v4495 = vunpack.c.l.b16 %v4460
      %v4496 = vunpack.c.l.b16 %v4461
      %v4497 = vunpack.c.l.b16 %v4462
      %v4498 = vunpack.c.l.b16 %v4463
      %v4499 = vunpack.c.l.b16 %v4464
      %v4500 = vunpack.c.l.b16 %v4465
      %v4501 = vunpack.c.l.b16 %v4466
      %v4502 = vunpack.c.l.b16 %v4467
      %v4503 = vunpack.c.l.b16 %v4468
      %v4504 = vunpack.c.l.b16 %v4469
      %v4505 = vunpack.c.l.b16 %v4470
      %v4506 = vpack.c.b16 %v4491, %v4490
      %v4507 = vpack.c.b16 %v4493, %v4492
      %v4508 = vpack.c.b16 %v4495, %v4494
      %v4509 = vpack.c.b16 %v4497, %v4496
      %v4510 = vpack.c.b16 %v4499, %v4498
      %v4511 = vpack.c.b16 %v4501, %v4500
      %v4512 = vpack.c.b16 %v4503, %v4502
      %v4513 = vpack.c.b16 %v4505, %v4504
      %4522 = vmatpush.bf16.msra.mxu0 %v4513
      %4523 = vmatpush.bf16.msra.mxu0 %v4512
      %4524 = vmatpush.bf16.msra.mxu0 %v4511
      %4525 = vmatpush.bf16.msra.mxu0 %v4510
      %4526 = vmatpush.bf16.msra.mxu0 %v4509
      %4527 = vmatpush.bf16.msra.mxu0 %v4508
      %4528 = vmatpush.bf16.msra.mxu0 %v4507
      %4529 = vmatpush.bf16.msra.mxu0 %v4506
      %4530 = vmatmul.bf16.gmra.mxu0 %v3731
      %v4531 = vpop.f32.mrf.mxu0
      %v4532 = vadd.f32 0.0, %v4531
      %v4533 = vpop.f32.mrf.mxu0
      %v4534 = vadd.f32 0.0, %v4533
      %4535 = vmatmul.bf16.gmra.mxu0 %v3732
      %v4536 = vpop.f32.mrf.mxu0
      %v4537 = vadd.f32 0.0, %v4536
      %v4538 = vpop.f32.mrf.mxu0
      %v4539 = vadd.f32 0.0, %v4538
      %4540 = vmatmul.bf16.gmra.mxu0 %v3733
      %v4541 = vpop.f32.mrf.mxu0
      %v4542 = vadd.f32 0.0, %v4541
      %v4543 = vpop.f32.mrf.mxu0
      %v4544 = vadd.f32 0.0, %v4543
      %4545 = vmatmul.bf16.gmra.mxu0 %v4472
      %v4546 = vpop.f32.mrf.mxu0
      %v4547 = vadd.f32 0.0, %v4546
      %v4548 = vpop.f32.mrf.mxu0
      %v4549 = vadd.f32 0.0, %v4548
      %4550 = vdwg.mxu0
      %v4551 = vadd.f32 %v4432, %v4532
      %v4552 = vadd.f32 %v4433, %v4534
      %v4553 = vadd.f32 %v4434, %v4537
      %v4554 = vadd.f32 %v4435, %v4539
      %v4555 = vadd.f32 %v4436, %v4542
      %v4556 = vadd.f32 %v4437, %v4544
      %v4557 = vadd.f32 %v4438, %v4547
      %v4558 = vadd.f32 %v4439, %v4549
      %v4560 = vrot.slane %v3465, 5
      %v4561 = vrot.slane %v4560, 4
      %v4562 = vrot.slane %v3466, 5
      %v4563 = vsel %vm1032, %v4561, %v4562
      %s4564 = scalar_lea.vmem %s3, 1664
      %v4565 = vld [vmem:[%s4564] sm:$0xf]
      %v4566 = vld [vmem:[%s4564 + $0x4] sm:$0xf]
      %v4567 = vld [vmem:[%s4564 + $0x8] sm:$0xf]
      %v4568 = vld [vmem:[%s4564 + $0xc] sm:$0xf]
      %v4569 = vld [vmem:[%s4564 + $0x10] sm:$0xf]
      %v4570 = vld [vmem:[%s4564 + $0x14] sm:$0xf]
      %v4571 = vld [vmem:[%s4564 + $0x18] sm:$0xf]
      %v4572 = vld [vmem:[%s4564 + $0x1c] sm:$0xf]
      %v4573 = vld [vmem:[%s4564 + $0x20] sm:$0xf]
      %v4574 = vld [vmem:[%s4564 + $0x24] sm:$0xf]
      %v4575 = vld [vmem:[%s4564 + $0x28] sm:$0xf]
      %v4576 = vld [vmem:[%s4564 + $0x2c] sm:$0xf]
      %v4577 = vld [vmem:[%s4564 + $0x30] sm:$0xf]
      %v4578 = vld [vmem:[%s4564 + $0x34] sm:$0xf]
      %v4579 = vld [vmem:[%s4564 + $0x38] sm:$0xf]
      %v4580 = vld [vmem:[%s4564 + $0x3c] sm:$0xf]
      %v4581 = vunpack.c.l.b16 %v4563
      %v4582 = vpack.c.b16 %v4581, %v4240
      %v4600 = vunpack.c.l.b16 %v4565
      %v4601 = vunpack.c.l.b16 %v4566
      %v4602 = vunpack.c.l.b16 %v4567
      %v4603 = vunpack.c.l.b16 %v4568
      %v4604 = vunpack.c.l.b16 %v4569
      %v4605 = vunpack.c.l.b16 %v4570
      %v4606 = vunpack.c.l.b16 %v4571
      %v4607 = vunpack.c.l.b16 %v4572
      %v4608 = vunpack.c.l.b16 %v4573
      %v4609 = vunpack.c.l.b16 %v4574
      %v4610 = vunpack.c.l.b16 %v4575
      %v4611 = vunpack.c.l.b16 %v4576
      %v4612 = vunpack.c.l.b16 %v4577
      %v4613 = vunpack.c.l.b16 %v4578
      %v4614 = vunpack.c.l.b16 %v4579
      %v4615 = vunpack.c.l.b16 %v4580
      %v4616 = vpack.c.b16 %v4601, %v4600
      %v4617 = vpack.c.b16 %v4603, %v4602
      %v4618 = vpack.c.b16 %v4605, %v4604
      %v4619 = vpack.c.b16 %v4607, %v4606
      %v4620 = vpack.c.b16 %v4609, %v4608
      %v4621 = vpack.c.b16 %v4611, %v4610
      %v4622 = vpack.c.b16 %v4613, %v4612
      %v4623 = vpack.c.b16 %v4615, %v4614
      %4632 = vmatpush.bf16.msra.mxu0 %v4623
      %4633 = vmatpush.bf16.msra.mxu0 %v4622
      %4634 = vmatpush.bf16.msra.mxu0 %v4621
      %4635 = vmatpush.bf16.msra.mxu0 %v4620
      %4636 = vmatpush.bf16.msra.mxu0 %v4619
      %4637 = vmatpush.bf16.msra.mxu0 %v4618
      %4638 = vmatpush.bf16.msra.mxu0 %v4617
      %4639 = vmatpush.bf16.msra.mxu0 %v4616
      %4640 = vmatmul.bf16.gmra.mxu0 %v3889
      %v4641 = vpop.f32.mrf.mxu0
      %v4642 = vadd.f32 0.0, %v4641
      %v4643 = vpop.f32.mrf.mxu0
      %v4644 = vadd.f32 0.0, %v4643
      %4645 = vmatmul.bf16.gmra.mxu0 %v3890
      %v4646 = vpop.f32.mrf.mxu0
      %v4647 = vadd.f32 0.0, %v4646
      %v4648 = vpop.f32.mrf.mxu0
      %v4649 = vadd.f32 0.0, %v4648
      %4650 = vmatmul.bf16.gmra.mxu0 %v3891
      %v4651 = vpop.f32.mrf.mxu0
      %v4652 = vadd.f32 0.0, %v4651
      %v4653 = vpop.f32.mrf.mxu0
      %v4654 = vadd.f32 0.0, %v4653
      %4655 = vmatmul.bf16.gmra.mxu0 %v4582
      %v4656 = vpop.f32.mrf.mxu0
      %v4657 = vadd.f32 0.0, %v4656
      %v4658 = vpop.f32.mrf.mxu0
      %v4659 = vadd.f32 0.0, %v4658
      %4660 = vdwg.mxu0
      %v4661 = vadd.f32 %v4551, %v4642
      %v4662 = vadd.f32 %v4552, %v4644
      %v4663 = vadd.f32 %v4553, %v4647
      %v4664 = vadd.f32 %v4554, %v4649
      %v4665 = vadd.f32 %v4555, %v4652
      %v4666 = vadd.f32 %v4556, %v4654
      %v4667 = vadd.f32 %v4557, %v4657
      %v4668 = vadd.f32 %v4558, %v4659
      %v4669 = vpack.c.bf16 %v4661, %v4661
      %v4670 = vpack.c.bf16 %v4662, %v4662
      %v4671 = vpack.c.bf16 %v4663, %v4663
      %v4672 = vpack.c.bf16 %v4664, %v4664
      %v4673 = vpack.c.bf16 %v4665, %v4665
      %v4674 = vpack.c.bf16 %v4666, %v4666
      %v4675 = vpack.c.bf16 %v4667, %v4667
      %v4676 = vpack.c.bf16 %v4668, %v4668
      %4677 = vst [vmem:[%s446] sm:$0xf] %v4669
      %4678 = vst [vmem:[%s446 + $0x4] sm:$0xf] %v4670
      %4679 = vst [vmem:[%s446 + $0x8] sm:$0xf] %v4671
      %4680 = vst [vmem:[%s446 + $0xc] sm:$0xf] %v4672
      %4681 = vst [vmem:[%s446 + $0x10] sm:$0xf] %v4673
      %4682 = vst [vmem:[%s446 + $0x14] sm:$0xf] %v4674
      %4683 = vst [vmem:[%s446 + $0x18] sm:$0xf] %v4675
      %4684 = vst [vmem:[%s446 + $0x1c] sm:$0xf] %v4676
      %v4685 = vadd.f32 %v4661, %v4662
      %v4686 = vadd.f32 %v4685, %v4663
      %v4687 = vadd.f32 %v4686, %v4664
      %v4688 = vadd.f32 %v4687, %v4665
      %v4689 = vadd.f32 %v4688, %v4666
      %v4690 = vadd.f32 %v4689, %v4667
      %v4691 = vadd.f32 %v4690, %v4668
      %v4692 = vrot.slane %v4691, 4
      %v4693 = vadd.f32 %v4691, %v4692
      %v4694 = vrot.slane %v4693, 2
      %v4695 = vadd.f32 %v4693, %v4694
      %v4696 = vrot.slane %v4695, 1
      %v4697 = vadd.f32 %v4695, %v4696
      %4698 = vst [vmem:[%s453] sm:$0x1] %v4697
      %v4699 = vmul.f32 %v4661, %v4661
      %v4700 = vmul.f32 %v4662, %v4662
      %v4701 = vmul.f32 %v4663, %v4663
      %v4702 = vmul.f32 %v4664, %v4664
      %v4703 = vmul.f32 %v4665, %v4665
      %v4704 = vmul.f32 %v4666, %v4666
      %v4705 = vmul.f32 %v4667, %v4667
      %v4706 = vmul.f32 %v4668, %v4668
      %v4707 = vadd.f32 %v4699, %v4700
      %v4708 = vadd.f32 %v4707, %v4701
      %v4709 = vadd.f32 %v4708, %v4702
      %v4710 = vadd.f32 %v4709, %v4703
      %v4711 = vadd.f32 %v4710, %v4704
      %v4712 = vadd.f32 %v4711, %v4705
      %v4713 = vadd.f32 %v4712, %v4706
      %v4714 = vrot.slane %v4713, 4
      %v4715 = vadd.f32 %v4713, %v4714
      %v4716 = vrot.slane %v4715, 2
      %v4717 = vadd.f32 %v4715, %v4716
      %v4718 = vrot.slane %v4717, 1
      %v4719 = vadd.f32 %v4717, %v4718
      %4720 = vst [vmem:[%s460] sm:$0x1] %v4719
      %p4721 = scmp.lt.s32.totalorder %s24, 1
      %s4722 = scalar_select %p4721, %s24, 1
      %p4723 = scmp.lt.s32.totalorder %s25, 7
      %s4724 = scalar_select %p4723, %s25, 7
      %s4725 = smul.addr %s4724, 8
      %s4726 = smul.addr %s4722, 64
      %s4727 = sadd.s32 %s4725, %s4726
      %s4728 = smul.addr %s4727, 4
      %s4729 = scalar_lea.vmem %s6, %s4728
      %p4730 = scmp.lt.s32.totalorder %s24, 1
      %s4731 = scalar_select %p4730, %s24, 1
      %p4732 = scmp.lt.s32.totalorder %s25, 7
      %s4733 = scalar_select %p4732, %s25, 7
      %s4734 = smul.addr %s4731, 8
      %s4735 = sadd.s32 %s4733, %s4734
      %s4736 = scalar_lea.vmem %s7, %s4735
      %p4737 = scmp.lt.s32.totalorder %s24, 1
      %s4738 = scalar_select %p4737, %s24, 1
      %p4739 = scmp.lt.s32.totalorder %s25, 7
      %s4740 = scalar_select %p4739, %s25, 7
      %s4741 = smul.addr %s4738, 8
      %s4742 = sadd.s32 %s4740, %s4741
      %s4743 = scalar_lea.vmem %s8, %s4742
      // Predicated region
      $region45: #{conv_block_forward.4} parent=43 // pred_check
        %p4744 = pneg %p203
      $region46: #{conv_block_forward.4} parent=43 // pred_check_branch
        %4746 = sbr.rel (%p4744) target = $region48
      $region47: #{conv_block_forward.4} parent=43 // pred_region
        _
      $region48: #{conv_block_forward.4} parent=43 // pred_fallthru
        _
      // Predicated region
      $region49: #{conv_block_forward.4} parent=43 // pred_check
        %p4747 = pneg %p231
      $region50: #{conv_block_forward.4} parent=43 // pred_check_branch
        %4749 = sbr.rel (%p4747) target = $region52
      $region51: #{conv_block_forward.4} parent=43 // pred_region
        _
      $region52: #{conv_block_forward.4} parent=43 // pred_fallthru
        _
      // Predicated region
      $region53: #{conv_block_forward.4} parent=43 // pred_check
        %p4750 = pneg %p259
      $region54: #{conv_block_forward.4} parent=43 // pred_check_branch
        %4752 = sbr.rel (%p4750) target = $region56
      $region55: #{conv_block_forward.4} parent=43 // pred_region
        _
      $region56: #{conv_block_forward.4} parent=43 // pred_fallthru
        _
    $region44: #{conv_block_forward.4} parent=5 // pred_fallthru
      _
    %p4753 = scmp.le.s32.totalorder 2, %s15
    // Predicated region
    $region57: #{conv_block_forward.4} parent=5 // pred_check
      %p4754 = pneg %p4753
    $region58: #{conv_block_forward.4} parent=5 // pred_check_branch
      %4756 = sbr.rel (%p4754) target = $region60
    $region59: #{conv_block_forward.4} parent=5 // pred_region
      %s4757 = ssub.s32 %s15, 2
      // Predicated region
      $region61: #{conv_block_forward.4} parent=59 // pred_check
        %p4758 = pneg %p209
      $region62: #{conv_block_forward.4} parent=59 // pred_check_branch
        %4760 = sbr.rel (%p4758) target = $region64
      $region63: #{conv_block_forward.4} parent=59 // pred_region
        %p4761 = scmp.lt.s32.totalorder %s26, 1
        %s4762 = scalar_select %p4761, %s26, 1
        %p4763 = scmp.lt.s32.totalorder %s27, 7
        %s4764 = scalar_select %p4763, %s27, 7
        %s4765 = smul.addr %s4764, 8
        %s4766 = smul.addr %s4762, 64
        %s4767 = sadd.s32 %s4765, %s4766
        %s4768 = smul.addr %s4767, 4
        %s4769 = scalar_lea.vmem %s6, %s4768
      $region64: #{conv_block_forward.4} parent=59 // pred_fallthru
        _
      // Predicated region
      $region65: #{conv_block_forward.4} parent=59 // pred_check
        %p4770 = pneg %p237
      $region66: #{conv_block_forward.4} parent=59 // pred_check_branch
        %4772 = sbr.rel (%p4770) target = $region68
      $region67: #{conv_block_forward.4} parent=59 // pred_region
        %p4773 = scmp.lt.s32.totalorder %s26, 1
        %s4774 = scalar_select %p4773, %s26, 1
        %p4775 = scmp.lt.s32.totalorder %s27, 7
        %s4776 = scalar_select %p4775, %s27, 7
        %s4777 = smul.addr %s4774, 8
        %s4778 = sadd.s32 %s4776, %s4777
        %s4779 = scalar_lea.vmem %s7, %s4778
      $region68: #{conv_block_forward.4} parent=59 // pred_fallthru
        _
      // Predicated region
      $region69: #{conv_block_forward.4} parent=59 // pred_check
        %p4780 = pneg %p265
      $region70: #{conv_block_forward.4} parent=59 // pred_check_branch
        %4782 = sbr.rel (%p4780) target = $region72
      $region71: #{conv_block_forward.4} parent=59 // pred_region
        %p4783 = scmp.lt.s32.totalorder %s26, 1
        %s4784 = scalar_select %p4783, %s26, 1
        %p4785 = scmp.lt.s32.totalorder %s27, 7
        %s4786 = scalar_select %p4785, %s27, 7
        %s4787 = smul.addr %s4784, 8
        %s4788 = sadd.s32 %s4786, %s4787
        %s4789 = scalar_lea.vmem %s8, %s4788
      $region72: #{conv_block_forward.4} parent=59 // pred_fallthru
        _
    $region60: #{conv_block_forward.4} parent=5 // pred_fallthru
      _
  $region6: #{conv_block_forward.4} parent=0 // loop_footer
    %s19 = sadd.s32 1, %s15
  $region7: #{conv_block_forward.4} parent=0 // loop_footer_branch
    %14 = sbr.rel target = $region3
  $region8: #{conv_block_forward.4} parent=0 // loop_exit
    _

</llo_original>
